<compile_context>
chip_gen: v7x
topology: tpu7x:2x2x1
jax: 0.10.0
libtpu: 0.0.40
codegen_flags: <defaults>
</compile_context>

<pallas_src>
import jax
import jax.numpy as jnp
from jax.experimental import pallas as pl
from jax.experimental.pallas import tpu as pltpu

INPUT_DIM = 30        # breast-cancer dataset feature count
D_MODEL = 64
NHEAD = 4             # heads never mix features here (softmax over 1 key == 1)
NUM_LAYERS = 3
DIM_FF = 2048         # PyTorch TransformerEncoderLayer default
LN_EPS = 1e-5

MAX_BATCH_TILE = 256  # fills MXU M on v6e/v7x; ~6 MiB live, safe for v5e default


def _round_up(n, m):
    return ((n + m - 1) // m) * m


def _layernorm(y, gamma, beta):
    mu = jnp.mean(y, axis=-1, keepdims=True)
    var = jnp.mean((y - mu) * (y - mu), axis=-1, keepdims=True)
    return (y - mu) * jax.lax.rsqrt(var + LN_EPS) * gamma + beta


def transformer_kernel(x_ref, emb_w_ref, emb_b_ref,
                       attn_w_ref, attn_b_ref,
                       lin1_w_ref, lin1_b_ref, lin2_w_ref, lin2_b_ref,
                       ln1_g_ref, ln1_b_ref, ln2_g_ref, ln2_b_ref,
                       fc_w_ref, fc_b_ref,
                       o_ref):
    """Grid = (batch_tile i [parallel],).  All weights are VMEM-resident.

    The 3 encoder layers are statically unrolled; per-layer weights are read
    with static leading-axis indices from the stacked (L, ...) refs.
    """
    # ---- embedding: (TB, 30) @ (30, 64) + b ----
    h = (jnp.dot(x_ref[...], emb_w_ref[...],
                 preferred_element_type=jnp.float32)
         + emb_b_ref[...])                                           # (TB, 64) f32

    for l in range(NUM_LAYERS):
        # ---- self-attention, folded: softmax over one key == 1 exactly, so
        #      attn(h) = h @ (W_v^T W_out^T) + (b_v W_out^T + b_out) ----
        attn = (jnp.dot(h.astype(jnp.bfloat16), attn_w_ref[l],
                        preferred_element_type=jnp.float32)
                + attn_b_ref[l])                                      # (TB, 64)
        h = _layernorm(h + attn, ln1_g_ref[l], ln1_b_ref[l])

        # ---- feed-forward: linear2(relu(linear1(h))), bf16 weights, f32 acc ----
        ff1 = (jnp.dot(h.astype(jnp.bfloat16), lin1_w_ref[l],
                       preferred_element_type=jnp.float32)
               + lin1_b_ref[l])                                       # (TB, 2048)
        ff1 = jnp.maximum(ff1, 0.0)
        ff2 = (jnp.dot(ff1.astype(jnp.bfloat16), lin2_w_ref[l],
                       preferred_element_type=jnp.float32)
               + lin2_b_ref[l])                                       # (TB, 64)
        h = _layernorm(h + ff2, ln2_g_ref[l], ln2_b_ref[l])

    # ---- classifier head + sigmoid, lane-dense (fc padded to 128 columns;
    #      real logits live in column 0, the rest are sliced off outside) ----
    logits = (jnp.dot(h, fc_w_ref[...],
                      preferred_element_type=jnp.float32)
              + fc_b_ref[...])                                        # (TB, 128)
    o_ref[...] = jax.nn.sigmoid(logits)


def prepare_params(p):
    """Fold V+out_proj, cast big weights to bf16, pad the head to 128 lanes."""
    D = D_MODEL
    vw = p["in_w"][:, :, 2 * D:3 * D]                    # (L, D, D)  = W_v^T
    vb = p["in_b"][:, 2 * D:3 * D]                       # (L, D)     = b_v
    attn_w = jnp.einsum("lij,ljk->lik", vw, p["out_w"])  # (L, D, D)
    attn_b = jnp.einsum("lj,ljk->lk", vb, p["out_w"]) + p["out_b"]

    # Lane-dense classifier head: real weights/bias in column 0, zeros elsewhere.
    fc_w_pad = jnp.zeros((D, 128), jnp.float32).at[:, 0:1].set(p["fc_w"])
    fc_b_pad = jnp.zeros((1, 128), jnp.float32).at[:, 0:1].set(p["fc_b"])

    return {
        "emb_w": p["emb_w"],
        "emb_b": p["emb_b"],
        "attn_w": attn_w.astype(jnp.bfloat16),
        "attn_b": attn_b[:, None, :],
        "lin1_w": p["lin1_w"].astype(jnp.bfloat16),
        "lin1_b": p["lin1_b"][:, None, :],
        "lin2_w": p["lin2_w"].astype(jnp.bfloat16),
        "lin2_b": p["lin2_b"][:, None, :],
        "ln1_g": p["ln1_g"][:, None, :],
        "ln1_b": p["ln1_b"][:, None, :],
        "ln2_g": p["ln2_g"][:, None, :],
        "ln2_b": p["ln2_b"][:, None, :],
        "fc_w": fc_w_pad,
        "fc_b": fc_b_pad,
    }


def _choose_batch_tile(B):
    """Tile size: sublane-aligned, <= MAX_BATCH_TILE, and >= 2 tiles when the
    batch is big enough so the parallel axis can shard across v7x's 2 cores."""
    b8 = _round_up(B, 8)
    if b8 < 16:
        return b8
    half = _round_up((b8 + 1) // 2, 8)
    return min(MAX_BATCH_TILE, half)


def transformer_forward(x, kernel_params):
    B = x.shape[0]
    D, F, L = D_MODEL, DIM_FF, NUM_LAYERS

    TB = _choose_batch_tile(B)
    Bp = _round_up(B, TB)
    if Bp != B:
        x = jnp.pad(x, ((0, Bp - B), (0, 0)))
    n_bt = Bp // TB

    kp = kernel_params
    args = (x,
            kp["emb_w"], kp["emb_b"],
            kp["attn_w"], kp["attn_b"],
            kp["lin1_w"], kp["lin1_b"],
            kp["lin2_w"], kp["lin2_b"],
            kp["ln1_g"], kp["ln1_b"],
            kp["ln2_g"], kp["ln2_b"],
            kp["fc_w"], kp["fc_b"])

    const2 = lambda i: (0, 0)       # resident (full array, constant block index)
    const3 = lambda i: (0, 0, 0)
    in_specs = [
        pl.BlockSpec((TB, INPUT_DIM), lambda i: (i, 0)),      # x
        pl.BlockSpec((INPUT_DIM, D), const2),                 # emb_w
        pl.BlockSpec((1, D), const2),                         # emb_b
        pl.BlockSpec((L, D, D), const3),                      # attn_w (bf16)
        pl.BlockSpec((L, 1, D), const3),                      # attn_b
        pl.BlockSpec((L, D, F), const3),                      # lin1_w (bf16)
        pl.BlockSpec((L, 1, F), const3),                      # lin1_b
        pl.BlockSpec((L, F, D), const3),                      # lin2_w (bf16)
        pl.BlockSpec((L, 1, D), const3),                      # lin2_b
        pl.BlockSpec((L, 1, D), const3),                      # ln1_g
        pl.BlockSpec((L, 1, D), const3),                      # ln1_b
        pl.BlockSpec((L, 1, D), const3),                      # ln2_g
        pl.BlockSpec((L, 1, D), const3),                      # ln2_b
        pl.BlockSpec((D, 128), const2),                       # fc_w (lane-padded)
        pl.BlockSpec((1, 128), const2),                       # fc_b (lane-padded)
    ]
    # Lane-dense output block: unmasked vst; real result is column 0.
    out_spec = pl.BlockSpec((TB, 128), lambda i: (i, 0))

    out = pl.pallas_call(
        transformer_kernel,
        out_shape=jax.ShapeDtypeStruct((Bp, 128), jnp.float32),
        grid_spec=pltpu.PrefetchScalarGridSpec(
            num_scalar_prefetch=0,
            grid=(n_bt,),
            in_specs=in_specs,
            out_specs=out_spec,
        ),
        compiler_params=pltpu.CompilerParams(
            dimension_semantics=("parallel",)),
    )(*args)
    return out[:B, 0:1]


def init_params(key):
    """Deterministic PyTorch-style (uniform +/- 1/sqrt(fan_in)) initialization."""
    ks = jax.random.split(key, 12)

    def u(k, shape, fan_in):
        bound = 1.0 / jnp.sqrt(jnp.float32(fan_in))
        return jax.random.uniform(k, shape, jnp.float32, -bound, bound)

    L, D, F = NUM_LAYERS, D_MODEL, DIM_FF
    return {
        "emb_w": u(ks[0], (INPUT_DIM, D), INPUT_DIM),        # (30, 64) = W_emb^T
        "emb_b": u(ks[1], (1, D), INPUT_DIM),
        "in_w": u(ks[2], (L, D, 3 * D), D),                  # stacked in_proj^T
        "in_b": u(ks[3], (L, 3 * D), D),
        "out_w": u(ks[4], (L, D, D), D),                     # stacked out_proj^T
        "out_b": u(ks[5], (L, D), D),
        "lin1_w": u(ks[6], (L, D, F), D),
        "lin1_b": u(ks[7], (L, F), D),
        "lin2_w": u(ks[8], (L, F, D), F),
        "lin2_b": u(ks[9], (L, D), F),
        "ln1_g": jnp.ones((L, D), jnp.float32),
        "ln1_b": jnp.zeros((L, D), jnp.float32),
        "ln2_g": jnp.ones((L, D), jnp.float32),
        "ln2_b": jnp.zeros((L, D), jnp.float32),
        "fc_w": u(ks[10], (D, 1), D),
        "fc_b": u(ks[11], (1, 1), D),
    }


def reference_forward(x, p):
    """Pure-JAX f32 reference on the RAW (unfolded) params for a sanity check."""
    h = x @ p["emb_w"] + p["emb_b"]
    for l in range(NUM_LAYERS):
        qkv = h @ p["in_w"][l] + p["in_b"][l]
        v = qkv[:, 2 * D_MODEL:3 * D_MODEL]        # softmax over 1 key == 1
        attn = v @ p["out_w"][l] + p["out_b"][l]
        h = _layernorm(h + attn, p["ln1_g"][l], p["ln1_b"][l])
        ff = jnp.maximum(h @ p["lin1_w"][l] + p["lin1_b"][l], 0.0)
        ff = ff @ p["lin2_w"][l] + p["lin2_b"][l]
        h = _layernorm(h + ff, p["ln2_g"][l], p["ln2_b"][l])
    return jax.nn.sigmoid(h @ p["fc_w"] + p["fc_b"])


if __name__ == "__main__":
    key = jax.random.PRNGKey(0)
    k_x, k_p = jax.random.split(key)

    B = 8
    x = jax.random.normal(k_x, (B, INPUT_DIM), jnp.float32)   # standardized features
    raw_params = init_params(k_p)
    kernel_params = prepare_params(raw_params)

    out = transformer_forward(x, kernel_params)
    out = jax.block_until_ready(out)

    ref = jax.block_until_ready(reference_forward(x, raw_params))
    assert out.shape == (B, 1)
    assert jnp.all(jnp.isfinite(out))
    # bf16 weights + folded attention: slightly looser tolerance than pure f32.
    assert jnp.allclose(out, ref, atol=2e-2, rtol=2e-2), (
        f"max abs err {jnp.max(jnp.abs(out - ref))}")

    print("KERNEL_OK")
</pallas_src>

<mosaic_0001>
module attributes {stable_mosaic.version = 11 : i64} {
  func.func @transformer_kernel(%arg0: i32, %arg1: memref<8x30xf32, #tpu.memory_space<vmem>>, %arg2: memref<30x64xf32, #tpu.memory_space<vmem>>, %arg3: memref<1x64xf32, #tpu.memory_space<vmem>>, %arg4: memref<3x64x64xbf16, #tpu.memory_space<vmem>>, %arg5: memref<3x1x64xf32, #tpu.memory_space<vmem>>, %arg6: memref<3x64x2048xbf16, #tpu.memory_space<vmem>>, %arg7: memref<3x1x2048xf32, #tpu.memory_space<vmem>>, %arg8: memref<3x2048x64xbf16, #tpu.memory_space<vmem>>, %arg9: memref<3x1x64xf32, #tpu.memory_space<vmem>>, %arg10: memref<3x1x64xf32, #tpu.memory_space<vmem>>, %arg11: memref<3x1x64xf32, #tpu.memory_space<vmem>>, %arg12: memref<3x1x64xf32, #tpu.memory_space<vmem>>, %arg13: memref<3x1x64xf32, #tpu.memory_space<vmem>>, %arg14: memref<64x128xf32, #tpu.memory_space<vmem>>, %arg15: memref<1x128xf32, #tpu.memory_space<vmem>>, %arg16: memref<8x128xf32, #tpu.memory_space<vmem>>) attributes {dimension_semantics = [#tpu.dimension_semantics<parallel>], iteration_bounds = array<i64: 1>, scalar_prefetch = 0 : i64, scratch_operands = 0 : i64, tpu.core_type = #tpu.core_type<tc>, window_params = [{transform_indices = @transform_0, window_bounds = array<i64: 8, 30>}, {pipeline_mode = #tpu.pipeline_mode<synchronous>, transform_indices = @transform_1, window_bounds = array<i64: 30, 64>}, {pipeline_mode = #tpu.pipeline_mode<synchronous>, transform_indices = @transform_2, window_bounds = array<i64: 1, 64>}, {pipeline_mode = #tpu.pipeline_mode<synchronous>, transform_indices = @transform_3, window_bounds = array<i64: 3, 64, 64>}, {pipeline_mode = #tpu.pipeline_mode<synchronous>, transform_indices = @transform_4, window_bounds = array<i64: 3, 1, 64>}, {pipeline_mode = #tpu.pipeline_mode<synchronous>, transform_indices = @transform_5, window_bounds = array<i64: 3, 64, 2048>}, {pipeline_mode = #tpu.pipeline_mode<synchronous>, transform_indices = @transform_6, window_bounds = array<i64: 3, 1, 2048>}, {pipeline_mode = #tpu.pipeline_mode<synchronous>, transform_indices = @transform_7, window_bounds = array<i64: 3, 2048, 64>}, {pipeline_mode = #tpu.pipeline_mode<synchronous>, transform_indices = @transform_8, window_bounds = array<i64: 3, 1, 64>}, {pipeline_mode = #tpu.pipeline_mode<synchronous>, transform_indices = @transform_9, window_bounds = array<i64: 3, 1, 64>}, {pipeline_mode = #tpu.pipeline_mode<synchronous>, transform_indices = @transform_10, window_bounds = array<i64: 3, 1, 64>}, {pipeline_mode = #tpu.pipeline_mode<synchronous>, transform_indices = @transform_11, window_bounds = array<i64: 3, 1, 64>}, {pipeline_mode = #tpu.pipeline_mode<synchronous>, transform_indices = @transform_12, window_bounds = array<i64: 3, 1, 64>}, {pipeline_mode = #tpu.pipeline_mode<synchronous>, transform_indices = @transform_13, window_bounds = array<i64: 64, 128>}, {pipeline_mode = #tpu.pipeline_mode<synchronous>, transform_indices = @transform_14, window_bounds = array<i64: 1, 128>}, {transform_indices = @transform_15, window_bounds = array<i64: 8, 128>}]} {
    %c0 = arith.constant 0 : index
    %c0_0 = arith.constant 0 : index
    %0 = vector.load %arg1[%c0, %c0_0] : memref<8x30xf32, #tpu.memory_space<vmem>>, vector<8x30xf32>
    %c0_1 = arith.constant 0 : index
    %c0_2 = arith.constant 0 : index
    %1 = vector.load %arg2[%c0_1, %c0_2] : memref<30x64xf32, #tpu.memory_space<vmem>>, vector<30x64xf32>
    %cst = arith.constant dense<0.000000e+00> : vector<8x64xf32>
    %2 = tpu.matmul %0, %1, %cst {dimension_numbers = #tpu.dot_dimension_numbers<[1], [0], [0], [1], [0, 0, 1, 1], [], []>} : vector<8x30xf32>, vector<30x64xf32>, vector<8x64xf32> -> vector<8x64xf32>
    %c0_3 = arith.constant 0 : index
    %c0_4 = arith.constant 0 : index
    %3 = vector.load %arg3[%c0_3, %c0_4] : memref<1x64xf32, #tpu.memory_space<vmem>>, vector<1x64xf32>
    %4 = vector.broadcast %3 : vector<1x64xf32> to vector<8x64xf32>
    %5 = arith.addf %2, %4 : vector<8x64xf32>
    %6 = arith.truncf %5 : vector<8x64xf32> to vector<8x64xbf16>
    %c0_5 = arith.constant 0 : index
    %c0_6 = arith.constant 0 : index
    %c0_7 = arith.constant 0 : index
    %7 = vector.load %arg4[%c0_5, %c0_6, %c0_7] : memref<3x64x64xbf16, #tpu.memory_space<vmem>>, vector<1x64x64xbf16>
    %8 = vector.shape_cast %7 : vector<1x64x64xbf16> to vector<64x64xbf16>
    %cst_8 = arith.constant dense<0.000000e+00> : vector<8x64xf32>
    %9 = tpu.matmul %6, %8, %cst_8 {dimension_numbers = #tpu.dot_dimension_numbers<[1], [0], [0], [1], [0, 0, 1, 1], [], []>} : vector<8x64xbf16>, vector<64x64xbf16>, vector<8x64xf32> -> vector<8x64xf32>
    %c0_9 = arith.constant 0 : index
    %c0_10 = arith.constant 0 : index
    %c0_11 = arith.constant 0 : index
    %10 = vector.load %arg5[%c0_9, %c0_10, %c0_11] : memref<3x1x64xf32, #tpu.memory_space<vmem>>, vector<1x1x64xf32>
    %11 = vector.shape_cast %10 : vector<1x1x64xf32> to vector<1x64xf32>
    %12 = vector.broadcast %11 : vector<1x64xf32> to vector<8x64xf32>
    %13 = arith.addf %9, %12 : vector<8x64xf32>
    %14 = arith.addf %5, %13 : vector<8x64xf32>
    %c0_12 = arith.constant 0 : index
    %c0_13 = arith.constant 0 : index
    %c0_14 = arith.constant 0 : index
    %15 = vector.load %arg10[%c0_12, %c0_13, %c0_14] : memref<3x1x64xf32, #tpu.memory_space<vmem>>, vector<1x1x64xf32>
    %16 = vector.shape_cast %15 : vector<1x1x64xf32> to vector<1x64xf32>
    %c0_15 = arith.constant 0 : index
    %c0_16 = arith.constant 0 : index
    %c0_17 = arith.constant 0 : index
    %17 = vector.load %arg11[%c0_15, %c0_16, %c0_17] : memref<3x1x64xf32, #tpu.memory_space<vmem>>, vector<1x1x64xf32>
    %18 = vector.shape_cast %17 : vector<1x1x64xf32> to vector<1x64xf32>
    %cst_18 = arith.constant dense<0.000000e+00> : vector<8xf32>
    %19 = vector.multi_reduction <add>, %14, %cst_18 [1] : vector<8x64xf32> to vector<8xf32>
    %20 = vector.shape_cast %19 : vector<8xf32> to vector<8x1xf32>
    %cst_19 = arith.constant 6.400000e+01 : f32
    %21 = vector.broadcast %cst_19 : f32 to vector<8x1xf32>
    %22 = arith.divf %20, %21 : vector<8x1xf32>
    %23 = vector.broadcast %22 : vector<8x1xf32> to vector<8x64xf32>
    %24 = arith.subf %14, %23 : vector<8x64xf32>
    %25 = vector.broadcast %22 : vector<8x1xf32> to vector<8x64xf32>
    %26 = arith.subf %14, %25 : vector<8x64xf32>
    %27 = arith.mulf %24, %26 : vector<8x64xf32>
    %cst_20 = arith.constant dense<0.000000e+00> : vector<8xf32>
    %28 = vector.multi_reduction <add>, %27, %cst_20 [1] : vector<8x64xf32> to vector<8xf32>
    %29 = vector.shape_cast %28 : vector<8xf32> to vector<8x1xf32>
    %cst_21 = arith.constant 6.400000e+01 : f32
    %30 = vector.broadcast %cst_21 : f32 to vector<8x1xf32>
    %31 = arith.divf %29, %30 : vector<8x1xf32>
    %32 = vector.broadcast %22 : vector<8x1xf32> to vector<8x64xf32>
    %33 = arith.subf %14, %32 : vector<8x64xf32>
    %cst_22 = arith.constant 9.99999974E-6 : f32
    %34 = vector.broadcast %cst_22 : f32 to vector<8x1xf32>
    %35 = arith.addf %31, %34 : vector<8x1xf32>
    %36 = math.rsqrt %35 : vector<8x1xf32>
    %37 = vector.broadcast %36 : vector<8x1xf32> to vector<8x64xf32>
    %38 = arith.mulf %33, %37 : vector<8x64xf32>
    %39 = vector.broadcast %16 : vector<1x64xf32> to vector<8x64xf32>
    %40 = arith.mulf %38, %39 : vector<8x64xf32>
    %41 = vector.broadcast %18 : vector<1x64xf32> to vector<8x64xf32>
    %42 = arith.addf %40, %41 : vector<8x64xf32>
    %43 = arith.truncf %42 : vector<8x64xf32> to vector<8x64xbf16>
    %c0_23 = arith.constant 0 : index
    %c0_24 = arith.constant 0 : index
    %c0_25 = arith.constant 0 : index
    %44 = vector.load %arg6[%c0_23, %c0_24, %c0_25] : memref<3x64x2048xbf16, #tpu.memory_space<vmem>>, vector<1x64x2048xbf16>
    %45 = vector.shape_cast %44 : vector<1x64x2048xbf16> to vector<64x2048xbf16>
    %cst_26 = arith.constant dense<0.000000e+00> : vector<8x2048xf32>
    %46 = tpu.matmul %43, %45, %cst_26 {dimension_numbers = #tpu.dot_dimension_numbers<[1], [0], [0], [1], [0, 0, 1, 1], [], []>} : vector<8x64xbf16>, vector<64x2048xbf16>, vector<8x2048xf32> -> vector<8x2048xf32>
    %c0_27 = arith.constant 0 : index
    %c0_28 = arith.constant 0 : index
    %c0_29 = arith.constant 0 : index
    %47 = vector.load %arg7[%c0_27, %c0_28, %c0_29] : memref<3x1x2048xf32, #tpu.memory_space<vmem>>, vector<1x1x2048xf32>
    %48 = vector.shape_cast %47 : vector<1x1x2048xf32> to vector<1x2048xf32>
    %49 = vector.broadcast %48 : vector<1x2048xf32> to vector<8x2048xf32>
    %50 = arith.addf %46, %49 : vector<8x2048xf32>
    %cst_30 = arith.constant 0.000000e+00 : f32
    %51 = vector.broadcast %cst_30 : f32 to vector<8x2048xf32>
    %52 = arith.maximumf %50, %51 : vector<8x2048xf32>
    %53 = arith.truncf %52 : vector<8x2048xf32> to vector<8x2048xbf16>
    %c0_31 = arith.constant 0 : index
    %c0_32 = arith.constant 0 : index
    %c0_33 = arith.constant 0 : index
    %54 = vector.load %arg8[%c0_31, %c0_32, %c0_33] : memref<3x2048x64xbf16, #tpu.memory_space<vmem>>, vector<1x2048x64xbf16>
    %55 = vector.shape_cast %54 : vector<1x2048x64xbf16> to vector<2048x64xbf16>
    %cst_34 = arith.constant dense<0.000000e+00> : vector<8x64xf32>
    %56 = tpu.matmul %53, %55, %cst_34 {dimension_numbers = #tpu.dot_dimension_numbers<[1], [0], [0], [1], [0, 0, 1, 1], [], []>} : vector<8x2048xbf16>, vector<2048x64xbf16>, vector<8x64xf32> -> vector<8x64xf32>
    %c0_35 = arith.constant 0 : index
    %c0_36 = arith.constant 0 : index
    %c0_37 = arith.constant 0 : index
    %57 = vector.load %arg9[%c0_35, %c0_36, %c0_37] : memref<3x1x64xf32, #tpu.memory_space<vmem>>, vector<1x1x64xf32>
    %58 = vector.shape_cast %57 : vector<1x1x64xf32> to vector<1x64xf32>
    %59 = vector.broadcast %58 : vector<1x64xf32> to vector<8x64xf32>
    %60 = arith.addf %56, %59 : vector<8x64xf32>
    %61 = arith.addf %42, %60 : vector<8x64xf32>
    %c0_38 = arith.constant 0 : index
    %c0_39 = arith.constant 0 : index
    %c0_40 = arith.constant 0 : index
    %62 = vector.load %arg12[%c0_38, %c0_39, %c0_40] : memref<3x1x64xf32, #tpu.memory_space<vmem>>, vector<1x1x64xf32>
    %63 = vector.shape_cast %62 : vector<1x1x64xf32> to vector<1x64xf32>
    %c0_41 = arith.constant 0 : index
    %c0_42 = arith.constant 0 : index
    %c0_43 = arith.constant 0 : index
    %64 = vector.load %arg13[%c0_41, %c0_42, %c0_43] : memref<3x1x64xf32, #tpu.memory_space<vmem>>, vector<1x1x64xf32>
    %65 = vector.shape_cast %64 : vector<1x1x64xf32> to vector<1x64xf32>
    %cst_44 = arith.constant dense<0.000000e+00> : vector<8xf32>
    %66 = vector.multi_reduction <add>, %61, %cst_44 [1] : vector<8x64xf32> to vector<8xf32>
    %67 = vector.shape_cast %66 : vector<8xf32> to vector<8x1xf32>
    %cst_45 = arith.constant 6.400000e+01 : f32
    %68 = vector.broadcast %cst_45 : f32 to vector<8x1xf32>
    %69 = arith.divf %67, %68 : vector<8x1xf32>
    %70 = vector.broadcast %69 : vector<8x1xf32> to vector<8x64xf32>
    %71 = arith.subf %61, %70 : vector<8x64xf32>
    %72 = vector.broadcast %69 : vector<8x1xf32> to vector<8x64xf32>
    %73 = arith.subf %61, %72 : vector<8x64xf32>
    %74 = arith.mulf %71, %73 : vector<8x64xf32>
    %cst_46 = arith.constant dense<0.000000e+00> : vector<8xf32>
    %75 = vector.multi_reduction <add>, %74, %cst_46 [1] : vector<8x64xf32> to vector<8xf32>
    %76 = vector.shape_cast %75 : vector<8xf32> to vector<8x1xf32>
    %cst_47 = arith.constant 6.400000e+01 : f32
    %77 = vector.broadcast %cst_47 : f32 to vector<8x1xf32>
    %78 = arith.divf %76, %77 : vector<8x1xf32>
    %79 = vector.broadcast %69 : vector<8x1xf32> to vector<8x64xf32>
    %80 = arith.subf %61, %79 : vector<8x64xf32>
    %cst_48 = arith.constant 9.99999974E-6 : f32
    %81 = vector.broadcast %cst_48 : f32 to vector<8x1xf32>
    %82 = arith.addf %78, %81 : vector<8x1xf32>
    %83 = math.rsqrt %82 : vector<8x1xf32>
    %84 = vector.broadcast %83 : vector<8x1xf32> to vector<8x64xf32>
    %85 = arith.mulf %80, %84 : vector<8x64xf32>
    %86 = vector.broadcast %63 : vector<1x64xf32> to vector<8x64xf32>
    %87 = arith.mulf %85, %86 : vector<8x64xf32>
    %88 = vector.broadcast %65 : vector<1x64xf32> to vector<8x64xf32>
    %89 = arith.addf %87, %88 : vector<8x64xf32>
    %90 = arith.truncf %89 : vector<8x64xf32> to vector<8x64xbf16>
    %c1 = arith.constant 1 : index
    %c0_49 = arith.constant 0 : index
    %c0_50 = arith.constant 0 : index
    %91 = vector.load %arg4[%c1, %c0_49, %c0_50] : memref<3x64x64xbf16, #tpu.memory_space<vmem>>, vector<1x64x64xbf16>
    %92 = vector.shape_cast %91 : vector<1x64x64xbf16> to vector<64x64xbf16>
    %cst_51 = arith.constant dense<0.000000e+00> : vector<8x64xf32>
    %93 = tpu.matmul %90, %92, %cst_51 {dimension_numbers = #tpu.dot_dimension_numbers<[1], [0], [0], [1], [0, 0, 1, 1], [], []>} : vector<8x64xbf16>, vector<64x64xbf16>, vector<8x64xf32> -> vector<8x64xf32>
    %c1_52 = arith.constant 1 : index
    %c0_53 = arith.constant 0 : index
    %c0_54 = arith.constant 0 : index
    %94 = vector.load %arg5[%c1_52, %c0_53, %c0_54] : memref<3x1x64xf32, #tpu.memory_space<vmem>>, vector<1x1x64xf32>
    %95 = vector.shape_cast %94 : vector<1x1x64xf32> to vector<1x64xf32>
    %96 = vector.broadcast %95 : vector<1x64xf32> to vector<8x64xf32>
    %97 = arith.addf %93, %96 : vector<8x64xf32>
    %98 = arith.addf %89, %97 : vector<8x64xf32>
    %c1_55 = arith.constant 1 : index
    %c0_56 = arith.constant 0 : index
    %c0_57 = arith.constant 0 : index
    %99 = vector.load %arg10[%c1_55, %c0_56, %c0_57] : memref<3x1x64xf32, #tpu.memory_space<vmem>>, vector<1x1x64xf32>
    %100 = vector.shape_cast %99 : vector<1x1x64xf32> to vector<1x64xf32>
    %c1_58 = arith.constant 1 : index
    %c0_59 = arith.constant 0 : index
    %c0_60 = arith.constant 0 : index
    %101 = vector.load %arg11[%c1_58, %c0_59, %c0_60] : memref<3x1x64xf32, #tpu.memory_space<vmem>>, vector<1x1x64xf32>
    %102 = vector.shape_cast %101 : vector<1x1x64xf32> to vector<1x64xf32>
    %cst_61 = arith.constant dense<0.000000e+00> : vector<8xf32>
    %103 = vector.multi_reduction <add>, %98, %cst_61 [1] : vector<8x64xf32> to vector<8xf32>
    %104 = vector.shape_cast %103 : vector<8xf32> to vector<8x1xf32>
    %cst_62 = arith.constant 6.400000e+01 : f32
    %105 = vector.broadcast %cst_62 : f32 to vector<8x1xf32>
    %106 = arith.divf %104, %105 : vector<8x1xf32>
    %107 = vector.broadcast %106 : vector<8x1xf32> to vector<8x64xf32>
    %108 = arith.subf %98, %107 : vector<8x64xf32>
    %109 = vector.broadcast %106 : vector<8x1xf32> to vector<8x64xf32>
    %110 = arith.subf %98, %109 : vector<8x64xf32>
    %111 = arith.mulf %108, %110 : vector<8x64xf32>
    %cst_63 = arith.constant dense<0.000000e+00> : vector<8xf32>
    %112 = vector.multi_reduction <add>, %111, %cst_63 [1] : vector<8x64xf32> to vector<8xf32>
    %113 = vector.shape_cast %112 : vector<8xf32> to vector<8x1xf32>
    %cst_64 = arith.constant 6.400000e+01 : f32
    %114 = vector.broadcast %cst_64 : f32 to vector<8x1xf32>
    %115 = arith.divf %113, %114 : vector<8x1xf32>
    %116 = vector.broadcast %106 : vector<8x1xf32> to vector<8x64xf32>
    %117 = arith.subf %98, %116 : vector<8x64xf32>
    %cst_65 = arith.constant 9.99999974E-6 : f32
    %118 = vector.broadcast %cst_65 : f32 to vector<8x1xf32>
    %119 = arith.addf %115, %118 : vector<8x1xf32>
    %120 = math.rsqrt %119 : vector<8x1xf32>
    %121 = vector.broadcast %120 : vector<8x1xf32> to vector<8x64xf32>
    %122 = arith.mulf %117, %121 : vector<8x64xf32>
    %123 = vector.broadcast %100 : vector<1x64xf32> to vector<8x64xf32>
    %124 = arith.mulf %122, %123 : vector<8x64xf32>
    %125 = vector.broadcast %102 : vector<1x64xf32> to vector<8x64xf32>
    %126 = arith.addf %124, %125 : vector<8x64xf32>
    %127 = arith.truncf %126 : vector<8x64xf32> to vector<8x64xbf16>
    %c1_66 = arith.constant 1 : index
    %c0_67 = arith.constant 0 : index
    %c0_68 = arith.constant 0 : index
    %128 = vector.load %arg6[%c1_66, %c0_67, %c0_68] : memref<3x64x2048xbf16, #tpu.memory_space<vmem>>, vector<1x64x2048xbf16>
    %129 = vector.shape_cast %128 : vector<1x64x2048xbf16> to vector<64x2048xbf16>
    %cst_69 = arith.constant dense<0.000000e+00> : vector<8x2048xf32>
    %130 = tpu.matmul %127, %129, %cst_69 {dimension_numbers = #tpu.dot_dimension_numbers<[1], [0], [0], [1], [0, 0, 1, 1], [], []>} : vector<8x64xbf16>, vector<64x2048xbf16>, vector<8x2048xf32> -> vector<8x2048xf32>
    %c1_70 = arith.constant 1 : index
    %c0_71 = arith.constant 0 : index
    %c0_72 = arith.constant 0 : index
    %131 = vector.load %arg7[%c1_70, %c0_71, %c0_72] : memref<3x1x2048xf32, #tpu.memory_space<vmem>>, vector<1x1x2048xf32>
    %132 = vector.shape_cast %131 : vector<1x1x2048xf32> to vector<1x2048xf32>
    %133 = vector.broadcast %132 : vector<1x2048xf32> to vector<8x2048xf32>
    %134 = arith.addf %130, %133 : vector<8x2048xf32>
    %cst_73 = arith.constant 0.000000e+00 : f32
    %135 = vector.broadcast %cst_73 : f32 to vector<8x2048xf32>
    %136 = arith.maximumf %134, %135 : vector<8x2048xf32>
    %137 = arith.truncf %136 : vector<8x2048xf32> to vector<8x2048xbf16>
    %c1_74 = arith.constant 1 : index
    %c0_75 = arith.constant 0 : index
    %c0_76 = arith.constant 0 : index
    %138 = vector.load %arg8[%c1_74, %c0_75, %c0_76] : memref<3x2048x64xbf16, #tpu.memory_space<vmem>>, vector<1x2048x64xbf16>
    %139 = vector.shape_cast %138 : vector<1x2048x64xbf16> to vector<2048x64xbf16>
    %cst_77 = arith.constant dense<0.000000e+00> : vector<8x64xf32>
    %140 = tpu.matmul %137, %139, %cst_77 {dimension_numbers = #tpu.dot_dimension_numbers<[1], [0], [0], [1], [0, 0, 1, 1], [], []>} : vector<8x2048xbf16>, vector<2048x64xbf16>, vector<8x64xf32> -> vector<8x64xf32>
    %c1_78 = arith.constant 1 : index
    %c0_79 = arith.constant 0 : index
    %c0_80 = arith.constant 0 : index
    %141 = vector.load %arg9[%c1_78, %c0_79, %c0_80] : memref<3x1x64xf32, #tpu.memory_space<vmem>>, vector<1x1x64xf32>
    %142 = vector.shape_cast %141 : vector<1x1x64xf32> to vector<1x64xf32>
    %143 = vector.broadcast %142 : vector<1x64xf32> to vector<8x64xf32>
    %144 = arith.addf %140, %143 : vector<8x64xf32>
    %145 = arith.addf %126, %144 : vector<8x64xf32>
    %c1_81 = arith.constant 1 : index
    %c0_82 = arith.constant 0 : index
    %c0_83 = arith.constant 0 : index
    %146 = vector.load %arg12[%c1_81, %c0_82, %c0_83] : memref<3x1x64xf32, #tpu.memory_space<vmem>>, vector<1x1x64xf32>
    %147 = vector.shape_cast %146 : vector<1x1x64xf32> to vector<1x64xf32>
    %c1_84 = arith.constant 1 : index
    %c0_85 = arith.constant 0 : index
    %c0_86 = arith.constant 0 : index
    %148 = vector.load %arg13[%c1_84, %c0_85, %c0_86] : memref<3x1x64xf32, #tpu.memory_space<vmem>>, vector<1x1x64xf32>
    %149 = vector.shape_cast %148 : vector<1x1x64xf32> to vector<1x64xf32>
    %cst_87 = arith.constant dense<0.000000e+00> : vector<8xf32>
    %150 = vector.multi_reduction <add>, %145, %cst_87 [1] : vector<8x64xf32> to vector<8xf32>
    %151 = vector.shape_cast %150 : vector<8xf32> to vector<8x1xf32>
    %cst_88 = arith.constant 6.400000e+01 : f32
    %152 = vector.broadcast %cst_88 : f32 to vector<8x1xf32>
    %153 = arith.divf %151, %152 : vector<8x1xf32>
    %154 = vector.broadcast %153 : vector<8x1xf32> to vector<8x64xf32>
    %155 = arith.subf %145, %154 : vector<8x64xf32>
    %156 = vector.broadcast %153 : vector<8x1xf32> to vector<8x64xf32>
    %157 = arith.subf %145, %156 : vector<8x64xf32>
    %158 = arith.mulf %155, %157 : vector<8x64xf32>
    %cst_89 = arith.constant dense<0.000000e+00> : vector<8xf32>
    %159 = vector.multi_reduction <add>, %158, %cst_89 [1] : vector<8x64xf32> to vector<8xf32>
    %160 = vector.shape_cast %159 : vector<8xf32> to vector<8x1xf32>
    %cst_90 = arith.constant 6.400000e+01 : f32
    %161 = vector.broadcast %cst_90 : f32 to vector<8x1xf32>
    %162 = arith.divf %160, %161 : vector<8x1xf32>
    %163 = vector.broadcast %153 : vector<8x1xf32> to vector<8x64xf32>
    %164 = arith.subf %145, %163 : vector<8x64xf32>
    %cst_91 = arith.constant 9.99999974E-6 : f32
    %165 = vector.broadcast %cst_91 : f32 to vector<8x1xf32>
    %166 = arith.addf %162, %165 : vector<8x1xf32>
    %167 = math.rsqrt %166 : vector<8x1xf32>
    %168 = vector.broadcast %167 : vector<8x1xf32> to vector<8x64xf32>
    %169 = arith.mulf %164, %168 : vector<8x64xf32>
    %170 = vector.broadcast %147 : vector<1x64xf32> to vector<8x64xf32>
    %171 = arith.mulf %169, %170 : vector<8x64xf32>
    %172 = vector.broadcast %149 : vector<1x64xf32> to vector<8x64xf32>
    %173 = arith.addf %171, %172 : vector<8x64xf32>
    %174 = arith.truncf %173 : vector<8x64xf32> to vector<8x64xbf16>
    %c2 = arith.constant 2 : index
    %c0_92 = arith.constant 0 : index
    %c0_93 = arith.constant 0 : index
    %175 = vector.load %arg4[%c2, %c0_92, %c0_93] : memref<3x64x64xbf16, #tpu.memory_space<vmem>>, vector<1x64x64xbf16>
    %176 = vector.shape_cast %175 : vector<1x64x64xbf16> to vector<64x64xbf16>
    %cst_94 = arith.constant dense<0.000000e+00> : vector<8x64xf32>
    %177 = tpu.matmul %174, %176, %cst_94 {dimension_numbers = #tpu.dot_dimension_numbers<[1], [0], [0], [1], [0, 0, 1, 1], [], []>} : vector<8x64xbf16>, vector<64x64xbf16>, vector<8x64xf32> -> vector<8x64xf32>
    %c2_95 = arith.constant 2 : index
    %c0_96 = arith.constant 0 : index
    %c0_97 = arith.constant 0 : index
    %178 = vector.load %arg5[%c2_95, %c0_96, %c0_97] : memref<3x1x64xf32, #tpu.memory_space<vmem>>, vector<1x1x64xf32>
    %179 = vector.shape_cast %178 : vector<1x1x64xf32> to vector<1x64xf32>
    %180 = vector.broadcast %179 : vector<1x64xf32> to vector<8x64xf32>
    %181 = arith.addf %177, %180 : vector<8x64xf32>
    %182 = arith.addf %173, %181 : vector<8x64xf32>
    %c2_98 = arith.constant 2 : index
    %c0_99 = arith.constant 0 : index
    %c0_100 = arith.constant 0 : index
    %183 = vector.load %arg10[%c2_98, %c0_99, %c0_100] : memref<3x1x64xf32, #tpu.memory_space<vmem>>, vector<1x1x64xf32>
    %184 = vector.shape_cast %183 : vector<1x1x64xf32> to vector<1x64xf32>
    %c2_101 = arith.constant 2 : index
    %c0_102 = arith.constant 0 : index
    %c0_103 = arith.constant 0 : index
    %185 = vector.load %arg11[%c2_101, %c0_102, %c0_103] : memref<3x1x64xf32, #tpu.memory_space<vmem>>, vector<1x1x64xf32>
    %186 = vector.shape_cast %185 : vector<1x1x64xf32> to vector<1x64xf32>
    %cst_104 = arith.constant dense<0.000000e+00> : vector<8xf32>
    %187 = vector.multi_reduction <add>, %182, %cst_104 [1] : vector<8x64xf32> to vector<8xf32>
    %188 = vector.shape_cast %187 : vector<8xf32> to vector<8x1xf32>
    %cst_105 = arith.constant 6.400000e+01 : f32
    %189 = vector.broadcast %cst_105 : f32 to vector<8x1xf32>
    %190 = arith.divf %188, %189 : vector<8x1xf32>
    %191 = vector.broadcast %190 : vector<8x1xf32> to vector<8x64xf32>
    %192 = arith.subf %182, %191 : vector<8x64xf32>
    %193 = vector.broadcast %190 : vector<8x1xf32> to vector<8x64xf32>
    %194 = arith.subf %182, %193 : vector<8x64xf32>
    %195 = arith.mulf %192, %194 : vector<8x64xf32>
    %cst_106 = arith.constant dense<0.000000e+00> : vector<8xf32>
    %196 = vector.multi_reduction <add>, %195, %cst_106 [1] : vector<8x64xf32> to vector<8xf32>
    %197 = vector.shape_cast %196 : vector<8xf32> to vector<8x1xf32>
    %cst_107 = arith.constant 6.400000e+01 : f32
    %198 = vector.broadcast %cst_107 : f32 to vector<8x1xf32>
    %199 = arith.divf %197, %198 : vector<8x1xf32>
    %200 = vector.broadcast %190 : vector<8x1xf32> to vector<8x64xf32>
    %201 = arith.subf %182, %200 : vector<8x64xf32>
    %cst_108 = arith.constant 9.99999974E-6 : f32
    %202 = vector.broadcast %cst_108 : f32 to vector<8x1xf32>
    %203 = arith.addf %199, %202 : vector<8x1xf32>
    %204 = math.rsqrt %203 : vector<8x1xf32>
    %205 = vector.broadcast %204 : vector<8x1xf32> to vector<8x64xf32>
    %206 = arith.mulf %201, %205 : vector<8x64xf32>
    %207 = vector.broadcast %184 : vector<1x64xf32> to vector<8x64xf32>
    %208 = arith.mulf %206, %207 : vector<8x64xf32>
    %209 = vector.broadcast %186 : vector<1x64xf32> to vector<8x64xf32>
    %210 = arith.addf %208, %209 : vector<8x64xf32>
    %211 = arith.truncf %210 : vector<8x64xf32> to vector<8x64xbf16>
    %c2_109 = arith.constant 2 : index
    %c0_110 = arith.constant 0 : index
    %c0_111 = arith.constant 0 : index
    %212 = vector.load %arg6[%c2_109, %c0_110, %c0_111] : memref<3x64x2048xbf16, #tpu.memory_space<vmem>>, vector<1x64x2048xbf16>
    %213 = vector.shape_cast %212 : vector<1x64x2048xbf16> to vector<64x2048xbf16>
    %cst_112 = arith.constant dense<0.000000e+00> : vector<8x2048xf32>
    %214 = tpu.matmul %211, %213, %cst_112 {dimension_numbers = #tpu.dot_dimension_numbers<[1], [0], [0], [1], [0, 0, 1, 1], [], []>} : vector<8x64xbf16>, vector<64x2048xbf16>, vector<8x2048xf32> -> vector<8x2048xf32>
    %c2_113 = arith.constant 2 : index
    %c0_114 = arith.constant 0 : index
    %c0_115 = arith.constant 0 : index
    %215 = vector.load %arg7[%c2_113, %c0_114, %c0_115] : memref<3x1x2048xf32, #tpu.memory_space<vmem>>, vector<1x1x2048xf32>
    %216 = vector.shape_cast %215 : vector<1x1x2048xf32> to vector<1x2048xf32>
    %217 = vector.broadcast %216 : vector<1x2048xf32> to vector<8x2048xf32>
    %218 = arith.addf %214, %217 : vector<8x2048xf32>
    %cst_116 = arith.constant 0.000000e+00 : f32
    %219 = vector.broadcast %cst_116 : f32 to vector<8x2048xf32>
    %220 = arith.maximumf %218, %219 : vector<8x2048xf32>
    %221 = arith.truncf %220 : vector<8x2048xf32> to vector<8x2048xbf16>
    %c2_117 = arith.constant 2 : index
    %c0_118 = arith.constant 0 : index
    %c0_119 = arith.constant 0 : index
    %222 = vector.load %arg8[%c2_117, %c0_118, %c0_119] : memref<3x2048x64xbf16, #tpu.memory_space<vmem>>, vector<1x2048x64xbf16>
    %223 = vector.shape_cast %222 : vector<1x2048x64xbf16> to vector<2048x64xbf16>
    %cst_120 = arith.constant dense<0.000000e+00> : vector<8x64xf32>
    %224 = tpu.matmul %221, %223, %cst_120 {dimension_numbers = #tpu.dot_dimension_numbers<[1], [0], [0], [1], [0, 0, 1, 1], [], []>} : vector<8x2048xbf16>, vector<2048x64xbf16>, vector<8x64xf32> -> vector<8x64xf32>
    %c2_121 = arith.constant 2 : index
    %c0_122 = arith.constant 0 : index
    %c0_123 = arith.constant 0 : index
    %225 = vector.load %arg9[%c2_121, %c0_122, %c0_123] : memref<3x1x64xf32, #tpu.memory_space<vmem>>, vector<1x1x64xf32>
    %226 = vector.shape_cast %225 : vector<1x1x64xf32> to vector<1x64xf32>
    %227 = vector.broadcast %226 : vector<1x64xf32> to vector<8x64xf32>
    %228 = arith.addf %224, %227 : vector<8x64xf32>
    %229 = arith.addf %210, %228 : vector<8x64xf32>
    %c2_124 = arith.constant 2 : index
    %c0_125 = arith.constant 0 : index
    %c0_126 = arith.constant 0 : index
    %230 = vector.load %arg12[%c2_124, %c0_125, %c0_126] : memref<3x1x64xf32, #tpu.memory_space<vmem>>, vector<1x1x64xf32>
    %231 = vector.shape_cast %230 : vector<1x1x64xf32> to vector<1x64xf32>
    %c2_127 = arith.constant 2 : index
    %c0_128 = arith.constant 0 : index
    %c0_129 = arith.constant 0 : index
    %232 = vector.load %arg13[%c2_127, %c0_128, %c0_129] : memref<3x1x64xf32, #tpu.memory_space<vmem>>, vector<1x1x64xf32>
    %233 = vector.shape_cast %232 : vector<1x1x64xf32> to vector<1x64xf32>
    %cst_130 = arith.constant dense<0.000000e+00> : vector<8xf32>
    %234 = vector.multi_reduction <add>, %229, %cst_130 [1] : vector<8x64xf32> to vector<8xf32>
    %235 = vector.shape_cast %234 : vector<8xf32> to vector<8x1xf32>
    %cst_131 = arith.constant 6.400000e+01 : f32
    %236 = vector.broadcast %cst_131 : f32 to vector<8x1xf32>
    %237 = arith.divf %235, %236 : vector<8x1xf32>
    %238 = vector.broadcast %237 : vector<8x1xf32> to vector<8x64xf32>
    %239 = arith.subf %229, %238 : vector<8x64xf32>
    %240 = vector.broadcast %237 : vector<8x1xf32> to vector<8x64xf32>
    %241 = arith.subf %229, %240 : vector<8x64xf32>
    %242 = arith.mulf %239, %241 : vector<8x64xf32>
    %cst_132 = arith.constant dense<0.000000e+00> : vector<8xf32>
    %243 = vector.multi_reduction <add>, %242, %cst_132 [1] : vector<8x64xf32> to vector<8xf32>
    %244 = vector.shape_cast %243 : vector<8xf32> to vector<8x1xf32>
    %cst_133 = arith.constant 6.400000e+01 : f32
    %245 = vector.broadcast %cst_133 : f32 to vector<8x1xf32>
    %246 = arith.divf %244, %245 : vector<8x1xf32>
    %247 = vector.broadcast %237 : vector<8x1xf32> to vector<8x64xf32>
    %248 = arith.subf %229, %247 : vector<8x64xf32>
    %cst_134 = arith.constant 9.99999974E-6 : f32
    %249 = vector.broadcast %cst_134 : f32 to vector<8x1xf32>
    %250 = arith.addf %246, %249 : vector<8x1xf32>
    %251 = math.rsqrt %250 : vector<8x1xf32>
    %252 = vector.broadcast %251 : vector<8x1xf32> to vector<8x64xf32>
    %253 = arith.mulf %248, %252 : vector<8x64xf32>
    %254 = vector.broadcast %231 : vector<1x64xf32> to vector<8x64xf32>
    %255 = arith.mulf %253, %254 : vector<8x64xf32>
    %256 = vector.broadcast %233 : vector<1x64xf32> to vector<8x64xf32>
    %257 = arith.addf %255, %256 : vector<8x64xf32>
    %c0_135 = arith.constant 0 : index
    %c0_136 = arith.constant 0 : index
    %258 = vector.load %arg14[%c0_135, %c0_136] : memref<64x128xf32, #tpu.memory_space<vmem>>, vector<64x128xf32>
    %cst_137 = arith.constant dense<0.000000e+00> : vector<8x128xf32>
    %259 = tpu.matmul %257, %258, %cst_137 {dimension_numbers = #tpu.dot_dimension_numbers<[1], [0], [0], [1], [0, 0, 1, 1], [], []>} : vector<8x64xf32>, vector<64x128xf32>, vector<8x128xf32> -> vector<8x128xf32>
    %c0_138 = arith.constant 0 : index
    %c0_139 = arith.constant 0 : index
    %260 = vector.load %arg15[%c0_138, %c0_139] : memref<1x128xf32, #tpu.memory_space<vmem>>, vector<1x128xf32>
    %261 = vector.broadcast %260 : vector<1x128xf32> to vector<8x128xf32>
    %262 = arith.addf %259, %261 : vector<8x128xf32>
    %263 = arith.negf %262 : vector<8x128xf32>
    %264 = math.exp %263 : vector<8x128xf32>
    %cst_140 = arith.constant 1.000000e+00 : f32
    %265 = vector.broadcast %cst_140 : f32 to vector<8x128xf32>
    %266 = arith.addf %265, %264 : vector<8x128xf32>
    %267 = arith.divf %265, %266 : vector<8x128xf32>
    %c0_141 = arith.constant 0 : index
    %c0_142 = arith.constant 0 : index
    %268 = vector.load %arg16[%c0_141, %c0_142] : memref<8x128xf32, #tpu.memory_space<vmem>>, vector<8x128xf32>
    tpu.vector_store %arg16[%c0_141, %c0_142], %267 {strides = array<i32>} : memref<8x128xf32, #tpu.memory_space<vmem>>, vector<8x128xf32>,
    return
  }
  func.func @transform_0(%arg0: i32) -> (i32, i32) {
    %c0_i32 = arith.constant 0 : i32
    %c0_i32_0 = arith.constant 0 : i32
    return %arg0, %c0_i32 : i32, i32
  }
  func.func @transform_1(%arg0: i32) -> (i32, i32) {
    %c0_i32 = arith.constant 0 : i32
    %c0_i32_0 = arith.constant 0 : i32
    %c0_i32_1 = arith.constant 0 : i32
    return %c0_i32, %c0_i32_0 : i32, i32
  }
  func.func @transform_2(%arg0: i32) -> (i32, i32) {
    %c0_i32 = arith.constant 0 : i32
    %c0_i32_0 = arith.constant 0 : i32
    %c0_i32_1 = arith.constant 0 : i32
    return %c0_i32, %c0_i32_0 : i32, i32
  }
  func.func @transform_3(%arg0: i32) -> (i32, i32, i32) {
    %c0_i32 = arith.constant 0 : i32
    %c0_i32_0 = arith.constant 0 : i32
    %c0_i32_1 = arith.constant 0 : i32
    %c0_i32_2 = arith.constant 0 : i32
    return %c0_i32, %c0_i32_0, %c0_i32_1 : i32, i32, i32
  }
  func.func @transform_4(%arg0: i32) -> (i32, i32, i32) {
    %c0_i32 = arith.constant 0 : i32
    %c0_i32_0 = arith.constant 0 : i32
    %c0_i32_1 = arith.constant 0 : i32
    %c0_i32_2 = arith.constant 0 : i32
    return %c0_i32, %c0_i32_0, %c0_i32_1 : i32, i32, i32
  }
  func.func @transform_5(%arg0: i32) -> (i32, i32, i32) {
    %c0_i32 = arith.constant 0 : i32
    %c0_i32_0 = arith.constant 0 : i32
    %c0_i32_1 = arith.constant 0 : i32
    %c0_i32_2 = arith.constant 0 : i32
    return %c0_i32, %c0_i32_0, %c0_i32_1 : i32, i32, i32
  }
  func.func @transform_6(%arg0: i32) -> (i32, i32, i32) {
    %c0_i32 = arith.constant 0 : i32
    %c0_i32_0 = arith.constant 0 : i32
    %c0_i32_1 = arith.constant 0 : i32
    %c0_i32_2 = arith.constant 0 : i32
    return %c0_i32, %c0_i32_0, %c0_i32_1 : i32, i32, i32
  }
  func.func @transform_7(%arg0: i32) -> (i32, i32, i32) {
    %c0_i32 = arith.constant 0 : i32
    %c0_i32_0 = arith.constant 0 : i32
    %c0_i32_1 = arith.constant 0 : i32
    %c0_i32_2 = arith.constant 0 : i32
    return %c0_i32, %c0_i32_0, %c0_i32_1 : i32, i32, i32
  }
  func.func @transform_8(%arg0: i32) -> (i32, i32, i32) {
    %c0_i32 = arith.constant 0 : i32
    %c0_i32_0 = arith.constant 0 : i32
    %c0_i32_1 = arith.constant 0 : i32
    %c0_i32_2 = arith.constant 0 : i32
    return %c0_i32, %c0_i32_0, %c0_i32_1 : i32, i32, i32
  }
  func.func @transform_9(%arg0: i32) -> (i32, i32, i32) {
    %c0_i32 = arith.constant 0 : i32
    %c0_i32_0 = arith.constant 0 : i32
    %c0_i32_1 = arith.constant 0 : i32
    %c0_i32_2 = arith.constant 0 : i32
    return %c0_i32, %c0_i32_0, %c0_i32_1 : i32, i32, i32
  }
  func.func @transform_10(%arg0: i32) -> (i32, i32, i32) {
    %c0_i32 = arith.constant 0 : i32
    %c0_i32_0 = arith.constant 0 : i32
    %c0_i32_1 = arith.constant 0 : i32
    %c0_i32_2 = arith.constant 0 : i32
    return %c0_i32, %c0_i32_0, %c0_i32_1 : i32, i32, i32
  }
  func.func @transform_11(%arg0: i32) -> (i32, i32, i32) {
    %c0_i32 = arith.constant 0 : i32
    %c0_i32_0 = arith.constant 0 : i32
    %c0_i32_1 = arith.constant 0 : i32
    %c0_i32_2 = arith.constant 0 : i32
    return %c0_i32, %c0_i32_0, %c0_i32_1 : i32, i32, i32
  }
  func.func @transform_12(%arg0: i32) -> (i32, i32, i32) {
    %c0_i32 = arith.constant 0 : i32
    %c0_i32_0 = arith.constant 0 : i32
    %c0_i32_1 = arith.constant 0 : i32
    %c0_i32_2 = arith.constant 0 : i32
    return %c0_i32, %c0_i32_0, %c0_i32_1 : i32, i32, i32
  }
  func.func @transform_13(%arg0: i32) -> (i32, i32) {
    %c0_i32 = arith.constant 0 : i32
    %c0_i32_0 = arith.constant 0 : i32
    %c0_i32_1 = arith.constant 0 : i32
    return %c0_i32, %c0_i32_0 : i32, i32
  }
  func.func @transform_14(%arg0: i32) -> (i32, i32) {
    %c0_i32 = arith.constant 0 : i32
    %c0_i32_0 = arith.constant 0 : i32
    %c0_i32_1 = arith.constant 0 : i32
    return %c0_i32, %c0_i32_0 : i32, i32
  }
  func.func @transform_15(%arg0: i32) -> (i32, i32) {
    %c0_i32 = arith.constant 0 : i32
    %c0_i32_0 = arith.constant 0 : i32
    return %arg0, %c0_i32 : i32, i32
  }
}

</mosaic_0001>

<llo_original>
// kernel: tpu_custom_call.1
$region0: #{tpu_custom_call.1}
  #allocation0 [shape = 'u32[]', space=smem, size = 0x4, offset = 0x4, fixed_abs, tag = 'smem constant byte address 0x4 - core index']
  #allocation1 [shape = 'u32[144,128]{1,0:T(1,128)}', space=vmem, size = 0x12000, scoped, tag = 'internal scratch']
  %s0 = inlined_call_operand.vmem [shape: f32[8,30], index: 0, kind: input, shape index: {}]
  %s1 = inlined_call_operand.vmem [shape: f32[30,64], index: 1, kind: input, shape index: {}]
  %s2 = inlined_call_operand.vmem [shape: f32[1,64], index: 2, kind: input, shape index: {}]
  %s3 = inlined_call_operand.vmem [shape: bf16[3,64,64], index: 3, kind: input, shape index: {}]
  %s4 = inlined_call_operand.vmem [shape: f32[3,1,64], index: 4, kind: input, shape index: {}]
  %s5 = inlined_call_operand.vmem [shape: bf16[3,64,2048], index: 5, kind: input, shape index: {}]
  %s6 = inlined_call_operand.vmem [shape: f32[3,1,2048], index: 6, kind: input, shape index: {}]
  %s7 = inlined_call_operand.vmem [shape: bf16[3,2048,64], index: 7, kind: input, shape index: {}]
  %s8 = inlined_call_operand.vmem [shape: f32[3,1,64], index: 8, kind: input, shape index: {}]
  %s9 = inlined_call_operand.vmem [shape: f32[3,1,64], index: 9, kind: input, shape index: {}]
  %s10 = inlined_call_operand.vmem [shape: f32[3,1,64], index: 10, kind: input, shape index: {}]
  %s11 = inlined_call_operand.vmem [shape: f32[3,1,64], index: 11, kind: input, shape index: {}]
  %s12 = inlined_call_operand.vmem [shape: f32[3,1,64], index: 12, kind: input, shape index: {}]
  %s13 = inlined_call_operand.vmem [shape: f32[64,128], index: 13, kind: input, shape index: {}]
  %s14 = inlined_call_operand.vmem [shape: f32[1,128], index: 14, kind: input, shape index: {}]
  %s15 = inlined_call_operand.hbm [shape: f32[8,128], index: 15, kind: output, shape index: {}]
  %s16 = sld [smem:[#allocation0]]
  $region70: #{tpu_custom_call.1} parent=0
    _
  %s18 = ssub.s32 1, %s16
  %s19 = scalar_select 0, %s18, %s16
  $region1: #{tpu_custom_call.1} parent=0
    #allocation2 [shape = 'u8[4096]{0}', space=vmem, size = 0x1000, scoped, tag = 'output window, operand 0, single buffered']
    #allocation3 [shape = 's32[1]{0}', space=sflag, size = 0x4, scoped, tag = 'scoped memory for tpu_custom_call.1']
    %20 = vsyncpa [#allocation3], 0
    // Predicated region
    $region2: #{tpu_custom_call.1} parent=1 // pred_check
      _
    $region3: #{tpu_custom_call.1} parent=1 // pred_check_branch
      %22 = sbr.rel (0) target = $region5
    $region4: #{tpu_custom_call.1} parent=1 // pred_region
      _
    $region5: #{tpu_custom_call.1} parent=1 // pred_fallthru
      _
    // Predicated region
    $region6: #{tpu_custom_call.1} parent=1 // pred_check
      _
    $region7: #{tpu_custom_call.1} parent=1 // pred_check_branch
      %24 = sbr.rel (0) target = $region9
    $region8: #{tpu_custom_call.1} parent=1 // pred_region
      _
    $region9: #{tpu_custom_call.1} parent=1 // pred_fallthru
      _
    // Predicated region
    $region10: #{tpu_custom_call.1} parent=1 // pred_check
      _
    $region11: #{tpu_custom_call.1} parent=1 // pred_check_branch
      %26 = sbr.rel (0) target = $region13
    $region12: #{tpu_custom_call.1} parent=1 // pred_region
      _
    $region13: #{tpu_custom_call.1} parent=1 // pred_fallthru
      _
    // Predicated region
    $region14: #{tpu_custom_call.1} parent=1 // pred_check
      _
    $region15: #{tpu_custom_call.1} parent=1 // pred_check_branch
      %28 = sbr.rel (0) target = $region17
    $region16: #{tpu_custom_call.1} parent=1 // pred_region
      _
    $region17: #{tpu_custom_call.1} parent=1 // pred_fallthru
      _
    // Predicated region
    $region18: #{tpu_custom_call.1} parent=1 // pred_check
      _
    $region19: #{tpu_custom_call.1} parent=1 // pred_check_branch
      %30 = sbr.rel (0) target = $region21
    $region20: #{tpu_custom_call.1} parent=1 // pred_region
      _
    $region21: #{tpu_custom_call.1} parent=1 // pred_fallthru
      _
    // Predicated region
    $region22: #{tpu_custom_call.1} parent=1 // pred_check
      _
    $region23: #{tpu_custom_call.1} parent=1 // pred_check_branch
      %32 = sbr.rel (0) target = $region25
    $region24: #{tpu_custom_call.1} parent=1 // pred_region
      _
    $region25: #{tpu_custom_call.1} parent=1 // pred_fallthru
      _
    // Predicated region
    $region26: #{tpu_custom_call.1} parent=1 // pred_check
      _
    $region27: #{tpu_custom_call.1} parent=1 // pred_check_branch
      %34 = sbr.rel (0) target = $region29
    $region28: #{tpu_custom_call.1} parent=1 // pred_region
      _
    $region29: #{tpu_custom_call.1} parent=1 // pred_fallthru
      _
    // Predicated region
    $region30: #{tpu_custom_call.1} parent=1 // pred_check
      _
    $region31: #{tpu_custom_call.1} parent=1 // pred_check_branch
      %36 = sbr.rel (0) target = $region33
    $region32: #{tpu_custom_call.1} parent=1 // pred_region
      _
    $region33: #{tpu_custom_call.1} parent=1 // pred_fallthru
      _
    // Predicated region
    $region34: #{tpu_custom_call.1} parent=1 // pred_check
      _
    $region35: #{tpu_custom_call.1} parent=1 // pred_check_branch
      %38 = sbr.rel (0) target = $region37
    $region36: #{tpu_custom_call.1} parent=1 // pred_region
      _
    $region37: #{tpu_custom_call.1} parent=1 // pred_fallthru
      _
    // Predicated region
    $region38: #{tpu_custom_call.1} parent=1 // pred_check
      _
    $region39: #{tpu_custom_call.1} parent=1 // pred_check_branch
      %40 = sbr.rel (0) target = $region41
    $region40: #{tpu_custom_call.1} parent=1 // pred_region
      _
    $region41: #{tpu_custom_call.1} parent=1 // pred_fallthru
      _
    // Predicated region
    $region42: #{tpu_custom_call.1} parent=1 // pred_check
      _
    $region43: #{tpu_custom_call.1} parent=1 // pred_check_branch
      %42 = sbr.rel (0) target = $region45
    $region44: #{tpu_custom_call.1} parent=1 // pred_region
      _
    $region45: #{tpu_custom_call.1} parent=1 // pred_fallthru
      _
    // Predicated region
    $region46: #{tpu_custom_call.1} parent=1 // pred_check
      _
    $region47: #{tpu_custom_call.1} parent=1 // pred_check_branch
      %44 = sbr.rel (0) target = $region49
    $region48: #{tpu_custom_call.1} parent=1 // pred_region
      _
    $region49: #{tpu_custom_call.1} parent=1 // pred_fallthru
      _
    // Predicated region
    $region50: #{tpu_custom_call.1} parent=1 // pred_check
      _
    $region51: #{tpu_custom_call.1} parent=1 // pred_check_branch
      %46 = sbr.rel (0) target = $region53
    $region52: #{tpu_custom_call.1} parent=1 // pred_region
      _
    $region53: #{tpu_custom_call.1} parent=1 // pred_fallthru
      _
    // Predicated region
    $region54: #{tpu_custom_call.1} parent=1 // pred_check
      _
    $region55: #{tpu_custom_call.1} parent=1 // pred_check_branch
      %48 = sbr.rel (0) target = $region57
    $region56: #{tpu_custom_call.1} parent=1 // pred_region
      _
    $region57: #{tpu_custom_call.1} parent=1 // pred_fallthru
      _
    // Predicated region
    $region58: #{tpu_custom_call.1} parent=1 // pred_check
      _
    $region59: #{tpu_custom_call.1} parent=1 // pred_check_branch
      %50 = sbr.rel (0) target = $region61
    $region60: #{tpu_custom_call.1} parent=1 // pred_region
      _
    $region61: #{tpu_custom_call.1} parent=1 // pred_fallthru
      _
    %v52 = vld [vmem:[%s0] sm:$0xff]
    %v53 = vld [vmem:[%s1] sm:$0xff]
    %v54 = vld [vmem:[%s1 + $0x8] sm:$0xff]
    %v55 = vld [vmem:[%s1 + $0x10] sm:$0xff]
    %v56 = vld [vmem:[%s1 + $0x18] sm:$0x3f]
    %v57 = vld [vmem:[%s2] sm:$0x1]
    %v59 = vlaneseq
    %v60 = vshrl.u32 %v59, 7
    %v61 = vsub.s32 0, %v60
    %v62 = vrot.slane %v57, %v61
    %vm64 = vcmask 244736
    %v66 = vsel %vm64, %v52, 0
    %vm68 = vcmask 1045504
    %v70 = vsel %vm68, %v56, 0
    %72 = vmatprep.subr.mxu0 0.0
    %73 = vmatpush1.msra.mxu0 %v53
    %74 = vmatprep.subr.mxu0 0.0
    %75 = vmatpush1.msra.mxu0 %v54
    %76 = vmatprep.subr.mxu0 0.0
    %77 = vmatpush1.msra.mxu0 %v55
    %78 = vmatprep.subr.mxu0 0.0
    %79 = vmatpush1.msra.mxu0 %v70
    %80 = vmatprep.subr.mxu0 0.0
    %81 = vmatpush1.msra.mxu0 0.0
    %82 = vmatprep.subr.mxu0 0.0
    %83 = vmatpush1.msra.mxu0 0.0
    %84 = vmatprep.subr.mxu0 0.0
    %85 = vmatpush1.msra.mxu0 0.0
    %86 = vmatprep.subr.mxu0 0.0
    %87 = vmatpush1.msra.mxu0 0.0
    %88 = vmatprep.subr.mxu0 0.0
    %89 = vmatpush1.msra.mxu0 0.0
    %90 = vmatprep.subr.mxu0 0.0
    %91 = vmatpush1.msra.mxu0 0.0
    %92 = vmatprep.subr.mxu0 0.0
    %93 = vmatpush1.msra.mxu0 0.0
    %94 = vmatprep.subr.mxu0 0.0
    %95 = vmatpush1.msra.mxu0 0.0
    %96 = vmatprep.subr.mxu0 0.0
    %97 = vmatpush1.msra.mxu0 0.0
    %98 = vmatprep.subr.mxu0 0.0
    %99 = vmatpush1.msra.mxu0 0.0
    %100 = vmatprep.subr.mxu0 0.0
    %101 = vmatpush1.msra.mxu0 0.0
    %102 = vmatprep.subr.mxu0 0.0
    %103 = vmatpush1.msra.mxu0 0.0
    %104 = vmatprep.subr.mxu0 0.0
    %105 = vmatpush1.msra.mxu0 0.0
    %106 = vmatprep.subr.mxu0 0.0
    %107 = vmatpush1.msra.mxu0 0.0
    %108 = vmatprep.subr.mxu0 0.0
    %109 = vmatpush1.msra.mxu0 0.0
    %110 = vmatprep.subr.mxu0 0.0
    %111 = vmatpush1.msra.mxu0 0.0
    %112 = vmatprep.subr.mxu0 0.0
    %113 = vmatpush1.msra.mxu0 0.0
    %114 = vmatprep.subr.mxu0 0.0
    %115 = vmatpush1.msra.mxu0 0.0
    %116 = vmatprep.subr.mxu0 0.0
    %117 = vmatpush1.msra.mxu0 0.0
    %118 = vmatprep.subr.mxu0 0.0
    %119 = vmatpush1.msra.mxu0 0.0
    %120 = vmatprep.subr.mxu0 0.0
    %121 = vmatpush1.msra.mxu0 0.0
    %122 = vmatprep.subr.mxu0 0.0
    %123 = vmatpush1.msra.mxu0 0.0
    %124 = vmatprep.subr.mxu0 0.0
    %125 = vmatpush1.msra.mxu0 0.0
    %126 = vmatprep.subr.mxu0 0.0
    %127 = vmatpush1.msra.mxu0 0.0
    %128 = vmatprep.subr.mxu0 0.0
    %129 = vmatpush1.msra.mxu0 0.0
    %130 = vmatprep.subr.mxu0 0.0
    %131 = vmatpush1.msra.mxu0 0.0
    %132 = vmatprep.subr.mxu0 0.0
    %133 = vmatpush1.msra.mxu0 0.0
    %134 = vmatprep.subr.mxu0 0.0
    %135 = vmatpush1.msra.mxu0 0.0
    %136 = vmatprep.mubr.f32.mxu0 0.0
    %137 = vmatmul.mubr.f32.gmra.mrb[0].mxu0 %v66
    %v138 = vpop.f32.mrb[0].mxu0
    %v139 = vadd.f32 %v62, %v138
    %v140 = vpop.f32.mrb[0].mxu0
    %141 = vdwg.mxu0
    %v142 = vpack.c.bf16 %v139, %v139
    %v143 = vld [vmem:[%s3] sm:$0xf]
    %v144 = vld [vmem:[%s3 + $0x4] sm:$0xf]
    %v145 = vld [vmem:[%s3 + $0x8] sm:$0xf]
    %v146 = vld [vmem:[%s3 + $0xc] sm:$0xf]
    %v147 = vld [vmem:[%s3 + $0x10] sm:$0xf]
    %v148 = vld [vmem:[%s3 + $0x14] sm:$0xf]
    %v149 = vld [vmem:[%s3 + $0x18] sm:$0xf]
    %v150 = vld [vmem:[%s3 + $0x1c] sm:$0xf]
    %v151 = vld [vmem:[%s4] sm:$0x1]
    %v153 = vlaneseq
    %v154 = vshrl.u32 %v153, 7
    %v155 = vsub.s32 0, %v154
    %v156 = vrot.slane %v151, %v155
    %v166 = vunpack.c.l.b16 %v143
    %v167 = vunpack.c.l.b16 %v144
    %v168 = vunpack.c.l.b16 %v145
    %v169 = vunpack.c.l.b16 %v146
    %v170 = vunpack.c.l.b16 %v147
    %v171 = vunpack.c.l.b16 %v148
    %v172 = vunpack.c.l.b16 %v149
    %v173 = vunpack.c.l.b16 %v150
    %v174 = vpack.c.b16 %v167, %v166
    %v175 = vpack.c.b16 %v169, %v168
    %v176 = vpack.c.b16 %v171, %v170
    %v177 = vpack.c.b16 %v173, %v172
    %vm182 = vcmask 523264
    %v184 = vsel %vm182, %v142, 0
    %186 = vmatprep.subr.bf16.mxu0 0
    %187 = vmatpush1.bf16.msra.mxu0 %v174
    %188 = vmatprep.subr.bf16.mxu0 0
    %189 = vmatpush1.bf16.msra.mxu0 %v175
    %190 = vmatprep.subr.bf16.mxu0 0
    %191 = vmatpush1.bf16.msra.mxu0 %v176
    %192 = vmatprep.subr.bf16.mxu0 0
    %193 = vmatpush1.bf16.msra.mxu0 %v177
    %194 = vmatprep.subr.bf16.mxu0 0
    %195 = vmatpush1.bf16.msra.mxu0 0
    %196 = vmatprep.subr.bf16.mxu0 0
    %197 = vmatpush1.bf16.msra.mxu0 0
    %198 = vmatprep.subr.bf16.mxu0 0
    %199 = vmatpush1.bf16.msra.mxu0 0
    %200 = vmatprep.subr.bf16.mxu0 0
    %201 = vmatpush1.bf16.msra.mxu0 0
    %202 = vmatprep.subr.bf16.mxu0 0
    %203 = vmatpush1.bf16.msra.mxu0 0
    %204 = vmatprep.subr.bf16.mxu0 0
    %205 = vmatpush1.bf16.msra.mxu0 0
    %206 = vmatprep.subr.bf16.mxu0 0
    %207 = vmatpush1.bf16.msra.mxu0 0
    %208 = vmatprep.subr.bf16.mxu0 0
    %209 = vmatpush1.bf16.msra.mxu0 0
    %210 = vmatprep.subr.bf16.mxu0 0
    %211 = vmatpush1.bf16.msra.mxu0 0
    %212 = vmatprep.subr.bf16.mxu0 0
    %213 = vmatpush1.bf16.msra.mxu0 0
    %214 = vmatprep.subr.bf16.mxu0 0
    %215 = vmatpush1.bf16.msra.mxu0 0
    %216 = vmatprep.subr.bf16.mxu0 0
    %217 = vmatpush1.bf16.msra.mxu0 0
    %218 = vmatprep.mubr.bf16.mxu0 0
    %219 = vmatmul.mubr.bf16.gmra.mrb[0].mxu0 %v184
    %v220 = vpop.f32.mrb[0].mxu0
    %v221 = vadd.f32 %v156, %v220
    %v222 = vpop.f32.mrb[0].mxu0
    %v223 = vpop.f32.mrb[0].mxu0
    %v224 = vpop.f32.mrb[0].mxu0
    %225 = vdwg.mxu0
    %v226 = vadd.f32 %v139, %v221
    %v227 = vld [vmem:[%s9] sm:$0x1]
    %v228 = vld [vmem:[%s10] sm:$0x1]
    %v229 = vsel %vm182, %v226, 0.0
    %230 = vadd.xlane.f32.xlu0 %v229
    %v231 = vpop.xlane.xlu0 %230
    %v232 = vrcp.pop 64.0
    %v233 = vmul.f32 %v231, %v232
    %v234 = vsub.f32 %v226, %v233
    %v235 = vmul.f32 %v234, %v234
    %v236 = vsel %vm182, %v235, 0.0
    %237 = vadd.xlane.f32.xlu0 %v236
    %v238 = vpop.xlane.xlu0 %237
    %v239 = vmul.f32 %v238, %v232
    %v240 = vadd.f32 %v239, 1e-05
    %v241 = vrsqrt.pop %v240
    %v242 = vmul.f32 %v234, %v241
    %v244 = vlaneseq
    %v245 = vshrl.u32 %v244, 7
    %v246 = vsub.s32 0, %v245
    %v247 = vrot.slane %v227, %v246
    %v249 = vmul.f32 %v242, %v247
    %v251 = vlaneseq
    %v252 = vshrl.u32 %v251, 7
    %v253 = vsub.s32 0, %v252
    %v254 = vrot.slane %v228, %v253
    %v256 = vadd.f32 %v249, %v254
    %v257 = vpack.c.bf16 %v256, %v256
    %v258 = vld [vmem:[%s5] sm:$0xff]
    %v259 = vld [vmem:[%s5 + $0x8] sm:$0xff]
    %v260 = vld [vmem:[%s5 + $0x10] sm:$0xff]
    %v261 = vld [vmem:[%s5 + $0x18] sm:$0xff]
    %v262 = vld [vmem:[%s5 + $0x20] sm:$0xff]
    %v263 = vld [vmem:[%s5 + $0x28] sm:$0xff]
    %v264 = vld [vmem:[%s5 + $0x30] sm:$0xff]
    %v265 = vld [vmem:[%s5 + $0x38] sm:$0xff]
    %v266 = vld [vmem:[%s5 + $0x40] sm:$0xff]
    %v267 = vld [vmem:[%s5 + $0x48] sm:$0xff]
    %v268 = vld [vmem:[%s5 + $0x50] sm:$0xff]
    %v269 = vld [vmem:[%s5 + $0x58] sm:$0xff]
    %v270 = vld [vmem:[%s5 + $0x60] sm:$0xff]
    %v271 = vld [vmem:[%s5 + $0x68] sm:$0xff]
    %v272 = vld [vmem:[%s5 + $0x70] sm:$0xff]
    %v273 = vld [vmem:[%s5 + $0x78] sm:$0xff]
    %v274 = vld [vmem:[%s5 + $0x80] sm:$0xff]
    %v275 = vld [vmem:[%s5 + $0x88] sm:$0xff]
    %v276 = vld [vmem:[%s5 + $0x90] sm:$0xff]
    %v277 = vld [vmem:[%s5 + $0x98] sm:$0xff]
    %v278 = vld [vmem:[%s5 + $0xa0] sm:$0xff]
    %v279 = vld [vmem:[%s5 + $0xa8] sm:$0xff]
    %v280 = vld [vmem:[%s5 + $0xb0] sm:$0xff]
    %v281 = vld [vmem:[%s5 + $0xb8] sm:$0xff]
    %v282 = vld [vmem:[%s5 + $0xc0] sm:$0xff]
    %v283 = vld [vmem:[%s5 + $0xc8] sm:$0xff]
    %v284 = vld [vmem:[%s5 + $0xd0] sm:$0xff]
    %v285 = vld [vmem:[%s5 + $0xd8] sm:$0xff]
    %v286 = vld [vmem:[%s5 + $0xe0] sm:$0xff]
    %v287 = vld [vmem:[%s5 + $0xe8] sm:$0xff]
    %v288 = vld [vmem:[%s5 + $0xf0] sm:$0xff]
    %v289 = vld [vmem:[%s5 + $0xf8] sm:$0xff]
    %v290 = vld [vmem:[%s5 + $0x100] sm:$0xff]
    %v291 = vld [vmem:[%s5 + $0x108] sm:$0xff]
    %v292 = vld [vmem:[%s5 + $0x110] sm:$0xff]
    %v293 = vld [vmem:[%s5 + $0x118] sm:$0xff]
    %v294 = vld [vmem:[%s5 + $0x120] sm:$0xff]
    %v295 = vld [vmem:[%s5 + $0x128] sm:$0xff]
    %v296 = vld [vmem:[%s5 + $0x130] sm:$0xff]
    %v297 = vld [vmem:[%s5 + $0x138] sm:$0xff]
    %v298 = vld [vmem:[%s5 + $0x140] sm:$0xff]
    %v299 = vld [vmem:[%s5 + $0x148] sm:$0xff]
    %v300 = vld [vmem:[%s5 + $0x150] sm:$0xff]
    %v301 = vld [vmem:[%s5 + $0x158] sm:$0xff]
    %v302 = vld [vmem:[%s5 + $0x160] sm:$0xff]
    %v303 = vld [vmem:[%s5 + $0x168] sm:$0xff]
    %v304 = vld [vmem:[%s5 + $0x170] sm:$0xff]
    %v305 = vld [vmem:[%s5 + $0x178] sm:$0xff]
    %v306 = vld [vmem:[%s5 + $0x180] sm:$0xff]
    %v307 = vld [vmem:[%s5 + $0x188] sm:$0xff]
    %v308 = vld [vmem:[%s5 + $0x190] sm:$0xff]
    %v309 = vld [vmem:[%s5 + $0x198] sm:$0xff]
    %v310 = vld [vmem:[%s5 + $0x1a0] sm:$0xff]
    %v311 = vld [vmem:[%s5 + $0x1a8] sm:$0xff]
    %v312 = vld [vmem:[%s5 + $0x1b0] sm:$0xff]
    %v313 = vld [vmem:[%s5 + $0x1b8] sm:$0xff]
    %v314 = vld [vmem:[%s5 + $0x1c0] sm:$0xff]
    %v315 = vld [vmem:[%s5 + $0x1c8] sm:$0xff]
    %v316 = vld [vmem:[%s5 + $0x1d0] sm:$0xff]
    %v317 = vld [vmem:[%s5 + $0x1d8] sm:$0xff]
    %v318 = vld [vmem:[%s5 + $0x1e0] sm:$0xff]
    %v319 = vld [vmem:[%s5 + $0x1e8] sm:$0xff]
    %v320 = vld [vmem:[%s5 + $0x1f0] sm:$0xff]
    %v321 = vld [vmem:[%s5 + $0x1f8] sm:$0xff]
    %v322 = vld [vmem:[%s6] sm:$0xff]
    %v323 = vld [vmem:[%s6 + $0x8] sm:$0xff]
    %v326 = vlaneseq
    %v327 = vshrl.u32 %v326, 7
    %v328 = vsub.s32 0, %v327
    %v329 = vrot.slane %v322, %v328
    %v330 = vlaneseq
    %v331 = vshrl.u32 %v330, 7
    %v332 = vsub.s32 1, %v331
    %v333 = vrot.slane %v322, %v332
    %v334 = vlaneseq
    %v335 = vshrl.u32 %v334, 7
    %v336 = vsub.s32 2, %v335
    %v337 = vrot.slane %v322, %v336
    %v338 = vlaneseq
    %v339 = vshrl.u32 %v338, 7
    %v340 = vsub.s32 3, %v339
    %v341 = vrot.slane %v322, %v340
    %v342 = vlaneseq
    %v343 = vshrl.u32 %v342, 7
    %v344 = vsub.s32 4, %v343
    %v345 = vrot.slane %v322, %v344
    %v346 = vlaneseq
    %v347 = vshrl.u32 %v346, 7
    %v348 = vsub.s32 5, %v347
    %v349 = vrot.slane %v322, %v348
    %v350 = vlaneseq
    %v351 = vshrl.u32 %v350, 7
    %v352 = vsub.s32 6, %v351
    %v353 = vrot.slane %v322, %v352
    %v354 = vlaneseq
    %v355 = vshrl.u32 %v354, 7
    %v356 = vsub.s32 7, %v355
    %v357 = vrot.slane %v322, %v356
    %v358 = vlaneseq
    %v359 = vshrl.u32 %v358, 7
    %v360 = vsub.s32 0, %v359
    %v361 = vrot.slane %v323, %v360
    %v362 = vlaneseq
    %v363 = vshrl.u32 %v362, 7
    %v364 = vsub.s32 1, %v363
    %v365 = vrot.slane %v323, %v364
    %v366 = vlaneseq
    %v367 = vshrl.u32 %v366, 7
    %v368 = vsub.s32 2, %v367
    %v369 = vrot.slane %v323, %v368
    %v370 = vlaneseq
    %v371 = vshrl.u32 %v370, 7
    %v372 = vsub.s32 3, %v371
    %v373 = vrot.slane %v323, %v372
    %v374 = vlaneseq
    %v375 = vshrl.u32 %v374, 7
    %v376 = vsub.s32 4, %v375
    %v377 = vrot.slane %v323, %v376
    %v378 = vlaneseq
    %v379 = vshrl.u32 %v378, 7
    %v380 = vsub.s32 5, %v379
    %v381 = vrot.slane %v323, %v380
    %v382 = vlaneseq
    %v383 = vshrl.u32 %v382, 7
    %v384 = vsub.s32 6, %v383
    %v385 = vrot.slane %v323, %v384
    %v386 = vlaneseq
    %v387 = vshrl.u32 %v386, 7
    %v388 = vsub.s32 7, %v387
    %v389 = vrot.slane %v323, %v388
    %v470 = vunpack.c.l.b16 %v258
    %v471 = vunpack.c.h.b16 %v258
    %v472 = vunpack.c.l.b16 %v259
    %v473 = vunpack.c.h.b16 %v259
    %v474 = vunpack.c.l.b16 %v260
    %v475 = vunpack.c.h.b16 %v260
    %v476 = vunpack.c.l.b16 %v261
    %v477 = vunpack.c.h.b16 %v261
    %v478 = vunpack.c.l.b16 %v262
    %v479 = vunpack.c.h.b16 %v262
    %v480 = vunpack.c.l.b16 %v263
    %v481 = vunpack.c.h.b16 %v263
    %v482 = vunpack.c.l.b16 %v264
    %v483 = vunpack.c.h.b16 %v264
    %v484 = vunpack.c.l.b16 %v265
    %v485 = vunpack.c.h.b16 %v265
    %v486 = vunpack.c.l.b16 %v266
    %v487 = vunpack.c.h.b16 %v266
    %v488 = vunpack.c.l.b16 %v267
    %v489 = vunpack.c.h.b16 %v267
    %v490 = vunpack.c.l.b16 %v268
    %v491 = vunpack.c.h.b16 %v268
    %v492 = vunpack.c.l.b16 %v269
    %v493 = vunpack.c.h.b16 %v269
    %v494 = vunpack.c.l.b16 %v270
    %v495 = vunpack.c.h.b16 %v270
    %v496 = vunpack.c.l.b16 %v271
    %v497 = vunpack.c.h.b16 %v271
    %v498 = vunpack.c.l.b16 %v272
    %v499 = vunpack.c.h.b16 %v272
    %v500 = vunpack.c.l.b16 %v273
    %v501 = vunpack.c.h.b16 %v273
    %v502 = vunpack.c.l.b16 %v274
    %v503 = vunpack.c.h.b16 %v274
    %v504 = vunpack.c.l.b16 %v275
    %v505 = vunpack.c.h.b16 %v275
    %v506 = vunpack.c.l.b16 %v276
    %v507 = vunpack.c.h.b16 %v276
    %v508 = vunpack.c.l.b16 %v277
    %v509 = vunpack.c.h.b16 %v277
    %v510 = vunpack.c.l.b16 %v278
    %v511 = vunpack.c.h.b16 %v278
    %v512 = vunpack.c.l.b16 %v279
    %v513 = vunpack.c.h.b16 %v279
    %v514 = vunpack.c.l.b16 %v280
    %v515 = vunpack.c.h.b16 %v280
    %v516 = vunpack.c.l.b16 %v281
    %v517 = vunpack.c.h.b16 %v281
    %v518 = vunpack.c.l.b16 %v282
    %v519 = vunpack.c.h.b16 %v282
    %v520 = vunpack.c.l.b16 %v283
    %v521 = vunpack.c.h.b16 %v283
    %v522 = vunpack.c.l.b16 %v284
    %v523 = vunpack.c.h.b16 %v284
    %v524 = vunpack.c.l.b16 %v285
    %v525 = vunpack.c.h.b16 %v285
    %v526 = vunpack.c.l.b16 %v286
    %v527 = vunpack.c.h.b16 %v286
    %v528 = vunpack.c.l.b16 %v287
    %v529 = vunpack.c.h.b16 %v287
    %v530 = vunpack.c.l.b16 %v288
    %v531 = vunpack.c.h.b16 %v288
    %v532 = vunpack.c.l.b16 %v289
    %v533 = vunpack.c.h.b16 %v289
    %v534 = vunpack.c.l.b16 %v290
    %v535 = vunpack.c.h.b16 %v290
    %v536 = vunpack.c.l.b16 %v291
    %v537 = vunpack.c.h.b16 %v291
    %v538 = vunpack.c.l.b16 %v292
    %v539 = vunpack.c.h.b16 %v292
    %v540 = vunpack.c.l.b16 %v293
    %v541 = vunpack.c.h.b16 %v293
    %v542 = vunpack.c.l.b16 %v294
    %v543 = vunpack.c.h.b16 %v294
    %v544 = vunpack.c.l.b16 %v295
    %v545 = vunpack.c.h.b16 %v295
    %v546 = vunpack.c.l.b16 %v296
    %v547 = vunpack.c.h.b16 %v296
    %v548 = vunpack.c.l.b16 %v297
    %v549 = vunpack.c.h.b16 %v297
    %v550 = vunpack.c.l.b16 %v298
    %v551 = vunpack.c.h.b16 %v298
    %v552 = vunpack.c.l.b16 %v299
    %v553 = vunpack.c.h.b16 %v299
    %v554 = vunpack.c.l.b16 %v300
    %v555 = vunpack.c.h.b16 %v300
    %v556 = vunpack.c.l.b16 %v301
    %v557 = vunpack.c.h.b16 %v301
    %v558 = vunpack.c.l.b16 %v302
    %v559 = vunpack.c.h.b16 %v302
    %v560 = vunpack.c.l.b16 %v303
    %v561 = vunpack.c.h.b16 %v303
    %v562 = vunpack.c.l.b16 %v304
    %v563 = vunpack.c.h.b16 %v304
    %v564 = vunpack.c.l.b16 %v305
    %v565 = vunpack.c.h.b16 %v305
    %v566 = vunpack.c.l.b16 %v306
    %v567 = vunpack.c.h.b16 %v306
    %v568 = vunpack.c.l.b16 %v307
    %v569 = vunpack.c.h.b16 %v307
    %v570 = vunpack.c.l.b16 %v308
    %v571 = vunpack.c.h.b16 %v308
    %v572 = vunpack.c.l.b16 %v309
    %v573 = vunpack.c.h.b16 %v309
    %v574 = vunpack.c.l.b16 %v310
    %v575 = vunpack.c.h.b16 %v310
    %v576 = vunpack.c.l.b16 %v311
    %v577 = vunpack.c.h.b16 %v311
    %v578 = vunpack.c.l.b16 %v312
    %v579 = vunpack.c.h.b16 %v312
    %v580 = vunpack.c.l.b16 %v313
    %v581 = vunpack.c.h.b16 %v313
    %v582 = vunpack.c.l.b16 %v314
    %v583 = vunpack.c.h.b16 %v314
    %v584 = vunpack.c.l.b16 %v315
    %v585 = vunpack.c.h.b16 %v315
    %v586 = vunpack.c.l.b16 %v316
    %v587 = vunpack.c.h.b16 %v316
    %v588 = vunpack.c.l.b16 %v317
    %v589 = vunpack.c.h.b16 %v317
    %v590 = vunpack.c.l.b16 %v318
    %v591 = vunpack.c.h.b16 %v318
    %v592 = vunpack.c.l.b16 %v319
    %v593 = vunpack.c.h.b16 %v319
    %v594 = vunpack.c.l.b16 %v320
    %v595 = vunpack.c.h.b16 %v320
    %v596 = vunpack.c.l.b16 %v321
    %v597 = vunpack.c.h.b16 %v321
    %v598 = vpack.c.b16 %v486, %v470
    %v599 = vpack.c.b16 %v487, %v471
    %v600 = vpack.c.b16 %v488, %v472
    %v601 = vpack.c.b16 %v489, %v473
    %v602 = vpack.c.b16 %v490, %v474
    %v603 = vpack.c.b16 %v491, %v475
    %v604 = vpack.c.b16 %v492, %v476
    %v605 = vpack.c.b16 %v493, %v477
    %v606 = vpack.c.b16 %v494, %v478
    %v607 = vpack.c.b16 %v495, %v479
    %v608 = vpack.c.b16 %v496, %v480
    %v609 = vpack.c.b16 %v497, %v481
    %v610 = vpack.c.b16 %v498, %v482
    %v611 = vpack.c.b16 %v499, %v483
    %v612 = vpack.c.b16 %v500, %v484
    %v613 = vpack.c.b16 %v501, %v485
    %v614 = vpack.c.b16 %v518, %v502
    %v615 = vpack.c.b16 %v519, %v503
    %v616 = vpack.c.b16 %v520, %v504
    %v617 = vpack.c.b16 %v521, %v505
    %v618 = vpack.c.b16 %v522, %v506
    %v619 = vpack.c.b16 %v523, %v507
    %v620 = vpack.c.b16 %v524, %v508
    %v621 = vpack.c.b16 %v525, %v509
    %v622 = vpack.c.b16 %v526, %v510
    %v623 = vpack.c.b16 %v527, %v511
    %v624 = vpack.c.b16 %v528, %v512
    %v625 = vpack.c.b16 %v529, %v513
    %v626 = vpack.c.b16 %v530, %v514
    %v627 = vpack.c.b16 %v531, %v515
    %v628 = vpack.c.b16 %v532, %v516
    %v629 = vpack.c.b16 %v533, %v517
    %v630 = vpack.c.b16 %v550, %v534
    %v631 = vpack.c.b16 %v551, %v535
    %v632 = vpack.c.b16 %v552, %v536
    %v633 = vpack.c.b16 %v553, %v537
    %v634 = vpack.c.b16 %v554, %v538
    %v635 = vpack.c.b16 %v555, %v539
    %v636 = vpack.c.b16 %v556, %v540
    %v637 = vpack.c.b16 %v557, %v541
    %v638 = vpack.c.b16 %v558, %v542
    %v639 = vpack.c.b16 %v559, %v543
    %v640 = vpack.c.b16 %v560, %v544
    %v641 = vpack.c.b16 %v561, %v545
    %v642 = vpack.c.b16 %v562, %v546
    %v643 = vpack.c.b16 %v563, %v547
    %v644 = vpack.c.b16 %v564, %v548
    %v645 = vpack.c.b16 %v565, %v549
    %v646 = vpack.c.b16 %v582, %v566
    %v647 = vpack.c.b16 %v583, %v567
    %v648 = vpack.c.b16 %v584, %v568
    %v649 = vpack.c.b16 %v585, %v569
    %v650 = vpack.c.b16 %v586, %v570
    %v651 = vpack.c.b16 %v587, %v571
    %v652 = vpack.c.b16 %v588, %v572
    %v653 = vpack.c.b16 %v589, %v573
    %v654 = vpack.c.b16 %v590, %v574
    %v655 = vpack.c.b16 %v591, %v575
    %v656 = vpack.c.b16 %v592, %v576
    %v657 = vpack.c.b16 %v593, %v577
    %v658 = vpack.c.b16 %v594, %v578
    %v659 = vpack.c.b16 %v595, %v579
    %v660 = vpack.c.b16 %v596, %v580
    %v661 = vpack.c.b16 %v597, %v581
    %v727 = vsel %vm182, %v257, 0
    %729 = vmatprep.subr.bf16.mxu0 %v599
    %730 = vmatpush1.bf16.msra.mxu0 %v598
    %731 = vmatprep.subr.bf16.mxu0 %v615
    %732 = vmatpush1.bf16.msra.mxu0 %v614
    %733 = vmatprep.subr.bf16.mxu0 %v631
    %734 = vmatpush1.bf16.msra.mxu0 %v630
    %735 = vmatprep.subr.bf16.mxu0 %v647
    %736 = vmatpush1.bf16.msra.mxu0 %v646
    %737 = vmatprep.subr.bf16.mxu0 0
    %738 = vmatpush1.bf16.msra.mxu0 0
    %739 = vmatprep.subr.bf16.mxu0 0
    %740 = vmatpush1.bf16.msra.mxu0 0
    %741 = vmatprep.subr.bf16.mxu0 0
    %742 = vmatpush1.bf16.msra.mxu0 0
    %743 = vmatprep.subr.bf16.mxu0 0
    %744 = vmatpush1.bf16.msra.mxu0 0
    %745 = vmatprep.subr.bf16.mxu0 0
    %746 = vmatpush1.bf16.msra.mxu0 0
    %747 = vmatprep.subr.bf16.mxu0 0
    %748 = vmatpush1.bf16.msra.mxu0 0
    %749 = vmatprep.subr.bf16.mxu0 0
    %750 = vmatpush1.bf16.msra.mxu0 0
    %751 = vmatprep.subr.bf16.mxu0 0
    %752 = vmatpush1.bf16.msra.mxu0 0
    %753 = vmatprep.subr.bf16.mxu0 0
    %754 = vmatpush1.bf16.msra.mxu0 0
    %755 = vmatprep.subr.bf16.mxu0 0
    %756 = vmatpush1.bf16.msra.mxu0 0
    %757 = vmatprep.subr.bf16.mxu0 0
    %758 = vmatpush1.bf16.msra.mxu0 0
    %759 = vmatprep.subr.bf16.mxu0 0
    %760 = vmatpush1.bf16.msra.mxu0 0
    %761 = vmatprep.mubr.bf16.mxu0 0
    %762 = vmatmul.mubr.bf16.gmra.mrb[0].mxu0 %v727
    %v763 = vpop.f32.mrb[0].mxu0
    %v764 = vadd.f32 %v329, %v763
    %v765 = vpop.f32.mrb[0].mxu0
    %v766 = vadd.f32 %v333, %v765
    %v767 = vpop.f32.mrb[0].mxu0
    %v768 = vpop.f32.mrb[0].mxu0
    %769 = vdwg.mxu0
    %770 = vmatprep.subr.bf16.mxu0 %v601
    %771 = vmatpush1.bf16.msra.mxu0 %v600
    %772 = vmatprep.subr.bf16.mxu0 %v617
    %773 = vmatpush1.bf16.msra.mxu0 %v616
    %774 = vmatprep.subr.bf16.mxu0 %v633
    %775 = vmatpush1.bf16.msra.mxu0 %v632
    %776 = vmatprep.subr.bf16.mxu0 %v649
    %777 = vmatpush1.bf16.msra.mxu0 %v648
    %778 = vmatprep.subr.bf16.mxu0 0
    %779 = vmatpush1.bf16.msra.mxu0 0
    %780 = vmatprep.subr.bf16.mxu0 0
    %781 = vmatpush1.bf16.msra.mxu0 0
    %782 = vmatprep.subr.bf16.mxu0 0
    %783 = vmatpush1.bf16.msra.mxu0 0
    %784 = vmatprep.subr.bf16.mxu0 0
    %785 = vmatpush1.bf16.msra.mxu0 0
    %786 = vmatprep.subr.bf16.mxu0 0
    %787 = vmatpush1.bf16.msra.mxu0 0
    %788 = vmatprep.subr.bf16.mxu0 0
    %789 = vmatpush1.bf16.msra.mxu0 0
    %790 = vmatprep.subr.bf16.mxu0 0
    %791 = vmatpush1.bf16.msra.mxu0 0
    %792 = vmatprep.subr.bf16.mxu0 0
    %793 = vmatpush1.bf16.msra.mxu0 0
    %794 = vmatprep.subr.bf16.mxu0 0
    %795 = vmatpush1.bf16.msra.mxu0 0
    %796 = vmatprep.subr.bf16.mxu0 0
    %797 = vmatpush1.bf16.msra.mxu0 0
    %798 = vmatprep.subr.bf16.mxu0 0
    %799 = vmatpush1.bf16.msra.mxu0 0
    %800 = vmatprep.subr.bf16.mxu0 0
    %801 = vmatpush1.bf16.msra.mxu0 0
    %802 = vmatprep.mubr.bf16.mxu0 0
    %803 = vmatmul.mubr.bf16.gmra.mrb[0].mxu0 %v727
    %v804 = vpop.f32.mrb[0].mxu0
    %v805 = vadd.f32 %v337, %v804
    %v806 = vpop.f32.mrb[0].mxu0
    %v807 = vadd.f32 %v341, %v806
    %v808 = vpop.f32.mrb[0].mxu0
    %v809 = vpop.f32.mrb[0].mxu0
    %810 = vdwg.mxu0
    %811 = vmatprep.subr.bf16.mxu0 %v603
    %812 = vmatpush1.bf16.msra.mxu0 %v602
    %813 = vmatprep.subr.bf16.mxu0 %v619
    %814 = vmatpush1.bf16.msra.mxu0 %v618
    %815 = vmatprep.subr.bf16.mxu0 %v635
    %816 = vmatpush1.bf16.msra.mxu0 %v634
    %817 = vmatprep.subr.bf16.mxu0 %v651
    %818 = vmatpush1.bf16.msra.mxu0 %v650
    %819 = vmatprep.subr.bf16.mxu0 0
    %820 = vmatpush1.bf16.msra.mxu0 0
    %821 = vmatprep.subr.bf16.mxu0 0
    %822 = vmatpush1.bf16.msra.mxu0 0
    %823 = vmatprep.subr.bf16.mxu0 0
    %824 = vmatpush1.bf16.msra.mxu0 0
    %825 = vmatprep.subr.bf16.mxu0 0
    %826 = vmatpush1.bf16.msra.mxu0 0
    %827 = vmatprep.subr.bf16.mxu0 0
    %828 = vmatpush1.bf16.msra.mxu0 0
    %829 = vmatprep.subr.bf16.mxu0 0
    %830 = vmatpush1.bf16.msra.mxu0 0
    %831 = vmatprep.subr.bf16.mxu0 0
    %832 = vmatpush1.bf16.msra.mxu0 0
    %833 = vmatprep.subr.bf16.mxu0 0
    %834 = vmatpush1.bf16.msra.mxu0 0
    %835 = vmatprep.subr.bf16.mxu0 0
    %836 = vmatpush1.bf16.msra.mxu0 0
    %837 = vmatprep.subr.bf16.mxu0 0
    %838 = vmatpush1.bf16.msra.mxu0 0
    %839 = vmatprep.subr.bf16.mxu0 0
    %840 = vmatpush1.bf16.msra.mxu0 0
    %841 = vmatprep.subr.bf16.mxu0 0
    %842 = vmatpush1.bf16.msra.mxu0 0
    %843 = vmatprep.mubr.bf16.mxu0 0
    %844 = vmatmul.mubr.bf16.gmra.mrb[0].mxu0 %v727
    %v845 = vpop.f32.mrb[0].mxu0
    %v846 = vadd.f32 %v345, %v845
    %v847 = vpop.f32.mrb[0].mxu0
    %v848 = vadd.f32 %v349, %v847
    %v849 = vpop.f32.mrb[0].mxu0
    %v850 = vpop.f32.mrb[0].mxu0
    %851 = vdwg.mxu0
    %852 = vmatprep.subr.bf16.mxu0 %v605
    %853 = vmatpush1.bf16.msra.mxu0 %v604
    %854 = vmatprep.subr.bf16.mxu0 %v621
    %855 = vmatpush1.bf16.msra.mxu0 %v620
    %856 = vmatprep.subr.bf16.mxu0 %v637
    %857 = vmatpush1.bf16.msra.mxu0 %v636
    %858 = vmatprep.subr.bf16.mxu0 %v653
    %859 = vmatpush1.bf16.msra.mxu0 %v652
    %860 = vmatprep.subr.bf16.mxu0 0
    %861 = vmatpush1.bf16.msra.mxu0 0
    %862 = vmatprep.subr.bf16.mxu0 0
    %863 = vmatpush1.bf16.msra.mxu0 0
    %864 = vmatprep.subr.bf16.mxu0 0
    %865 = vmatpush1.bf16.msra.mxu0 0
    %866 = vmatprep.subr.bf16.mxu0 0
    %867 = vmatpush1.bf16.msra.mxu0 0
    %868 = vmatprep.subr.bf16.mxu0 0
    %869 = vmatpush1.bf16.msra.mxu0 0
    %870 = vmatprep.subr.bf16.mxu0 0
    %871 = vmatpush1.bf16.msra.mxu0 0
    %872 = vmatprep.subr.bf16.mxu0 0
    %873 = vmatpush1.bf16.msra.mxu0 0
    %874 = vmatprep.subr.bf16.mxu0 0
    %875 = vmatpush1.bf16.msra.mxu0 0
    %876 = vmatprep.subr.bf16.mxu0 0
    %877 = vmatpush1.bf16.msra.mxu0 0
    %878 = vmatprep.subr.bf16.mxu0 0
    %879 = vmatpush1.bf16.msra.mxu0 0
    %880 = vmatprep.subr.bf16.mxu0 0
    %881 = vmatpush1.bf16.msra.mxu0 0
    %882 = vmatprep.subr.bf16.mxu0 0
    %883 = vmatpush1.bf16.msra.mxu0 0
    %884 = vmatprep.mubr.bf16.mxu0 0
    %885 = vmatmul.mubr.bf16.gmra.mrb[0].mxu0 %v727
    %v886 = vpop.f32.mrb[0].mxu0
    %v887 = vadd.f32 %v353, %v886
    %v888 = vpop.f32.mrb[0].mxu0
    %v889 = vadd.f32 %v357, %v888
    %v890 = vpop.f32.mrb[0].mxu0
    %v891 = vpop.f32.mrb[0].mxu0
    %892 = vdwg.mxu0
    %893 = vmatprep.subr.bf16.mxu0 %v607
    %894 = vmatpush1.bf16.msra.mxu0 %v606
    %895 = vmatprep.subr.bf16.mxu0 %v623
    %896 = vmatpush1.bf16.msra.mxu0 %v622
    %897 = vmatprep.subr.bf16.mxu0 %v639
    %898 = vmatpush1.bf16.msra.mxu0 %v638
    %899 = vmatprep.subr.bf16.mxu0 %v655
    %900 = vmatpush1.bf16.msra.mxu0 %v654
    %901 = vmatprep.subr.bf16.mxu0 0
    %902 = vmatpush1.bf16.msra.mxu0 0
    %903 = vmatprep.subr.bf16.mxu0 0
    %904 = vmatpush1.bf16.msra.mxu0 0
    %905 = vmatprep.subr.bf16.mxu0 0
    %906 = vmatpush1.bf16.msra.mxu0 0
    %907 = vmatprep.subr.bf16.mxu0 0
    %908 = vmatpush1.bf16.msra.mxu0 0
    %909 = vmatprep.subr.bf16.mxu0 0
    %910 = vmatpush1.bf16.msra.mxu0 0
    %911 = vmatprep.subr.bf16.mxu0 0
    %912 = vmatpush1.bf16.msra.mxu0 0
    %913 = vmatprep.subr.bf16.mxu0 0
    %914 = vmatpush1.bf16.msra.mxu0 0
    %915 = vmatprep.subr.bf16.mxu0 0
    %916 = vmatpush1.bf16.msra.mxu0 0
    %917 = vmatprep.subr.bf16.mxu0 0
    %918 = vmatpush1.bf16.msra.mxu0 0
    %919 = vmatprep.subr.bf16.mxu0 0
    %920 = vmatpush1.bf16.msra.mxu0 0
    %921 = vmatprep.subr.bf16.mxu0 0
    %922 = vmatpush1.bf16.msra.mxu0 0
    %923 = vmatprep.subr.bf16.mxu0 0
    %924 = vmatpush1.bf16.msra.mxu0 0
    %925 = vmatprep.mubr.bf16.mxu0 0
    %926 = vmatmul.mubr.bf16.gmra.mrb[0].mxu0 %v727
    %v927 = vpop.f32.mrb[0].mxu0
    %v928 = vadd.f32 %v361, %v927
    %v929 = vpop.f32.mrb[0].mxu0
    %v930 = vadd.f32 %v365, %v929
    %v931 = vpop.f32.mrb[0].mxu0
    %v932 = vpop.f32.mrb[0].mxu0
    %933 = vdwg.mxu0
    %934 = vmatprep.subr.bf16.mxu0 %v609
    %935 = vmatpush1.bf16.msra.mxu0 %v608
    %936 = vmatprep.subr.bf16.mxu0 %v625
    %937 = vmatpush1.bf16.msra.mxu0 %v624
    %938 = vmatprep.subr.bf16.mxu0 %v641
    %939 = vmatpush1.bf16.msra.mxu0 %v640
    %940 = vmatprep.subr.bf16.mxu0 %v657
    %941 = vmatpush1.bf16.msra.mxu0 %v656
    %942 = vmatprep.subr.bf16.mxu0 0
    %943 = vmatpush1.bf16.msra.mxu0 0
    %944 = vmatprep.subr.bf16.mxu0 0
    %945 = vmatpush1.bf16.msra.mxu0 0
    %946 = vmatprep.subr.bf16.mxu0 0
    %947 = vmatpush1.bf16.msra.mxu0 0
    %948 = vmatprep.subr.bf16.mxu0 0
    %949 = vmatpush1.bf16.msra.mxu0 0
    %950 = vmatprep.subr.bf16.mxu0 0
    %951 = vmatpush1.bf16.msra.mxu0 0
    %952 = vmatprep.subr.bf16.mxu0 0
    %953 = vmatpush1.bf16.msra.mxu0 0
    %954 = vmatprep.subr.bf16.mxu0 0
    %955 = vmatpush1.bf16.msra.mxu0 0
    %956 = vmatprep.subr.bf16.mxu0 0
    %957 = vmatpush1.bf16.msra.mxu0 0
    %958 = vmatprep.subr.bf16.mxu0 0
    %959 = vmatpush1.bf16.msra.mxu0 0
    %960 = vmatprep.subr.bf16.mxu0 0
    %961 = vmatpush1.bf16.msra.mxu0 0
    %962 = vmatprep.subr.bf16.mxu0 0
    %963 = vmatpush1.bf16.msra.mxu0 0
    %964 = vmatprep.subr.bf16.mxu0 0
    %965 = vmatpush1.bf16.msra.mxu0 0
    %966 = vmatprep.mubr.bf16.mxu0 0
    %967 = vmatmul.mubr.bf16.gmra.mrb[0].mxu0 %v727
    %v968 = vpop.f32.mrb[0].mxu0
    %v969 = vadd.f32 %v369, %v968
    %v970 = vpop.f32.mrb[0].mxu0
    %v971 = vadd.f32 %v373, %v970
    %v972 = vpop.f32.mrb[0].mxu0
    %v973 = vpop.f32.mrb[0].mxu0
    %974 = vdwg.mxu0
    %975 = vmatprep.subr.bf16.mxu0 %v611
    %976 = vmatpush1.bf16.msra.mxu0 %v610
    %977 = vmatprep.subr.bf16.mxu0 %v627
    %978 = vmatpush1.bf16.msra.mxu0 %v626
    %979 = vmatprep.subr.bf16.mxu0 %v643
    %980 = vmatpush1.bf16.msra.mxu0 %v642
    %981 = vmatprep.subr.bf16.mxu0 %v659
    %982 = vmatpush1.bf16.msra.mxu0 %v658
    %983 = vmatprep.subr.bf16.mxu0 0
    %984 = vmatpush1.bf16.msra.mxu0 0
    %985 = vmatprep.subr.bf16.mxu0 0
    %986 = vmatpush1.bf16.msra.mxu0 0
    %987 = vmatprep.subr.bf16.mxu0 0
    %988 = vmatpush1.bf16.msra.mxu0 0
    %989 = vmatprep.subr.bf16.mxu0 0
    %990 = vmatpush1.bf16.msra.mxu0 0
    %991 = vmatprep.subr.bf16.mxu0 0
    %992 = vmatpush1.bf16.msra.mxu0 0
    %993 = vmatprep.subr.bf16.mxu0 0
    %994 = vmatpush1.bf16.msra.mxu0 0
    %995 = vmatprep.subr.bf16.mxu0 0
    %996 = vmatpush1.bf16.msra.mxu0 0
    %997 = vmatprep.subr.bf16.mxu0 0
    %998 = vmatpush1.bf16.msra.mxu0 0
    %999 = vmatprep.subr.bf16.mxu0 0
    %1000 = vmatpush1.bf16.msra.mxu0 0
    %1001 = vmatprep.subr.bf16.mxu0 0
    %1002 = vmatpush1.bf16.msra.mxu0 0
    %1003 = vmatprep.subr.bf16.mxu0 0
    %1004 = vmatpush1.bf16.msra.mxu0 0
    %1005 = vmatprep.subr.bf16.mxu0 0
    %1006 = vmatpush1.bf16.msra.mxu0 0
    %1007 = vmatprep.mubr.bf16.mxu0 0
    %1008 = vmatmul.mubr.bf16.gmra.mrb[0].mxu0 %v727
    %v1009 = vpop.f32.mrb[0].mxu0
    %v1010 = vadd.f32 %v377, %v1009
    %v1011 = vpop.f32.mrb[0].mxu0
    %v1012 = vadd.f32 %v381, %v1011
    %v1013 = vpop.f32.mrb[0].mxu0
    %v1014 = vpop.f32.mrb[0].mxu0
    %1015 = vdwg.mxu0
    %1016 = vmatprep.subr.bf16.mxu0 %v613
    %1017 = vmatpush1.bf16.msra.mxu0 %v612
    %1018 = vmatprep.subr.bf16.mxu0 %v629
    %1019 = vmatpush1.bf16.msra.mxu0 %v628
    %1020 = vmatprep.subr.bf16.mxu0 %v645
    %1021 = vmatpush1.bf16.msra.mxu0 %v644
    %1022 = vmatprep.subr.bf16.mxu0 %v661
    %1023 = vmatpush1.bf16.msra.mxu0 %v660
    %1024 = vmatprep.subr.bf16.mxu0 0
    %1025 = vmatpush1.bf16.msra.mxu0 0
    %1026 = vmatprep.subr.bf16.mxu0 0
    %1027 = vmatpush1.bf16.msra.mxu0 0
    %1028 = vmatprep.subr.bf16.mxu0 0
    %1029 = vmatpush1.bf16.msra.mxu0 0
    %1030 = vmatprep.subr.bf16.mxu0 0
    %1031 = vmatpush1.bf16.msra.mxu0 0
    %1032 = vmatprep.subr.bf16.mxu0 0
    %1033 = vmatpush1.bf16.msra.mxu0 0
    %1034 = vmatprep.subr.bf16.mxu0 0
    %1035 = vmatpush1.bf16.msra.mxu0 0
    %1036 = vmatprep.subr.bf16.mxu0 0
    %1037 = vmatpush1.bf16.msra.mxu0 0
    %1038 = vmatprep.subr.bf16.mxu0 0
    %1039 = vmatpush1.bf16.msra.mxu0 0
    %1040 = vmatprep.subr.bf16.mxu0 0
    %1041 = vmatpush1.bf16.msra.mxu0 0
    %1042 = vmatprep.subr.bf16.mxu0 0
    %1043 = vmatpush1.bf16.msra.mxu0 0
    %1044 = vmatprep.subr.bf16.mxu0 0
    %1045 = vmatpush1.bf16.msra.mxu0 0
    %1046 = vmatprep.subr.bf16.mxu0 0
    %1047 = vmatpush1.bf16.msra.mxu0 0
    %1048 = vmatprep.mubr.bf16.mxu0 0
    %1049 = vmatmul.mubr.bf16.gmra.mrb[0].mxu0 %v727
    %v1050 = vpop.f32.mrb[0].mxu0
    %v1051 = vadd.f32 %v385, %v1050
    %v1052 = vpop.f32.mrb[0].mxu0
    %v1053 = vadd.f32 %v389, %v1052
    %v1054 = vpop.f32.mrb[0].mxu0
    %v1055 = vpop.f32.mrb[0].mxu0
    %1056 = vdwg.mxu0
    %v1057 = vmax.f32 %v764, 0.0
    %v1058 = vmax.f32 %v766, 0.0
    %v1059 = vmax.f32 %v805, 0.0
    %v1060 = vmax.f32 %v807, 0.0
    %v1061 = vmax.f32 %v846, 0.0
    %v1062 = vmax.f32 %v848, 0.0
    %v1063 = vmax.f32 %v887, 0.0
    %v1064 = vmax.f32 %v889, 0.0
    %v1065 = vmax.f32 %v928, 0.0
    %v1066 = vmax.f32 %v930, 0.0
    %v1067 = vmax.f32 %v969, 0.0
    %v1068 = vmax.f32 %v971, 0.0
    %v1069 = vmax.f32 %v1010, 0.0
    %v1070 = vmax.f32 %v1012, 0.0
    %v1071 = vmax.f32 %v1051, 0.0
    %v1072 = vmax.f32 %v1053, 0.0
    %v1073 = vpack.c.bf16 %v1057, %v1057
    %v1074 = vpack.c.bf16 %v1058, %v1058
    %v1075 = vpack.c.bf16 %v1059, %v1059
    %v1076 = vpack.c.bf16 %v1060, %v1060
    %v1077 = vpack.c.bf16 %v1061, %v1061
    %v1078 = vpack.c.bf16 %v1062, %v1062
    %v1079 = vpack.c.bf16 %v1063, %v1063
    %v1080 = vpack.c.bf16 %v1064, %v1064
    %v1081 = vpack.c.bf16 %v1065, %v1065
    %v1082 = vpack.c.bf16 %v1066, %v1066
    %v1083 = vpack.c.bf16 %v1067, %v1067
    %v1084 = vpack.c.bf16 %v1068, %v1068
    %v1085 = vpack.c.bf16 %v1069, %v1069
    %v1086 = vpack.c.bf16 %v1070, %v1070
    %v1087 = vpack.c.bf16 %v1071, %v1071
    %v1088 = vpack.c.bf16 %v1072, %v1072
    %v1089 = vld [vmem:[%s7] sm:$0xf]
    %v1090 = vld [vmem:[%s7 + $0x4] sm:$0xf]
    %v1091 = vld [vmem:[%s7 + $0x8] sm:$0xf]
    %v1092 = vld [vmem:[%s7 + $0xc] sm:$0xf]
    %v1093 = vld [vmem:[%s7 + $0x10] sm:$0xf]
    %v1094 = vld [vmem:[%s7 + $0x14] sm:$0xf]
    %v1095 = vld [vmem:[%s7 + $0x18] sm:$0xf]
    %v1096 = vld [vmem:[%s7 + $0x1c] sm:$0xf]
    %v1097 = vld [vmem:[%s7 + $0x20] sm:$0xf]
    %v1098 = vld [vmem:[%s7 + $0x24] sm:$0xf]
    %v1099 = vld [vmem:[%s7 + $0x28] sm:$0xf]
    %v1100 = vld [vmem:[%s7 + $0x2c] sm:$0xf]
    %v1101 = vld [vmem:[%s7 + $0x30] sm:$0xf]
    %v1102 = vld [vmem:[%s7 + $0x34] sm:$0xf]
    %v1103 = vld [vmem:[%s7 + $0x38] sm:$0xf]
    %v1104 = vld [vmem:[%s7 + $0x3c] sm:$0xf]
    %v1105 = vld [vmem:[%s7 + $0x40] sm:$0xf]
    %v1106 = vld [vmem:[%s7 + $0x44] sm:$0xf]
    %v1107 = vld [vmem:[%s7 + $0x48] sm:$0xf]
    %v1108 = vld [vmem:[%s7 + $0x4c] sm:$0xf]
    %v1109 = vld [vmem:[%s7 + $0x50] sm:$0xf]
    %v1110 = vld [vmem:[%s7 + $0x54] sm:$0xf]
    %v1111 = vld [vmem:[%s7 + $0x58] sm:$0xf]
    %v1112 = vld [vmem:[%s7 + $0x5c] sm:$0xf]
    %v1113 = vld [vmem:[%s7 + $0x60] sm:$0xf]
    %v1114 = vld [vmem:[%s7 + $0x64] sm:$0xf]
    %v1115 = vld [vmem:[%s7 + $0x68] sm:$0xf]
    %v1116 = vld [vmem:[%s7 + $0x6c] sm:$0xf]
    %v1117 = vld [vmem:[%s7 + $0x70] sm:$0xf]
    %v1118 = vld [vmem:[%s7 + $0x74] sm:$0xf]
    %v1119 = vld [vmem:[%s7 + $0x78] sm:$0xf]
    %v1120 = vld [vmem:[%s7 + $0x7c] sm:$0xf]
    %v1121 = vld [vmem:[%s7 + $0x80] sm:$0xf]
    %v1122 = vld [vmem:[%s7 + $0x84] sm:$0xf]
    %v1123 = vld [vmem:[%s7 + $0x88] sm:$0xf]
    %v1124 = vld [vmem:[%s7 + $0x8c] sm:$0xf]
    %v1125 = vld [vmem:[%s7 + $0x90] sm:$0xf]
    %v1126 = vld [vmem:[%s7 + $0x94] sm:$0xf]
    %v1127 = vld [vmem:[%s7 + $0x98] sm:$0xf]
    %v1128 = vld [vmem:[%s7 + $0x9c] sm:$0xf]
    %v1129 = vld [vmem:[%s7 + $0xa0] sm:$0xf]
    %v1130 = vld [vmem:[%s7 + $0xa4] sm:$0xf]
    %v1131 = vld [vmem:[%s7 + $0xa8] sm:$0xf]
    %v1132 = vld [vmem:[%s7 + $0xac] sm:$0xf]
    %v1133 = vld [vmem:[%s7 + $0xb0] sm:$0xf]
    %v1134 = vld [vmem:[%s7 + $0xb4] sm:$0xf]
    %v1135 = vld [vmem:[%s7 + $0xb8] sm:$0xf]
    %v1136 = vld [vmem:[%s7 + $0xbc] sm:$0xf]
    %v1137 = vld [vmem:[%s7 + $0xc0] sm:$0xf]
    %v1138 = vld [vmem:[%s7 + $0xc4] sm:$0xf]
    %v1139 = vld [vmem:[%s7 + $0xc8] sm:$0xf]
    %v1140 = vld [vmem:[%s7 + $0xcc] sm:$0xf]
    %v1141 = vld [vmem:[%s7 + $0xd0] sm:$0xf]
    %v1142 = vld [vmem:[%s7 + $0xd4] sm:$0xf]
    %v1143 = vld [vmem:[%s7 + $0xd8] sm:$0xf]
    %v1144 = vld [vmem:[%s7 + $0xdc] sm:$0xf]
    %v1145 = vld [vmem:[%s7 + $0xe0] sm:$0xf]
    %v1146 = vld [vmem:[%s7 + $0xe4] sm:$0xf]
    %v1147 = vld [vmem:[%s7 + $0xe8] sm:$0xf]
    %v1148 = vld [vmem:[%s7 + $0xec] sm:$0xf]
    %v1149 = vld [vmem:[%s7 + $0xf0] sm:$0xf]
    %v1150 = vld [vmem:[%s7 + $0xf4] sm:$0xf]
    %v1151 = vld [vmem:[%s7 + $0xf8] sm:$0xf]
    %v1152 = vld [vmem:[%s7 + $0xfc] sm:$0xf]
    %v1153 = vld [vmem:[%s7 + $0x100] sm:$0xf]
    %v1154 = vld [vmem:[%s7 + $0x104] sm:$0xf]
    %v1155 = vld [vmem:[%s7 + $0x108] sm:$0xf]
    %v1156 = vld [vmem:[%s7 + $0x10c] sm:$0xf]
    %v1157 = vld [vmem:[%s7 + $0x110] sm:$0xf]
    %v1158 = vld [vmem:[%s7 + $0x114] sm:$0xf]
    %v1159 = vld [vmem:[%s7 + $0x118] sm:$0xf]
    %v1160 = vld [vmem:[%s7 + $0x11c] sm:$0xf]
    %v1161 = vld [vmem:[%s7 + $0x120] sm:$0xf]
    %v1162 = vld [vmem:[%s7 + $0x124] sm:$0xf]
    %v1163 = vld [vmem:[%s7 + $0x128] sm:$0xf]
    %v1164 = vld [vmem:[%s7 + $0x12c] sm:$0xf]
    %v1165 = vld [vmem:[%s7 + $0x130] sm:$0xf]
    %v1166 = vld [vmem:[%s7 + $0x134] sm:$0xf]
    %v1167 = vld [vmem:[%s7 + $0x138] sm:$0xf]
    %v1168 = vld [vmem:[%s7 + $0x13c] sm:$0xf]
    %v1169 = vld [vmem:[%s7 + $0x140] sm:$0xf]
    %v1170 = vld [vmem:[%s7 + $0x144] sm:$0xf]
    %v1171 = vld [vmem:[%s7 + $0x148] sm:$0xf]
    %v1172 = vld [vmem:[%s7 + $0x14c] sm:$0xf]
    %v1173 = vld [vmem:[%s7 + $0x150] sm:$0xf]
    %v1174 = vld [vmem:[%s7 + $0x154] sm:$0xf]
    %v1175 = vld [vmem:[%s7 + $0x158] sm:$0xf]
    %v1176 = vld [vmem:[%s7 + $0x15c] sm:$0xf]
    %v1177 = vld [vmem:[%s7 + $0x160] sm:$0xf]
    %v1178 = vld [vmem:[%s7 + $0x164] sm:$0xf]
    %v1179 = vld [vmem:[%s7 + $0x168] sm:$0xf]
    %v1180 = vld [vmem:[%s7 + $0x16c] sm:$0xf]
    %v1181 = vld [vmem:[%s7 + $0x170] sm:$0xf]
    %v1182 = vld [vmem:[%s7 + $0x174] sm:$0xf]
    %v1183 = vld [vmem:[%s7 + $0x178] sm:$0xf]
    %v1184 = vld [vmem:[%s7 + $0x17c] sm:$0xf]
    %v1185 = vld [vmem:[%s7 + $0x180] sm:$0xf]
    %v1186 = vld [vmem:[%s7 + $0x184] sm:$0xf]
    %v1187 = vld [vmem:[%s7 + $0x188] sm:$0xf]
    %v1188 = vld [vmem:[%s7 + $0x18c] sm:$0xf]
    %v1189 = vld [vmem:[%s7 + $0x190] sm:$0xf]
    %v1190 = vld [vmem:[%s7 + $0x194] sm:$0xf]
    %v1191 = vld [vmem:[%s7 + $0x198] sm:$0xf]
    %v1192 = vld [vmem:[%s7 + $0x19c] sm:$0xf]
    %v1193 = vld [vmem:[%s7 + $0x1a0] sm:$0xf]
    %v1194 = vld [vmem:[%s7 + $0x1a4] sm:$0xf]
    %v1195 = vld [vmem:[%s7 + $0x1a8] sm:$0xf]
    %v1196 = vld [vmem:[%s7 + $0x1ac] sm:$0xf]
    %v1197 = vld [vmem:[%s7 + $0x1b0] sm:$0xf]
    %v1198 = vld [vmem:[%s7 + $0x1b4] sm:$0xf]
    %v1199 = vld [vmem:[%s7 + $0x1b8] sm:$0xf]
    %v1200 = vld [vmem:[%s7 + $0x1bc] sm:$0xf]
    %v1201 = vld [vmem:[%s7 + $0x1c0] sm:$0xf]
    %v1202 = vld [vmem:[%s7 + $0x1c4] sm:$0xf]
    %v1203 = vld [vmem:[%s7 + $0x1c8] sm:$0xf]
    %v1204 = vld [vmem:[%s7 + $0x1cc] sm:$0xf]
    %v1205 = vld [vmem:[%s7 + $0x1d0] sm:$0xf]
    %v1206 = vld [vmem:[%s7 + $0x1d4] sm:$0xf]
    %v1207 = vld [vmem:[%s7 + $0x1d8] sm:$0xf]
    %v1208 = vld [vmem:[%s7 + $0x1dc] sm:$0xf]
    %v1209 = vld [vmem:[%s7 + $0x1e0] sm:$0xf]
    %v1210 = vld [vmem:[%s7 + $0x1e4] sm:$0xf]
    %v1211 = vld [vmem:[%s7 + $0x1e8] sm:$0xf]
    %v1212 = vld [vmem:[%s7 + $0x1ec] sm:$0xf]
    %v1213 = vld [vmem:[%s7 + $0x1f0] sm:$0xf]
    %v1214 = vld [vmem:[%s7 + $0x1f4] sm:$0xf]
    %v1215 = vld [vmem:[%s7 + $0x1f8] sm:$0xf]
    %v1216 = vld [vmem:[%s7 + $0x1fc] sm:$0xf]
    %v1217 = vld [vmem:[%s7 + $0x200] sm:$0xf]
    %v1218 = vld [vmem:[%s7 + $0x204] sm:$0xf]
    %v1219 = vld [vmem:[%s7 + $0x208] sm:$0xf]
    %v1220 = vld [vmem:[%s7 + $0x20c] sm:$0xf]
    %v1221 = vld [vmem:[%s7 + $0x210] sm:$0xf]
    %v1222 = vld [vmem:[%s7 + $0x214] sm:$0xf]
    %v1223 = vld [vmem:[%s7 + $0x218] sm:$0xf]
    %v1224 = vld [vmem:[%s7 + $0x21c] sm:$0xf]
    %v1225 = vld [vmem:[%s7 + $0x220] sm:$0xf]
    %v1226 = vld [vmem:[%s7 + $0x224] sm:$0xf]
    %v1227 = vld [vmem:[%s7 + $0x228] sm:$0xf]
    %v1228 = vld [vmem:[%s7 + $0x22c] sm:$0xf]
    %v1229 = vld [vmem:[%s7 + $0x230] sm:$0xf]
    %v1230 = vld [vmem:[%s7 + $0x234] sm:$0xf]
    %v1231 = vld [vmem:[%s7 + $0x238] sm:$0xf]
    %v1232 = vld [vmem:[%s7 + $0x23c] sm:$0xf]
    %v1233 = vld [vmem:[%s7 + $0x240] sm:$0xf]
    %v1234 = vld [vmem:[%s7 + $0x244] sm:$0xf]
    %v1235 = vld [vmem:[%s7 + $0x248] sm:$0xf]
    %v1236 = vld [vmem:[%s7 + $0x24c] sm:$0xf]
    %v1237 = vld [vmem:[%s7 + $0x250] sm:$0xf]
    %v1238 = vld [vmem:[%s7 + $0x254] sm:$0xf]
    %v1239 = vld [vmem:[%s7 + $0x258] sm:$0xf]
    %v1240 = vld [vmem:[%s7 + $0x25c] sm:$0xf]
    %v1241 = vld [vmem:[%s7 + $0x260] sm:$0xf]
    %v1242 = vld [vmem:[%s7 + $0x264] sm:$0xf]
    %v1243 = vld [vmem:[%s7 + $0x268] sm:$0xf]
    %v1244 = vld [vmem:[%s7 + $0x26c] sm:$0xf]
    %v1245 = vld [vmem:[%s7 + $0x270] sm:$0xf]
    %v1246 = vld [vmem:[%s7 + $0x274] sm:$0xf]
    %v1247 = vld [vmem:[%s7 + $0x278] sm:$0xf]
    %v1248 = vld [vmem:[%s7 + $0x27c] sm:$0xf]
    %v1249 = vld [vmem:[%s7 + $0x280] sm:$0xf]
    %v1250 = vld [vmem:[%s7 + $0x284] sm:$0xf]
    %v1251 = vld [vmem:[%s7 + $0x288] sm:$0xf]
    %v1252 = vld [vmem:[%s7 + $0x28c] sm:$0xf]
    %v1253 = vld [vmem:[%s7 + $0x290] sm:$0xf]
    %v1254 = vld [vmem:[%s7 + $0x294] sm:$0xf]
    %v1255 = vld [vmem:[%s7 + $0x298] sm:$0xf]
    %v1256 = vld [vmem:[%s7 + $0x29c] sm:$0xf]
    %v1257 = vld [vmem:[%s7 + $0x2a0] sm:$0xf]
    %v1258 = vld [vmem:[%s7 + $0x2a4] sm:$0xf]
    %v1259 = vld [vmem:[%s7 + $0x2a8] sm:$0xf]
    %v1260 = vld [vmem:[%s7 + $0x2ac] sm:$0xf]
    %v1261 = vld [vmem:[%s7 + $0x2b0] sm:$0xf]
    %v1262 = vld [vmem:[%s7 + $0x2b4] sm:$0xf]
    %v1263 = vld [vmem:[%s7 + $0x2b8] sm:$0xf]
    %v1264 = vld [vmem:[%s7 + $0x2bc] sm:$0xf]
    %v1265 = vld [vmem:[%s7 + $0x2c0] sm:$0xf]
    %v1266 = vld [vmem:[%s7 + $0x2c4] sm:$0xf]
    %v1267 = vld [vmem:[%s7 + $0x2c8] sm:$0xf]
    %v1268 = vld [vmem:[%s7 + $0x2cc] sm:$0xf]
    %v1269 = vld [vmem:[%s7 + $0x2d0] sm:$0xf]
    %v1270 = vld [vmem:[%s7 + $0x2d4] sm:$0xf]
    %v1271 = vld [vmem:[%s7 + $0x2d8] sm:$0xf]
    %v1272 = vld [vmem:[%s7 + $0x2dc] sm:$0xf]
    %v1273 = vld [vmem:[%s7 + $0x2e0] sm:$0xf]
    %v1274 = vld [vmem:[%s7 + $0x2e4] sm:$0xf]
    %v1275 = vld [vmem:[%s7 + $0x2e8] sm:$0xf]
    %v1276 = vld [vmem:[%s7 + $0x2ec] sm:$0xf]
    %v1277 = vld [vmem:[%s7 + $0x2f0] sm:$0xf]
    %v1278 = vld [vmem:[%s7 + $0x2f4] sm:$0xf]
    %v1279 = vld [vmem:[%s7 + $0x2f8] sm:$0xf]
    %v1280 = vld [vmem:[%s7 + $0x2fc] sm:$0xf]
    %v1281 = vld [vmem:[%s7 + $0x300] sm:$0xf]
    %v1282 = vld [vmem:[%s7 + $0x304] sm:$0xf]
    %v1283 = vld [vmem:[%s7 + $0x308] sm:$0xf]
    %v1284 = vld [vmem:[%s7 + $0x30c] sm:$0xf]
    %v1285 = vld [vmem:[%s7 + $0x310] sm:$0xf]
    %v1286 = vld [vmem:[%s7 + $0x314] sm:$0xf]
    %v1287 = vld [vmem:[%s7 + $0x318] sm:$0xf]
    %v1288 = vld [vmem:[%s7 + $0x31c] sm:$0xf]
    %v1289 = vld [vmem:[%s7 + $0x320] sm:$0xf]
    %v1290 = vld [vmem:[%s7 + $0x324] sm:$0xf]
    %v1291 = vld [vmem:[%s7 + $0x328] sm:$0xf]
    %v1292 = vld [vmem:[%s7 + $0x32c] sm:$0xf]
    %v1293 = vld [vmem:[%s7 + $0x330] sm:$0xf]
    %v1294 = vld [vmem:[%s7 + $0x334] sm:$0xf]
    %v1295 = vld [vmem:[%s7 + $0x338] sm:$0xf]
    %v1296 = vld [vmem:[%s7 + $0x33c] sm:$0xf]
    %v1297 = vld [vmem:[%s7 + $0x340] sm:$0xf]
    %v1298 = vld [vmem:[%s7 + $0x344] sm:$0xf]
    %v1299 = vld [vmem:[%s7 + $0x348] sm:$0xf]
    %v1300 = vld [vmem:[%s7 + $0x34c] sm:$0xf]
    %v1301 = vld [vmem:[%s7 + $0x350] sm:$0xf]
    %v1302 = vld [vmem:[%s7 + $0x354] sm:$0xf]
    %v1303 = vld [vmem:[%s7 + $0x358] sm:$0xf]
    %v1304 = vld [vmem:[%s7 + $0x35c] sm:$0xf]
    %v1305 = vld [vmem:[%s7 + $0x360] sm:$0xf]
    %v1306 = vld [vmem:[%s7 + $0x364] sm:$0xf]
    %v1307 = vld [vmem:[%s7 + $0x368] sm:$0xf]
    %v1308 = vld [vmem:[%s7 + $0x36c] sm:$0xf]
    %v1309 = vld [vmem:[%s7 + $0x370] sm:$0xf]
    %v1310 = vld [vmem:[%s7 + $0x374] sm:$0xf]
    %v1311 = vld [vmem:[%s7 + $0x378] sm:$0xf]
    %v1312 = vld [vmem:[%s7 + $0x37c] sm:$0xf]
    %v1313 = vld [vmem:[%s7 + $0x380] sm:$0xf]
    %v1314 = vld [vmem:[%s7 + $0x384] sm:$0xf]
    %v1315 = vld [vmem:[%s7 + $0x388] sm:$0xf]
    %v1316 = vld [vmem:[%s7 + $0x38c] sm:$0xf]
    %v1317 = vld [vmem:[%s7 + $0x390] sm:$0xf]
    %v1318 = vld [vmem:[%s7 + $0x394] sm:$0xf]
    %v1319 = vld [vmem:[%s7 + $0x398] sm:$0xf]
    %v1320 = vld [vmem:[%s7 + $0x39c] sm:$0xf]
    %v1321 = vld [vmem:[%s7 + $0x3a0] sm:$0xf]
    %v1322 = vld [vmem:[%s7 + $0x3a4] sm:$0xf]
    %v1323 = vld [vmem:[%s7 + $0x3a8] sm:$0xf]
    %v1324 = vld [vmem:[%s7 + $0x3ac] sm:$0xf]
    %v1325 = vld [vmem:[%s7 + $0x3b0] sm:$0xf]
    %v1326 = vld [vmem:[%s7 + $0x3b4] sm:$0xf]
    %v1327 = vld [vmem:[%s7 + $0x3b8] sm:$0xf]
    %v1328 = vld [vmem:[%s7 + $0x3bc] sm:$0xf]
    %v1329 = vld [vmem:[%s7 + $0x3c0] sm:$0xf]
    %v1330 = vld [vmem:[%s7 + $0x3c4] sm:$0xf]
    %v1331 = vld [vmem:[%s7 + $0x3c8] sm:$0xf]
    %v1332 = vld [vmem:[%s7 + $0x3cc] sm:$0xf]
    %v1333 = vld [vmem:[%s7 + $0x3d0] sm:$0xf]
    %v1334 = vld [vmem:[%s7 + $0x3d4] sm:$0xf]
    %v1335 = vld [vmem:[%s7 + $0x3d8] sm:$0xf]
    %v1336 = vld [vmem:[%s7 + $0x3dc] sm:$0xf]
    %v1337 = vld [vmem:[%s7 + $0x3e0] sm:$0xf]
    %v1338 = vld [vmem:[%s7 + $0x3e4] sm:$0xf]
    %v1339 = vld [vmem:[%s7 + $0x3e8] sm:$0xf]
    %v1340 = vld [vmem:[%s7 + $0x3ec] sm:$0xf]
    %v1341 = vld [vmem:[%s7 + $0x3f0] sm:$0xf]
    %v1342 = vld [vmem:[%s7 + $0x3f4] sm:$0xf]
    %v1343 = vld [vmem:[%s7 + $0x3f8] sm:$0xf]
    %v1344 = vld [vmem:[%s7 + $0x3fc] sm:$0xf]
    %v1345 = vld [vmem:[%s8] sm:$0x1]
    %v1347 = vlaneseq
    %v1348 = vshrl.u32 %v1347, 7
    %v1349 = vsub.s32 0, %v1348
    %v1350 = vrot.slane %v1345, %v1349
    %v1608 = vunpack.c.l.b16 %v1089
    %v1609 = vunpack.c.l.b16 %v1090
    %v1610 = vunpack.c.l.b16 %v1091
    %v1611 = vunpack.c.l.b16 %v1092
    %v1612 = vunpack.c.l.b16 %v1093
    %v1613 = vunpack.c.l.b16 %v1094
    %v1614 = vunpack.c.l.b16 %v1095
    %v1615 = vunpack.c.l.b16 %v1096
    %v1616 = vunpack.c.l.b16 %v1097
    %v1617 = vunpack.c.l.b16 %v1098
    %v1618 = vunpack.c.l.b16 %v1099
    %v1619 = vunpack.c.l.b16 %v1100
    %v1620 = vunpack.c.l.b16 %v1101
    %v1621 = vunpack.c.l.b16 %v1102
    %v1622 = vunpack.c.l.b16 %v1103
    %v1623 = vunpack.c.l.b16 %v1104
    %v1624 = vunpack.c.l.b16 %v1105
    %v1625 = vunpack.c.l.b16 %v1106
    %v1626 = vunpack.c.l.b16 %v1107
    %v1627 = vunpack.c.l.b16 %v1108
    %v1628 = vunpack.c.l.b16 %v1109
    %v1629 = vunpack.c.l.b16 %v1110
    %v1630 = vunpack.c.l.b16 %v1111
    %v1631 = vunpack.c.l.b16 %v1112
    %v1632 = vunpack.c.l.b16 %v1113
    %v1633 = vunpack.c.l.b16 %v1114
    %v1634 = vunpack.c.l.b16 %v1115
    %v1635 = vunpack.c.l.b16 %v1116
    %v1636 = vunpack.c.l.b16 %v1117
    %v1637 = vunpack.c.l.b16 %v1118
    %v1638 = vunpack.c.l.b16 %v1119
    %v1639 = vunpack.c.l.b16 %v1120
    %v1640 = vunpack.c.l.b16 %v1121
    %v1641 = vunpack.c.l.b16 %v1122
    %v1642 = vunpack.c.l.b16 %v1123
    %v1643 = vunpack.c.l.b16 %v1124
    %v1644 = vunpack.c.l.b16 %v1125
    %v1645 = vunpack.c.l.b16 %v1126
    %v1646 = vunpack.c.l.b16 %v1127
    %v1647 = vunpack.c.l.b16 %v1128
    %v1648 = vunpack.c.l.b16 %v1129
    %v1649 = vunpack.c.l.b16 %v1130
    %v1650 = vunpack.c.l.b16 %v1131
    %v1651 = vunpack.c.l.b16 %v1132
    %v1652 = vunpack.c.l.b16 %v1133
    %v1653 = vunpack.c.l.b16 %v1134
    %v1654 = vunpack.c.l.b16 %v1135
    %v1655 = vunpack.c.l.b16 %v1136
    %v1656 = vunpack.c.l.b16 %v1137
    %v1657 = vunpack.c.l.b16 %v1138
    %v1658 = vunpack.c.l.b16 %v1139
    %v1659 = vunpack.c.l.b16 %v1140
    %v1660 = vunpack.c.l.b16 %v1141
    %v1661 = vunpack.c.l.b16 %v1142
    %v1662 = vunpack.c.l.b16 %v1143
    %v1663 = vunpack.c.l.b16 %v1144
    %v1664 = vunpack.c.l.b16 %v1145
    %v1665 = vunpack.c.l.b16 %v1146
    %v1666 = vunpack.c.l.b16 %v1147
    %v1667 = vunpack.c.l.b16 %v1148
    %v1668 = vunpack.c.l.b16 %v1149
    %v1669 = vunpack.c.l.b16 %v1150
    %v1670 = vunpack.c.l.b16 %v1151
    %v1671 = vunpack.c.l.b16 %v1152
    %v1672 = vunpack.c.l.b16 %v1153
    %v1673 = vunpack.c.l.b16 %v1154
    %v1674 = vunpack.c.l.b16 %v1155
    %v1675 = vunpack.c.l.b16 %v1156
    %v1676 = vunpack.c.l.b16 %v1157
    %v1677 = vunpack.c.l.b16 %v1158
    %v1678 = vunpack.c.l.b16 %v1159
    %v1679 = vunpack.c.l.b16 %v1160
    %v1680 = vunpack.c.l.b16 %v1161
    %v1681 = vunpack.c.l.b16 %v1162
    %v1682 = vunpack.c.l.b16 %v1163
    %v1683 = vunpack.c.l.b16 %v1164
    %v1684 = vunpack.c.l.b16 %v1165
    %v1685 = vunpack.c.l.b16 %v1166
    %v1686 = vunpack.c.l.b16 %v1167
    %v1687 = vunpack.c.l.b16 %v1168
    %v1688 = vunpack.c.l.b16 %v1169
    %v1689 = vunpack.c.l.b16 %v1170
    %v1690 = vunpack.c.l.b16 %v1171
    %v1691 = vunpack.c.l.b16 %v1172
    %v1692 = vunpack.c.l.b16 %v1173
    %v1693 = vunpack.c.l.b16 %v1174
    %v1694 = vunpack.c.l.b16 %v1175
    %v1695 = vunpack.c.l.b16 %v1176
    %v1696 = vunpack.c.l.b16 %v1177
    %v1697 = vunpack.c.l.b16 %v1178
    %v1698 = vunpack.c.l.b16 %v1179
    %v1699 = vunpack.c.l.b16 %v1180
    %v1700 = vunpack.c.l.b16 %v1181
    %v1701 = vunpack.c.l.b16 %v1182
    %v1702 = vunpack.c.l.b16 %v1183
    %v1703 = vunpack.c.l.b16 %v1184
    %v1704 = vunpack.c.l.b16 %v1185
    %v1705 = vunpack.c.l.b16 %v1186
    %v1706 = vunpack.c.l.b16 %v1187
    %v1707 = vunpack.c.l.b16 %v1188
    %v1708 = vunpack.c.l.b16 %v1189
    %v1709 = vunpack.c.l.b16 %v1190
    %v1710 = vunpack.c.l.b16 %v1191
    %v1711 = vunpack.c.l.b16 %v1192
    %v1712 = vunpack.c.l.b16 %v1193
    %v1713 = vunpack.c.l.b16 %v1194
    %v1714 = vunpack.c.l.b16 %v1195
    %v1715 = vunpack.c.l.b16 %v1196
    %v1716 = vunpack.c.l.b16 %v1197
    %v1717 = vunpack.c.l.b16 %v1198
    %v1718 = vunpack.c.l.b16 %v1199
    %v1719 = vunpack.c.l.b16 %v1200
    %v1720 = vunpack.c.l.b16 %v1201
    %v1721 = vunpack.c.l.b16 %v1202
    %v1722 = vunpack.c.l.b16 %v1203
    %v1723 = vunpack.c.l.b16 %v1204
    %v1724 = vunpack.c.l.b16 %v1205
    %v1725 = vunpack.c.l.b16 %v1206
    %v1726 = vunpack.c.l.b16 %v1207
    %v1727 = vunpack.c.l.b16 %v1208
    %v1728 = vunpack.c.l.b16 %v1209
    %v1729 = vunpack.c.l.b16 %v1210
    %v1730 = vunpack.c.l.b16 %v1211
    %v1731 = vunpack.c.l.b16 %v1212
    %v1732 = vunpack.c.l.b16 %v1213
    %v1733 = vunpack.c.l.b16 %v1214
    %v1734 = vunpack.c.l.b16 %v1215
    %v1735 = vunpack.c.l.b16 %v1216
    %v1736 = vunpack.c.l.b16 %v1217
    %v1737 = vunpack.c.l.b16 %v1218
    %v1738 = vunpack.c.l.b16 %v1219
    %v1739 = vunpack.c.l.b16 %v1220
    %v1740 = vunpack.c.l.b16 %v1221
    %v1741 = vunpack.c.l.b16 %v1222
    %v1742 = vunpack.c.l.b16 %v1223
    %v1743 = vunpack.c.l.b16 %v1224
    %v1744 = vunpack.c.l.b16 %v1225
    %v1745 = vunpack.c.l.b16 %v1226
    %v1746 = vunpack.c.l.b16 %v1227
    %v1747 = vunpack.c.l.b16 %v1228
    %v1748 = vunpack.c.l.b16 %v1229
    %v1749 = vunpack.c.l.b16 %v1230
    %v1750 = vunpack.c.l.b16 %v1231
    %v1751 = vunpack.c.l.b16 %v1232
    %v1752 = vunpack.c.l.b16 %v1233
    %v1753 = vunpack.c.l.b16 %v1234
    %v1754 = vunpack.c.l.b16 %v1235
    %v1755 = vunpack.c.l.b16 %v1236
    %v1756 = vunpack.c.l.b16 %v1237
    %v1757 = vunpack.c.l.b16 %v1238
    %v1758 = vunpack.c.l.b16 %v1239
    %v1759 = vunpack.c.l.b16 %v1240
    %v1760 = vunpack.c.l.b16 %v1241
    %v1761 = vunpack.c.l.b16 %v1242
    %v1762 = vunpack.c.l.b16 %v1243
    %v1763 = vunpack.c.l.b16 %v1244
    %v1764 = vunpack.c.l.b16 %v1245
    %v1765 = vunpack.c.l.b16 %v1246
    %v1766 = vunpack.c.l.b16 %v1247
    %v1767 = vunpack.c.l.b16 %v1248
    %v1768 = vunpack.c.l.b16 %v1249
    %v1769 = vunpack.c.l.b16 %v1250
    %v1770 = vunpack.c.l.b16 %v1251
    %v1771 = vunpack.c.l.b16 %v1252
    %v1772 = vunpack.c.l.b16 %v1253
    %v1773 = vunpack.c.l.b16 %v1254
    %v1774 = vunpack.c.l.b16 %v1255
    %v1775 = vunpack.c.l.b16 %v1256
    %v1776 = vunpack.c.l.b16 %v1257
    %v1777 = vunpack.c.l.b16 %v1258
    %v1778 = vunpack.c.l.b16 %v1259
    %v1779 = vunpack.c.l.b16 %v1260
    %v1780 = vunpack.c.l.b16 %v1261
    %v1781 = vunpack.c.l.b16 %v1262
    %v1782 = vunpack.c.l.b16 %v1263
    %v1783 = vunpack.c.l.b16 %v1264
    %v1784 = vunpack.c.l.b16 %v1265
    %v1785 = vunpack.c.l.b16 %v1266
    %v1786 = vunpack.c.l.b16 %v1267
    %v1787 = vunpack.c.l.b16 %v1268
    %v1788 = vunpack.c.l.b16 %v1269
    %v1789 = vunpack.c.l.b16 %v1270
    %v1790 = vunpack.c.l.b16 %v1271
    %v1791 = vunpack.c.l.b16 %v1272
    %v1792 = vunpack.c.l.b16 %v1273
    %v1793 = vunpack.c.l.b16 %v1274
    %v1794 = vunpack.c.l.b16 %v1275
    %v1795 = vunpack.c.l.b16 %v1276
    %v1796 = vunpack.c.l.b16 %v1277
    %v1797 = vunpack.c.l.b16 %v1278
    %v1798 = vunpack.c.l.b16 %v1279
    %v1799 = vunpack.c.l.b16 %v1280
    %v1800 = vunpack.c.l.b16 %v1281
    %v1801 = vunpack.c.l.b16 %v1282
    %v1802 = vunpack.c.l.b16 %v1283
    %v1803 = vunpack.c.l.b16 %v1284
    %v1804 = vunpack.c.l.b16 %v1285
    %v1805 = vunpack.c.l.b16 %v1286
    %v1806 = vunpack.c.l.b16 %v1287
    %v1807 = vunpack.c.l.b16 %v1288
    %v1808 = vunpack.c.l.b16 %v1289
    %v1809 = vunpack.c.l.b16 %v1290
    %v1810 = vunpack.c.l.b16 %v1291
    %v1811 = vunpack.c.l.b16 %v1292
    %v1812 = vunpack.c.l.b16 %v1293
    %v1813 = vunpack.c.l.b16 %v1294
    %v1814 = vunpack.c.l.b16 %v1295
    %v1815 = vunpack.c.l.b16 %v1296
    %v1816 = vunpack.c.l.b16 %v1297
    %v1817 = vunpack.c.l.b16 %v1298
    %v1818 = vunpack.c.l.b16 %v1299
    %v1819 = vunpack.c.l.b16 %v1300
    %v1820 = vunpack.c.l.b16 %v1301
    %v1821 = vunpack.c.l.b16 %v1302
    %v1822 = vunpack.c.l.b16 %v1303
    %v1823 = vunpack.c.l.b16 %v1304
    %v1824 = vunpack.c.l.b16 %v1305
    %v1825 = vunpack.c.l.b16 %v1306
    %v1826 = vunpack.c.l.b16 %v1307
    %v1827 = vunpack.c.l.b16 %v1308
    %v1828 = vunpack.c.l.b16 %v1309
    %v1829 = vunpack.c.l.b16 %v1310
    %v1830 = vunpack.c.l.b16 %v1311
    %v1831 = vunpack.c.l.b16 %v1312
    %v1832 = vunpack.c.l.b16 %v1313
    %v1833 = vunpack.c.l.b16 %v1314
    %v1834 = vunpack.c.l.b16 %v1315
    %v1835 = vunpack.c.l.b16 %v1316
    %v1836 = vunpack.c.l.b16 %v1317
    %v1837 = vunpack.c.l.b16 %v1318
    %v1838 = vunpack.c.l.b16 %v1319
    %v1839 = vunpack.c.l.b16 %v1320
    %v1840 = vunpack.c.l.b16 %v1321
    %v1841 = vunpack.c.l.b16 %v1322
    %v1842 = vunpack.c.l.b16 %v1323
    %v1843 = vunpack.c.l.b16 %v1324
    %v1844 = vunpack.c.l.b16 %v1325
    %v1845 = vunpack.c.l.b16 %v1326
    %v1846 = vunpack.c.l.b16 %v1327
    %v1847 = vunpack.c.l.b16 %v1328
    %v1848 = vunpack.c.l.b16 %v1329
    %v1849 = vunpack.c.l.b16 %v1330
    %v1850 = vunpack.c.l.b16 %v1331
    %v1851 = vunpack.c.l.b16 %v1332
    %v1852 = vunpack.c.l.b16 %v1333
    %v1853 = vunpack.c.l.b16 %v1334
    %v1854 = vunpack.c.l.b16 %v1335
    %v1855 = vunpack.c.l.b16 %v1336
    %v1856 = vunpack.c.l.b16 %v1337
    %v1857 = vunpack.c.l.b16 %v1338
    %v1858 = vunpack.c.l.b16 %v1339
    %v1859 = vunpack.c.l.b16 %v1340
    %v1860 = vunpack.c.l.b16 %v1341
    %v1861 = vunpack.c.l.b16 %v1342
    %v1862 = vunpack.c.l.b16 %v1343
    %v1863 = vunpack.c.l.b16 %v1344
    %v1864 = vpack.c.b16 %v1609, %v1608
    %v1865 = vpack.c.b16 %v1611, %v1610
    %v1866 = vpack.c.b16 %v1613, %v1612
    %v1867 = vpack.c.b16 %v1615, %v1614
    %v1868 = vpack.c.b16 %v1617, %v1616
    %v1869 = vpack.c.b16 %v1619, %v1618
    %v1870 = vpack.c.b16 %v1621, %v1620
    %v1871 = vpack.c.b16 %v1623, %v1622
    %v1872 = vpack.c.b16 %v1625, %v1624
    %v1873 = vpack.c.b16 %v1627, %v1626
    %v1874 = vpack.c.b16 %v1629, %v1628
    %v1875 = vpack.c.b16 %v1631, %v1630
    %v1876 = vpack.c.b16 %v1633, %v1632
    %v1877 = vpack.c.b16 %v1635, %v1634
    %v1878 = vpack.c.b16 %v1637, %v1636
    %v1879 = vpack.c.b16 %v1639, %v1638
    %v1880 = vpack.c.b16 %v1641, %v1640
    %v1881 = vpack.c.b16 %v1643, %v1642
    %v1882 = vpack.c.b16 %v1645, %v1644
    %v1883 = vpack.c.b16 %v1647, %v1646
    %v1884 = vpack.c.b16 %v1649, %v1648
    %v1885 = vpack.c.b16 %v1651, %v1650
    %v1886 = vpack.c.b16 %v1653, %v1652
    %v1887 = vpack.c.b16 %v1655, %v1654
    %v1888 = vpack.c.b16 %v1657, %v1656
    %v1889 = vpack.c.b16 %v1659, %v1658
    %v1890 = vpack.c.b16 %v1661, %v1660
    %v1891 = vpack.c.b16 %v1663, %v1662
    %v1892 = vpack.c.b16 %v1665, %v1664
    %v1893 = vpack.c.b16 %v1667, %v1666
    %v1894 = vpack.c.b16 %v1669, %v1668
    %v1895 = vpack.c.b16 %v1671, %v1670
    %v1896 = vpack.c.b16 %v1673, %v1672
    %v1897 = vpack.c.b16 %v1675, %v1674
    %v1898 = vpack.c.b16 %v1677, %v1676
    %v1899 = vpack.c.b16 %v1679, %v1678
    %v1900 = vpack.c.b16 %v1681, %v1680
    %v1901 = vpack.c.b16 %v1683, %v1682
    %v1902 = vpack.c.b16 %v1685, %v1684
    %v1903 = vpack.c.b16 %v1687, %v1686
    %v1904 = vpack.c.b16 %v1689, %v1688
    %v1905 = vpack.c.b16 %v1691, %v1690
    %v1906 = vpack.c.b16 %v1693, %v1692
    %v1907 = vpack.c.b16 %v1695, %v1694
    %v1908 = vpack.c.b16 %v1697, %v1696
    %v1909 = vpack.c.b16 %v1699, %v1698
    %v1910 = vpack.c.b16 %v1701, %v1700
    %v1911 = vpack.c.b16 %v1703, %v1702
    %v1912 = vpack.c.b16 %v1705, %v1704
    %v1913 = vpack.c.b16 %v1707, %v1706
    %v1914 = vpack.c.b16 %v1709, %v1708
    %v1915 = vpack.c.b16 %v1711, %v1710
    %v1916 = vpack.c.b16 %v1713, %v1712
    %v1917 = vpack.c.b16 %v1715, %v1714
    %v1918 = vpack.c.b16 %v1717, %v1716
    %v1919 = vpack.c.b16 %v1719, %v1718
    %v1920 = vpack.c.b16 %v1721, %v1720
    %v1921 = vpack.c.b16 %v1723, %v1722
    %v1922 = vpack.c.b16 %v1725, %v1724
    %v1923 = vpack.c.b16 %v1727, %v1726
    %v1924 = vpack.c.b16 %v1729, %v1728
    %v1925 = vpack.c.b16 %v1731, %v1730
    %v1926 = vpack.c.b16 %v1733, %v1732
    %v1927 = vpack.c.b16 %v1735, %v1734
    %v1928 = vpack.c.b16 %v1737, %v1736
    %v1929 = vpack.c.b16 %v1739, %v1738
    %v1930 = vpack.c.b16 %v1741, %v1740
    %v1931 = vpack.c.b16 %v1743, %v1742
    %v1932 = vpack.c.b16 %v1745, %v1744
    %v1933 = vpack.c.b16 %v1747, %v1746
    %v1934 = vpack.c.b16 %v1749, %v1748
    %v1935 = vpack.c.b16 %v1751, %v1750
    %v1936 = vpack.c.b16 %v1753, %v1752
    %v1937 = vpack.c.b16 %v1755, %v1754
    %v1938 = vpack.c.b16 %v1757, %v1756
    %v1939 = vpack.c.b16 %v1759, %v1758
    %v1940 = vpack.c.b16 %v1761, %v1760
    %v1941 = vpack.c.b16 %v1763, %v1762
    %v1942 = vpack.c.b16 %v1765, %v1764
    %v1943 = vpack.c.b16 %v1767, %v1766
    %v1944 = vpack.c.b16 %v1769, %v1768
    %v1945 = vpack.c.b16 %v1771, %v1770
    %v1946 = vpack.c.b16 %v1773, %v1772
    %v1947 = vpack.c.b16 %v1775, %v1774
    %v1948 = vpack.c.b16 %v1777, %v1776
    %v1949 = vpack.c.b16 %v1779, %v1778
    %v1950 = vpack.c.b16 %v1781, %v1780
    %v1951 = vpack.c.b16 %v1783, %v1782
    %v1952 = vpack.c.b16 %v1785, %v1784
    %v1953 = vpack.c.b16 %v1787, %v1786
    %v1954 = vpack.c.b16 %v1789, %v1788
    %v1955 = vpack.c.b16 %v1791, %v1790
    %v1956 = vpack.c.b16 %v1793, %v1792
    %v1957 = vpack.c.b16 %v1795, %v1794
    %v1958 = vpack.c.b16 %v1797, %v1796
    %v1959 = vpack.c.b16 %v1799, %v1798
    %v1960 = vpack.c.b16 %v1801, %v1800
    %v1961 = vpack.c.b16 %v1803, %v1802
    %v1962 = vpack.c.b16 %v1805, %v1804
    %v1963 = vpack.c.b16 %v1807, %v1806
    %v1964 = vpack.c.b16 %v1809, %v1808
    %v1965 = vpack.c.b16 %v1811, %v1810
    %v1966 = vpack.c.b16 %v1813, %v1812
    %v1967 = vpack.c.b16 %v1815, %v1814
    %v1968 = vpack.c.b16 %v1817, %v1816
    %v1969 = vpack.c.b16 %v1819, %v1818
    %v1970 = vpack.c.b16 %v1821, %v1820
    %v1971 = vpack.c.b16 %v1823, %v1822
    %v1972 = vpack.c.b16 %v1825, %v1824
    %v1973 = vpack.c.b16 %v1827, %v1826
    %v1974 = vpack.c.b16 %v1829, %v1828
    %v1975 = vpack.c.b16 %v1831, %v1830
    %v1976 = vpack.c.b16 %v1833, %v1832
    %v1977 = vpack.c.b16 %v1835, %v1834
    %v1978 = vpack.c.b16 %v1837, %v1836
    %v1979 = vpack.c.b16 %v1839, %v1838
    %v1980 = vpack.c.b16 %v1841, %v1840
    %v1981 = vpack.c.b16 %v1843, %v1842
    %v1982 = vpack.c.b16 %v1845, %v1844
    %v1983 = vpack.c.b16 %v1847, %v1846
    %v1984 = vpack.c.b16 %v1849, %v1848
    %v1985 = vpack.c.b16 %v1851, %v1850
    %v1986 = vpack.c.b16 %v1853, %v1852
    %v1987 = vpack.c.b16 %v1855, %v1854
    %v1988 = vpack.c.b16 %v1857, %v1856
    %v1989 = vpack.c.b16 %v1859, %v1858
    %v1990 = vpack.c.b16 %v1861, %v1860
    %v1991 = vpack.c.b16 %v1863, %v1862
    %2120 = vmatprep.subr.bf16.mxu0 0
    %2121 = vmatpush1.bf16.msra.mxu0 %v1864
    %2122 = vmatprep.subr.bf16.mxu0 0
    %2123 = vmatpush1.bf16.msra.mxu0 %v1865
    %2124 = vmatprep.subr.bf16.mxu0 0
    %2125 = vmatpush1.bf16.msra.mxu0 %v1866
    %2126 = vmatprep.subr.bf16.mxu0 0
    %2127 = vmatpush1.bf16.msra.mxu0 %v1867
    %2128 = vmatprep.subr.bf16.mxu0 0
    %2129 = vmatpush1.bf16.msra.mxu0 %v1868
    %2130 = vmatprep.subr.bf16.mxu0 0
    %2131 = vmatpush1.bf16.msra.mxu0 %v1869
    %2132 = vmatprep.subr.bf16.mxu0 0
    %2133 = vmatpush1.bf16.msra.mxu0 %v1870
    %2134 = vmatprep.subr.bf16.mxu0 0
    %2135 = vmatpush1.bf16.msra.mxu0 %v1871
    %2136 = vmatprep.subr.bf16.mxu0 0
    %2137 = vmatpush1.bf16.msra.mxu0 %v1872
    %2138 = vmatprep.subr.bf16.mxu0 0
    %2139 = vmatpush1.bf16.msra.mxu0 %v1873
    %2140 = vmatprep.subr.bf16.mxu0 0
    %2141 = vmatpush1.bf16.msra.mxu0 %v1874
    %2142 = vmatprep.subr.bf16.mxu0 0
    %2143 = vmatpush1.bf16.msra.mxu0 %v1875
    %2144 = vmatprep.subr.bf16.mxu0 0
    %2145 = vmatpush1.bf16.msra.mxu0 %v1876
    %2146 = vmatprep.subr.bf16.mxu0 0
    %2147 = vmatpush1.bf16.msra.mxu0 %v1877
    %2148 = vmatprep.subr.bf16.mxu0 0
    %2149 = vmatpush1.bf16.msra.mxu0 %v1878
    %2150 = vmatprep.subr.bf16.mxu0 0
    %2151 = vmatpush1.bf16.msra.mxu0 %v1879
    %2152 = vmatprep.mubr.bf16.mxu0 %v1074
    %2153 = vmatmul.mubr.bf16.gmra.mrb[0].mxu0 %v1073
    %v2154 = vpop.f32.mrb[0].mxu0
    %v2155 = vadd.f32 %v1350, %v2154
    %v2156 = vpop.f32.mrb[0].mxu0
    %v2157 = vpop.f32.mrb[0].mxu0
    %v2158 = vpop.f32.mrb[0].mxu0
    %2159 = vdwg.mxu0
    %2160 = vmatprep.subr.bf16.mxu0 0
    %2161 = vmatpush1.bf16.msra.mxu0 %v1880
    %2162 = vmatprep.subr.bf16.mxu0 0
    %2163 = vmatpush1.bf16.msra.mxu0 %v1881
    %2164 = vmatprep.subr.bf16.mxu0 0
    %2165 = vmatpush1.bf16.msra.mxu0 %v1882
    %2166 = vmatprep.subr.bf16.mxu0 0
    %2167 = vmatpush1.bf16.msra.mxu0 %v1883
    %2168 = vmatprep.subr.bf16.mxu0 0
    %2169 = vmatpush1.bf16.msra.mxu0 %v1884
    %2170 = vmatprep.subr.bf16.mxu0 0
    %2171 = vmatpush1.bf16.msra.mxu0 %v1885
    %2172 = vmatprep.subr.bf16.mxu0 0
    %2173 = vmatpush1.bf16.msra.mxu0 %v1886
    %2174 = vmatprep.subr.bf16.mxu0 0
    %2175 = vmatpush1.bf16.msra.mxu0 %v1887
    %2176 = vmatprep.subr.bf16.mxu0 0
    %2177 = vmatpush1.bf16.msra.mxu0 %v1888
    %2178 = vmatprep.subr.bf16.mxu0 0
    %2179 = vmatpush1.bf16.msra.mxu0 %v1889
    %2180 = vmatprep.subr.bf16.mxu0 0
    %2181 = vmatpush1.bf16.msra.mxu0 %v1890
    %2182 = vmatprep.subr.bf16.mxu0 0
    %2183 = vmatpush1.bf16.msra.mxu0 %v1891
    %2184 = vmatprep.subr.bf16.mxu0 0
    %2185 = vmatpush1.bf16.msra.mxu0 %v1892
    %2186 = vmatprep.subr.bf16.mxu0 0
    %2187 = vmatpush1.bf16.msra.mxu0 %v1893
    %2188 = vmatprep.subr.bf16.mxu0 0
    %2189 = vmatpush1.bf16.msra.mxu0 %v1894
    %2190 = vmatprep.subr.bf16.mxu0 0
    %2191 = vmatpush1.bf16.msra.mxu0 %v1895
    %2192 = vmatprep.mubr.bf16.mxu0 %v1076
    %2193 = vmatmul.mubr.bf16.gmra.mrb[0].mxu0 %v1075
    %v2194 = vpop.f32.mrb[0].mxu0
    %v2195 = vadd.f32 %v2155, %v2194
    %v2196 = vpop.f32.mrb[0].mxu0
    %v2197 = vpop.f32.mrb[0].mxu0
    %v2198 = vpop.f32.mrb[0].mxu0
    %2199 = vdwg.mxu0
    %2200 = vmatprep.subr.bf16.mxu0 0
    %2201 = vmatpush1.bf16.msra.mxu0 %v1896
    %2202 = vmatprep.subr.bf16.mxu0 0
    %2203 = vmatpush1.bf16.msra.mxu0 %v1897
    %2204 = vmatprep.subr.bf16.mxu0 0
    %2205 = vmatpush1.bf16.msra.mxu0 %v1898
    %2206 = vmatprep.subr.bf16.mxu0 0
    %2207 = vmatpush1.bf16.msra.mxu0 %v1899
    %2208 = vmatprep.subr.bf16.mxu0 0
    %2209 = vmatpush1.bf16.msra.mxu0 %v1900
    %2210 = vmatprep.subr.bf16.mxu0 0
    %2211 = vmatpush1.bf16.msra.mxu0 %v1901
    %2212 = vmatprep.subr.bf16.mxu0 0
    %2213 = vmatpush1.bf16.msra.mxu0 %v1902
    %2214 = vmatprep.subr.bf16.mxu0 0
    %2215 = vmatpush1.bf16.msra.mxu0 %v1903
    %2216 = vmatprep.subr.bf16.mxu0 0
    %2217 = vmatpush1.bf16.msra.mxu0 %v1904
    %2218 = vmatprep.subr.bf16.mxu0 0
    %2219 = vmatpush1.bf16.msra.mxu0 %v1905
    %2220 = vmatprep.subr.bf16.mxu0 0
    %2221 = vmatpush1.bf16.msra.mxu0 %v1906
    %2222 = vmatprep.subr.bf16.mxu0 0
    %2223 = vmatpush1.bf16.msra.mxu0 %v1907
    %2224 = vmatprep.subr.bf16.mxu0 0
    %2225 = vmatpush1.bf16.msra.mxu0 %v1908
    %2226 = vmatprep.subr.bf16.mxu0 0
    %2227 = vmatpush1.bf16.msra.mxu0 %v1909
    %2228 = vmatprep.subr.bf16.mxu0 0
    %2229 = vmatpush1.bf16.msra.mxu0 %v1910
    %2230 = vmatprep.subr.bf16.mxu0 0
    %2231 = vmatpush1.bf16.msra.mxu0 %v1911
    %2232 = vmatprep.mubr.bf16.mxu0 %v1078
    %2233 = vmatmul.mubr.bf16.gmra.mrb[0].mxu0 %v1077
    %v2234 = vpop.f32.mrb[0].mxu0
    %v2235 = vadd.f32 %v2195, %v2234
    %v2236 = vpop.f32.mrb[0].mxu0
    %v2237 = vpop.f32.mrb[0].mxu0
    %v2238 = vpop.f32.mrb[0].mxu0
    %2239 = vdwg.mxu0
    %2240 = vmatprep.subr.bf16.mxu0 0
    %2241 = vmatpush1.bf16.msra.mxu0 %v1912
    %2242 = vmatprep.subr.bf16.mxu0 0
    %2243 = vmatpush1.bf16.msra.mxu0 %v1913
    %2244 = vmatprep.subr.bf16.mxu0 0
    %2245 = vmatpush1.bf16.msra.mxu0 %v1914
    %2246 = vmatprep.subr.bf16.mxu0 0
    %2247 = vmatpush1.bf16.msra.mxu0 %v1915
    %2248 = vmatprep.subr.bf16.mxu0 0
    %2249 = vmatpush1.bf16.msra.mxu0 %v1916
    %2250 = vmatprep.subr.bf16.mxu0 0
    %2251 = vmatpush1.bf16.msra.mxu0 %v1917
    %2252 = vmatprep.subr.bf16.mxu0 0
    %2253 = vmatpush1.bf16.msra.mxu0 %v1918
    %2254 = vmatprep.subr.bf16.mxu0 0
    %2255 = vmatpush1.bf16.msra.mxu0 %v1919
    %2256 = vmatprep.subr.bf16.mxu0 0
    %2257 = vmatpush1.bf16.msra.mxu0 %v1920
    %2258 = vmatprep.subr.bf16.mxu0 0
    %2259 = vmatpush1.bf16.msra.mxu0 %v1921
    %2260 = vmatprep.subr.bf16.mxu0 0
    %2261 = vmatpush1.bf16.msra.mxu0 %v1922
    %2262 = vmatprep.subr.bf16.mxu0 0
    %2263 = vmatpush1.bf16.msra.mxu0 %v1923
    %2264 = vmatprep.subr.bf16.mxu0 0
    %2265 = vmatpush1.bf16.msra.mxu0 %v1924
    %2266 = vmatprep.subr.bf16.mxu0 0
    %2267 = vmatpush1.bf16.msra.mxu0 %v1925
    %2268 = vmatprep.subr.bf16.mxu0 0
    %2269 = vmatpush1.bf16.msra.mxu0 %v1926
    %2270 = vmatprep.subr.bf16.mxu0 0
    %2271 = vmatpush1.bf16.msra.mxu0 %v1927
    %2272 = vmatprep.mubr.bf16.mxu0 %v1080
    %2273 = vmatmul.mubr.bf16.gmra.mrb[0].mxu0 %v1079
    %v2274 = vpop.f32.mrb[0].mxu0
    %v2275 = vadd.f32 %v2235, %v2274
    %v2276 = vpop.f32.mrb[0].mxu0
    %v2277 = vpop.f32.mrb[0].mxu0
    %v2278 = vpop.f32.mrb[0].mxu0
    %2279 = vdwg.mxu0
    %2280 = vmatprep.subr.bf16.mxu0 0
    %2281 = vmatpush1.bf16.msra.mxu0 %v1928
    %2282 = vmatprep.subr.bf16.mxu0 0
    %2283 = vmatpush1.bf16.msra.mxu0 %v1929
    %2284 = vmatprep.subr.bf16.mxu0 0
    %2285 = vmatpush1.bf16.msra.mxu0 %v1930
    %2286 = vmatprep.subr.bf16.mxu0 0
    %2287 = vmatpush1.bf16.msra.mxu0 %v1931
    %2288 = vmatprep.subr.bf16.mxu0 0
    %2289 = vmatpush1.bf16.msra.mxu0 %v1932
    %2290 = vmatprep.subr.bf16.mxu0 0
    %2291 = vmatpush1.bf16.msra.mxu0 %v1933
    %2292 = vmatprep.subr.bf16.mxu0 0
    %2293 = vmatpush1.bf16.msra.mxu0 %v1934
    %2294 = vmatprep.subr.bf16.mxu0 0
    %2295 = vmatpush1.bf16.msra.mxu0 %v1935
    %2296 = vmatprep.subr.bf16.mxu0 0
    %2297 = vmatpush1.bf16.msra.mxu0 %v1936
    %2298 = vmatprep.subr.bf16.mxu0 0
    %2299 = vmatpush1.bf16.msra.mxu0 %v1937
    %2300 = vmatprep.subr.bf16.mxu0 0
    %2301 = vmatpush1.bf16.msra.mxu0 %v1938
    %2302 = vmatprep.subr.bf16.mxu0 0
    %2303 = vmatpush1.bf16.msra.mxu0 %v1939
    %2304 = vmatprep.subr.bf16.mxu0 0
    %2305 = vmatpush1.bf16.msra.mxu0 %v1940
    %2306 = vmatprep.subr.bf16.mxu0 0
    %2307 = vmatpush1.bf16.msra.mxu0 %v1941
    %2308 = vmatprep.subr.bf16.mxu0 0
    %2309 = vmatpush1.bf16.msra.mxu0 %v1942
    %2310 = vmatprep.subr.bf16.mxu0 0
    %2311 = vmatpush1.bf16.msra.mxu0 %v1943
    %2312 = vmatprep.mubr.bf16.mxu0 %v1082
    %2313 = vmatmul.mubr.bf16.gmra.mrb[0].mxu0 %v1081
    %v2314 = vpop.f32.mrb[0].mxu0
    %v2315 = vadd.f32 %v2275, %v2314
    %v2316 = vpop.f32.mrb[0].mxu0
    %v2317 = vpop.f32.mrb[0].mxu0
    %v2318 = vpop.f32.mrb[0].mxu0
    %2319 = vdwg.mxu0
    %2320 = vmatprep.subr.bf16.mxu0 0
    %2321 = vmatpush1.bf16.msra.mxu0 %v1944
    %2322 = vmatprep.subr.bf16.mxu0 0
    %2323 = vmatpush1.bf16.msra.mxu0 %v1945
    %2324 = vmatprep.subr.bf16.mxu0 0
    %2325 = vmatpush1.bf16.msra.mxu0 %v1946
    %2326 = vmatprep.subr.bf16.mxu0 0
    %2327 = vmatpush1.bf16.msra.mxu0 %v1947
    %2328 = vmatprep.subr.bf16.mxu0 0
    %2329 = vmatpush1.bf16.msra.mxu0 %v1948
    %2330 = vmatprep.subr.bf16.mxu0 0
    %2331 = vmatpush1.bf16.msra.mxu0 %v1949
    %2332 = vmatprep.subr.bf16.mxu0 0
    %2333 = vmatpush1.bf16.msra.mxu0 %v1950
    %2334 = vmatprep.subr.bf16.mxu0 0
    %2335 = vmatpush1.bf16.msra.mxu0 %v1951
    %2336 = vmatprep.subr.bf16.mxu0 0
    %2337 = vmatpush1.bf16.msra.mxu0 %v1952
    %2338 = vmatprep.subr.bf16.mxu0 0
    %2339 = vmatpush1.bf16.msra.mxu0 %v1953
    %2340 = vmatprep.subr.bf16.mxu0 0
    %2341 = vmatpush1.bf16.msra.mxu0 %v1954
    %2342 = vmatprep.subr.bf16.mxu0 0
    %2343 = vmatpush1.bf16.msra.mxu0 %v1955
    %2344 = vmatprep.subr.bf16.mxu0 0
    %2345 = vmatpush1.bf16.msra.mxu0 %v1956
    %2346 = vmatprep.subr.bf16.mxu0 0
    %2347 = vmatpush1.bf16.msra.mxu0 %v1957
    %2348 = vmatprep.subr.bf16.mxu0 0
    %2349 = vmatpush1.bf16.msra.mxu0 %v1958
    %2350 = vmatprep.subr.bf16.mxu0 0
    %2351 = vmatpush1.bf16.msra.mxu0 %v1959
    %2352 = vmatprep.mubr.bf16.mxu0 %v1084
    %2353 = vmatmul.mubr.bf16.gmra.mrb[0].mxu0 %v1083
    %v2354 = vpop.f32.mrb[0].mxu0
    %v2355 = vadd.f32 %v2315, %v2354
    %v2356 = vpop.f32.mrb[0].mxu0
    %v2357 = vpop.f32.mrb[0].mxu0
    %v2358 = vpop.f32.mrb[0].mxu0
    %2359 = vdwg.mxu0
    %2360 = vmatprep.subr.bf16.mxu0 0
    %2361 = vmatpush1.bf16.msra.mxu0 %v1960
    %2362 = vmatprep.subr.bf16.mxu0 0
    %2363 = vmatpush1.bf16.msra.mxu0 %v1961
    %2364 = vmatprep.subr.bf16.mxu0 0
    %2365 = vmatpush1.bf16.msra.mxu0 %v1962
    %2366 = vmatprep.subr.bf16.mxu0 0
    %2367 = vmatpush1.bf16.msra.mxu0 %v1963
    %2368 = vmatprep.subr.bf16.mxu0 0
    %2369 = vmatpush1.bf16.msra.mxu0 %v1964
    %2370 = vmatprep.subr.bf16.mxu0 0
    %2371 = vmatpush1.bf16.msra.mxu0 %v1965
    %2372 = vmatprep.subr.bf16.mxu0 0
    %2373 = vmatpush1.bf16.msra.mxu0 %v1966
    %2374 = vmatprep.subr.bf16.mxu0 0
    %2375 = vmatpush1.bf16.msra.mxu0 %v1967
    %2376 = vmatprep.subr.bf16.mxu0 0
    %2377 = vmatpush1.bf16.msra.mxu0 %v1968
    %2378 = vmatprep.subr.bf16.mxu0 0
    %2379 = vmatpush1.bf16.msra.mxu0 %v1969
    %2380 = vmatprep.subr.bf16.mxu0 0
    %2381 = vmatpush1.bf16.msra.mxu0 %v1970
    %2382 = vmatprep.subr.bf16.mxu0 0
    %2383 = vmatpush1.bf16.msra.mxu0 %v1971
    %2384 = vmatprep.subr.bf16.mxu0 0
    %2385 = vmatpush1.bf16.msra.mxu0 %v1972
    %2386 = vmatprep.subr.bf16.mxu0 0
    %2387 = vmatpush1.bf16.msra.mxu0 %v1973
    %2388 = vmatprep.subr.bf16.mxu0 0
    %2389 = vmatpush1.bf16.msra.mxu0 %v1974
    %2390 = vmatprep.subr.bf16.mxu0 0
    %2391 = vmatpush1.bf16.msra.mxu0 %v1975
    %2392 = vmatprep.mubr.bf16.mxu0 %v1086
    %2393 = vmatmul.mubr.bf16.gmra.mrb[0].mxu0 %v1085
    %v2394 = vpop.f32.mrb[0].mxu0
    %v2395 = vadd.f32 %v2355, %v2394
    %v2396 = vpop.f32.mrb[0].mxu0
    %v2397 = vpop.f32.mrb[0].mxu0
    %v2398 = vpop.f32.mrb[0].mxu0
    %2399 = vdwg.mxu0
    %2400 = vmatprep.subr.bf16.mxu0 0
    %2401 = vmatpush1.bf16.msra.mxu0 %v1976
    %2402 = vmatprep.subr.bf16.mxu0 0
    %2403 = vmatpush1.bf16.msra.mxu0 %v1977
    %2404 = vmatprep.subr.bf16.mxu0 0
    %2405 = vmatpush1.bf16.msra.mxu0 %v1978
    %2406 = vmatprep.subr.bf16.mxu0 0
    %2407 = vmatpush1.bf16.msra.mxu0 %v1979
    %2408 = vmatprep.subr.bf16.mxu0 0
    %2409 = vmatpush1.bf16.msra.mxu0 %v1980
    %2410 = vmatprep.subr.bf16.mxu0 0
    %2411 = vmatpush1.bf16.msra.mxu0 %v1981
    %2412 = vmatprep.subr.bf16.mxu0 0
    %2413 = vmatpush1.bf16.msra.mxu0 %v1982
    %2414 = vmatprep.subr.bf16.mxu0 0
    %2415 = vmatpush1.bf16.msra.mxu0 %v1983
    %2416 = vmatprep.subr.bf16.mxu0 0
    %2417 = vmatpush1.bf16.msra.mxu0 %v1984
    %2418 = vmatprep.subr.bf16.mxu0 0
    %2419 = vmatpush1.bf16.msra.mxu0 %v1985
    %2420 = vmatprep.subr.bf16.mxu0 0
    %2421 = vmatpush1.bf16.msra.mxu0 %v1986
    %2422 = vmatprep.subr.bf16.mxu0 0
    %2423 = vmatpush1.bf16.msra.mxu0 %v1987
    %2424 = vmatprep.subr.bf16.mxu0 0
    %2425 = vmatpush1.bf16.msra.mxu0 %v1988
    %2426 = vmatprep.subr.bf16.mxu0 0
    %2427 = vmatpush1.bf16.msra.mxu0 %v1989
    %2428 = vmatprep.subr.bf16.mxu0 0
    %2429 = vmatpush1.bf16.msra.mxu0 %v1990
    %2430 = vmatprep.subr.bf16.mxu0 0
    %2431 = vmatpush1.bf16.msra.mxu0 %v1991
    %2432 = vmatprep.mubr.bf16.mxu0 %v1088
    %2433 = vmatmul.mubr.bf16.gmra.mrb[0].mxu0 %v1087
    %v2434 = vpop.f32.mrb[0].mxu0
    %v2435 = vadd.f32 %v2395, %v2434
    %v2436 = vpop.f32.mrb[0].mxu0
    %v2437 = vpop.f32.mrb[0].mxu0
    %v2438 = vpop.f32.mrb[0].mxu0
    %2439 = vdwg.mxu0
    %v2440 = vadd.f32 %v256, %v2435
    %v2441 = vld [vmem:[%s11] sm:$0x1]
    %v2442 = vld [vmem:[%s12] sm:$0x1]
    %v2443 = vsel %vm182, %v2440, 0.0
    %2444 = vadd.xlane.f32.xlu0 %v2443
    %v2445 = vpop.xlane.xlu0 %2444
    %v2446 = vmul.f32 %v2445, %v232
    %v2447 = vsub.f32 %v2440, %v2446
    %v2448 = vmul.f32 %v2447, %v2447
    %v2449 = vsel %vm182, %v2448, 0.0
    %2450 = vadd.xlane.f32.xlu0 %v2449
    %v2451 = vpop.xlane.xlu0 %2450
    %v2452 = vmul.f32 %v2451, %v232
    %v2453 = vadd.f32 %v2452, 1e-05
    %v2454 = vrsqrt.pop %v2453
    %v2455 = vmul.f32 %v2447, %v2454
    %v2457 = vlaneseq
    %v2458 = vshrl.u32 %v2457, 7
    %v2459 = vsub.s32 0, %v2458
    %v2460 = vrot.slane %v2441, %v2459
    %v2462 = vmul.f32 %v2455, %v2460
    %v2464 = vlaneseq
    %v2465 = vshrl.u32 %v2464, 7
    %v2466 = vsub.s32 0, %v2465
    %v2467 = vrot.slane %v2442, %v2466
    %v2469 = vadd.f32 %v2462, %v2467
    %v2470 = vpack.c.bf16 %v2469, %v2469
    %s2471 = scalar_lea.vmem %s3, 32
    %v2472 = vld [vmem:[%s2471] sm:$0xf]
    %v2473 = vld [vmem:[%s2471 + $0x4] sm:$0xf]
    %v2474 = vld [vmem:[%s2471 + $0x8] sm:$0xf]
    %v2475 = vld [vmem:[%s2471 + $0xc] sm:$0xf]
    %v2476 = vld [vmem:[%s2471 + $0x10] sm:$0xf]
    %v2477 = vld [vmem:[%s2471 + $0x14] sm:$0xf]
    %v2478 = vld [vmem:[%s2471 + $0x18] sm:$0xf]
    %v2479 = vld [vmem:[%s2471 + $0x1c] sm:$0xf]
    %s2480 = scalar_lea.vmem %s4, 1
    %v2481 = vld [vmem:[%s2480] sm:$0x1]
    %v2483 = vlaneseq
    %v2484 = vshrl.u32 %v2483, 7
    %v2485 = vsub.s32 0, %v2484
    %v2486 = vrot.slane %v2481, %v2485
    %v2496 = vunpack.c.l.b16 %v2472
    %v2497 = vunpack.c.l.b16 %v2473
    %v2498 = vunpack.c.l.b16 %v2474
    %v2499 = vunpack.c.l.b16 %v2475
    %v2500 = vunpack.c.l.b16 %v2476
    %v2501 = vunpack.c.l.b16 %v2477
    %v2502 = vunpack.c.l.b16 %v2478
    %v2503 = vunpack.c.l.b16 %v2479
    %v2504 = vpack.c.b16 %v2497, %v2496
    %v2505 = vpack.c.b16 %v2499, %v2498
    %v2506 = vpack.c.b16 %v2501, %v2500
    %v2507 = vpack.c.b16 %v2503, %v2502
    %v2513 = vsel %vm182, %v2470, 0
    %2515 = vmatprep.subr.bf16.mxu0 0
    %2516 = vmatpush1.bf16.msra.mxu0 %v2504
    %2517 = vmatprep.subr.bf16.mxu0 0
    %2518 = vmatpush1.bf16.msra.mxu0 %v2505
    %2519 = vmatprep.subr.bf16.mxu0 0
    %2520 = vmatpush1.bf16.msra.mxu0 %v2506
    %2521 = vmatprep.subr.bf16.mxu0 0
    %2522 = vmatpush1.bf16.msra.mxu0 %v2507
    %2523 = vmatprep.subr.bf16.mxu0 0
    %2524 = vmatpush1.bf16.msra.mxu0 0
    %2525 = vmatprep.subr.bf16.mxu0 0
    %2526 = vmatpush1.bf16.msra.mxu0 0
    %2527 = vmatprep.subr.bf16.mxu0 0
    %2528 = vmatpush1.bf16.msra.mxu0 0
    %2529 = vmatprep.subr.bf16.mxu0 0
    %2530 = vmatpush1.bf16.msra.mxu0 0
    %2531 = vmatprep.subr.bf16.mxu0 0
    %2532 = vmatpush1.bf16.msra.mxu0 0
    %2533 = vmatprep.subr.bf16.mxu0 0
    %2534 = vmatpush1.bf16.msra.mxu0 0
    %2535 = vmatprep.subr.bf16.mxu0 0
    %2536 = vmatpush1.bf16.msra.mxu0 0
    %2537 = vmatprep.subr.bf16.mxu0 0
    %2538 = vmatpush1.bf16.msra.mxu0 0
    %2539 = vmatprep.subr.bf16.mxu0 0
    %2540 = vmatpush1.bf16.msra.mxu0 0
    %2541 = vmatprep.subr.bf16.mxu0 0
    %2542 = vmatpush1.bf16.msra.mxu0 0
    %2543 = vmatprep.subr.bf16.mxu0 0
    %2544 = vmatpush1.bf16.msra.mxu0 0
    %2545 = vmatprep.subr.bf16.mxu0 0
    %2546 = vmatpush1.bf16.msra.mxu0 0
    %2547 = vmatprep.mubr.bf16.mxu0 0
    %2548 = vmatmul.mubr.bf16.gmra.mrb[0].mxu0 %v2513
    %v2549 = vpop.f32.mrb[0].mxu0
    %v2550 = vadd.f32 %v2486, %v2549
    %v2551 = vpop.f32.mrb[0].mxu0
    %v2552 = vpop.f32.mrb[0].mxu0
    %v2553 = vpop.f32.mrb[0].mxu0
    %2554 = vdwg.mxu0
    %v2555 = vadd.f32 %v2469, %v2550
    %s2556 = scalar_lea.vmem %s9, 1
    %v2557 = vld [vmem:[%s2556] sm:$0x1]
    %s2558 = scalar_lea.vmem %s10, 1
    %v2559 = vld [vmem:[%s2558] sm:$0x1]
    %v2560 = vsel %vm182, %v2555, 0.0
    %2561 = vadd.xlane.f32.xlu0 %v2560
    %v2562 = vpop.xlane.xlu0 %2561
    %v2563 = vmul.f32 %v2562, %v232
    %v2564 = vsub.f32 %v2555, %v2563
    %v2565 = vmul.f32 %v2564, %v2564
    %v2566 = vsel %vm182, %v2565, 0.0
    %2567 = vadd.xlane.f32.xlu0 %v2566
    %v2568 = vpop.xlane.xlu0 %2567
    %v2569 = vmul.f32 %v2568, %v232
    %v2570 = vadd.f32 %v2569, 1e-05
    %v2571 = vrsqrt.pop %v2570
    %v2572 = vmul.f32 %v2564, %v2571
    %v2574 = vlaneseq
    %v2575 = vshrl.u32 %v2574, 7
    %v2576 = vsub.s32 0, %v2575
    %v2577 = vrot.slane %v2557, %v2576
    %v2579 = vmul.f32 %v2572, %v2577
    %v2581 = vlaneseq
    %v2582 = vshrl.u32 %v2581, 7
    %v2583 = vsub.s32 0, %v2582
    %v2584 = vrot.slane %v2559, %v2583
    %v2586 = vadd.f32 %v2579, %v2584
    %v2587 = vpack.c.bf16 %v2586, %v2586
    %s2588 = scalar_lea.vmem %s5, 512
    %v2589 = vld [vmem:[%s2588] sm:$0xff]
    %v2590 = vld [vmem:[%s2588 + $0x8] sm:$0xff]
    %v2591 = vld [vmem:[%s2588 + $0x10] sm:$0xff]
    %v2592 = vld [vmem:[%s2588 + $0x18] sm:$0xff]
    %v2593 = vld [vmem:[%s2588 + $0x20] sm:$0xff]
    %v2594 = vld [vmem:[%s2588 + $0x28] sm:$0xff]
    %v2595 = vld [vmem:[%s2588 + $0x30] sm:$0xff]
    %v2596 = vld [vmem:[%s2588 + $0x38] sm:$0xff]
    %v2597 = vld [vmem:[%s2588 + $0x40] sm:$0xff]
    %v2598 = vld [vmem:[%s2588 + $0x48] sm:$0xff]
    %v2599 = vld [vmem:[%s2588 + $0x50] sm:$0xff]
    %v2600 = vld [vmem:[%s2588 + $0x58] sm:$0xff]
    %v2601 = vld [vmem:[%s2588 + $0x60] sm:$0xff]
    %v2602 = vld [vmem:[%s2588 + $0x68] sm:$0xff]
    %v2603 = vld [vmem:[%s2588 + $0x70] sm:$0xff]
    %v2604 = vld [vmem:[%s2588 + $0x78] sm:$0xff]
    %v2605 = vld [vmem:[%s2588 + $0x80] sm:$0xff]
    %v2606 = vld [vmem:[%s2588 + $0x88] sm:$0xff]
    %v2607 = vld [vmem:[%s2588 + $0x90] sm:$0xff]
    %v2608 = vld [vmem:[%s2588 + $0x98] sm:$0xff]
    %v2609 = vld [vmem:[%s2588 + $0xa0] sm:$0xff]
    %v2610 = vld [vmem:[%s2588 + $0xa8] sm:$0xff]
    %v2611 = vld [vmem:[%s2588 + $0xb0] sm:$0xff]
    %v2612 = vld [vmem:[%s2588 + $0xb8] sm:$0xff]
    %v2613 = vld [vmem:[%s2588 + $0xc0] sm:$0xff]
    %v2614 = vld [vmem:[%s2588 + $0xc8] sm:$0xff]
    %v2615 = vld [vmem:[%s2588 + $0xd0] sm:$0xff]
    %v2616 = vld [vmem:[%s2588 + $0xd8] sm:$0xff]
    %v2617 = vld [vmem:[%s2588 + $0xe0] sm:$0xff]
    %v2618 = vld [vmem:[%s2588 + $0xe8] sm:$0xff]
    %v2619 = vld [vmem:[%s2588 + $0xf0] sm:$0xff]
    %v2620 = vld [vmem:[%s2588 + $0xf8] sm:$0xff]
    %v2621 = vld [vmem:[%s2588 + $0x100] sm:$0xff]
    %v2622 = vld [vmem:[%s2588 + $0x108] sm:$0xff]
    %v2623 = vld [vmem:[%s2588 + $0x110] sm:$0xff]
    %v2624 = vld [vmem:[%s2588 + $0x118] sm:$0xff]
    %v2625 = vld [vmem:[%s2588 + $0x120] sm:$0xff]
    %v2626 = vld [vmem:[%s2588 + $0x128] sm:$0xff]
    %v2627 = vld [vmem:[%s2588 + $0x130] sm:$0xff]
    %v2628 = vld [vmem:[%s2588 + $0x138] sm:$0xff]
    %v2629 = vld [vmem:[%s2588 + $0x140] sm:$0xff]
    %v2630 = vld [vmem:[%s2588 + $0x148] sm:$0xff]
    %v2631 = vld [vmem:[%s2588 + $0x150] sm:$0xff]
    %v2632 = vld [vmem:[%s2588 + $0x158] sm:$0xff]
    %v2633 = vld [vmem:[%s2588 + $0x160] sm:$0xff]
    %v2634 = vld [vmem:[%s2588 + $0x168] sm:$0xff]
    %v2635 = vld [vmem:[%s2588 + $0x170] sm:$0xff]
    %v2636 = vld [vmem:[%s2588 + $0x178] sm:$0xff]
    %v2637 = vld [vmem:[%s2588 + $0x180] sm:$0xff]
    %v2638 = vld [vmem:[%s2588 + $0x188] sm:$0xff]
    %v2639 = vld [vmem:[%s2588 + $0x190] sm:$0xff]
    %v2640 = vld [vmem:[%s2588 + $0x198] sm:$0xff]
    %v2641 = vld [vmem:[%s2588 + $0x1a0] sm:$0xff]
    %v2642 = vld [vmem:[%s2588 + $0x1a8] sm:$0xff]
    %v2643 = vld [vmem:[%s2588 + $0x1b0] sm:$0xff]
    %v2644 = vld [vmem:[%s2588 + $0x1b8] sm:$0xff]
    %v2645 = vld [vmem:[%s2588 + $0x1c0] sm:$0xff]
    %v2646 = vld [vmem:[%s2588 + $0x1c8] sm:$0xff]
    %v2647 = vld [vmem:[%s2588 + $0x1d0] sm:$0xff]
    %v2648 = vld [vmem:[%s2588 + $0x1d8] sm:$0xff]
    %v2649 = vld [vmem:[%s2588 + $0x1e0] sm:$0xff]
    %v2650 = vld [vmem:[%s2588 + $0x1e8] sm:$0xff]
    %v2651 = vld [vmem:[%s2588 + $0x1f0] sm:$0xff]
    %v2652 = vld [vmem:[%s2588 + $0x1f8] sm:$0xff]
    %s2653 = scalar_lea.vmem %s6, 16
    %v2654 = vld [vmem:[%s2653] sm:$0xff]
    %v2655 = vld [vmem:[%s2653 + $0x8] sm:$0xff]
    %v2658 = vlaneseq
    %v2659 = vshrl.u32 %v2658, 7
    %v2660 = vsub.s32 0, %v2659
    %v2661 = vrot.slane %v2654, %v2660
    %v2662 = vlaneseq
    %v2663 = vshrl.u32 %v2662, 7
    %v2664 = vsub.s32 1, %v2663
    %v2665 = vrot.slane %v2654, %v2664
    %v2666 = vlaneseq
    %v2667 = vshrl.u32 %v2666, 7
    %v2668 = vsub.s32 2, %v2667
    %v2669 = vrot.slane %v2654, %v2668
    %v2670 = vlaneseq
    %v2671 = vshrl.u32 %v2670, 7
    %v2672 = vsub.s32 3, %v2671
    %v2673 = vrot.slane %v2654, %v2672
    %v2674 = vlaneseq
    %v2675 = vshrl.u32 %v2674, 7
    %v2676 = vsub.s32 4, %v2675
    %v2677 = vrot.slane %v2654, %v2676
    %v2678 = vlaneseq
    %v2679 = vshrl.u32 %v2678, 7
    %v2680 = vsub.s32 5, %v2679
    %v2681 = vrot.slane %v2654, %v2680
    %v2682 = vlaneseq
    %v2683 = vshrl.u32 %v2682, 7
    %v2684 = vsub.s32 6, %v2683
    %v2685 = vrot.slane %v2654, %v2684
    %v2686 = vlaneseq
    %v2687 = vshrl.u32 %v2686, 7
    %v2688 = vsub.s32 7, %v2687
    %v2689 = vrot.slane %v2654, %v2688
    %v2690 = vlaneseq
    %v2691 = vshrl.u32 %v2690, 7
    %v2692 = vsub.s32 0, %v2691
    %v2693 = vrot.slane %v2655, %v2692
    %v2694 = vlaneseq
    %v2695 = vshrl.u32 %v2694, 7
    %v2696 = vsub.s32 1, %v2695
    %v2697 = vrot.slane %v2655, %v2696
    %v2698 = vlaneseq
    %v2699 = vshrl.u32 %v2698, 7
    %v2700 = vsub.s32 2, %v2699
    %v2701 = vrot.slane %v2655, %v2700
    %v2702 = vlaneseq
    %v2703 = vshrl.u32 %v2702, 7
    %v2704 = vsub.s32 3, %v2703
    %v2705 = vrot.slane %v2655, %v2704
    %v2706 = vlaneseq
    %v2707 = vshrl.u32 %v2706, 7
    %v2708 = vsub.s32 4, %v2707
    %v2709 = vrot.slane %v2655, %v2708
    %v2710 = vlaneseq
    %v2711 = vshrl.u32 %v2710, 7
    %v2712 = vsub.s32 5, %v2711
    %v2713 = vrot.slane %v2655, %v2712
    %v2714 = vlaneseq
    %v2715 = vshrl.u32 %v2714, 7
    %v2716 = vsub.s32 6, %v2715
    %v2717 = vrot.slane %v2655, %v2716
    %v2718 = vlaneseq
    %v2719 = vshrl.u32 %v2718, 7
    %v2720 = vsub.s32 7, %v2719
    %v2721 = vrot.slane %v2655, %v2720
    %v2802 = vunpack.c.l.b16 %v2589
    %v2803 = vunpack.c.h.b16 %v2589
    %v2804 = vunpack.c.l.b16 %v2590
    %v2805 = vunpack.c.h.b16 %v2590
    %v2806 = vunpack.c.l.b16 %v2591
    %v2807 = vunpack.c.h.b16 %v2591
    %v2808 = vunpack.c.l.b16 %v2592
    %v2809 = vunpack.c.h.b16 %v2592
    %v2810 = vunpack.c.l.b16 %v2593
    %v2811 = vunpack.c.h.b16 %v2593
    %v2812 = vunpack.c.l.b16 %v2594
    %v2813 = vunpack.c.h.b16 %v2594
    %v2814 = vunpack.c.l.b16 %v2595
    %v2815 = vunpack.c.h.b16 %v2595
    %v2816 = vunpack.c.l.b16 %v2596
    %v2817 = vunpack.c.h.b16 %v2596
    %v2818 = vunpack.c.l.b16 %v2597
    %v2819 = vunpack.c.h.b16 %v2597
    %v2820 = vunpack.c.l.b16 %v2598
    %v2821 = vunpack.c.h.b16 %v2598
    %v2822 = vunpack.c.l.b16 %v2599
    %v2823 = vunpack.c.h.b16 %v2599
    %v2824 = vunpack.c.l.b16 %v2600
    %v2825 = vunpack.c.h.b16 %v2600
    %v2826 = vunpack.c.l.b16 %v2601
    %v2827 = vunpack.c.h.b16 %v2601
    %v2828 = vunpack.c.l.b16 %v2602
    %v2829 = vunpack.c.h.b16 %v2602
    %v2830 = vunpack.c.l.b16 %v2603
    %v2831 = vunpack.c.h.b16 %v2603
    %v2832 = vunpack.c.l.b16 %v2604
    %v2833 = vunpack.c.h.b16 %v2604
    %v2834 = vunpack.c.l.b16 %v2605
    %v2835 = vunpack.c.h.b16 %v2605
    %v2836 = vunpack.c.l.b16 %v2606
    %v2837 = vunpack.c.h.b16 %v2606
    %v2838 = vunpack.c.l.b16 %v2607
    %v2839 = vunpack.c.h.b16 %v2607
    %v2840 = vunpack.c.l.b16 %v2608
    %v2841 = vunpack.c.h.b16 %v2608
    %v2842 = vunpack.c.l.b16 %v2609
    %v2843 = vunpack.c.h.b16 %v2609
    %v2844 = vunpack.c.l.b16 %v2610
    %v2845 = vunpack.c.h.b16 %v2610
    %v2846 = vunpack.c.l.b16 %v2611
    %v2847 = vunpack.c.h.b16 %v2611
    %v2848 = vunpack.c.l.b16 %v2612
    %v2849 = vunpack.c.h.b16 %v2612
    %v2850 = vunpack.c.l.b16 %v2613
    %v2851 = vunpack.c.h.b16 %v2613
    %v2852 = vunpack.c.l.b16 %v2614
    %v2853 = vunpack.c.h.b16 %v2614
    %v2854 = vunpack.c.l.b16 %v2615
    %v2855 = vunpack.c.h.b16 %v2615
    %v2856 = vunpack.c.l.b16 %v2616
    %v2857 = vunpack.c.h.b16 %v2616
    %v2858 = vunpack.c.l.b16 %v2617
    %v2859 = vunpack.c.h.b16 %v2617
    %v2860 = vunpack.c.l.b16 %v2618
    %v2861 = vunpack.c.h.b16 %v2618
    %v2862 = vunpack.c.l.b16 %v2619
    %v2863 = vunpack.c.h.b16 %v2619
    %v2864 = vunpack.c.l.b16 %v2620
    %v2865 = vunpack.c.h.b16 %v2620
    %v2866 = vunpack.c.l.b16 %v2621
    %v2867 = vunpack.c.h.b16 %v2621
    %v2868 = vunpack.c.l.b16 %v2622
    %v2869 = vunpack.c.h.b16 %v2622
    %v2870 = vunpack.c.l.b16 %v2623
    %v2871 = vunpack.c.h.b16 %v2623
    %v2872 = vunpack.c.l.b16 %v2624
    %v2873 = vunpack.c.h.b16 %v2624
    %v2874 = vunpack.c.l.b16 %v2625
    %v2875 = vunpack.c.h.b16 %v2625
    %v2876 = vunpack.c.l.b16 %v2626
    %v2877 = vunpack.c.h.b16 %v2626
    %v2878 = vunpack.c.l.b16 %v2627
    %v2879 = vunpack.c.h.b16 %v2627
    %v2880 = vunpack.c.l.b16 %v2628
    %v2881 = vunpack.c.h.b16 %v2628
    %v2882 = vunpack.c.l.b16 %v2629
    %v2883 = vunpack.c.h.b16 %v2629
    %v2884 = vunpack.c.l.b16 %v2630
    %v2885 = vunpack.c.h.b16 %v2630
    %v2886 = vunpack.c.l.b16 %v2631
    %v2887 = vunpack.c.h.b16 %v2631
    %v2888 = vunpack.c.l.b16 %v2632
    %v2889 = vunpack.c.h.b16 %v2632
    %v2890 = vunpack.c.l.b16 %v2633
    %v2891 = vunpack.c.h.b16 %v2633
    %v2892 = vunpack.c.l.b16 %v2634
    %v2893 = vunpack.c.h.b16 %v2634
    %v2894 = vunpack.c.l.b16 %v2635
    %v2895 = vunpack.c.h.b16 %v2635
    %v2896 = vunpack.c.l.b16 %v2636
    %v2897 = vunpack.c.h.b16 %v2636
    %v2898 = vunpack.c.l.b16 %v2637
    %v2899 = vunpack.c.h.b16 %v2637
    %v2900 = vunpack.c.l.b16 %v2638
    %v2901 = vunpack.c.h.b16 %v2638
    %v2902 = vunpack.c.l.b16 %v2639
    %v2903 = vunpack.c.h.b16 %v2639
    %v2904 = vunpack.c.l.b16 %v2640
    %v2905 = vunpack.c.h.b16 %v2640
    %v2906 = vunpack.c.l.b16 %v2641
    %v2907 = vunpack.c.h.b16 %v2641
    %v2908 = vunpack.c.l.b16 %v2642
    %v2909 = vunpack.c.h.b16 %v2642
    %v2910 = vunpack.c.l.b16 %v2643
    %v2911 = vunpack.c.h.b16 %v2643
    %v2912 = vunpack.c.l.b16 %v2644
    %v2913 = vunpack.c.h.b16 %v2644
    %v2914 = vunpack.c.l.b16 %v2645
    %v2915 = vunpack.c.h.b16 %v2645
    %v2916 = vunpack.c.l.b16 %v2646
    %v2917 = vunpack.c.h.b16 %v2646
    %v2918 = vunpack.c.l.b16 %v2647
    %v2919 = vunpack.c.h.b16 %v2647
    %v2920 = vunpack.c.l.b16 %v2648
    %v2921 = vunpack.c.h.b16 %v2648
    %v2922 = vunpack.c.l.b16 %v2649
    %v2923 = vunpack.c.h.b16 %v2649
    %v2924 = vunpack.c.l.b16 %v2650
    %v2925 = vunpack.c.h.b16 %v2650
    %v2926 = vunpack.c.l.b16 %v2651
    %v2927 = vunpack.c.h.b16 %v2651
    %v2928 = vunpack.c.l.b16 %v2652
    %v2929 = vunpack.c.h.b16 %v2652
    %v2930 = vpack.c.b16 %v2818, %v2802
    %v2931 = vpack.c.b16 %v2819, %v2803
    %v2932 = vpack.c.b16 %v2820, %v2804
    %v2933 = vpack.c.b16 %v2821, %v2805
    %v2934 = vpack.c.b16 %v2822, %v2806
    %v2935 = vpack.c.b16 %v2823, %v2807
    %v2936 = vpack.c.b16 %v2824, %v2808
    %v2937 = vpack.c.b16 %v2825, %v2809
    %v2938 = vpack.c.b16 %v2826, %v2810
    %v2939 = vpack.c.b16 %v2827, %v2811
    %v2940 = vpack.c.b16 %v2828, %v2812
    %v2941 = vpack.c.b16 %v2829, %v2813
    %v2942 = vpack.c.b16 %v2830, %v2814
    %v2943 = vpack.c.b16 %v2831, %v2815
    %v2944 = vpack.c.b16 %v2832, %v2816
    %v2945 = vpack.c.b16 %v2833, %v2817
    %v2946 = vpack.c.b16 %v2850, %v2834
    %v2947 = vpack.c.b16 %v2851, %v2835
    %v2948 = vpack.c.b16 %v2852, %v2836
    %v2949 = vpack.c.b16 %v2853, %v2837
    %v2950 = vpack.c.b16 %v2854, %v2838
    %v2951 = vpack.c.b16 %v2855, %v2839
    %v2952 = vpack.c.b16 %v2856, %v2840
    %v2953 = vpack.c.b16 %v2857, %v2841
    %v2954 = vpack.c.b16 %v2858, %v2842
    %v2955 = vpack.c.b16 %v2859, %v2843
    %v2956 = vpack.c.b16 %v2860, %v2844
    %v2957 = vpack.c.b16 %v2861, %v2845
    %v2958 = vpack.c.b16 %v2862, %v2846
    %v2959 = vpack.c.b16 %v2863, %v2847
    %v2960 = vpack.c.b16 %v2864, %v2848
    %v2961 = vpack.c.b16 %v2865, %v2849
    %v2962 = vpack.c.b16 %v2882, %v2866
    %v2963 = vpack.c.b16 %v2883, %v2867
    %v2964 = vpack.c.b16 %v2884, %v2868
    %v2965 = vpack.c.b16 %v2885, %v2869
    %v2966 = vpack.c.b16 %v2886, %v2870
    %v2967 = vpack.c.b16 %v2887, %v2871
    %v2968 = vpack.c.b16 %v2888, %v2872
    %v2969 = vpack.c.b16 %v2889, %v2873
    %v2970 = vpack.c.b16 %v2890, %v2874
    %v2971 = vpack.c.b16 %v2891, %v2875
    %v2972 = vpack.c.b16 %v2892, %v2876
    %v2973 = vpack.c.b16 %v2893, %v2877
    %v2974 = vpack.c.b16 %v2894, %v2878
    %v2975 = vpack.c.b16 %v2895, %v2879
    %v2976 = vpack.c.b16 %v2896, %v2880
    %v2977 = vpack.c.b16 %v2897, %v2881
    %v2978 = vpack.c.b16 %v2914, %v2898
    %v2979 = vpack.c.b16 %v2915, %v2899
    %v2980 = vpack.c.b16 %v2916, %v2900
    %v2981 = vpack.c.b16 %v2917, %v2901
    %v2982 = vpack.c.b16 %v2918, %v2902
    %v2983 = vpack.c.b16 %v2919, %v2903
    %v2984 = vpack.c.b16 %v2920, %v2904
    %v2985 = vpack.c.b16 %v2921, %v2905
    %v2986 = vpack.c.b16 %v2922, %v2906
    %v2987 = vpack.c.b16 %v2923, %v2907
    %v2988 = vpack.c.b16 %v2924, %v2908
    %v2989 = vpack.c.b16 %v2925, %v2909
    %v2990 = vpack.c.b16 %v2926, %v2910
    %v2991 = vpack.c.b16 %v2927, %v2911
    %v2992 = vpack.c.b16 %v2928, %v2912
    %v2993 = vpack.c.b16 %v2929, %v2913
    %v3059 = vsel %vm182, %v2587, 0
    %3061 = vmatprep.subr.bf16.mxu0 %v2931
    %3062 = vmatpush1.bf16.msra.mxu0 %v2930
    %3063 = vmatprep.subr.bf16.mxu0 %v2947
    %3064 = vmatpush1.bf16.msra.mxu0 %v2946
    %3065 = vmatprep.subr.bf16.mxu0 %v2963
    %3066 = vmatpush1.bf16.msra.mxu0 %v2962
    %3067 = vmatprep.subr.bf16.mxu0 %v2979
    %3068 = vmatpush1.bf16.msra.mxu0 %v2978
    %3069 = vmatprep.subr.bf16.mxu0 0
    %3070 = vmatpush1.bf16.msra.mxu0 0
    %3071 = vmatprep.subr.bf16.mxu0 0
    %3072 = vmatpush1.bf16.msra.mxu0 0
    %3073 = vmatprep.subr.bf16.mxu0 0
    %3074 = vmatpush1.bf16.msra.mxu0 0
    %3075 = vmatprep.subr.bf16.mxu0 0
    %3076 = vmatpush1.bf16.msra.mxu0 0
    %3077 = vmatprep.subr.bf16.mxu0 0
    %3078 = vmatpush1.bf16.msra.mxu0 0
    %3079 = vmatprep.subr.bf16.mxu0 0
    %3080 = vmatpush1.bf16.msra.mxu0 0
    %3081 = vmatprep.subr.bf16.mxu0 0
    %3082 = vmatpush1.bf16.msra.mxu0 0
    %3083 = vmatprep.subr.bf16.mxu0 0
    %3084 = vmatpush1.bf16.msra.mxu0 0
    %3085 = vmatprep.subr.bf16.mxu0 0
    %3086 = vmatpush1.bf16.msra.mxu0 0
    %3087 = vmatprep.subr.bf16.mxu0 0
    %3088 = vmatpush1.bf16.msra.mxu0 0
    %3089 = vmatprep.subr.bf16.mxu0 0
    %3090 = vmatpush1.bf16.msra.mxu0 0
    %3091 = vmatprep.subr.bf16.mxu0 0
    %3092 = vmatpush1.bf16.msra.mxu0 0
    %3093 = vmatprep.mubr.bf16.mxu0 0
    %3094 = vmatmul.mubr.bf16.gmra.mrb[0].mxu0 %v3059
    %v3095 = vpop.f32.mrb[0].mxu0
    %v3096 = vadd.f32 %v2661, %v3095
    %v3097 = vpop.f32.mrb[0].mxu0
    %v3098 = vadd.f32 %v2665, %v3097
    %v3099 = vpop.f32.mrb[0].mxu0
    %v3100 = vpop.f32.mrb[0].mxu0
    %3101 = vdwg.mxu0
    %3102 = vmatprep.subr.bf16.mxu0 %v2933
    %3103 = vmatpush1.bf16.msra.mxu0 %v2932
    %3104 = vmatprep.subr.bf16.mxu0 %v2949
    %3105 = vmatpush1.bf16.msra.mxu0 %v2948
    %3106 = vmatprep.subr.bf16.mxu0 %v2965
    %3107 = vmatpush1.bf16.msra.mxu0 %v2964
    %3108 = vmatprep.subr.bf16.mxu0 %v2981
    %3109 = vmatpush1.bf16.msra.mxu0 %v2980
    %3110 = vmatprep.subr.bf16.mxu0 0
    %3111 = vmatpush1.bf16.msra.mxu0 0
    %3112 = vmatprep.subr.bf16.mxu0 0
    %3113 = vmatpush1.bf16.msra.mxu0 0
    %3114 = vmatprep.subr.bf16.mxu0 0
    %3115 = vmatpush1.bf16.msra.mxu0 0
    %3116 = vmatprep.subr.bf16.mxu0 0
    %3117 = vmatpush1.bf16.msra.mxu0 0
    %3118 = vmatprep.subr.bf16.mxu0 0
    %3119 = vmatpush1.bf16.msra.mxu0 0
    %3120 = vmatprep.subr.bf16.mxu0 0
    %3121 = vmatpush1.bf16.msra.mxu0 0
    %3122 = vmatprep.subr.bf16.mxu0 0
    %3123 = vmatpush1.bf16.msra.mxu0 0
    %3124 = vmatprep.subr.bf16.mxu0 0
    %3125 = vmatpush1.bf16.msra.mxu0 0
    %3126 = vmatprep.subr.bf16.mxu0 0
    %3127 = vmatpush1.bf16.msra.mxu0 0
    %3128 = vmatprep.subr.bf16.mxu0 0
    %3129 = vmatpush1.bf16.msra.mxu0 0
    %3130 = vmatprep.subr.bf16.mxu0 0
    %3131 = vmatpush1.bf16.msra.mxu0 0
    %3132 = vmatprep.subr.bf16.mxu0 0
    %3133 = vmatpush1.bf16.msra.mxu0 0
    %3134 = vmatprep.mubr.bf16.mxu0 0
    %3135 = vmatmul.mubr.bf16.gmra.mrb[0].mxu0 %v3059
    %v3136 = vpop.f32.mrb[0].mxu0
    %v3137 = vadd.f32 %v2669, %v3136
    %v3138 = vpop.f32.mrb[0].mxu0
    %v3139 = vadd.f32 %v2673, %v3138
    %v3140 = vpop.f32.mrb[0].mxu0
    %v3141 = vpop.f32.mrb[0].mxu0
    %3142 = vdwg.mxu0
    %3143 = vmatprep.subr.bf16.mxu0 %v2935
    %3144 = vmatpush1.bf16.msra.mxu0 %v2934
    %3145 = vmatprep.subr.bf16.mxu0 %v2951
    %3146 = vmatpush1.bf16.msra.mxu0 %v2950
    %3147 = vmatprep.subr.bf16.mxu0 %v2967
    %3148 = vmatpush1.bf16.msra.mxu0 %v2966
    %3149 = vmatprep.subr.bf16.mxu0 %v2983
    %3150 = vmatpush1.bf16.msra.mxu0 %v2982
    %3151 = vmatprep.subr.bf16.mxu0 0
    %3152 = vmatpush1.bf16.msra.mxu0 0
    %3153 = vmatprep.subr.bf16.mxu0 0
    %3154 = vmatpush1.bf16.msra.mxu0 0
    %3155 = vmatprep.subr.bf16.mxu0 0
    %3156 = vmatpush1.bf16.msra.mxu0 0
    %3157 = vmatprep.subr.bf16.mxu0 0
    %3158 = vmatpush1.bf16.msra.mxu0 0
    %3159 = vmatprep.subr.bf16.mxu0 0
    %3160 = vmatpush1.bf16.msra.mxu0 0
    %3161 = vmatprep.subr.bf16.mxu0 0
    %3162 = vmatpush1.bf16.msra.mxu0 0
    %3163 = vmatprep.subr.bf16.mxu0 0
    %3164 = vmatpush1.bf16.msra.mxu0 0
    %3165 = vmatprep.subr.bf16.mxu0 0
    %3166 = vmatpush1.bf16.msra.mxu0 0
    %3167 = vmatprep.subr.bf16.mxu0 0
    %3168 = vmatpush1.bf16.msra.mxu0 0
    %3169 = vmatprep.subr.bf16.mxu0 0
    %3170 = vmatpush1.bf16.msra.mxu0 0
    %3171 = vmatprep.subr.bf16.mxu0 0
    %3172 = vmatpush1.bf16.msra.mxu0 0
    %3173 = vmatprep.subr.bf16.mxu0 0
    %3174 = vmatpush1.bf16.msra.mxu0 0
    %3175 = vmatprep.mubr.bf16.mxu0 0
    %3176 = vmatmul.mubr.bf16.gmra.mrb[0].mxu0 %v3059
    %v3177 = vpop.f32.mrb[0].mxu0
    %v3178 = vadd.f32 %v2677, %v3177
    %v3179 = vpop.f32.mrb[0].mxu0
    %v3180 = vadd.f32 %v2681, %v3179
    %v3181 = vpop.f32.mrb[0].mxu0
    %v3182 = vpop.f32.mrb[0].mxu0
    %3183 = vdwg.mxu0
    %3184 = vmatprep.subr.bf16.mxu0 %v2937
    %3185 = vmatpush1.bf16.msra.mxu0 %v2936
    %3186 = vmatprep.subr.bf16.mxu0 %v2953
    %3187 = vmatpush1.bf16.msra.mxu0 %v2952
    %3188 = vmatprep.subr.bf16.mxu0 %v2969
    %3189 = vmatpush1.bf16.msra.mxu0 %v2968
    %3190 = vmatprep.subr.bf16.mxu0 %v2985
    %3191 = vmatpush1.bf16.msra.mxu0 %v2984
    %3192 = vmatprep.subr.bf16.mxu0 0
    %3193 = vmatpush1.bf16.msra.mxu0 0
    %3194 = vmatprep.subr.bf16.mxu0 0
    %3195 = vmatpush1.bf16.msra.mxu0 0
    %3196 = vmatprep.subr.bf16.mxu0 0
    %3197 = vmatpush1.bf16.msra.mxu0 0
    %3198 = vmatprep.subr.bf16.mxu0 0
    %3199 = vmatpush1.bf16.msra.mxu0 0
    %3200 = vmatprep.subr.bf16.mxu0 0
    %3201 = vmatpush1.bf16.msra.mxu0 0
    %3202 = vmatprep.subr.bf16.mxu0 0
    %3203 = vmatpush1.bf16.msra.mxu0 0
    %3204 = vmatprep.subr.bf16.mxu0 0
    %3205 = vmatpush1.bf16.msra.mxu0 0
    %3206 = vmatprep.subr.bf16.mxu0 0
    %3207 = vmatpush1.bf16.msra.mxu0 0
    %3208 = vmatprep.subr.bf16.mxu0 0
    %3209 = vmatpush1.bf16.msra.mxu0 0
    %3210 = vmatprep.subr.bf16.mxu0 0
    %3211 = vmatpush1.bf16.msra.mxu0 0
    %3212 = vmatprep.subr.bf16.mxu0 0
    %3213 = vmatpush1.bf16.msra.mxu0 0
    %3214 = vmatprep.subr.bf16.mxu0 0
    %3215 = vmatpush1.bf16.msra.mxu0 0
    %3216 = vmatprep.mubr.bf16.mxu0 0
    %3217 = vmatmul.mubr.bf16.gmra.mrb[0].mxu0 %v3059
    %v3218 = vpop.f32.mrb[0].mxu0
    %v3219 = vadd.f32 %v2685, %v3218
    %v3220 = vpop.f32.mrb[0].mxu0
    %v3221 = vadd.f32 %v2689, %v3220
    %v3222 = vpop.f32.mrb[0].mxu0
    %v3223 = vpop.f32.mrb[0].mxu0
    %3224 = vdwg.mxu0
    %3225 = vmatprep.subr.bf16.mxu0 %v2939
    %3226 = vmatpush1.bf16.msra.mxu0 %v2938
    %3227 = vmatprep.subr.bf16.mxu0 %v2955
    %3228 = vmatpush1.bf16.msra.mxu0 %v2954
    %3229 = vmatprep.subr.bf16.mxu0 %v2971
    %3230 = vmatpush1.bf16.msra.mxu0 %v2970
    %3231 = vmatprep.subr.bf16.mxu0 %v2987
    %3232 = vmatpush1.bf16.msra.mxu0 %v2986
    %3233 = vmatprep.subr.bf16.mxu0 0
    %3234 = vmatpush1.bf16.msra.mxu0 0
    %3235 = vmatprep.subr.bf16.mxu0 0
    %3236 = vmatpush1.bf16.msra.mxu0 0
    %3237 = vmatprep.subr.bf16.mxu0 0
    %3238 = vmatpush1.bf16.msra.mxu0 0
    %3239 = vmatprep.subr.bf16.mxu0 0
    %3240 = vmatpush1.bf16.msra.mxu0 0
    %3241 = vmatprep.subr.bf16.mxu0 0
    %3242 = vmatpush1.bf16.msra.mxu0 0
    %3243 = vmatprep.subr.bf16.mxu0 0
    %3244 = vmatpush1.bf16.msra.mxu0 0
    %3245 = vmatprep.subr.bf16.mxu0 0
    %3246 = vmatpush1.bf16.msra.mxu0 0
    %3247 = vmatprep.subr.bf16.mxu0 0
    %3248 = vmatpush1.bf16.msra.mxu0 0
    %3249 = vmatprep.subr.bf16.mxu0 0
    %3250 = vmatpush1.bf16.msra.mxu0 0
    %3251 = vmatprep.subr.bf16.mxu0 0
    %3252 = vmatpush1.bf16.msra.mxu0 0
    %3253 = vmatprep.subr.bf16.mxu0 0
    %3254 = vmatpush1.bf16.msra.mxu0 0
    %3255 = vmatprep.subr.bf16.mxu0 0
    %3256 = vmatpush1.bf16.msra.mxu0 0
    %3257 = vmatprep.mubr.bf16.mxu0 0
    %3258 = vmatmul.mubr.bf16.gmra.mrb[0].mxu0 %v3059
    %v3259 = vpop.f32.mrb[0].mxu0
    %v3260 = vadd.f32 %v2693, %v3259
    %v3261 = vpop.f32.mrb[0].mxu0
    %v3262 = vadd.f32 %v2697, %v3261
    %v3263 = vpop.f32.mrb[0].mxu0
    %v3264 = vpop.f32.mrb[0].mxu0
    %3265 = vdwg.mxu0
    %3266 = vmatprep.subr.bf16.mxu0 %v2941
    %3267 = vmatpush1.bf16.msra.mxu0 %v2940
    %3268 = vmatprep.subr.bf16.mxu0 %v2957
    %3269 = vmatpush1.bf16.msra.mxu0 %v2956
    %3270 = vmatprep.subr.bf16.mxu0 %v2973
    %3271 = vmatpush1.bf16.msra.mxu0 %v2972
    %3272 = vmatprep.subr.bf16.mxu0 %v2989
    %3273 = vmatpush1.bf16.msra.mxu0 %v2988
    %3274 = vmatprep.subr.bf16.mxu0 0
    %3275 = vmatpush1.bf16.msra.mxu0 0
    %3276 = vmatprep.subr.bf16.mxu0 0
    %3277 = vmatpush1.bf16.msra.mxu0 0
    %3278 = vmatprep.subr.bf16.mxu0 0
    %3279 = vmatpush1.bf16.msra.mxu0 0
    %3280 = vmatprep.subr.bf16.mxu0 0
    %3281 = vmatpush1.bf16.msra.mxu0 0
    %3282 = vmatprep.subr.bf16.mxu0 0
    %3283 = vmatpush1.bf16.msra.mxu0 0
    %3284 = vmatprep.subr.bf16.mxu0 0
    %3285 = vmatpush1.bf16.msra.mxu0 0
    %3286 = vmatprep.subr.bf16.mxu0 0
    %3287 = vmatpush1.bf16.msra.mxu0 0
    %3288 = vmatprep.subr.bf16.mxu0 0
    %3289 = vmatpush1.bf16.msra.mxu0 0
    %3290 = vmatprep.subr.bf16.mxu0 0
    %3291 = vmatpush1.bf16.msra.mxu0 0
    %3292 = vmatprep.subr.bf16.mxu0 0
    %3293 = vmatpush1.bf16.msra.mxu0 0
    %3294 = vmatprep.subr.bf16.mxu0 0
    %3295 = vmatpush1.bf16.msra.mxu0 0
    %3296 = vmatprep.subr.bf16.mxu0 0
    %3297 = vmatpush1.bf16.msra.mxu0 0
    %3298 = vmatprep.mubr.bf16.mxu0 0
    %3299 = vmatmul.mubr.bf16.gmra.mrb[0].mxu0 %v3059
    %v3300 = vpop.f32.mrb[0].mxu0
    %v3301 = vadd.f32 %v2701, %v3300
    %v3302 = vpop.f32.mrb[0].mxu0
    %v3303 = vadd.f32 %v2705, %v3302
    %v3304 = vpop.f32.mrb[0].mxu0
    %v3305 = vpop.f32.mrb[0].mxu0
    %3306 = vdwg.mxu0
    %3307 = vmatprep.subr.bf16.mxu0 %v2943
    %3308 = vmatpush1.bf16.msra.mxu0 %v2942
    %3309 = vmatprep.subr.bf16.mxu0 %v2959
    %3310 = vmatpush1.bf16.msra.mxu0 %v2958
    %3311 = vmatprep.subr.bf16.mxu0 %v2975
    %3312 = vmatpush1.bf16.msra.mxu0 %v2974
    %3313 = vmatprep.subr.bf16.mxu0 %v2991
    %3314 = vmatpush1.bf16.msra.mxu0 %v2990
    %3315 = vmatprep.subr.bf16.mxu0 0
    %3316 = vmatpush1.bf16.msra.mxu0 0
    %3317 = vmatprep.subr.bf16.mxu0 0
    %3318 = vmatpush1.bf16.msra.mxu0 0
    %3319 = vmatprep.subr.bf16.mxu0 0
    %3320 = vmatpush1.bf16.msra.mxu0 0
    %3321 = vmatprep.subr.bf16.mxu0 0
    %3322 = vmatpush1.bf16.msra.mxu0 0
    %3323 = vmatprep.subr.bf16.mxu0 0
    %3324 = vmatpush1.bf16.msra.mxu0 0
    %3325 = vmatprep.subr.bf16.mxu0 0
    %3326 = vmatpush1.bf16.msra.mxu0 0
    %3327 = vmatprep.subr.bf16.mxu0 0
    %3328 = vmatpush1.bf16.msra.mxu0 0
    %3329 = vmatprep.subr.bf16.mxu0 0
    %3330 = vmatpush1.bf16.msra.mxu0 0
    %3331 = vmatprep.subr.bf16.mxu0 0
    %3332 = vmatpush1.bf16.msra.mxu0 0
    %3333 = vmatprep.subr.bf16.mxu0 0
    %3334 = vmatpush1.bf16.msra.mxu0 0
    %3335 = vmatprep.subr.bf16.mxu0 0
    %3336 = vmatpush1.bf16.msra.mxu0 0
    %3337 = vmatprep.subr.bf16.mxu0 0
    %3338 = vmatpush1.bf16.msra.mxu0 0
    %3339 = vmatprep.mubr.bf16.mxu0 0
    %3340 = vmatmul.mubr.bf16.gmra.mrb[0].mxu0 %v3059
    %v3341 = vpop.f32.mrb[0].mxu0
    %v3342 = vadd.f32 %v2709, %v3341
    %v3343 = vpop.f32.mrb[0].mxu0
    %v3344 = vadd.f32 %v2713, %v3343
    %v3345 = vpop.f32.mrb[0].mxu0
    %v3346 = vpop.f32.mrb[0].mxu0
    %3347 = vdwg.mxu0
    %3348 = vmatprep.subr.bf16.mxu0 %v2945
    %3349 = vmatpush1.bf16.msra.mxu0 %v2944
    %3350 = vmatprep.subr.bf16.mxu0 %v2961
    %3351 = vmatpush1.bf16.msra.mxu0 %v2960
    %3352 = vmatprep.subr.bf16.mxu0 %v2977
    %3353 = vmatpush1.bf16.msra.mxu0 %v2976
    %3354 = vmatprep.subr.bf16.mxu0 %v2993
    %3355 = vmatpush1.bf16.msra.mxu0 %v2992
    %3356 = vmatprep.subr.bf16.mxu0 0
    %3357 = vmatpush1.bf16.msra.mxu0 0
    %3358 = vmatprep.subr.bf16.mxu0 0
    %3359 = vmatpush1.bf16.msra.mxu0 0
    %3360 = vmatprep.subr.bf16.mxu0 0
    %3361 = vmatpush1.bf16.msra.mxu0 0
    %3362 = vmatprep.subr.bf16.mxu0 0
    %3363 = vmatpush1.bf16.msra.mxu0 0
    %3364 = vmatprep.subr.bf16.mxu0 0
    %3365 = vmatpush1.bf16.msra.mxu0 0
    %3366 = vmatprep.subr.bf16.mxu0 0
    %3367 = vmatpush1.bf16.msra.mxu0 0
    %3368 = vmatprep.subr.bf16.mxu0 0
    %3369 = vmatpush1.bf16.msra.mxu0 0
    %3370 = vmatprep.subr.bf16.mxu0 0
    %3371 = vmatpush1.bf16.msra.mxu0 0
    %3372 = vmatprep.subr.bf16.mxu0 0
    %3373 = vmatpush1.bf16.msra.mxu0 0
    %3374 = vmatprep.subr.bf16.mxu0 0
    %3375 = vmatpush1.bf16.msra.mxu0 0
    %3376 = vmatprep.subr.bf16.mxu0 0
    %3377 = vmatpush1.bf16.msra.mxu0 0
    %3378 = vmatprep.subr.bf16.mxu0 0
    %3379 = vmatpush1.bf16.msra.mxu0 0
    %3380 = vmatprep.mubr.bf16.mxu0 0
    %3381 = vmatmul.mubr.bf16.gmra.mrb[0].mxu0 %v3059
    %v3382 = vpop.f32.mrb[0].mxu0
    %v3383 = vadd.f32 %v2717, %v3382
    %v3384 = vpop.f32.mrb[0].mxu0
    %v3385 = vadd.f32 %v2721, %v3384
    %v3386 = vpop.f32.mrb[0].mxu0
    %v3387 = vpop.f32.mrb[0].mxu0
    %3388 = vdwg.mxu0
    %v3389 = vmax.f32 %v3096, 0.0
    %v3390 = vmax.f32 %v3098, 0.0
    %v3391 = vmax.f32 %v3137, 0.0
    %v3392 = vmax.f32 %v3139, 0.0
    %v3393 = vmax.f32 %v3178, 0.0
    %v3394 = vmax.f32 %v3180, 0.0
    %v3395 = vmax.f32 %v3219, 0.0
    %v3396 = vmax.f32 %v3221, 0.0
    %v3397 = vmax.f32 %v3260, 0.0
    %v3398 = vmax.f32 %v3262, 0.0
    %v3399 = vmax.f32 %v3301, 0.0
    %v3400 = vmax.f32 %v3303, 0.0
    %v3401 = vmax.f32 %v3342, 0.0
    %v3402 = vmax.f32 %v3344, 0.0
    %v3403 = vmax.f32 %v3383, 0.0
    %v3404 = vmax.f32 %v3385, 0.0
    %v3405 = vpack.c.bf16 %v3389, %v3389
    %v3406 = vpack.c.bf16 %v3390, %v3390
    %v3407 = vpack.c.bf16 %v3391, %v3391
    %v3408 = vpack.c.bf16 %v3392, %v3392
    %v3409 = vpack.c.bf16 %v3393, %v3393
    %v3410 = vpack.c.bf16 %v3394, %v3394
    %v3411 = vpack.c.bf16 %v3395, %v3395
    %v3412 = vpack.c.bf16 %v3396, %v3396
    %v3413 = vpack.c.bf16 %v3397, %v3397
    %v3414 = vpack.c.bf16 %v3398, %v3398
    %v3415 = vpack.c.bf16 %v3399, %v3399
    %v3416 = vpack.c.bf16 %v3400, %v3400
    %v3417 = vpack.c.bf16 %v3401, %v3401
    %v3418 = vpack.c.bf16 %v3402, %v3402
    %v3419 = vpack.c.bf16 %v3403, %v3403
    %v3420 = vpack.c.bf16 %v3404, %v3404
    %s3421 = scalar_lea.vmem %s7, 1024
    %v3422 = vld [vmem:[%s3421] sm:$0xf]
    %v3423 = vld [vmem:[%s3421 + $0x4] sm:$0xf]
    %v3424 = vld [vmem:[%s3421 + $0x8] sm:$0xf]
    %v3425 = vld [vmem:[%s3421 + $0xc] sm:$0xf]
    %v3426 = vld [vmem:[%s3421 + $0x10] sm:$0xf]
    %v3427 = vld [vmem:[%s3421 + $0x14] sm:$0xf]
    %v3428 = vld [vmem:[%s3421 + $0x18] sm:$0xf]
    %v3429 = vld [vmem:[%s3421 + $0x1c] sm:$0xf]
    %v3430 = vld [vmem:[%s3421 + $0x20] sm:$0xf]
    %v3431 = vld [vmem:[%s3421 + $0x24] sm:$0xf]
    %v3432 = vld [vmem:[%s3421 + $0x28] sm:$0xf]
    %v3433 = vld [vmem:[%s3421 + $0x2c] sm:$0xf]
    %v3434 = vld [vmem:[%s3421 + $0x30] sm:$0xf]
    %v3435 = vld [vmem:[%s3421 + $0x34] sm:$0xf]
    %v3436 = vld [vmem:[%s3421 + $0x38] sm:$0xf]
    %v3437 = vld [vmem:[%s3421 + $0x3c] sm:$0xf]
    %v3438 = vld [vmem:[%s3421 + $0x40] sm:$0xf]
    %v3439 = vld [vmem:[%s3421 + $0x44] sm:$0xf]
    %v3440 = vld [vmem:[%s3421 + $0x48] sm:$0xf]
    %v3441 = vld [vmem:[%s3421 + $0x4c] sm:$0xf]
    %v3442 = vld [vmem:[%s3421 + $0x50] sm:$0xf]
    %v3443 = vld [vmem:[%s3421 + $0x54] sm:$0xf]
    %v3444 = vld [vmem:[%s3421 + $0x58] sm:$0xf]
    %v3445 = vld [vmem:[%s3421 + $0x5c] sm:$0xf]
    %v3446 = vld [vmem:[%s3421 + $0x60] sm:$0xf]
    %v3447 = vld [vmem:[%s3421 + $0x64] sm:$0xf]
    %v3448 = vld [vmem:[%s3421 + $0x68] sm:$0xf]
    %v3449 = vld [vmem:[%s3421 + $0x6c] sm:$0xf]
    %v3450 = vld [vmem:[%s3421 + $0x70] sm:$0xf]
    %v3451 = vld [vmem:[%s3421 + $0x74] sm:$0xf]
    %v3452 = vld [vmem:[%s3421 + $0x78] sm:$0xf]
    %v3453 = vld [vmem:[%s3421 + $0x7c] sm:$0xf]
    %v3454 = vld [vmem:[%s3421 + $0x80] sm:$0xf]
    %v3455 = vld [vmem:[%s3421 + $0x84] sm:$0xf]
    %v3456 = vld [vmem:[%s3421 + $0x88] sm:$0xf]
    %v3457 = vld [vmem:[%s3421 + $0x8c] sm:$0xf]
    %v3458 = vld [vmem:[%s3421 + $0x90] sm:$0xf]
    %v3459 = vld [vmem:[%s3421 + $0x94] sm:$0xf]
    %v3460 = vld [vmem:[%s3421 + $0x98] sm:$0xf]
    %v3461 = vld [vmem:[%s3421 + $0x9c] sm:$0xf]
    %v3462 = vld [vmem:[%s3421 + $0xa0] sm:$0xf]
    %v3463 = vld [vmem:[%s3421 + $0xa4] sm:$0xf]
    %v3464 = vld [vmem:[%s3421 + $0xa8] sm:$0xf]
    %v3465 = vld [vmem:[%s3421 + $0xac] sm:$0xf]
    %v3466 = vld [vmem:[%s3421 + $0xb0] sm:$0xf]
    %v3467 = vld [vmem:[%s3421 + $0xb4] sm:$0xf]
    %v3468 = vld [vmem:[%s3421 + $0xb8] sm:$0xf]
    %v3469 = vld [vmem:[%s3421 + $0xbc] sm:$0xf]
    %v3470 = vld [vmem:[%s3421 + $0xc0] sm:$0xf]
    %v3471 = vld [vmem:[%s3421 + $0xc4] sm:$0xf]
    %v3472 = vld [vmem:[%s3421 + $0xc8] sm:$0xf]
    %v3473 = vld [vmem:[%s3421 + $0xcc] sm:$0xf]
    %v3474 = vld [vmem:[%s3421 + $0xd0] sm:$0xf]
    %v3475 = vld [vmem:[%s3421 + $0xd4] sm:$0xf]
    %v3476 = vld [vmem:[%s3421 + $0xd8] sm:$0xf]
    %v3477 = vld [vmem:[%s3421 + $0xdc] sm:$0xf]
    %v3478 = vld [vmem:[%s3421 + $0xe0] sm:$0xf]
    %v3479 = vld [vmem:[%s3421 + $0xe4] sm:$0xf]
    %v3480 = vld [vmem:[%s3421 + $0xe8] sm:$0xf]
    %v3481 = vld [vmem:[%s3421 + $0xec] sm:$0xf]
    %v3482 = vld [vmem:[%s3421 + $0xf0] sm:$0xf]
    %v3483 = vld [vmem:[%s3421 + $0xf4] sm:$0xf]
    %v3484 = vld [vmem:[%s3421 + $0xf8] sm:$0xf]
    %v3485 = vld [vmem:[%s3421 + $0xfc] sm:$0xf]
    %v3486 = vld [vmem:[%s3421 + $0x100] sm:$0xf]
    %v3487 = vld [vmem:[%s3421 + $0x104] sm:$0xf]
    %v3488 = vld [vmem:[%s3421 + $0x108] sm:$0xf]
    %v3489 = vld [vmem:[%s3421 + $0x10c] sm:$0xf]
    %v3490 = vld [vmem:[%s3421 + $0x110] sm:$0xf]
    %v3491 = vld [vmem:[%s3421 + $0x114] sm:$0xf]
    %v3492 = vld [vmem:[%s3421 + $0x118] sm:$0xf]
    %v3493 = vld [vmem:[%s3421 + $0x11c] sm:$0xf]
    %v3494 = vld [vmem:[%s3421 + $0x120] sm:$0xf]
    %v3495 = vld [vmem:[%s3421 + $0x124] sm:$0xf]
    %v3496 = vld [vmem:[%s3421 + $0x128] sm:$0xf]
    %v3497 = vld [vmem:[%s3421 + $0x12c] sm:$0xf]
    %v3498 = vld [vmem:[%s3421 + $0x130] sm:$0xf]
    %v3499 = vld [vmem:[%s3421 + $0x134] sm:$0xf]
    %v3500 = vld [vmem:[%s3421 + $0x138] sm:$0xf]
    %v3501 = vld [vmem:[%s3421 + $0x13c] sm:$0xf]
    %v3502 = vld [vmem:[%s3421 + $0x140] sm:$0xf]
    %v3503 = vld [vmem:[%s3421 + $0x144] sm:$0xf]
    %v3504 = vld [vmem:[%s3421 + $0x148] sm:$0xf]
    %v3505 = vld [vmem:[%s3421 + $0x14c] sm:$0xf]
    %v3506 = vld [vmem:[%s3421 + $0x150] sm:$0xf]
    %v3507 = vld [vmem:[%s3421 + $0x154] sm:$0xf]
    %v3508 = vld [vmem:[%s3421 + $0x158] sm:$0xf]
    %v3509 = vld [vmem:[%s3421 + $0x15c] sm:$0xf]
    %v3510 = vld [vmem:[%s3421 + $0x160] sm:$0xf]
    %v3511 = vld [vmem:[%s3421 + $0x164] sm:$0xf]
    %v3512 = vld [vmem:[%s3421 + $0x168] sm:$0xf]
    %v3513 = vld [vmem:[%s3421 + $0x16c] sm:$0xf]
    %v3514 = vld [vmem:[%s3421 + $0x170] sm:$0xf]
    %v3515 = vld [vmem:[%s3421 + $0x174] sm:$0xf]
    %v3516 = vld [vmem:[%s3421 + $0x178] sm:$0xf]
    %v3517 = vld [vmem:[%s3421 + $0x17c] sm:$0xf]
    %v3518 = vld [vmem:[%s3421 + $0x180] sm:$0xf]
    %v3519 = vld [vmem:[%s3421 + $0x184] sm:$0xf]
    %v3520 = vld [vmem:[%s3421 + $0x188] sm:$0xf]
    %v3521 = vld [vmem:[%s3421 + $0x18c] sm:$0xf]
    %v3522 = vld [vmem:[%s3421 + $0x190] sm:$0xf]
    %v3523 = vld [vmem:[%s3421 + $0x194] sm:$0xf]
    %v3524 = vld [vmem:[%s3421 + $0x198] sm:$0xf]
    %v3525 = vld [vmem:[%s3421 + $0x19c] sm:$0xf]
    %v3526 = vld [vmem:[%s3421 + $0x1a0] sm:$0xf]
    %v3527 = vld [vmem:[%s3421 + $0x1a4] sm:$0xf]
    %v3528 = vld [vmem:[%s3421 + $0x1a8] sm:$0xf]
    %v3529 = vld [vmem:[%s3421 + $0x1ac] sm:$0xf]
    %v3530 = vld [vmem:[%s3421 + $0x1b0] sm:$0xf]
    %v3531 = vld [vmem:[%s3421 + $0x1b4] sm:$0xf]
    %v3532 = vld [vmem:[%s3421 + $0x1b8] sm:$0xf]
    %v3533 = vld [vmem:[%s3421 + $0x1bc] sm:$0xf]
    %v3534 = vld [vmem:[%s3421 + $0x1c0] sm:$0xf]
    %v3535 = vld [vmem:[%s3421 + $0x1c4] sm:$0xf]
    %v3536 = vld [vmem:[%s3421 + $0x1c8] sm:$0xf]
    %v3537 = vld [vmem:[%s3421 + $0x1cc] sm:$0xf]
    %v3538 = vld [vmem:[%s3421 + $0x1d0] sm:$0xf]
    %v3539 = vld [vmem:[%s3421 + $0x1d4] sm:$0xf]
    %v3540 = vld [vmem:[%s3421 + $0x1d8] sm:$0xf]
    %v3541 = vld [vmem:[%s3421 + $0x1dc] sm:$0xf]
    %v3542 = vld [vmem:[%s3421 + $0x1e0] sm:$0xf]
    %v3543 = vld [vmem:[%s3421 + $0x1e4] sm:$0xf]
    %v3544 = vld [vmem:[%s3421 + $0x1e8] sm:$0xf]
    %v3545 = vld [vmem:[%s3421 + $0x1ec] sm:$0xf]
    %v3546 = vld [vmem:[%s3421 + $0x1f0] sm:$0xf]
    %v3547 = vld [vmem:[%s3421 + $0x1f4] sm:$0xf]
    %v3548 = vld [vmem:[%s3421 + $0x1f8] sm:$0xf]
    %v3549 = vld [vmem:[%s3421 + $0x1fc] sm:$0xf]
    %v3550 = vld [vmem:[%s3421 + $0x200] sm:$0xf]
    %v3551 = vld [vmem:[%s3421 + $0x204] sm:$0xf]
    %v3552 = vld [vmem:[%s3421 + $0x208] sm:$0xf]
    %v3553 = vld [vmem:[%s3421 + $0x20c] sm:$0xf]
    %v3554 = vld [vmem:[%s3421 + $0x210] sm:$0xf]
    %v3555 = vld [vmem:[%s3421 + $0x214] sm:$0xf]
    %v3556 = vld [vmem:[%s3421 + $0x218] sm:$0xf]
    %v3557 = vld [vmem:[%s3421 + $0x21c] sm:$0xf]
    %v3558 = vld [vmem:[%s3421 + $0x220] sm:$0xf]
    %v3559 = vld [vmem:[%s3421 + $0x224] sm:$0xf]
    %v3560 = vld [vmem:[%s3421 + $0x228] sm:$0xf]
    %v3561 = vld [vmem:[%s3421 + $0x22c] sm:$0xf]
    %v3562 = vld [vmem:[%s3421 + $0x230] sm:$0xf]
    %v3563 = vld [vmem:[%s3421 + $0x234] sm:$0xf]
    %v3564 = vld [vmem:[%s3421 + $0x238] sm:$0xf]
    %v3565 = vld [vmem:[%s3421 + $0x23c] sm:$0xf]
    %v3566 = vld [vmem:[%s3421 + $0x240] sm:$0xf]
    %v3567 = vld [vmem:[%s3421 + $0x244] sm:$0xf]
    %v3568 = vld [vmem:[%s3421 + $0x248] sm:$0xf]
    %v3569 = vld [vmem:[%s3421 + $0x24c] sm:$0xf]
    %v3570 = vld [vmem:[%s3421 + $0x250] sm:$0xf]
    %v3571 = vld [vmem:[%s3421 + $0x254] sm:$0xf]
    %v3572 = vld [vmem:[%s3421 + $0x258] sm:$0xf]
    %v3573 = vld [vmem:[%s3421 + $0x25c] sm:$0xf]
    %v3574 = vld [vmem:[%s3421 + $0x260] sm:$0xf]
    %v3575 = vld [vmem:[%s3421 + $0x264] sm:$0xf]
    %v3576 = vld [vmem:[%s3421 + $0x268] sm:$0xf]
    %v3577 = vld [vmem:[%s3421 + $0x26c] sm:$0xf]
    %v3578 = vld [vmem:[%s3421 + $0x270] sm:$0xf]
    %v3579 = vld [vmem:[%s3421 + $0x274] sm:$0xf]
    %v3580 = vld [vmem:[%s3421 + $0x278] sm:$0xf]
    %v3581 = vld [vmem:[%s3421 + $0x27c] sm:$0xf]
    %v3582 = vld [vmem:[%s3421 + $0x280] sm:$0xf]
    %v3583 = vld [vmem:[%s3421 + $0x284] sm:$0xf]
    %v3584 = vld [vmem:[%s3421 + $0x288] sm:$0xf]
    %v3585 = vld [vmem:[%s3421 + $0x28c] sm:$0xf]
    %v3586 = vld [vmem:[%s3421 + $0x290] sm:$0xf]
    %v3587 = vld [vmem:[%s3421 + $0x294] sm:$0xf]
    %v3588 = vld [vmem:[%s3421 + $0x298] sm:$0xf]
    %v3589 = vld [vmem:[%s3421 + $0x29c] sm:$0xf]
    %v3590 = vld [vmem:[%s3421 + $0x2a0] sm:$0xf]
    %v3591 = vld [vmem:[%s3421 + $0x2a4] sm:$0xf]
    %v3592 = vld [vmem:[%s3421 + $0x2a8] sm:$0xf]
    %v3593 = vld [vmem:[%s3421 + $0x2ac] sm:$0xf]
    %v3594 = vld [vmem:[%s3421 + $0x2b0] sm:$0xf]
    %v3595 = vld [vmem:[%s3421 + $0x2b4] sm:$0xf]
    %v3596 = vld [vmem:[%s3421 + $0x2b8] sm:$0xf]
    %v3597 = vld [vmem:[%s3421 + $0x2bc] sm:$0xf]
    %v3598 = vld [vmem:[%s3421 + $0x2c0] sm:$0xf]
    %v3599 = vld [vmem:[%s3421 + $0x2c4] sm:$0xf]
    %v3600 = vld [vmem:[%s3421 + $0x2c8] sm:$0xf]
    %v3601 = vld [vmem:[%s3421 + $0x2cc] sm:$0xf]
    %v3602 = vld [vmem:[%s3421 + $0x2d0] sm:$0xf]
    %v3603 = vld [vmem:[%s3421 + $0x2d4] sm:$0xf]
    %v3604 = vld [vmem:[%s3421 + $0x2d8] sm:$0xf]
    %v3605 = vld [vmem:[%s3421 + $0x2dc] sm:$0xf]
    %v3606 = vld [vmem:[%s3421 + $0x2e0] sm:$0xf]
    %v3607 = vld [vmem:[%s3421 + $0x2e4] sm:$0xf]
    %v3608 = vld [vmem:[%s3421 + $0x2e8] sm:$0xf]
    %v3609 = vld [vmem:[%s3421 + $0x2ec] sm:$0xf]
    %v3610 = vld [vmem:[%s3421 + $0x2f0] sm:$0xf]
    %v3611 = vld [vmem:[%s3421 + $0x2f4] sm:$0xf]
    %v3612 = vld [vmem:[%s3421 + $0x2f8] sm:$0xf]
    %v3613 = vld [vmem:[%s3421 + $0x2fc] sm:$0xf]
    %v3614 = vld [vmem:[%s3421 + $0x300] sm:$0xf]
    %v3615 = vld [vmem:[%s3421 + $0x304] sm:$0xf]
    %v3616 = vld [vmem:[%s3421 + $0x308] sm:$0xf]
    %v3617 = vld [vmem:[%s3421 + $0x30c] sm:$0xf]
    %v3618 = vld [vmem:[%s3421 + $0x310] sm:$0xf]
    %v3619 = vld [vmem:[%s3421 + $0x314] sm:$0xf]
    %v3620 = vld [vmem:[%s3421 + $0x318] sm:$0xf]
    %v3621 = vld [vmem:[%s3421 + $0x31c] sm:$0xf]
    %v3622 = vld [vmem:[%s3421 + $0x320] sm:$0xf]
    %v3623 = vld [vmem:[%s3421 + $0x324] sm:$0xf]
    %v3624 = vld [vmem:[%s3421 + $0x328] sm:$0xf]
    %v3625 = vld [vmem:[%s3421 + $0x32c] sm:$0xf]
    %v3626 = vld [vmem:[%s3421 + $0x330] sm:$0xf]
    %v3627 = vld [vmem:[%s3421 + $0x334] sm:$0xf]
    %v3628 = vld [vmem:[%s3421 + $0x338] sm:$0xf]
    %v3629 = vld [vmem:[%s3421 + $0x33c] sm:$0xf]
    %v3630 = vld [vmem:[%s3421 + $0x340] sm:$0xf]
    %v3631 = vld [vmem:[%s3421 + $0x344] sm:$0xf]
    %v3632 = vld [vmem:[%s3421 + $0x348] sm:$0xf]
    %v3633 = vld [vmem:[%s3421 + $0x34c] sm:$0xf]
    %v3634 = vld [vmem:[%s3421 + $0x350] sm:$0xf]
    %v3635 = vld [vmem:[%s3421 + $0x354] sm:$0xf]
    %v3636 = vld [vmem:[%s3421 + $0x358] sm:$0xf]
    %v3637 = vld [vmem:[%s3421 + $0x35c] sm:$0xf]
    %v3638 = vld [vmem:[%s3421 + $0x360] sm:$0xf]
    %v3639 = vld [vmem:[%s3421 + $0x364] sm:$0xf]
    %v3640 = vld [vmem:[%s3421 + $0x368] sm:$0xf]
    %v3641 = vld [vmem:[%s3421 + $0x36c] sm:$0xf]
    %v3642 = vld [vmem:[%s3421 + $0x370] sm:$0xf]
    %v3643 = vld [vmem:[%s3421 + $0x374] sm:$0xf]
    %v3644 = vld [vmem:[%s3421 + $0x378] sm:$0xf]
    %v3645 = vld [vmem:[%s3421 + $0x37c] sm:$0xf]
    %v3646 = vld [vmem:[%s3421 + $0x380] sm:$0xf]
    %v3647 = vld [vmem:[%s3421 + $0x384] sm:$0xf]
    %v3648 = vld [vmem:[%s3421 + $0x388] sm:$0xf]
    %v3649 = vld [vmem:[%s3421 + $0x38c] sm:$0xf]
    %v3650 = vld [vmem:[%s3421 + $0x390] sm:$0xf]
    %v3651 = vld [vmem:[%s3421 + $0x394] sm:$0xf]
    %v3652 = vld [vmem:[%s3421 + $0x398] sm:$0xf]
    %v3653 = vld [vmem:[%s3421 + $0x39c] sm:$0xf]
    %v3654 = vld [vmem:[%s3421 + $0x3a0] sm:$0xf]
    %v3655 = vld [vmem:[%s3421 + $0x3a4] sm:$0xf]
    %v3656 = vld [vmem:[%s3421 + $0x3a8] sm:$0xf]
    %v3657 = vld [vmem:[%s3421 + $0x3ac] sm:$0xf]
    %v3658 = vld [vmem:[%s3421 + $0x3b0] sm:$0xf]
    %v3659 = vld [vmem:[%s3421 + $0x3b4] sm:$0xf]
    %v3660 = vld [vmem:[%s3421 + $0x3b8] sm:$0xf]
    %v3661 = vld [vmem:[%s3421 + $0x3bc] sm:$0xf]
    %v3662 = vld [vmem:[%s3421 + $0x3c0] sm:$0xf]
    %v3663 = vld [vmem:[%s3421 + $0x3c4] sm:$0xf]
    %v3664 = vld [vmem:[%s3421 + $0x3c8] sm:$0xf]
    %v3665 = vld [vmem:[%s3421 + $0x3cc] sm:$0xf]
    %v3666 = vld [vmem:[%s3421 + $0x3d0] sm:$0xf]
    %v3667 = vld [vmem:[%s3421 + $0x3d4] sm:$0xf]
    %v3668 = vld [vmem:[%s3421 + $0x3d8] sm:$0xf]
    %v3669 = vld [vmem:[%s3421 + $0x3dc] sm:$0xf]
    %v3670 = vld [vmem:[%s3421 + $0x3e0] sm:$0xf]
    %v3671 = vld [vmem:[%s3421 + $0x3e4] sm:$0xf]
    %v3672 = vld [vmem:[%s3421 + $0x3e8] sm:$0xf]
    %v3673 = vld [vmem:[%s3421 + $0x3ec] sm:$0xf]
    %v3674 = vld [vmem:[%s3421 + $0x3f0] sm:$0xf]
    %v3675 = vld [vmem:[%s3421 + $0x3f4] sm:$0xf]
    %v3676 = vld [vmem:[%s3421 + $0x3f8] sm:$0xf]
    %v3677 = vld [vmem:[%s3421 + $0x3fc] sm:$0xf]
    %s3678 = scalar_lea.vmem %s8, 1
    %v3679 = vld [vmem:[%s3678] sm:$0x1]
    %v3681 = vlaneseq
    %v3682 = vshrl.u32 %v3681, 7
    %v3683 = vsub.s32 0, %v3682
    %v3684 = vrot.slane %v3679, %v3683
    %v3942 = vunpack.c.l.b16 %v3422
    %v3943 = vunpack.c.l.b16 %v3423
    %v3944 = vunpack.c.l.b16 %v3424
    %v3945 = vunpack.c.l.b16 %v3425
    %v3946 = vunpack.c.l.b16 %v3426
    %v3947 = vunpack.c.l.b16 %v3427
    %v3948 = vunpack.c.l.b16 %v3428
    %v3949 = vunpack.c.l.b16 %v3429
    %v3950 = vunpack.c.l.b16 %v3430
    %v3951 = vunpack.c.l.b16 %v3431
    %v3952 = vunpack.c.l.b16 %v3432
    %v3953 = vunpack.c.l.b16 %v3433
    %v3954 = vunpack.c.l.b16 %v3434
    %v3955 = vunpack.c.l.b16 %v3435
    %v3956 = vunpack.c.l.b16 %v3436
    %v3957 = vunpack.c.l.b16 %v3437
    %v3958 = vunpack.c.l.b16 %v3438
    %v3959 = vunpack.c.l.b16 %v3439
    %v3960 = vunpack.c.l.b16 %v3440
    %v3961 = vunpack.c.l.b16 %v3441
    %v3962 = vunpack.c.l.b16 %v3442
    %v3963 = vunpack.c.l.b16 %v3443
    %v3964 = vunpack.c.l.b16 %v3444
    %v3965 = vunpack.c.l.b16 %v3445
    %v3966 = vunpack.c.l.b16 %v3446
    %v3967 = vunpack.c.l.b16 %v3447
    %v3968 = vunpack.c.l.b16 %v3448
    %v3969 = vunpack.c.l.b16 %v3449
    %v3970 = vunpack.c.l.b16 %v3450
    %v3971 = vunpack.c.l.b16 %v3451
    %v3972 = vunpack.c.l.b16 %v3452
    %v3973 = vunpack.c.l.b16 %v3453
    %v3974 = vunpack.c.l.b16 %v3454
    %v3975 = vunpack.c.l.b16 %v3455
    %v3976 = vunpack.c.l.b16 %v3456
    %v3977 = vunpack.c.l.b16 %v3457
    %v3978 = vunpack.c.l.b16 %v3458
    %v3979 = vunpack.c.l.b16 %v3459
    %v3980 = vunpack.c.l.b16 %v3460
    %v3981 = vunpack.c.l.b16 %v3461
    %v3982 = vunpack.c.l.b16 %v3462
    %v3983 = vunpack.c.l.b16 %v3463
    %v3984 = vunpack.c.l.b16 %v3464
    %v3985 = vunpack.c.l.b16 %v3465
    %v3986 = vunpack.c.l.b16 %v3466
    %v3987 = vunpack.c.l.b16 %v3467
    %v3988 = vunpack.c.l.b16 %v3468
    %v3989 = vunpack.c.l.b16 %v3469
    %v3990 = vunpack.c.l.b16 %v3470
    %v3991 = vunpack.c.l.b16 %v3471
    %v3992 = vunpack.c.l.b16 %v3472
    %v3993 = vunpack.c.l.b16 %v3473
    %v3994 = vunpack.c.l.b16 %v3474
    %v3995 = vunpack.c.l.b16 %v3475
    %v3996 = vunpack.c.l.b16 %v3476
    %v3997 = vunpack.c.l.b16 %v3477
    %v3998 = vunpack.c.l.b16 %v3478
    %v3999 = vunpack.c.l.b16 %v3479
    %v4000 = vunpack.c.l.b16 %v3480
    %v4001 = vunpack.c.l.b16 %v3481
    %v4002 = vunpack.c.l.b16 %v3482
    %v4003 = vunpack.c.l.b16 %v3483
    %v4004 = vunpack.c.l.b16 %v3484
    %v4005 = vunpack.c.l.b16 %v3485
    %v4006 = vunpack.c.l.b16 %v3486
    %v4007 = vunpack.c.l.b16 %v3487
    %v4008 = vunpack.c.l.b16 %v3488
    %v4009 = vunpack.c.l.b16 %v3489
    %v4010 = vunpack.c.l.b16 %v3490
    %v4011 = vunpack.c.l.b16 %v3491
    %v4012 = vunpack.c.l.b16 %v3492
    %v4013 = vunpack.c.l.b16 %v3493
    %v4014 = vunpack.c.l.b16 %v3494
    %v4015 = vunpack.c.l.b16 %v3495
    %v4016 = vunpack.c.l.b16 %v3496
    %v4017 = vunpack.c.l.b16 %v3497
    %v4018 = vunpack.c.l.b16 %v3498
    %v4019 = vunpack.c.l.b16 %v3499
    %v4020 = vunpack.c.l.b16 %v3500
    %v4021 = vunpack.c.l.b16 %v3501
    %v4022 = vunpack.c.l.b16 %v3502
    %v4023 = vunpack.c.l.b16 %v3503
    %v4024 = vunpack.c.l.b16 %v3504
    %v4025 = vunpack.c.l.b16 %v3505
    %v4026 = vunpack.c.l.b16 %v3506
    %v4027 = vunpack.c.l.b16 %v3507
    %v4028 = vunpack.c.l.b16 %v3508
    %v4029 = vunpack.c.l.b16 %v3509
    %v4030 = vunpack.c.l.b16 %v3510
    %v4031 = vunpack.c.l.b16 %v3511
    %v4032 = vunpack.c.l.b16 %v3512
    %v4033 = vunpack.c.l.b16 %v3513
    %v4034 = vunpack.c.l.b16 %v3514
    %v4035 = vunpack.c.l.b16 %v3515
    %v4036 = vunpack.c.l.b16 %v3516
    %v4037 = vunpack.c.l.b16 %v3517
    %v4038 = vunpack.c.l.b16 %v3518
    %v4039 = vunpack.c.l.b16 %v3519
    %v4040 = vunpack.c.l.b16 %v3520
    %v4041 = vunpack.c.l.b16 %v3521
    %v4042 = vunpack.c.l.b16 %v3522
    %v4043 = vunpack.c.l.b16 %v3523
    %v4044 = vunpack.c.l.b16 %v3524
    %v4045 = vunpack.c.l.b16 %v3525
    %v4046 = vunpack.c.l.b16 %v3526
    %v4047 = vunpack.c.l.b16 %v3527
    %v4048 = vunpack.c.l.b16 %v3528
    %v4049 = vunpack.c.l.b16 %v3529
    %v4050 = vunpack.c.l.b16 %v3530
    %v4051 = vunpack.c.l.b16 %v3531
    %v4052 = vunpack.c.l.b16 %v3532
    %v4053 = vunpack.c.l.b16 %v3533
    %v4054 = vunpack.c.l.b16 %v3534
    %v4055 = vunpack.c.l.b16 %v3535
    %v4056 = vunpack.c.l.b16 %v3536
    %v4057 = vunpack.c.l.b16 %v3537
    %v4058 = vunpack.c.l.b16 %v3538
    %v4059 = vunpack.c.l.b16 %v3539
    %v4060 = vunpack.c.l.b16 %v3540
    %v4061 = vunpack.c.l.b16 %v3541
    %v4062 = vunpack.c.l.b16 %v3542
    %v4063 = vunpack.c.l.b16 %v3543
    %v4064 = vunpack.c.l.b16 %v3544
    %v4065 = vunpack.c.l.b16 %v3545
    %v4066 = vunpack.c.l.b16 %v3546
    %v4067 = vunpack.c.l.b16 %v3547
    %v4068 = vunpack.c.l.b16 %v3548
    %v4069 = vunpack.c.l.b16 %v3549
    %v4070 = vunpack.c.l.b16 %v3550
    %v4071 = vunpack.c.l.b16 %v3551
    %v4072 = vunpack.c.l.b16 %v3552
    %v4073 = vunpack.c.l.b16 %v3553
    %v4074 = vunpack.c.l.b16 %v3554
    %v4075 = vunpack.c.l.b16 %v3555
    %v4076 = vunpack.c.l.b16 %v3556
    %v4077 = vunpack.c.l.b16 %v3557
    %v4078 = vunpack.c.l.b16 %v3558
    %v4079 = vunpack.c.l.b16 %v3559
    %v4080 = vunpack.c.l.b16 %v3560
    %v4081 = vunpack.c.l.b16 %v3561
    %v4082 = vunpack.c.l.b16 %v3562
    %v4083 = vunpack.c.l.b16 %v3563
    %v4084 = vunpack.c.l.b16 %v3564
    %v4085 = vunpack.c.l.b16 %v3565
    %v4086 = vunpack.c.l.b16 %v3566
    %v4087 = vunpack.c.l.b16 %v3567
    %v4088 = vunpack.c.l.b16 %v3568
    %v4089 = vunpack.c.l.b16 %v3569
    %v4090 = vunpack.c.l.b16 %v3570
    %v4091 = vunpack.c.l.b16 %v3571
    %v4092 = vunpack.c.l.b16 %v3572
    %v4093 = vunpack.c.l.b16 %v3573
    %v4094 = vunpack.c.l.b16 %v3574
    %v4095 = vunpack.c.l.b16 %v3575
    %v4096 = vunpack.c.l.b16 %v3576
    %v4097 = vunpack.c.l.b16 %v3577
    %v4098 = vunpack.c.l.b16 %v3578
    %v4099 = vunpack.c.l.b16 %v3579
    %v4100 = vunpack.c.l.b16 %v3580
    %v4101 = vunpack.c.l.b16 %v3581
    %v4102 = vunpack.c.l.b16 %v3582
    %v4103 = vunpack.c.l.b16 %v3583
    %v4104 = vunpack.c.l.b16 %v3584
    %v4105 = vunpack.c.l.b16 %v3585
    %v4106 = vunpack.c.l.b16 %v3586
    %v4107 = vunpack.c.l.b16 %v3587
    %v4108 = vunpack.c.l.b16 %v3588
    %v4109 = vunpack.c.l.b16 %v3589
    %v4110 = vunpack.c.l.b16 %v3590
    %v4111 = vunpack.c.l.b16 %v3591
    %v4112 = vunpack.c.l.b16 %v3592
    %v4113 = vunpack.c.l.b16 %v3593
    %v4114 = vunpack.c.l.b16 %v3594
    %v4115 = vunpack.c.l.b16 %v3595
    %v4116 = vunpack.c.l.b16 %v3596
    %v4117 = vunpack.c.l.b16 %v3597
    %v4118 = vunpack.c.l.b16 %v3598
    %v4119 = vunpack.c.l.b16 %v3599
    %v4120 = vunpack.c.l.b16 %v3600
    %v4121 = vunpack.c.l.b16 %v3601
    %v4122 = vunpack.c.l.b16 %v3602
    %v4123 = vunpack.c.l.b16 %v3603
    %v4124 = vunpack.c.l.b16 %v3604
    %v4125 = vunpack.c.l.b16 %v3605
    %v4126 = vunpack.c.l.b16 %v3606
    %v4127 = vunpack.c.l.b16 %v3607
    %v4128 = vunpack.c.l.b16 %v3608
    %v4129 = vunpack.c.l.b16 %v3609
    %v4130 = vunpack.c.l.b16 %v3610
    %v4131 = vunpack.c.l.b16 %v3611
    %v4132 = vunpack.c.l.b16 %v3612
    %v4133 = vunpack.c.l.b16 %v3613
    %v4134 = vunpack.c.l.b16 %v3614
    %v4135 = vunpack.c.l.b16 %v3615
    %v4136 = vunpack.c.l.b16 %v3616
    %v4137 = vunpack.c.l.b16 %v3617
    %v4138 = vunpack.c.l.b16 %v3618
    %v4139 = vunpack.c.l.b16 %v3619
    %v4140 = vunpack.c.l.b16 %v3620
    %v4141 = vunpack.c.l.b16 %v3621
    %v4142 = vunpack.c.l.b16 %v3622
    %v4143 = vunpack.c.l.b16 %v3623
    %v4144 = vunpack.c.l.b16 %v3624
    %v4145 = vunpack.c.l.b16 %v3625
    %v4146 = vunpack.c.l.b16 %v3626
    %v4147 = vunpack.c.l.b16 %v3627
    %v4148 = vunpack.c.l.b16 %v3628
    %v4149 = vunpack.c.l.b16 %v3629
    %v4150 = vunpack.c.l.b16 %v3630
    %v4151 = vunpack.c.l.b16 %v3631
    %v4152 = vunpack.c.l.b16 %v3632
    %v4153 = vunpack.c.l.b16 %v3633
    %v4154 = vunpack.c.l.b16 %v3634
    %v4155 = vunpack.c.l.b16 %v3635
    %v4156 = vunpack.c.l.b16 %v3636
    %v4157 = vunpack.c.l.b16 %v3637
    %v4158 = vunpack.c.l.b16 %v3638
    %v4159 = vunpack.c.l.b16 %v3639
    %v4160 = vunpack.c.l.b16 %v3640
    %v4161 = vunpack.c.l.b16 %v3641
    %v4162 = vunpack.c.l.b16 %v3642
    %v4163 = vunpack.c.l.b16 %v3643
    %v4164 = vunpack.c.l.b16 %v3644
    %v4165 = vunpack.c.l.b16 %v3645
    %v4166 = vunpack.c.l.b16 %v3646
    %v4167 = vunpack.c.l.b16 %v3647
    %v4168 = vunpack.c.l.b16 %v3648
    %v4169 = vunpack.c.l.b16 %v3649
    %v4170 = vunpack.c.l.b16 %v3650
    %v4171 = vunpack.c.l.b16 %v3651
    %v4172 = vunpack.c.l.b16 %v3652
    %v4173 = vunpack.c.l.b16 %v3653
    %v4174 = vunpack.c.l.b16 %v3654
    %v4175 = vunpack.c.l.b16 %v3655
    %v4176 = vunpack.c.l.b16 %v3656
    %v4177 = vunpack.c.l.b16 %v3657
    %v4178 = vunpack.c.l.b16 %v3658
    %v4179 = vunpack.c.l.b16 %v3659
    %v4180 = vunpack.c.l.b16 %v3660
    %v4181 = vunpack.c.l.b16 %v3661
    %v4182 = vunpack.c.l.b16 %v3662
    %v4183 = vunpack.c.l.b16 %v3663
    %v4184 = vunpack.c.l.b16 %v3664
    %v4185 = vunpack.c.l.b16 %v3665
    %v4186 = vunpack.c.l.b16 %v3666
    %v4187 = vunpack.c.l.b16 %v3667
    %v4188 = vunpack.c.l.b16 %v3668
    %v4189 = vunpack.c.l.b16 %v3669
    %v4190 = vunpack.c.l.b16 %v3670
    %v4191 = vunpack.c.l.b16 %v3671
    %v4192 = vunpack.c.l.b16 %v3672
    %v4193 = vunpack.c.l.b16 %v3673
    %v4194 = vunpack.c.l.b16 %v3674
    %v4195 = vunpack.c.l.b16 %v3675
    %v4196 = vunpack.c.l.b16 %v3676
    %v4197 = vunpack.c.l.b16 %v3677
    %v4198 = vpack.c.b16 %v3943, %v3942
    %v4199 = vpack.c.b16 %v3945, %v3944
    %v4200 = vpack.c.b16 %v3947, %v3946
    %v4201 = vpack.c.b16 %v3949, %v3948
    %v4202 = vpack.c.b16 %v3951, %v3950
    %v4203 = vpack.c.b16 %v3953, %v3952
    %v4204 = vpack.c.b16 %v3955, %v3954
    %v4205 = vpack.c.b16 %v3957, %v3956
    %v4206 = vpack.c.b16 %v3959, %v3958
    %v4207 = vpack.c.b16 %v3961, %v3960
    %v4208 = vpack.c.b16 %v3963, %v3962
    %v4209 = vpack.c.b16 %v3965, %v3964
    %v4210 = vpack.c.b16 %v3967, %v3966
    %v4211 = vpack.c.b16 %v3969, %v3968
    %v4212 = vpack.c.b16 %v3971, %v3970
    %v4213 = vpack.c.b16 %v3973, %v3972
    %v4214 = vpack.c.b16 %v3975, %v3974
    %v4215 = vpack.c.b16 %v3977, %v3976
    %v4216 = vpack.c.b16 %v3979, %v3978
    %v4217 = vpack.c.b16 %v3981, %v3980
    %v4218 = vpack.c.b16 %v3983, %v3982
    %v4219 = vpack.c.b16 %v3985, %v3984
    %v4220 = vpack.c.b16 %v3987, %v3986
    %v4221 = vpack.c.b16 %v3989, %v3988
    %v4222 = vpack.c.b16 %v3991, %v3990
    %v4223 = vpack.c.b16 %v3993, %v3992
    %v4224 = vpack.c.b16 %v3995, %v3994
    %v4225 = vpack.c.b16 %v3997, %v3996
    %v4226 = vpack.c.b16 %v3999, %v3998
    %v4227 = vpack.c.b16 %v4001, %v4000
    %v4228 = vpack.c.b16 %v4003, %v4002
    %v4229 = vpack.c.b16 %v4005, %v4004
    %v4230 = vpack.c.b16 %v4007, %v4006
    %v4231 = vpack.c.b16 %v4009, %v4008
    %v4232 = vpack.c.b16 %v4011, %v4010
    %v4233 = vpack.c.b16 %v4013, %v4012
    %v4234 = vpack.c.b16 %v4015, %v4014
    %v4235 = vpack.c.b16 %v4017, %v4016
    %v4236 = vpack.c.b16 %v4019, %v4018
    %v4237 = vpack.c.b16 %v4021, %v4020
    %v4238 = vpack.c.b16 %v4023, %v4022
    %v4239 = vpack.c.b16 %v4025, %v4024
    %v4240 = vpack.c.b16 %v4027, %v4026
    %v4241 = vpack.c.b16 %v4029, %v4028
    %v4242 = vpack.c.b16 %v4031, %v4030
    %v4243 = vpack.c.b16 %v4033, %v4032
    %v4244 = vpack.c.b16 %v4035, %v4034
    %v4245 = vpack.c.b16 %v4037, %v4036
    %v4246 = vpack.c.b16 %v4039, %v4038
    %v4247 = vpack.c.b16 %v4041, %v4040
    %v4248 = vpack.c.b16 %v4043, %v4042
    %v4249 = vpack.c.b16 %v4045, %v4044
    %v4250 = vpack.c.b16 %v4047, %v4046
    %v4251 = vpack.c.b16 %v4049, %v4048
    %v4252 = vpack.c.b16 %v4051, %v4050
    %v4253 = vpack.c.b16 %v4053, %v4052
    %v4254 = vpack.c.b16 %v4055, %v4054
    %v4255 = vpack.c.b16 %v4057, %v4056
    %v4256 = vpack.c.b16 %v4059, %v4058
    %v4257 = vpack.c.b16 %v4061, %v4060
    %v4258 = vpack.c.b16 %v4063, %v4062
    %v4259 = vpack.c.b16 %v4065, %v4064
    %v4260 = vpack.c.b16 %v4067, %v4066
    %v4261 = vpack.c.b16 %v4069, %v4068
    %v4262 = vpack.c.b16 %v4071, %v4070
    %v4263 = vpack.c.b16 %v4073, %v4072
    %v4264 = vpack.c.b16 %v4075, %v4074
    %v4265 = vpack.c.b16 %v4077, %v4076
    %v4266 = vpack.c.b16 %v4079, %v4078
    %v4267 = vpack.c.b16 %v4081, %v4080
    %v4268 = vpack.c.b16 %v4083, %v4082
    %v4269 = vpack.c.b16 %v4085, %v4084
    %v4270 = vpack.c.b16 %v4087, %v4086
    %v4271 = vpack.c.b16 %v4089, %v4088
    %v4272 = vpack.c.b16 %v4091, %v4090
    %v4273 = vpack.c.b16 %v4093, %v4092
    %v4274 = vpack.c.b16 %v4095, %v4094
    %v4275 = vpack.c.b16 %v4097, %v4096
    %v4276 = vpack.c.b16 %v4099, %v4098
    %v4277 = vpack.c.b16 %v4101, %v4100
    %v4278 = vpack.c.b16 %v4103, %v4102
    %v4279 = vpack.c.b16 %v4105, %v4104
    %v4280 = vpack.c.b16 %v4107, %v4106
    %v4281 = vpack.c.b16 %v4109, %v4108
    %v4282 = vpack.c.b16 %v4111, %v4110
    %v4283 = vpack.c.b16 %v4113, %v4112
    %v4284 = vpack.c.b16 %v4115, %v4114
    %v4285 = vpack.c.b16 %v4117, %v4116
    %v4286 = vpack.c.b16 %v4119, %v4118
    %v4287 = vpack.c.b16 %v4121, %v4120
    %v4288 = vpack.c.b16 %v4123, %v4122
    %v4289 = vpack.c.b16 %v4125, %v4124
    %v4290 = vpack.c.b16 %v4127, %v4126
    %v4291 = vpack.c.b16 %v4129, %v4128
    %v4292 = vpack.c.b16 %v4131, %v4130
    %v4293 = vpack.c.b16 %v4133, %v4132
    %v4294 = vpack.c.b16 %v4135, %v4134
    %v4295 = vpack.c.b16 %v4137, %v4136
    %v4296 = vpack.c.b16 %v4139, %v4138
    %v4297 = vpack.c.b16 %v4141, %v4140
    %v4298 = vpack.c.b16 %v4143, %v4142
    %v4299 = vpack.c.b16 %v4145, %v4144
    %v4300 = vpack.c.b16 %v4147, %v4146
    %v4301 = vpack.c.b16 %v4149, %v4148
    %v4302 = vpack.c.b16 %v4151, %v4150
    %v4303 = vpack.c.b16 %v4153, %v4152
    %v4304 = vpack.c.b16 %v4155, %v4154
    %v4305 = vpack.c.b16 %v4157, %v4156
    %v4306 = vpack.c.b16 %v4159, %v4158
    %v4307 = vpack.c.b16 %v4161, %v4160
    %v4308 = vpack.c.b16 %v4163, %v4162
    %v4309 = vpack.c.b16 %v4165, %v4164
    %v4310 = vpack.c.b16 %v4167, %v4166
    %v4311 = vpack.c.b16 %v4169, %v4168
    %v4312 = vpack.c.b16 %v4171, %v4170
    %v4313 = vpack.c.b16 %v4173, %v4172
    %v4314 = vpack.c.b16 %v4175, %v4174
    %v4315 = vpack.c.b16 %v4177, %v4176
    %v4316 = vpack.c.b16 %v4179, %v4178
    %v4317 = vpack.c.b16 %v4181, %v4180
    %v4318 = vpack.c.b16 %v4183, %v4182
    %v4319 = vpack.c.b16 %v4185, %v4184
    %v4320 = vpack.c.b16 %v4187, %v4186
    %v4321 = vpack.c.b16 %v4189, %v4188
    %v4322 = vpack.c.b16 %v4191, %v4190
    %v4323 = vpack.c.b16 %v4193, %v4192
    %v4324 = vpack.c.b16 %v4195, %v4194
    %v4325 = vpack.c.b16 %v4197, %v4196
    %4454 = vmatprep.subr.bf16.mxu0 0
    %4455 = vmatpush1.bf16.msra.mxu0 %v4198
    %4456 = vmatprep.subr.bf16.mxu0 0
    %4457 = vmatpush1.bf16.msra.mxu0 %v4199
    %4458 = vmatprep.subr.bf16.mxu0 0
    %4459 = vmatpush1.bf16.msra.mxu0 %v4200
    %4460 = vmatprep.subr.bf16.mxu0 0
    %4461 = vmatpush1.bf16.msra.mxu0 %v4201
    %4462 = vmatprep.subr.bf16.mxu0 0
    %4463 = vmatpush1.bf16.msra.mxu0 %v4202
    %4464 = vmatprep.subr.bf16.mxu0 0
    %4465 = vmatpush1.bf16.msra.mxu0 %v4203
    %4466 = vmatprep.subr.bf16.mxu0 0
    %4467 = vmatpush1.bf16.msra.mxu0 %v4204
    %4468 = vmatprep.subr.bf16.mxu0 0
    %4469 = vmatpush1.bf16.msra.mxu0 %v4205
    %4470 = vmatprep.subr.bf16.mxu0 0
    %4471 = vmatpush1.bf16.msra.mxu0 %v4206
    %4472 = vmatprep.subr.bf16.mxu0 0
    %4473 = vmatpush1.bf16.msra.mxu0 %v4207
    %4474 = vmatprep.subr.bf16.mxu0 0
    %4475 = vmatpush1.bf16.msra.mxu0 %v4208
    %4476 = vmatprep.subr.bf16.mxu0 0
    %4477 = vmatpush1.bf16.msra.mxu0 %v4209
    %4478 = vmatprep.subr.bf16.mxu0 0
    %4479 = vmatpush1.bf16.msra.mxu0 %v4210
    %4480 = vmatprep.subr.bf16.mxu0 0
    %4481 = vmatpush1.bf16.msra.mxu0 %v4211
    %4482 = vmatprep.subr.bf16.mxu0 0
    %4483 = vmatpush1.bf16.msra.mxu0 %v4212
    %4484 = vmatprep.subr.bf16.mxu0 0
    %4485 = vmatpush1.bf16.msra.mxu0 %v4213
    %4486 = vmatprep.mubr.bf16.mxu0 %v3406
    %4487 = vmatmul.mubr.bf16.gmra.mrb[0].mxu0 %v3405
    %v4488 = vpop.f32.mrb[0].mxu0
    %v4489 = vadd.f32 %v3684, %v4488
    %v4490 = vpop.f32.mrb[0].mxu0
    %v4491 = vpop.f32.mrb[0].mxu0
    %v4492 = vpop.f32.mrb[0].mxu0
    %4493 = vdwg.mxu0
    %4494 = vmatprep.subr.bf16.mxu0 0
    %4495 = vmatpush1.bf16.msra.mxu0 %v4214
    %4496 = vmatprep.subr.bf16.mxu0 0
    %4497 = vmatpush1.bf16.msra.mxu0 %v4215
    %4498 = vmatprep.subr.bf16.mxu0 0
    %4499 = vmatpush1.bf16.msra.mxu0 %v4216
    %4500 = vmatprep.subr.bf16.mxu0 0
    %4501 = vmatpush1.bf16.msra.mxu0 %v4217
    %4502 = vmatprep.subr.bf16.mxu0 0
    %4503 = vmatpush1.bf16.msra.mxu0 %v4218
    %4504 = vmatprep.subr.bf16.mxu0 0
    %4505 = vmatpush1.bf16.msra.mxu0 %v4219
    %4506 = vmatprep.subr.bf16.mxu0 0
    %4507 = vmatpush1.bf16.msra.mxu0 %v4220
    %4508 = vmatprep.subr.bf16.mxu0 0
    %4509 = vmatpush1.bf16.msra.mxu0 %v4221
    %4510 = vmatprep.subr.bf16.mxu0 0
    %4511 = vmatpush1.bf16.msra.mxu0 %v4222
    %4512 = vmatprep.subr.bf16.mxu0 0
    %4513 = vmatpush1.bf16.msra.mxu0 %v4223
    %4514 = vmatprep.subr.bf16.mxu0 0
    %4515 = vmatpush1.bf16.msra.mxu0 %v4224
    %4516 = vmatprep.subr.bf16.mxu0 0
    %4517 = vmatpush1.bf16.msra.mxu0 %v4225
    %4518 = vmatprep.subr.bf16.mxu0 0
    %4519 = vmatpush1.bf16.msra.mxu0 %v4226
    %4520 = vmatprep.subr.bf16.mxu0 0
    %4521 = vmatpush1.bf16.msra.mxu0 %v4227
    %4522 = vmatprep.subr.bf16.mxu0 0
    %4523 = vmatpush1.bf16.msra.mxu0 %v4228
    %4524 = vmatprep.subr.bf16.mxu0 0
    %4525 = vmatpush1.bf16.msra.mxu0 %v4229
    %4526 = vmatprep.mubr.bf16.mxu0 %v3408
    %4527 = vmatmul.mubr.bf16.gmra.mrb[0].mxu0 %v3407
    %v4528 = vpop.f32.mrb[0].mxu0
    %v4529 = vadd.f32 %v4489, %v4528
    %v4530 = vpop.f32.mrb[0].mxu0
    %v4531 = vpop.f32.mrb[0].mxu0
    %v4532 = vpop.f32.mrb[0].mxu0
    %4533 = vdwg.mxu0
    %4534 = vmatprep.subr.bf16.mxu0 0
    %4535 = vmatpush1.bf16.msra.mxu0 %v4230
    %4536 = vmatprep.subr.bf16.mxu0 0
    %4537 = vmatpush1.bf16.msra.mxu0 %v4231
    %4538 = vmatprep.subr.bf16.mxu0 0
    %4539 = vmatpush1.bf16.msra.mxu0 %v4232
    %4540 = vmatprep.subr.bf16.mxu0 0
    %4541 = vmatpush1.bf16.msra.mxu0 %v4233
    %4542 = vmatprep.subr.bf16.mxu0 0
    %4543 = vmatpush1.bf16.msra.mxu0 %v4234
    %4544 = vmatprep.subr.bf16.mxu0 0
    %4545 = vmatpush1.bf16.msra.mxu0 %v4235
    %4546 = vmatprep.subr.bf16.mxu0 0
    %4547 = vmatpush1.bf16.msra.mxu0 %v4236
    %4548 = vmatprep.subr.bf16.mxu0 0
    %4549 = vmatpush1.bf16.msra.mxu0 %v4237
    %4550 = vmatprep.subr.bf16.mxu0 0
    %4551 = vmatpush1.bf16.msra.mxu0 %v4238
    %4552 = vmatprep.subr.bf16.mxu0 0
    %4553 = vmatpush1.bf16.msra.mxu0 %v4239
    %4554 = vmatprep.subr.bf16.mxu0 0
    %4555 = vmatpush1.bf16.msra.mxu0 %v4240
    %4556 = vmatprep.subr.bf16.mxu0 0
    %4557 = vmatpush1.bf16.msra.mxu0 %v4241
    %4558 = vmatprep.subr.bf16.mxu0 0
    %4559 = vmatpush1.bf16.msra.mxu0 %v4242
    %4560 = vmatprep.subr.bf16.mxu0 0
    %4561 = vmatpush1.bf16.msra.mxu0 %v4243
    %4562 = vmatprep.subr.bf16.mxu0 0
    %4563 = vmatpush1.bf16.msra.mxu0 %v4244
    %4564 = vmatprep.subr.bf16.mxu0 0
    %4565 = vmatpush1.bf16.msra.mxu0 %v4245
    %4566 = vmatprep.mubr.bf16.mxu0 %v3410
    %4567 = vmatmul.mubr.bf16.gmra.mrb[0].mxu0 %v3409
    %v4568 = vpop.f32.mrb[0].mxu0
    %v4569 = vadd.f32 %v4529, %v4568
    %v4570 = vpop.f32.mrb[0].mxu0
    %v4571 = vpop.f32.mrb[0].mxu0
    %v4572 = vpop.f32.mrb[0].mxu0
    %4573 = vdwg.mxu0
    %4574 = vmatprep.subr.bf16.mxu0 0
    %4575 = vmatpush1.bf16.msra.mxu0 %v4246
    %4576 = vmatprep.subr.bf16.mxu0 0
    %4577 = vmatpush1.bf16.msra.mxu0 %v4247
    %4578 = vmatprep.subr.bf16.mxu0 0
    %4579 = vmatpush1.bf16.msra.mxu0 %v4248
    %4580 = vmatprep.subr.bf16.mxu0 0
    %4581 = vmatpush1.bf16.msra.mxu0 %v4249
    %4582 = vmatprep.subr.bf16.mxu0 0
    %4583 = vmatpush1.bf16.msra.mxu0 %v4250
    %4584 = vmatprep.subr.bf16.mxu0 0
    %4585 = vmatpush1.bf16.msra.mxu0 %v4251
    %4586 = vmatprep.subr.bf16.mxu0 0
    %4587 = vmatpush1.bf16.msra.mxu0 %v4252
    %4588 = vmatprep.subr.bf16.mxu0 0
    %4589 = vmatpush1.bf16.msra.mxu0 %v4253
    %4590 = vmatprep.subr.bf16.mxu0 0
    %4591 = vmatpush1.bf16.msra.mxu0 %v4254
    %4592 = vmatprep.subr.bf16.mxu0 0
    %4593 = vmatpush1.bf16.msra.mxu0 %v4255
    %4594 = vmatprep.subr.bf16.mxu0 0
    %4595 = vmatpush1.bf16.msra.mxu0 %v4256
    %4596 = vmatprep.subr.bf16.mxu0 0
    %4597 = vmatpush1.bf16.msra.mxu0 %v4257
    %4598 = vmatprep.subr.bf16.mxu0 0
    %4599 = vmatpush1.bf16.msra.mxu0 %v4258
    %4600 = vmatprep.subr.bf16.mxu0 0
    %4601 = vmatpush1.bf16.msra.mxu0 %v4259
    %4602 = vmatprep.subr.bf16.mxu0 0
    %4603 = vmatpush1.bf16.msra.mxu0 %v4260
    %4604 = vmatprep.subr.bf16.mxu0 0
    %4605 = vmatpush1.bf16.msra.mxu0 %v4261
    %4606 = vmatprep.mubr.bf16.mxu0 %v3412
    %4607 = vmatmul.mubr.bf16.gmra.mrb[0].mxu0 %v3411
    %v4608 = vpop.f32.mrb[0].mxu0
    %v4609 = vadd.f32 %v4569, %v4608
    %v4610 = vpop.f32.mrb[0].mxu0
    %v4611 = vpop.f32.mrb[0].mxu0
    %v4612 = vpop.f32.mrb[0].mxu0
    %4613 = vdwg.mxu0
    %4614 = vmatprep.subr.bf16.mxu0 0
    %4615 = vmatpush1.bf16.msra.mxu0 %v4262
    %4616 = vmatprep.subr.bf16.mxu0 0
    %4617 = vmatpush1.bf16.msra.mxu0 %v4263
    %4618 = vmatprep.subr.bf16.mxu0 0
    %4619 = vmatpush1.bf16.msra.mxu0 %v4264
    %4620 = vmatprep.subr.bf16.mxu0 0
    %4621 = vmatpush1.bf16.msra.mxu0 %v4265
    %4622 = vmatprep.subr.bf16.mxu0 0
    %4623 = vmatpush1.bf16.msra.mxu0 %v4266
    %4624 = vmatprep.subr.bf16.mxu0 0
    %4625 = vmatpush1.bf16.msra.mxu0 %v4267
    %4626 = vmatprep.subr.bf16.mxu0 0
    %4627 = vmatpush1.bf16.msra.mxu0 %v4268
    %4628 = vmatprep.subr.bf16.mxu0 0
    %4629 = vmatpush1.bf16.msra.mxu0 %v4269
    %4630 = vmatprep.subr.bf16.mxu0 0
    %4631 = vmatpush1.bf16.msra.mxu0 %v4270
    %4632 = vmatprep.subr.bf16.mxu0 0
    %4633 = vmatpush1.bf16.msra.mxu0 %v4271
    %4634 = vmatprep.subr.bf16.mxu0 0
    %4635 = vmatpush1.bf16.msra.mxu0 %v4272
    %4636 = vmatprep.subr.bf16.mxu0 0
    %4637 = vmatpush1.bf16.msra.mxu0 %v4273
    %4638 = vmatprep.subr.bf16.mxu0 0
    %4639 = vmatpush1.bf16.msra.mxu0 %v4274
    %4640 = vmatprep.subr.bf16.mxu0 0
    %4641 = vmatpush1.bf16.msra.mxu0 %v4275
    %4642 = vmatprep.subr.bf16.mxu0 0
    %4643 = vmatpush1.bf16.msra.mxu0 %v4276
    %4644 = vmatprep.subr.bf16.mxu0 0
    %4645 = vmatpush1.bf16.msra.mxu0 %v4277
    %4646 = vmatprep.mubr.bf16.mxu0 %v3414
    %4647 = vmatmul.mubr.bf16.gmra.mrb[0].mxu0 %v3413
    %v4648 = vpop.f32.mrb[0].mxu0
    %v4649 = vadd.f32 %v4609, %v4648
    %v4650 = vpop.f32.mrb[0].mxu0
    %v4651 = vpop.f32.mrb[0].mxu0
    %v4652 = vpop.f32.mrb[0].mxu0
    %4653 = vdwg.mxu0
    %4654 = vmatprep.subr.bf16.mxu0 0
    %4655 = vmatpush1.bf16.msra.mxu0 %v4278
    %4656 = vmatprep.subr.bf16.mxu0 0
    %4657 = vmatpush1.bf16.msra.mxu0 %v4279
    %4658 = vmatprep.subr.bf16.mxu0 0
    %4659 = vmatpush1.bf16.msra.mxu0 %v4280
    %4660 = vmatprep.subr.bf16.mxu0 0
    %4661 = vmatpush1.bf16.msra.mxu0 %v4281
    %4662 = vmatprep.subr.bf16.mxu0 0
    %4663 = vmatpush1.bf16.msra.mxu0 %v4282
    %4664 = vmatprep.subr.bf16.mxu0 0
    %4665 = vmatpush1.bf16.msra.mxu0 %v4283
    %4666 = vmatprep.subr.bf16.mxu0 0
    %4667 = vmatpush1.bf16.msra.mxu0 %v4284
    %4668 = vmatprep.subr.bf16.mxu0 0
    %4669 = vmatpush1.bf16.msra.mxu0 %v4285
    %4670 = vmatprep.subr.bf16.mxu0 0
    %4671 = vmatpush1.bf16.msra.mxu0 %v4286
    %4672 = vmatprep.subr.bf16.mxu0 0
    %4673 = vmatpush1.bf16.msra.mxu0 %v4287
    %4674 = vmatprep.subr.bf16.mxu0 0
    %4675 = vmatpush1.bf16.msra.mxu0 %v4288
    %4676 = vmatprep.subr.bf16.mxu0 0
    %4677 = vmatpush1.bf16.msra.mxu0 %v4289
    %4678 = vmatprep.subr.bf16.mxu0 0
    %4679 = vmatpush1.bf16.msra.mxu0 %v4290
    %4680 = vmatprep.subr.bf16.mxu0 0
    %4681 = vmatpush1.bf16.msra.mxu0 %v4291
    %4682 = vmatprep.subr.bf16.mxu0 0
    %4683 = vmatpush1.bf16.msra.mxu0 %v4292
    %4684 = vmatprep.subr.bf16.mxu0 0
    %4685 = vmatpush1.bf16.msra.mxu0 %v4293
    %4686 = vmatprep.mubr.bf16.mxu0 %v3416
    %4687 = vmatmul.mubr.bf16.gmra.mrb[0].mxu0 %v3415
    %v4688 = vpop.f32.mrb[0].mxu0
    %v4689 = vadd.f32 %v4649, %v4688
    %v4690 = vpop.f32.mrb[0].mxu0
    %v4691 = vpop.f32.mrb[0].mxu0
    %v4692 = vpop.f32.mrb[0].mxu0
    %4693 = vdwg.mxu0
    %4694 = vmatprep.subr.bf16.mxu0 0
    %4695 = vmatpush1.bf16.msra.mxu0 %v4294
    %4696 = vmatprep.subr.bf16.mxu0 0
    %4697 = vmatpush1.bf16.msra.mxu0 %v4295
    %4698 = vmatprep.subr.bf16.mxu0 0
    %4699 = vmatpush1.bf16.msra.mxu0 %v4296
    %4700 = vmatprep.subr.bf16.mxu0 0
    %4701 = vmatpush1.bf16.msra.mxu0 %v4297
    %4702 = vmatprep.subr.bf16.mxu0 0
    %4703 = vmatpush1.bf16.msra.mxu0 %v4298
    %4704 = vmatprep.subr.bf16.mxu0 0
    %4705 = vmatpush1.bf16.msra.mxu0 %v4299
    %4706 = vmatprep.subr.bf16.mxu0 0
    %4707 = vmatpush1.bf16.msra.mxu0 %v4300
    %4708 = vmatprep.subr.bf16.mxu0 0
    %4709 = vmatpush1.bf16.msra.mxu0 %v4301
    %4710 = vmatprep.subr.bf16.mxu0 0
    %4711 = vmatpush1.bf16.msra.mxu0 %v4302
    %4712 = vmatprep.subr.bf16.mxu0 0
    %4713 = vmatpush1.bf16.msra.mxu0 %v4303
    %4714 = vmatprep.subr.bf16.mxu0 0
    %4715 = vmatpush1.bf16.msra.mxu0 %v4304
    %4716 = vmatprep.subr.bf16.mxu0 0
    %4717 = vmatpush1.bf16.msra.mxu0 %v4305
    %4718 = vmatprep.subr.bf16.mxu0 0
    %4719 = vmatpush1.bf16.msra.mxu0 %v4306
    %4720 = vmatprep.subr.bf16.mxu0 0
    %4721 = vmatpush1.bf16.msra.mxu0 %v4307
    %4722 = vmatprep.subr.bf16.mxu0 0
    %4723 = vmatpush1.bf16.msra.mxu0 %v4308
    %4724 = vmatprep.subr.bf16.mxu0 0
    %4725 = vmatpush1.bf16.msra.mxu0 %v4309
    %4726 = vmatprep.mubr.bf16.mxu0 %v3418
    %4727 = vmatmul.mubr.bf16.gmra.mrb[0].mxu0 %v3417
    %v4728 = vpop.f32.mrb[0].mxu0
    %v4729 = vadd.f32 %v4689, %v4728
    %v4730 = vpop.f32.mrb[0].mxu0
    %v4731 = vpop.f32.mrb[0].mxu0
    %v4732 = vpop.f32.mrb[0].mxu0
    %4733 = vdwg.mxu0
    %4734 = vmatprep.subr.bf16.mxu0 0
    %4735 = vmatpush1.bf16.msra.mxu0 %v4310
    %4736 = vmatprep.subr.bf16.mxu0 0
    %4737 = vmatpush1.bf16.msra.mxu0 %v4311
    %4738 = vmatprep.subr.bf16.mxu0 0
    %4739 = vmatpush1.bf16.msra.mxu0 %v4312
    %4740 = vmatprep.subr.bf16.mxu0 0
    %4741 = vmatpush1.bf16.msra.mxu0 %v4313
    %4742 = vmatprep.subr.bf16.mxu0 0
    %4743 = vmatpush1.bf16.msra.mxu0 %v4314
    %4744 = vmatprep.subr.bf16.mxu0 0
    %4745 = vmatpush1.bf16.msra.mxu0 %v4315
    %4746 = vmatprep.subr.bf16.mxu0 0
    %4747 = vmatpush1.bf16.msra.mxu0 %v4316
    %4748 = vmatprep.subr.bf16.mxu0 0
    %4749 = vmatpush1.bf16.msra.mxu0 %v4317
    %4750 = vmatprep.subr.bf16.mxu0 0
    %4751 = vmatpush1.bf16.msra.mxu0 %v4318
    %4752 = vmatprep.subr.bf16.mxu0 0
    %4753 = vmatpush1.bf16.msra.mxu0 %v4319
    %4754 = vmatprep.subr.bf16.mxu0 0
    %4755 = vmatpush1.bf16.msra.mxu0 %v4320
    %4756 = vmatprep.subr.bf16.mxu0 0
    %4757 = vmatpush1.bf16.msra.mxu0 %v4321
    %4758 = vmatprep.subr.bf16.mxu0 0
    %4759 = vmatpush1.bf16.msra.mxu0 %v4322
    %4760 = vmatprep.subr.bf16.mxu0 0
    %4761 = vmatpush1.bf16.msra.mxu0 %v4323
    %4762 = vmatprep.subr.bf16.mxu0 0
    %4763 = vmatpush1.bf16.msra.mxu0 %v4324
    %4764 = vmatprep.subr.bf16.mxu0 0
    %4765 = vmatpush1.bf16.msra.mxu0 %v4325
    %4766 = vmatprep.mubr.bf16.mxu0 %v3420
    %4767 = vmatmul.mubr.bf16.gmra.mrb[0].mxu0 %v3419
    %v4768 = vpop.f32.mrb[0].mxu0
    %v4769 = vadd.f32 %v4729, %v4768
    %v4770 = vpop.f32.mrb[0].mxu0
    %v4771 = vpop.f32.mrb[0].mxu0
    %v4772 = vpop.f32.mrb[0].mxu0
    %4773 = vdwg.mxu0
    %v4774 = vadd.f32 %v2586, %v4769
    %s4775 = scalar_lea.vmem %s11, 1
    %v4776 = vld [vmem:[%s4775] sm:$0x1]
    %s4777 = scalar_lea.vmem %s12, 1
    %v4778 = vld [vmem:[%s4777] sm:$0x1]
    %v4779 = vsel %vm182, %v4774, 0.0
    %4780 = vadd.xlane.f32.xlu0 %v4779
    %v4781 = vpop.xlane.xlu0 %4780
    %v4782 = vmul.f32 %v4781, %v232
    %v4783 = vsub.f32 %v4774, %v4782
    %v4784 = vmul.f32 %v4783, %v4783
    %v4785 = vsel %vm182, %v4784, 0.0
    %4786 = vadd.xlane.f32.xlu0 %v4785
    %v4787 = vpop.xlane.xlu0 %4786
    %v4788 = vmul.f32 %v4787, %v232
    %v4789 = vadd.f32 %v4788, 1e-05
    %v4790 = vrsqrt.pop %v4789
    %v4791 = vmul.f32 %v4783, %v4790
    %v4793 = vlaneseq
    %v4794 = vshrl.u32 %v4793, 7
    %v4795 = vsub.s32 0, %v4794
    %v4796 = vrot.slane %v4776, %v4795
    %v4798 = vmul.f32 %v4791, %v4796
    %v4800 = vlaneseq
    %v4801 = vshrl.u32 %v4800, 7
    %v4802 = vsub.s32 0, %v4801
    %v4803 = vrot.slane %v4778, %v4802
    %v4805 = vadd.f32 %v4798, %v4803
    %v4806 = vpack.c.bf16 %v4805, %v4805
    %s4807 = scalar_lea.vmem %s3, 64
    %v4808 = vld [vmem:[%s4807] sm:$0xf]
    %v4809 = vld [vmem:[%s4807 + $0x4] sm:$0xf]
    %v4810 = vld [vmem:[%s4807 + $0x8] sm:$0xf]
    %v4811 = vld [vmem:[%s4807 + $0xc] sm:$0xf]
    %v4812 = vld [vmem:[%s4807 + $0x10] sm:$0xf]
    %v4813 = vld [vmem:[%s4807 + $0x14] sm:$0xf]
    %v4814 = vld [vmem:[%s4807 + $0x18] sm:$0xf]
    %v4815 = vld [vmem:[%s4807 + $0x1c] sm:$0xf]
    %s4816 = scalar_lea.vmem %s4, 2
    %v4817 = vld [vmem:[%s4816] sm:$0x1]
    %v4819 = vlaneseq
    %v4820 = vshrl.u32 %v4819, 7
    %v4821 = vsub.s32 0, %v4820
    %v4822 = vrot.slane %v4817, %v4821
    %v4832 = vunpack.c.l.b16 %v4808
    %v4833 = vunpack.c.l.b16 %v4809
    %v4834 = vunpack.c.l.b16 %v4810
    %v4835 = vunpack.c.l.b16 %v4811
    %v4836 = vunpack.c.l.b16 %v4812
    %v4837 = vunpack.c.l.b16 %v4813
    %v4838 = vunpack.c.l.b16 %v4814
    %v4839 = vunpack.c.l.b16 %v4815
    %v4840 = vpack.c.b16 %v4833, %v4832
    %v4841 = vpack.c.b16 %v4835, %v4834
    %v4842 = vpack.c.b16 %v4837, %v4836
    %v4843 = vpack.c.b16 %v4839, %v4838
    %v4849 = vsel %vm182, %v4806, 0
    %4851 = vmatprep.subr.bf16.mxu0 0
    %4852 = vmatpush1.bf16.msra.mxu0 %v4840
    %4853 = vmatprep.subr.bf16.mxu0 0
    %4854 = vmatpush1.bf16.msra.mxu0 %v4841
    %4855 = vmatprep.subr.bf16.mxu0 0
    %4856 = vmatpush1.bf16.msra.mxu0 %v4842
    %4857 = vmatprep.subr.bf16.mxu0 0
    %4858 = vmatpush1.bf16.msra.mxu0 %v4843
    %4859 = vmatprep.subr.bf16.mxu0 0
    %4860 = vmatpush1.bf16.msra.mxu0 0
    %4861 = vmatprep.subr.bf16.mxu0 0
    %4862 = vmatpush1.bf16.msra.mxu0 0
    %4863 = vmatprep.subr.bf16.mxu0 0
    %4864 = vmatpush1.bf16.msra.mxu0 0
    %4865 = vmatprep.subr.bf16.mxu0 0
    %4866 = vmatpush1.bf16.msra.mxu0 0
    %4867 = vmatprep.subr.bf16.mxu0 0
    %4868 = vmatpush1.bf16.msra.mxu0 0
    %4869 = vmatprep.subr.bf16.mxu0 0
    %4870 = vmatpush1.bf16.msra.mxu0 0
    %4871 = vmatprep.subr.bf16.mxu0 0
    %4872 = vmatpush1.bf16.msra.mxu0 0
    %4873 = vmatprep.subr.bf16.mxu0 0
    %4874 = vmatpush1.bf16.msra.mxu0 0
    %4875 = vmatprep.subr.bf16.mxu0 0
    %4876 = vmatpush1.bf16.msra.mxu0 0
    %4877 = vmatprep.subr.bf16.mxu0 0
    %4878 = vmatpush1.bf16.msra.mxu0 0
    %4879 = vmatprep.subr.bf16.mxu0 0
    %4880 = vmatpush1.bf16.msra.mxu0 0
    %4881 = vmatprep.subr.bf16.mxu0 0
    %4882 = vmatpush1.bf16.msra.mxu0 0
    %4883 = vmatprep.mubr.bf16.mxu0 0
    %4884 = vmatmul.mubr.bf16.gmra.mrb[0].mxu0 %v4849
    %v4885 = vpop.f32.mrb[0].mxu0
    %v4886 = vadd.f32 %v4822, %v4885
    %v4887 = vpop.f32.mrb[0].mxu0
    %v4888 = vpop.f32.mrb[0].mxu0
    %v4889 = vpop.f32.mrb[0].mxu0
    %4890 = vdwg.mxu0
    %v4891 = vadd.f32 %v4805, %v4886
    %s4892 = scalar_lea.vmem %s9, 2
    %v4893 = vld [vmem:[%s4892] sm:$0x1]
    %s4894 = scalar_lea.vmem %s10, 2
    %v4895 = vld [vmem:[%s4894] sm:$0x1]
    %v4896 = vsel %vm182, %v4891, 0.0
    %4897 = vadd.xlane.f32.xlu0 %v4896
    %v4898 = vpop.xlane.xlu0 %4897
    %v4899 = vmul.f32 %v4898, %v232
    %v4900 = vsub.f32 %v4891, %v4899
    %v4901 = vmul.f32 %v4900, %v4900
    %v4902 = vsel %vm182, %v4901, 0.0
    %4903 = vadd.xlane.f32.xlu0 %v4902
    %v4904 = vpop.xlane.xlu0 %4903
    %v4905 = vmul.f32 %v4904, %v232
    %v4906 = vadd.f32 %v4905, 1e-05
    %v4907 = vrsqrt.pop %v4906
    %v4908 = vmul.f32 %v4900, %v4907
    %v4910 = vlaneseq
    %v4911 = vshrl.u32 %v4910, 7
    %v4912 = vsub.s32 0, %v4911
    %v4913 = vrot.slane %v4893, %v4912
    %v4915 = vmul.f32 %v4908, %v4913
    %v4917 = vlaneseq
    %v4918 = vshrl.u32 %v4917, 7
    %v4919 = vsub.s32 0, %v4918
    %v4920 = vrot.slane %v4895, %v4919
    %v4922 = vadd.f32 %v4915, %v4920
    %v4923 = vpack.c.bf16 %v4922, %v4922
    %s4924 = scalar_lea.vmem %s5, 1024
    %v4925 = vld [vmem:[%s4924] sm:$0xff]
    %v4926 = vld [vmem:[%s4924 + $0x8] sm:$0xff]
    %v4927 = vld [vmem:[%s4924 + $0x10] sm:$0xff]
    %v4928 = vld [vmem:[%s4924 + $0x18] sm:$0xff]
    %v4929 = vld [vmem:[%s4924 + $0x20] sm:$0xff]
    %v4930 = vld [vmem:[%s4924 + $0x28] sm:$0xff]
    %v4931 = vld [vmem:[%s4924 + $0x30] sm:$0xff]
    %v4932 = vld [vmem:[%s4924 + $0x38] sm:$0xff]
    %v4933 = vld [vmem:[%s4924 + $0x40] sm:$0xff]
    %v4934 = vld [vmem:[%s4924 + $0x48] sm:$0xff]
    %v4935 = vld [vmem:[%s4924 + $0x50] sm:$0xff]
    %v4936 = vld [vmem:[%s4924 + $0x58] sm:$0xff]
    %v4937 = vld [vmem:[%s4924 + $0x60] sm:$0xff]
    %v4938 = vld [vmem:[%s4924 + $0x68] sm:$0xff]
    %v4939 = vld [vmem:[%s4924 + $0x70] sm:$0xff]
    %v4940 = vld [vmem:[%s4924 + $0x78] sm:$0xff]
    %v4941 = vld [vmem:[%s4924 + $0x80] sm:$0xff]
    %v4942 = vld [vmem:[%s4924 + $0x88] sm:$0xff]
    %v4943 = vld [vmem:[%s4924 + $0x90] sm:$0xff]
    %v4944 = vld [vmem:[%s4924 + $0x98] sm:$0xff]
    %v4945 = vld [vmem:[%s4924 + $0xa0] sm:$0xff]
    %v4946 = vld [vmem:[%s4924 + $0xa8] sm:$0xff]
    %v4947 = vld [vmem:[%s4924 + $0xb0] sm:$0xff]
    %v4948 = vld [vmem:[%s4924 + $0xb8] sm:$0xff]
    %v4949 = vld [vmem:[%s4924 + $0xc0] sm:$0xff]
    %v4950 = vld [vmem:[%s4924 + $0xc8] sm:$0xff]
    %v4951 = vld [vmem:[%s4924 + $0xd0] sm:$0xff]
    %v4952 = vld [vmem:[%s4924 + $0xd8] sm:$0xff]
    %v4953 = vld [vmem:[%s4924 + $0xe0] sm:$0xff]
    %v4954 = vld [vmem:[%s4924 + $0xe8] sm:$0xff]
    %v4955 = vld [vmem:[%s4924 + $0xf0] sm:$0xff]
    %v4956 = vld [vmem:[%s4924 + $0xf8] sm:$0xff]
    %v4957 = vld [vmem:[%s4924 + $0x100] sm:$0xff]
    %v4958 = vld [vmem:[%s4924 + $0x108] sm:$0xff]
    %v4959 = vld [vmem:[%s4924 + $0x110] sm:$0xff]
    %v4960 = vld [vmem:[%s4924 + $0x118] sm:$0xff]
    %v4961 = vld [vmem:[%s4924 + $0x120] sm:$0xff]
    %v4962 = vld [vmem:[%s4924 + $0x128] sm:$0xff]
    %v4963 = vld [vmem:[%s4924 + $0x130] sm:$0xff]
    %v4964 = vld [vmem:[%s4924 + $0x138] sm:$0xff]
    %v4965 = vld [vmem:[%s4924 + $0x140] sm:$0xff]
    %v4966 = vld [vmem:[%s4924 + $0x148] sm:$0xff]
    %v4967 = vld [vmem:[%s4924 + $0x150] sm:$0xff]
    %v4968 = vld [vmem:[%s4924 + $0x158] sm:$0xff]
    %v4969 = vld [vmem:[%s4924 + $0x160] sm:$0xff]
    %v4970 = vld [vmem:[%s4924 + $0x168] sm:$0xff]
    %v4971 = vld [vmem:[%s4924 + $0x170] sm:$0xff]
    %v4972 = vld [vmem:[%s4924 + $0x178] sm:$0xff]
    %v4973 = vld [vmem:[%s4924 + $0x180] sm:$0xff]
    %v4974 = vld [vmem:[%s4924 + $0x188] sm:$0xff]
    %v4975 = vld [vmem:[%s4924 + $0x190] sm:$0xff]
    %v4976 = vld [vmem:[%s4924 + $0x198] sm:$0xff]
    %v4977 = vld [vmem:[%s4924 + $0x1a0] sm:$0xff]
    %v4978 = vld [vmem:[%s4924 + $0x1a8] sm:$0xff]
    %v4979 = vld [vmem:[%s4924 + $0x1b0] sm:$0xff]
    %v4980 = vld [vmem:[%s4924 + $0x1b8] sm:$0xff]
    %v4981 = vld [vmem:[%s4924 + $0x1c0] sm:$0xff]
    %v4982 = vld [vmem:[%s4924 + $0x1c8] sm:$0xff]
    %v4983 = vld [vmem:[%s4924 + $0x1d0] sm:$0xff]
    %v4984 = vld [vmem:[%s4924 + $0x1d8] sm:$0xff]
    %v4985 = vld [vmem:[%s4924 + $0x1e0] sm:$0xff]
    %v4986 = vld [vmem:[%s4924 + $0x1e8] sm:$0xff]
    %v4987 = vld [vmem:[%s4924 + $0x1f0] sm:$0xff]
    %v4988 = vld [vmem:[%s4924 + $0x1f8] sm:$0xff]
    %s4989 = scalar_lea.vmem %s6, 32
    %v4990 = vld [vmem:[%s4989] sm:$0xff]
    %v4991 = vld [vmem:[%s4989 + $0x8] sm:$0xff]
    %v4994 = vlaneseq
    %v4995 = vshrl.u32 %v4994, 7
    %v4996 = vsub.s32 0, %v4995
    %v4997 = vrot.slane %v4990, %v4996
    %v4998 = vlaneseq
    %v4999 = vshrl.u32 %v4998, 7
    %v5000 = vsub.s32 1, %v4999
    %v5001 = vrot.slane %v4990, %v5000
    %v5002 = vlaneseq
    %v5003 = vshrl.u32 %v5002, 7
    %v5004 = vsub.s32 2, %v5003
    %v5005 = vrot.slane %v4990, %v5004
    %v5006 = vlaneseq
    %v5007 = vshrl.u32 %v5006, 7
    %v5008 = vsub.s32 3, %v5007
    %v5009 = vrot.slane %v4990, %v5008
    %v5010 = vlaneseq
    %v5011 = vshrl.u32 %v5010, 7
    %v5012 = vsub.s32 4, %v5011
    %v5013 = vrot.slane %v4990, %v5012
    %v5014 = vlaneseq
    %v5015 = vshrl.u32 %v5014, 7
    %v5016 = vsub.s32 5, %v5015
    %v5017 = vrot.slane %v4990, %v5016
    %v5018 = vlaneseq
    %v5019 = vshrl.u32 %v5018, 7
    %v5020 = vsub.s32 6, %v5019
    %v5021 = vrot.slane %v4990, %v5020
    %v5022 = vlaneseq
    %v5023 = vshrl.u32 %v5022, 7
    %v5024 = vsub.s32 7, %v5023
    %v5025 = vrot.slane %v4990, %v5024
    %v5026 = vlaneseq
    %v5027 = vshrl.u32 %v5026, 7
    %v5028 = vsub.s32 0, %v5027
    %v5029 = vrot.slane %v4991, %v5028
    %v5030 = vlaneseq
    %v5031 = vshrl.u32 %v5030, 7
    %v5032 = vsub.s32 1, %v5031
    %v5033 = vrot.slane %v4991, %v5032
    %v5034 = vlaneseq
    %v5035 = vshrl.u32 %v5034, 7
    %v5036 = vsub.s32 2, %v5035
    %v5037 = vrot.slane %v4991, %v5036
    %v5038 = vlaneseq
    %v5039 = vshrl.u32 %v5038, 7
    %v5040 = vsub.s32 3, %v5039
    %v5041 = vrot.slane %v4991, %v5040
    %v5042 = vlaneseq
    %v5043 = vshrl.u32 %v5042, 7
    %v5044 = vsub.s32 4, %v5043
    %v5045 = vrot.slane %v4991, %v5044
    %v5046 = vlaneseq
    %v5047 = vshrl.u32 %v5046, 7
    %v5048 = vsub.s32 5, %v5047
    %v5049 = vrot.slane %v4991, %v5048
    %v5050 = vlaneseq
    %v5051 = vshrl.u32 %v5050, 7
    %v5052 = vsub.s32 6, %v5051
    %v5053 = vrot.slane %v4991, %v5052
    %v5054 = vlaneseq
    %v5055 = vshrl.u32 %v5054, 7
    %v5056 = vsub.s32 7, %v5055
    %v5057 = vrot.slane %v4991, %v5056
    %v5138 = vunpack.c.l.b16 %v4925
    %v5139 = vunpack.c.h.b16 %v4925
    %v5140 = vunpack.c.l.b16 %v4926
    %v5141 = vunpack.c.h.b16 %v4926
    %v5142 = vunpack.c.l.b16 %v4927
    %v5143 = vunpack.c.h.b16 %v4927
    %v5144 = vunpack.c.l.b16 %v4928
    %v5145 = vunpack.c.h.b16 %v4928
    %v5146 = vunpack.c.l.b16 %v4929
    %v5147 = vunpack.c.h.b16 %v4929
    %v5148 = vunpack.c.l.b16 %v4930
    %v5149 = vunpack.c.h.b16 %v4930
    %v5150 = vunpack.c.l.b16 %v4931
    %v5151 = vunpack.c.h.b16 %v4931
    %v5152 = vunpack.c.l.b16 %v4932
    %v5153 = vunpack.c.h.b16 %v4932
    %v5154 = vunpack.c.l.b16 %v4933
    %v5155 = vunpack.c.h.b16 %v4933
    %v5156 = vunpack.c.l.b16 %v4934
    %v5157 = vunpack.c.h.b16 %v4934
    %v5158 = vunpack.c.l.b16 %v4935
    %v5159 = vunpack.c.h.b16 %v4935
    %v5160 = vunpack.c.l.b16 %v4936
    %v5161 = vunpack.c.h.b16 %v4936
    %v5162 = vunpack.c.l.b16 %v4937
    %v5163 = vunpack.c.h.b16 %v4937
    %v5164 = vunpack.c.l.b16 %v4938
    %v5165 = vunpack.c.h.b16 %v4938
    %v5166 = vunpack.c.l.b16 %v4939
    %v5167 = vunpack.c.h.b16 %v4939
    %v5168 = vunpack.c.l.b16 %v4940
    %v5169 = vunpack.c.h.b16 %v4940
    %v5170 = vunpack.c.l.b16 %v4941
    %v5171 = vunpack.c.h.b16 %v4941
    %v5172 = vunpack.c.l.b16 %v4942
    %v5173 = vunpack.c.h.b16 %v4942
    %v5174 = vunpack.c.l.b16 %v4943
    %v5175 = vunpack.c.h.b16 %v4943
    %v5176 = vunpack.c.l.b16 %v4944
    %v5177 = vunpack.c.h.b16 %v4944
    %v5178 = vunpack.c.l.b16 %v4945
    %v5179 = vunpack.c.h.b16 %v4945
    %v5180 = vunpack.c.l.b16 %v4946
    %v5181 = vunpack.c.h.b16 %v4946
    %v5182 = vunpack.c.l.b16 %v4947
    %v5183 = vunpack.c.h.b16 %v4947
    %v5184 = vunpack.c.l.b16 %v4948
    %v5185 = vunpack.c.h.b16 %v4948
    %v5186 = vunpack.c.l.b16 %v4949
    %v5187 = vunpack.c.h.b16 %v4949
    %v5188 = vunpack.c.l.b16 %v4950
    %v5189 = vunpack.c.h.b16 %v4950
    %v5190 = vunpack.c.l.b16 %v4951
    %v5191 = vunpack.c.h.b16 %v4951
    %v5192 = vunpack.c.l.b16 %v4952
    %v5193 = vunpack.c.h.b16 %v4952
    %v5194 = vunpack.c.l.b16 %v4953
    %v5195 = vunpack.c.h.b16 %v4953
    %v5196 = vunpack.c.l.b16 %v4954
    %v5197 = vunpack.c.h.b16 %v4954
    %v5198 = vunpack.c.l.b16 %v4955
    %v5199 = vunpack.c.h.b16 %v4955
    %v5200 = vunpack.c.l.b16 %v4956
    %v5201 = vunpack.c.h.b16 %v4956
    %v5202 = vunpack.c.l.b16 %v4957
    %v5203 = vunpack.c.h.b16 %v4957
    %v5204 = vunpack.c.l.b16 %v4958
    %v5205 = vunpack.c.h.b16 %v4958
    %v5206 = vunpack.c.l.b16 %v4959
    %v5207 = vunpack.c.h.b16 %v4959
    %v5208 = vunpack.c.l.b16 %v4960
    %v5209 = vunpack.c.h.b16 %v4960
    %v5210 = vunpack.c.l.b16 %v4961
    %v5211 = vunpack.c.h.b16 %v4961
    %v5212 = vunpack.c.l.b16 %v4962
    %v5213 = vunpack.c.h.b16 %v4962
    %v5214 = vunpack.c.l.b16 %v4963
    %v5215 = vunpack.c.h.b16 %v4963
    %v5216 = vunpack.c.l.b16 %v4964
    %v5217 = vunpack.c.h.b16 %v4964
    %v5218 = vunpack.c.l.b16 %v4965
    %v5219 = vunpack.c.h.b16 %v4965
    %v5220 = vunpack.c.l.b16 %v4966
    %v5221 = vunpack.c.h.b16 %v4966
    %v5222 = vunpack.c.l.b16 %v4967
    %v5223 = vunpack.c.h.b16 %v4967
    %v5224 = vunpack.c.l.b16 %v4968
    %v5225 = vunpack.c.h.b16 %v4968
    %v5226 = vunpack.c.l.b16 %v4969
    %v5227 = vunpack.c.h.b16 %v4969
    %v5228 = vunpack.c.l.b16 %v4970
    %v5229 = vunpack.c.h.b16 %v4970
    %v5230 = vunpack.c.l.b16 %v4971
    %v5231 = vunpack.c.h.b16 %v4971
    %v5232 = vunpack.c.l.b16 %v4972
    %v5233 = vunpack.c.h.b16 %v4972
    %v5234 = vunpack.c.l.b16 %v4973
    %v5235 = vunpack.c.h.b16 %v4973
    %v5236 = vunpack.c.l.b16 %v4974
    %v5237 = vunpack.c.h.b16 %v4974
    %v5238 = vunpack.c.l.b16 %v4975
    %v5239 = vunpack.c.h.b16 %v4975
    %v5240 = vunpack.c.l.b16 %v4976
    %v5241 = vunpack.c.h.b16 %v4976
    %v5242 = vunpack.c.l.b16 %v4977
    %v5243 = vunpack.c.h.b16 %v4977
    %v5244 = vunpack.c.l.b16 %v4978
    %v5245 = vunpack.c.h.b16 %v4978
    %v5246 = vunpack.c.l.b16 %v4979
    %v5247 = vunpack.c.h.b16 %v4979
    %v5248 = vunpack.c.l.b16 %v4980
    %v5249 = vunpack.c.h.b16 %v4980
    %v5250 = vunpack.c.l.b16 %v4981
    %v5251 = vunpack.c.h.b16 %v4981
    %v5252 = vunpack.c.l.b16 %v4982
    %v5253 = vunpack.c.h.b16 %v4982
    %v5254 = vunpack.c.l.b16 %v4983
    %v5255 = vunpack.c.h.b16 %v4983
    %v5256 = vunpack.c.l.b16 %v4984
    %v5257 = vunpack.c.h.b16 %v4984
    %v5258 = vunpack.c.l.b16 %v4985
    %v5259 = vunpack.c.h.b16 %v4985
    %v5260 = vunpack.c.l.b16 %v4986
    %v5261 = vunpack.c.h.b16 %v4986
    %v5262 = vunpack.c.l.b16 %v4987
    %v5263 = vunpack.c.h.b16 %v4987
    %v5264 = vunpack.c.l.b16 %v4988
    %v5265 = vunpack.c.h.b16 %v4988
    %v5266 = vpack.c.b16 %v5154, %v5138
    %v5267 = vpack.c.b16 %v5155, %v5139
    %v5268 = vpack.c.b16 %v5156, %v5140
    %v5269 = vpack.c.b16 %v5157, %v5141
    %v5270 = vpack.c.b16 %v5158, %v5142
    %v5271 = vpack.c.b16 %v5159, %v5143
    %v5272 = vpack.c.b16 %v5160, %v5144
    %v5273 = vpack.c.b16 %v5161, %v5145
    %v5274 = vpack.c.b16 %v5162, %v5146
    %v5275 = vpack.c.b16 %v5163, %v5147
    %v5276 = vpack.c.b16 %v5164, %v5148
    %v5277 = vpack.c.b16 %v5165, %v5149
    %v5278 = vpack.c.b16 %v5166, %v5150
    %v5279 = vpack.c.b16 %v5167, %v5151
    %v5280 = vpack.c.b16 %v5168, %v5152
    %v5281 = vpack.c.b16 %v5169, %v5153
    %v5282 = vpack.c.b16 %v5186, %v5170
    %v5283 = vpack.c.b16 %v5187, %v5171
    %v5284 = vpack.c.b16 %v5188, %v5172
    %v5285 = vpack.c.b16 %v5189, %v5173
    %v5286 = vpack.c.b16 %v5190, %v5174
    %v5287 = vpack.c.b16 %v5191, %v5175
    %v5288 = vpack.c.b16 %v5192, %v5176
    %v5289 = vpack.c.b16 %v5193, %v5177
    %v5290 = vpack.c.b16 %v5194, %v5178
    %v5291 = vpack.c.b16 %v5195, %v5179
    %v5292 = vpack.c.b16 %v5196, %v5180
    %v5293 = vpack.c.b16 %v5197, %v5181
    %v5294 = vpack.c.b16 %v5198, %v5182
    %v5295 = vpack.c.b16 %v5199, %v5183
    %v5296 = vpack.c.b16 %v5200, %v5184
    %v5297 = vpack.c.b16 %v5201, %v5185
    %v5298 = vpack.c.b16 %v5218, %v5202
    %v5299 = vpack.c.b16 %v5219, %v5203
    %v5300 = vpack.c.b16 %v5220, %v5204
    %v5301 = vpack.c.b16 %v5221, %v5205
    %v5302 = vpack.c.b16 %v5222, %v5206
    %v5303 = vpack.c.b16 %v5223, %v5207
    %v5304 = vpack.c.b16 %v5224, %v5208
    %v5305 = vpack.c.b16 %v5225, %v5209
    %v5306 = vpack.c.b16 %v5226, %v5210
    %v5307 = vpack.c.b16 %v5227, %v5211
    %v5308 = vpack.c.b16 %v5228, %v5212
    %v5309 = vpack.c.b16 %v5229, %v5213
    %v5310 = vpack.c.b16 %v5230, %v5214
    %v5311 = vpack.c.b16 %v5231, %v5215
    %v5312 = vpack.c.b16 %v5232, %v5216
    %v5313 = vpack.c.b16 %v5233, %v5217
    %v5314 = vpack.c.b16 %v5250, %v5234
    %v5315 = vpack.c.b16 %v5251, %v5235
    %v5316 = vpack.c.b16 %v5252, %v5236
    %v5317 = vpack.c.b16 %v5253, %v5237
    %v5318 = vpack.c.b16 %v5254, %v5238
    %v5319 = vpack.c.b16 %v5255, %v5239
    %v5320 = vpack.c.b16 %v5256, %v5240
    %v5321 = vpack.c.b16 %v5257, %v5241
    %v5322 = vpack.c.b16 %v5258, %v5242
    %v5323 = vpack.c.b16 %v5259, %v5243
    %v5324 = vpack.c.b16 %v5260, %v5244
    %v5325 = vpack.c.b16 %v5261, %v5245
    %v5326 = vpack.c.b16 %v5262, %v5246
    %v5327 = vpack.c.b16 %v5263, %v5247
    %v5328 = vpack.c.b16 %v5264, %v5248
    %v5329 = vpack.c.b16 %v5265, %v5249
    %v5395 = vsel %vm182, %v4923, 0
    %5397 = vmatprep.subr.bf16.mxu0 %v5267
    %5398 = vmatpush1.bf16.msra.mxu0 %v5266
    %5399 = vmatprep.subr.bf16.mxu0 %v5283
    %5400 = vmatpush1.bf16.msra.mxu0 %v5282
    %5401 = vmatprep.subr.bf16.mxu0 %v5299
    %5402 = vmatpush1.bf16.msra.mxu0 %v5298
    %5403 = vmatprep.subr.bf16.mxu0 %v5315
    %5404 = vmatpush1.bf16.msra.mxu0 %v5314
    %5405 = vmatprep.subr.bf16.mxu0 0
    %5406 = vmatpush1.bf16.msra.mxu0 0
    %5407 = vmatprep.subr.bf16.mxu0 0
    %5408 = vmatpush1.bf16.msra.mxu0 0
    %5409 = vmatprep.subr.bf16.mxu0 0
    %5410 = vmatpush1.bf16.msra.mxu0 0
    %5411 = vmatprep.subr.bf16.mxu0 0
    %5412 = vmatpush1.bf16.msra.mxu0 0
    %5413 = vmatprep.subr.bf16.mxu0 0
    %5414 = vmatpush1.bf16.msra.mxu0 0
    %5415 = vmatprep.subr.bf16.mxu0 0
    %5416 = vmatpush1.bf16.msra.mxu0 0
    %5417 = vmatprep.subr.bf16.mxu0 0
    %5418 = vmatpush1.bf16.msra.mxu0 0
    %5419 = vmatprep.subr.bf16.mxu0 0
    %5420 = vmatpush1.bf16.msra.mxu0 0
    %5421 = vmatprep.subr.bf16.mxu0 0
    %5422 = vmatpush1.bf16.msra.mxu0 0
    %5423 = vmatprep.subr.bf16.mxu0 0
    %5424 = vmatpush1.bf16.msra.mxu0 0
    %5425 = vmatprep.subr.bf16.mxu0 0
    %5426 = vmatpush1.bf16.msra.mxu0 0
    %5427 = vmatprep.subr.bf16.mxu0 0
    %5428 = vmatpush1.bf16.msra.mxu0 0
    %5429 = vmatprep.mubr.bf16.mxu0 0
    %5430 = vmatmul.mubr.bf16.gmra.mrb[0].mxu0 %v5395
    %v5431 = vpop.f32.mrb[0].mxu0
    %v5432 = vadd.f32 %v4997, %v5431
    %v5433 = vpop.f32.mrb[0].mxu0
    %v5434 = vadd.f32 %v5001, %v5433
    %v5435 = vpop.f32.mrb[0].mxu0
    %v5436 = vpop.f32.mrb[0].mxu0
    %5437 = vdwg.mxu0
    %5438 = vmatprep.subr.bf16.mxu0 %v5269
    %5439 = vmatpush1.bf16.msra.mxu0 %v5268
    %5440 = vmatprep.subr.bf16.mxu0 %v5285
    %5441 = vmatpush1.bf16.msra.mxu0 %v5284
    %5442 = vmatprep.subr.bf16.mxu0 %v5301
    %5443 = vmatpush1.bf16.msra.mxu0 %v5300
    %5444 = vmatprep.subr.bf16.mxu0 %v5317
    %5445 = vmatpush1.bf16.msra.mxu0 %v5316
    %5446 = vmatprep.subr.bf16.mxu0 0
    %5447 = vmatpush1.bf16.msra.mxu0 0
    %5448 = vmatprep.subr.bf16.mxu0 0
    %5449 = vmatpush1.bf16.msra.mxu0 0
    %5450 = vmatprep.subr.bf16.mxu0 0
    %5451 = vmatpush1.bf16.msra.mxu0 0
    %5452 = vmatprep.subr.bf16.mxu0 0
    %5453 = vmatpush1.bf16.msra.mxu0 0
    %5454 = vmatprep.subr.bf16.mxu0 0
    %5455 = vmatpush1.bf16.msra.mxu0 0
    %5456 = vmatprep.subr.bf16.mxu0 0
    %5457 = vmatpush1.bf16.msra.mxu0 0
    %5458 = vmatprep.subr.bf16.mxu0 0
    %5459 = vmatpush1.bf16.msra.mxu0 0
    %5460 = vmatprep.subr.bf16.mxu0 0
    %5461 = vmatpush1.bf16.msra.mxu0 0
    %5462 = vmatprep.subr.bf16.mxu0 0
    %5463 = vmatpush1.bf16.msra.mxu0 0
    %5464 = vmatprep.subr.bf16.mxu0 0
    %5465 = vmatpush1.bf16.msra.mxu0 0
    %5466 = vmatprep.subr.bf16.mxu0 0
    %5467 = vmatpush1.bf16.msra.mxu0 0
    %5468 = vmatprep.subr.bf16.mxu0 0
    %5469 = vmatpush1.bf16.msra.mxu0 0
    %5470 = vmatprep.mubr.bf16.mxu0 0
    %5471 = vmatmul.mubr.bf16.gmra.mrb[0].mxu0 %v5395
    %v5472 = vpop.f32.mrb[0].mxu0
    %v5473 = vadd.f32 %v5005, %v5472
    %v5474 = vpop.f32.mrb[0].mxu0
    %v5475 = vadd.f32 %v5009, %v5474
    %v5476 = vpop.f32.mrb[0].mxu0
    %v5477 = vpop.f32.mrb[0].mxu0
    %5478 = vdwg.mxu0
    %5479 = vmatprep.subr.bf16.mxu0 %v5271
    %5480 = vmatpush1.bf16.msra.mxu0 %v5270
    %5481 = vmatprep.subr.bf16.mxu0 %v5287
    %5482 = vmatpush1.bf16.msra.mxu0 %v5286
    %5483 = vmatprep.subr.bf16.mxu0 %v5303
    %5484 = vmatpush1.bf16.msra.mxu0 %v5302
    %5485 = vmatprep.subr.bf16.mxu0 %v5319
    %5486 = vmatpush1.bf16.msra.mxu0 %v5318
    %5487 = vmatprep.subr.bf16.mxu0 0
    %5488 = vmatpush1.bf16.msra.mxu0 0
    %5489 = vmatprep.subr.bf16.mxu0 0
    %5490 = vmatpush1.bf16.msra.mxu0 0
    %5491 = vmatprep.subr.bf16.mxu0 0
    %5492 = vmatpush1.bf16.msra.mxu0 0
    %5493 = vmatprep.subr.bf16.mxu0 0
    %5494 = vmatpush1.bf16.msra.mxu0 0
    %5495 = vmatprep.subr.bf16.mxu0 0
    %5496 = vmatpush1.bf16.msra.mxu0 0
    %5497 = vmatprep.subr.bf16.mxu0 0
    %5498 = vmatpush1.bf16.msra.mxu0 0
    %5499 = vmatprep.subr.bf16.mxu0 0
    %5500 = vmatpush1.bf16.msra.mxu0 0
    %5501 = vmatprep.subr.bf16.mxu0 0
    %5502 = vmatpush1.bf16.msra.mxu0 0
    %5503 = vmatprep.subr.bf16.mxu0 0
    %5504 = vmatpush1.bf16.msra.mxu0 0
    %5505 = vmatprep.subr.bf16.mxu0 0
    %5506 = vmatpush1.bf16.msra.mxu0 0
    %5507 = vmatprep.subr.bf16.mxu0 0
    %5508 = vmatpush1.bf16.msra.mxu0 0
    %5509 = vmatprep.subr.bf16.mxu0 0
    %5510 = vmatpush1.bf16.msra.mxu0 0
    %5511 = vmatprep.mubr.bf16.mxu0 0
    %5512 = vmatmul.mubr.bf16.gmra.mrb[0].mxu0 %v5395
    %v5513 = vpop.f32.mrb[0].mxu0
    %v5514 = vadd.f32 %v5013, %v5513
    %v5515 = vpop.f32.mrb[0].mxu0
    %v5516 = vadd.f32 %v5017, %v5515
    %v5517 = vpop.f32.mrb[0].mxu0
    %v5518 = vpop.f32.mrb[0].mxu0
    %5519 = vdwg.mxu0
    %5520 = vmatprep.subr.bf16.mxu0 %v5273
    %5521 = vmatpush1.bf16.msra.mxu0 %v5272
    %5522 = vmatprep.subr.bf16.mxu0 %v5289
    %5523 = vmatpush1.bf16.msra.mxu0 %v5288
    %5524 = vmatprep.subr.bf16.mxu0 %v5305
    %5525 = vmatpush1.bf16.msra.mxu0 %v5304
    %5526 = vmatprep.subr.bf16.mxu0 %v5321
    %5527 = vmatpush1.bf16.msra.mxu0 %v5320
    %5528 = vmatprep.subr.bf16.mxu0 0
    %5529 = vmatpush1.bf16.msra.mxu0 0
    %5530 = vmatprep.subr.bf16.mxu0 0
    %5531 = vmatpush1.bf16.msra.mxu0 0
    %5532 = vmatprep.subr.bf16.mxu0 0
    %5533 = vmatpush1.bf16.msra.mxu0 0
    %5534 = vmatprep.subr.bf16.mxu0 0
    %5535 = vmatpush1.bf16.msra.mxu0 0
    %5536 = vmatprep.subr.bf16.mxu0 0
    %5537 = vmatpush1.bf16.msra.mxu0 0
    %5538 = vmatprep.subr.bf16.mxu0 0
    %5539 = vmatpush1.bf16.msra.mxu0 0
    %5540 = vmatprep.subr.bf16.mxu0 0
    %5541 = vmatpush1.bf16.msra.mxu0 0
    %5542 = vmatprep.subr.bf16.mxu0 0
    %5543 = vmatpush1.bf16.msra.mxu0 0
    %5544 = vmatprep.subr.bf16.mxu0 0
    %5545 = vmatpush1.bf16.msra.mxu0 0
    %5546 = vmatprep.subr.bf16.mxu0 0
    %5547 = vmatpush1.bf16.msra.mxu0 0
    %5548 = vmatprep.subr.bf16.mxu0 0
    %5549 = vmatpush1.bf16.msra.mxu0 0
    %5550 = vmatprep.subr.bf16.mxu0 0
    %5551 = vmatpush1.bf16.msra.mxu0 0
    %5552 = vmatprep.mubr.bf16.mxu0 0
    %5553 = vmatmul.mubr.bf16.gmra.mrb[0].mxu0 %v5395
    %v5554 = vpop.f32.mrb[0].mxu0
    %v5555 = vadd.f32 %v5021, %v5554
    %v5556 = vpop.f32.mrb[0].mxu0
    %v5557 = vadd.f32 %v5025, %v5556
    %v5558 = vpop.f32.mrb[0].mxu0
    %v5559 = vpop.f32.mrb[0].mxu0
    %5560 = vdwg.mxu0
    %5561 = vmatprep.subr.bf16.mxu0 %v5275
    %5562 = vmatpush1.bf16.msra.mxu0 %v5274
    %5563 = vmatprep.subr.bf16.mxu0 %v5291
    %5564 = vmatpush1.bf16.msra.mxu0 %v5290
    %5565 = vmatprep.subr.bf16.mxu0 %v5307
    %5566 = vmatpush1.bf16.msra.mxu0 %v5306
    %5567 = vmatprep.subr.bf16.mxu0 %v5323
    %5568 = vmatpush1.bf16.msra.mxu0 %v5322
    %5569 = vmatprep.subr.bf16.mxu0 0
    %5570 = vmatpush1.bf16.msra.mxu0 0
    %5571 = vmatprep.subr.bf16.mxu0 0
    %5572 = vmatpush1.bf16.msra.mxu0 0
    %5573 = vmatprep.subr.bf16.mxu0 0
    %5574 = vmatpush1.bf16.msra.mxu0 0
    %5575 = vmatprep.subr.bf16.mxu0 0
    %5576 = vmatpush1.bf16.msra.mxu0 0
    %5577 = vmatprep.subr.bf16.mxu0 0
    %5578 = vmatpush1.bf16.msra.mxu0 0
    %5579 = vmatprep.subr.bf16.mxu0 0
    %5580 = vmatpush1.bf16.msra.mxu0 0
    %5581 = vmatprep.subr.bf16.mxu0 0
    %5582 = vmatpush1.bf16.msra.mxu0 0
    %5583 = vmatprep.subr.bf16.mxu0 0
    %5584 = vmatpush1.bf16.msra.mxu0 0
    %5585 = vmatprep.subr.bf16.mxu0 0
    %5586 = vmatpush1.bf16.msra.mxu0 0
    %5587 = vmatprep.subr.bf16.mxu0 0
    %5588 = vmatpush1.bf16.msra.mxu0 0
    %5589 = vmatprep.subr.bf16.mxu0 0
    %5590 = vmatpush1.bf16.msra.mxu0 0
    %5591 = vmatprep.subr.bf16.mxu0 0
    %5592 = vmatpush1.bf16.msra.mxu0 0
    %5593 = vmatprep.mubr.bf16.mxu0 0
    %5594 = vmatmul.mubr.bf16.gmra.mrb[0].mxu0 %v5395
    %v5595 = vpop.f32.mrb[0].mxu0
    %v5596 = vadd.f32 %v5029, %v5595
    %v5597 = vpop.f32.mrb[0].mxu0
    %v5598 = vadd.f32 %v5033, %v5597
    %v5599 = vpop.f32.mrb[0].mxu0
    %v5600 = vpop.f32.mrb[0].mxu0
    %5601 = vdwg.mxu0
    %5602 = vmatprep.subr.bf16.mxu0 %v5277
    %5603 = vmatpush1.bf16.msra.mxu0 %v5276
    %5604 = vmatprep.subr.bf16.mxu0 %v5293
    %5605 = vmatpush1.bf16.msra.mxu0 %v5292
    %5606 = vmatprep.subr.bf16.mxu0 %v5309
    %5607 = vmatpush1.bf16.msra.mxu0 %v5308
    %5608 = vmatprep.subr.bf16.mxu0 %v5325
    %5609 = vmatpush1.bf16.msra.mxu0 %v5324
    %5610 = vmatprep.subr.bf16.mxu0 0
    %5611 = vmatpush1.bf16.msra.mxu0 0
    %5612 = vmatprep.subr.bf16.mxu0 0
    %5613 = vmatpush1.bf16.msra.mxu0 0
    %5614 = vmatprep.subr.bf16.mxu0 0
    %5615 = vmatpush1.bf16.msra.mxu0 0
    %5616 = vmatprep.subr.bf16.mxu0 0
    %5617 = vmatpush1.bf16.msra.mxu0 0
    %5618 = vmatprep.subr.bf16.mxu0 0
    %5619 = vmatpush1.bf16.msra.mxu0 0
    %5620 = vmatprep.subr.bf16.mxu0 0
    %5621 = vmatpush1.bf16.msra.mxu0 0
    %5622 = vmatprep.subr.bf16.mxu0 0
    %5623 = vmatpush1.bf16.msra.mxu0 0
    %5624 = vmatprep.subr.bf16.mxu0 0
    %5625 = vmatpush1.bf16.msra.mxu0 0
    %5626 = vmatprep.subr.bf16.mxu0 0
    %5627 = vmatpush1.bf16.msra.mxu0 0
    %5628 = vmatprep.subr.bf16.mxu0 0
    %5629 = vmatpush1.bf16.msra.mxu0 0
    %5630 = vmatprep.subr.bf16.mxu0 0
    %5631 = vmatpush1.bf16.msra.mxu0 0
    %5632 = vmatprep.subr.bf16.mxu0 0
    %5633 = vmatpush1.bf16.msra.mxu0 0
    %5634 = vmatprep.mubr.bf16.mxu0 0
    %5635 = vmatmul.mubr.bf16.gmra.mrb[0].mxu0 %v5395
    %v5636 = vpop.f32.mrb[0].mxu0
    %v5637 = vadd.f32 %v5037, %v5636
    %v5638 = vpop.f32.mrb[0].mxu0
    %v5639 = vadd.f32 %v5041, %v5638
    %v5640 = vpop.f32.mrb[0].mxu0
    %v5641 = vpop.f32.mrb[0].mxu0
    %5642 = vdwg.mxu0
    %5643 = vmatprep.subr.bf16.mxu0 %v5279
    %5644 = vmatpush1.bf16.msra.mxu0 %v5278
    %5645 = vmatprep.subr.bf16.mxu0 %v5295
    %5646 = vmatpush1.bf16.msra.mxu0 %v5294
    %5647 = vmatprep.subr.bf16.mxu0 %v5311
    %5648 = vmatpush1.bf16.msra.mxu0 %v5310
    %5649 = vmatprep.subr.bf16.mxu0 %v5327
    %5650 = vmatpush1.bf16.msra.mxu0 %v5326
    %5651 = vmatprep.subr.bf16.mxu0 0
    %5652 = vmatpush1.bf16.msra.mxu0 0
    %5653 = vmatprep.subr.bf16.mxu0 0
    %5654 = vmatpush1.bf16.msra.mxu0 0
    %5655 = vmatprep.subr.bf16.mxu0 0
    %5656 = vmatpush1.bf16.msra.mxu0 0
    %5657 = vmatprep.subr.bf16.mxu0 0
    %5658 = vmatpush1.bf16.msra.mxu0 0
    %5659 = vmatprep.subr.bf16.mxu0 0
    %5660 = vmatpush1.bf16.msra.mxu0 0
    %5661 = vmatprep.subr.bf16.mxu0 0
    %5662 = vmatpush1.bf16.msra.mxu0 0
    %5663 = vmatprep.subr.bf16.mxu0 0
    %5664 = vmatpush1.bf16.msra.mxu0 0
    %5665 = vmatprep.subr.bf16.mxu0 0
    %5666 = vmatpush1.bf16.msra.mxu0 0
    %5667 = vmatprep.subr.bf16.mxu0 0
    %5668 = vmatpush1.bf16.msra.mxu0 0
    %5669 = vmatprep.subr.bf16.mxu0 0
    %5670 = vmatpush1.bf16.msra.mxu0 0
    %5671 = vmatprep.subr.bf16.mxu0 0
    %5672 = vmatpush1.bf16.msra.mxu0 0
    %5673 = vmatprep.subr.bf16.mxu0 0
    %5674 = vmatpush1.bf16.msra.mxu0 0
    %5675 = vmatprep.mubr.bf16.mxu0 0
    %5676 = vmatmul.mubr.bf16.gmra.mrb[0].mxu0 %v5395
    %v5677 = vpop.f32.mrb[0].mxu0
    %v5678 = vadd.f32 %v5045, %v5677
    %v5679 = vpop.f32.mrb[0].mxu0
    %v5680 = vadd.f32 %v5049, %v5679
    %v5681 = vpop.f32.mrb[0].mxu0
    %v5682 = vpop.f32.mrb[0].mxu0
    %5683 = vdwg.mxu0
    %5684 = vmatprep.subr.bf16.mxu0 %v5281
    %5685 = vmatpush1.bf16.msra.mxu0 %v5280
    %5686 = vmatprep.subr.bf16.mxu0 %v5297
    %5687 = vmatpush1.bf16.msra.mxu0 %v5296
    %5688 = vmatprep.subr.bf16.mxu0 %v5313
    %5689 = vmatpush1.bf16.msra.mxu0 %v5312
    %5690 = vmatprep.subr.bf16.mxu0 %v5329
    %5691 = vmatpush1.bf16.msra.mxu0 %v5328
    %5692 = vmatprep.subr.bf16.mxu0 0
    %5693 = vmatpush1.bf16.msra.mxu0 0
    %5694 = vmatprep.subr.bf16.mxu0 0
    %5695 = vmatpush1.bf16.msra.mxu0 0
    %5696 = vmatprep.subr.bf16.mxu0 0
    %5697 = vmatpush1.bf16.msra.mxu0 0
    %5698 = vmatprep.subr.bf16.mxu0 0
    %5699 = vmatpush1.bf16.msra.mxu0 0
    %5700 = vmatprep.subr.bf16.mxu0 0
    %5701 = vmatpush1.bf16.msra.mxu0 0
    %5702 = vmatprep.subr.bf16.mxu0 0
    %5703 = vmatpush1.bf16.msra.mxu0 0
    %5704 = vmatprep.subr.bf16.mxu0 0
    %5705 = vmatpush1.bf16.msra.mxu0 0
    %5706 = vmatprep.subr.bf16.mxu0 0
    %5707 = vmatpush1.bf16.msra.mxu0 0
    %5708 = vmatprep.subr.bf16.mxu0 0
    %5709 = vmatpush1.bf16.msra.mxu0 0
    %5710 = vmatprep.subr.bf16.mxu0 0
    %5711 = vmatpush1.bf16.msra.mxu0 0
    %5712 = vmatprep.subr.bf16.mxu0 0
    %5713 = vmatpush1.bf16.msra.mxu0 0
    %5714 = vmatprep.subr.bf16.mxu0 0
    %5715 = vmatpush1.bf16.msra.mxu0 0
    %5716 = vmatprep.mubr.bf16.mxu0 0
    %5717 = vmatmul.mubr.bf16.gmra.mrb[0].mxu0 %v5395
    %v5718 = vpop.f32.mrb[0].mxu0
    %v5719 = vadd.f32 %v5053, %v5718
    %v5720 = vpop.f32.mrb[0].mxu0
    %v5721 = vadd.f32 %v5057, %v5720
    %v5722 = vpop.f32.mrb[0].mxu0
    %v5723 = vpop.f32.mrb[0].mxu0
    %5724 = vdwg.mxu0
    %v5725 = vmax.f32 %v5432, 0.0
    %v5726 = vmax.f32 %v5434, 0.0
    %v5727 = vmax.f32 %v5473, 0.0
    %v5728 = vmax.f32 %v5475, 0.0
    %v5729 = vmax.f32 %v5514, 0.0
    %v5730 = vmax.f32 %v5516, 0.0
    %v5731 = vmax.f32 %v5555, 0.0
    %v5732 = vmax.f32 %v5557, 0.0
    %v5733 = vmax.f32 %v5596, 0.0
    %v5734 = vmax.f32 %v5598, 0.0
    %v5735 = vmax.f32 %v5637, 0.0
    %v5736 = vmax.f32 %v5639, 0.0
    %v5737 = vmax.f32 %v5678, 0.0
    %v5738 = vmax.f32 %v5680, 0.0
    %v5739 = vmax.f32 %v5719, 0.0
    %v5740 = vmax.f32 %v5721, 0.0
    %v5741 = vpack.c.bf16 %v5725, %v5725
    %v5742 = vpack.c.bf16 %v5726, %v5726
    %v5743 = vpack.c.bf16 %v5727, %v5727
    %v5744 = vpack.c.bf16 %v5728, %v5728
    %v5745 = vpack.c.bf16 %v5729, %v5729
    %v5746 = vpack.c.bf16 %v5730, %v5730
    %v5747 = vpack.c.bf16 %v5731, %v5731
    %v5748 = vpack.c.bf16 %v5732, %v5732
    %v5749 = vpack.c.bf16 %v5733, %v5733
    %v5750 = vpack.c.bf16 %v5734, %v5734
    %v5751 = vpack.c.bf16 %v5735, %v5735
    %v5752 = vpack.c.bf16 %v5736, %v5736
    %v5753 = vpack.c.bf16 %v5737, %v5737
    %v5754 = vpack.c.bf16 %v5738, %v5738
    %v5755 = vpack.c.bf16 %v5739, %v5739
    %v5756 = vpack.c.bf16 %v5740, %v5740
    %s5757 = scalar_lea.vmem %s7, 2048
    %v5758 = vld [vmem:[%s5757] sm:$0xf]
    %v5759 = vld [vmem:[%s5757 + $0x4] sm:$0xf]
    %v5760 = vld [vmem:[%s5757 + $0x8] sm:$0xf]
    %v5761 = vld [vmem:[%s5757 + $0xc] sm:$0xf]
    %v5762 = vld [vmem:[%s5757 + $0x10] sm:$0xf]
    %v5763 = vld [vmem:[%s5757 + $0x14] sm:$0xf]
    %v5764 = vld [vmem:[%s5757 + $0x18] sm:$0xf]
    %v5765 = vld [vmem:[%s5757 + $0x1c] sm:$0xf]
    %v5766 = vld [vmem:[%s5757 + $0x20] sm:$0xf]
    %v5767 = vld [vmem:[%s5757 + $0x24] sm:$0xf]
    %v5768 = vld [vmem:[%s5757 + $0x28] sm:$0xf]
    %v5769 = vld [vmem:[%s5757 + $0x2c] sm:$0xf]
    %v5770 = vld [vmem:[%s5757 + $0x30] sm:$0xf]
    %v5771 = vld [vmem:[%s5757 + $0x34] sm:$0xf]
    %v5772 = vld [vmem:[%s5757 + $0x38] sm:$0xf]
    %v5773 = vld [vmem:[%s5757 + $0x3c] sm:$0xf]
    %v5774 = vld [vmem:[%s5757 + $0x40] sm:$0xf]
    %v5775 = vld [vmem:[%s5757 + $0x44] sm:$0xf]
    %v5776 = vld [vmem:[%s5757 + $0x48] sm:$0xf]
    %v5777 = vld [vmem:[%s5757 + $0x4c] sm:$0xf]
    %v5778 = vld [vmem:[%s5757 + $0x50] sm:$0xf]
    %v5779 = vld [vmem:[%s5757 + $0x54] sm:$0xf]
    %v5780 = vld [vmem:[%s5757 + $0x58] sm:$0xf]
    %v5781 = vld [vmem:[%s5757 + $0x5c] sm:$0xf]
    %v5782 = vld [vmem:[%s5757 + $0x60] sm:$0xf]
    %v5783 = vld [vmem:[%s5757 + $0x64] sm:$0xf]
    %v5784 = vld [vmem:[%s5757 + $0x68] sm:$0xf]
    %v5785 = vld [vmem:[%s5757 + $0x6c] sm:$0xf]
    %v5786 = vld [vmem:[%s5757 + $0x70] sm:$0xf]
    %v5787 = vld [vmem:[%s5757 + $0x74] sm:$0xf]
    %v5788 = vld [vmem:[%s5757 + $0x78] sm:$0xf]
    %v5789 = vld [vmem:[%s5757 + $0x7c] sm:$0xf]
    %v5790 = vld [vmem:[%s5757 + $0x80] sm:$0xf]
    %v5791 = vld [vmem:[%s5757 + $0x84] sm:$0xf]
    %v5792 = vld [vmem:[%s5757 + $0x88] sm:$0xf]
    %v5793 = vld [vmem:[%s5757 + $0x8c] sm:$0xf]
    %v5794 = vld [vmem:[%s5757 + $0x90] sm:$0xf]
    %v5795 = vld [vmem:[%s5757 + $0x94] sm:$0xf]
    %v5796 = vld [vmem:[%s5757 + $0x98] sm:$0xf]
    %v5797 = vld [vmem:[%s5757 + $0x9c] sm:$0xf]
    %v5798 = vld [vmem:[%s5757 + $0xa0] sm:$0xf]
    %v5799 = vld [vmem:[%s5757 + $0xa4] sm:$0xf]
    %v5800 = vld [vmem:[%s5757 + $0xa8] sm:$0xf]
    %v5801 = vld [vmem:[%s5757 + $0xac] sm:$0xf]
    %v5802 = vld [vmem:[%s5757 + $0xb0] sm:$0xf]
    %v5803 = vld [vmem:[%s5757 + $0xb4] sm:$0xf]
    %v5804 = vld [vmem:[%s5757 + $0xb8] sm:$0xf]
    %v5805 = vld [vmem:[%s5757 + $0xbc] sm:$0xf]
    %v5806 = vld [vmem:[%s5757 + $0xc0] sm:$0xf]
    %v5807 = vld [vmem:[%s5757 + $0xc4] sm:$0xf]
    %v5808 = vld [vmem:[%s5757 + $0xc8] sm:$0xf]
    %v5809 = vld [vmem:[%s5757 + $0xcc] sm:$0xf]
    %v5810 = vld [vmem:[%s5757 + $0xd0] sm:$0xf]
    %v5811 = vld [vmem:[%s5757 + $0xd4] sm:$0xf]
    %v5812 = vld [vmem:[%s5757 + $0xd8] sm:$0xf]
    %v5813 = vld [vmem:[%s5757 + $0xdc] sm:$0xf]
    %v5814 = vld [vmem:[%s5757 + $0xe0] sm:$0xf]
    %v5815 = vld [vmem:[%s5757 + $0xe4] sm:$0xf]
    %v5816 = vld [vmem:[%s5757 + $0xe8] sm:$0xf]
    %v5817 = vld [vmem:[%s5757 + $0xec] sm:$0xf]
    %v5818 = vld [vmem:[%s5757 + $0xf0] sm:$0xf]
    %v5819 = vld [vmem:[%s5757 + $0xf4] sm:$0xf]
    %v5820 = vld [vmem:[%s5757 + $0xf8] sm:$0xf]
    %v5821 = vld [vmem:[%s5757 + $0xfc] sm:$0xf]
    %v5822 = vld [vmem:[%s5757 + $0x100] sm:$0xf]
    %v5823 = vld [vmem:[%s5757 + $0x104] sm:$0xf]
    %v5824 = vld [vmem:[%s5757 + $0x108] sm:$0xf]
    %v5825 = vld [vmem:[%s5757 + $0x10c] sm:$0xf]
    %v5826 = vld [vmem:[%s5757 + $0x110] sm:$0xf]
    %v5827 = vld [vmem:[%s5757 + $0x114] sm:$0xf]
    %v5828 = vld [vmem:[%s5757 + $0x118] sm:$0xf]
    %v5829 = vld [vmem:[%s5757 + $0x11c] sm:$0xf]
    %v5830 = vld [vmem:[%s5757 + $0x120] sm:$0xf]
    %v5831 = vld [vmem:[%s5757 + $0x124] sm:$0xf]
    %v5832 = vld [vmem:[%s5757 + $0x128] sm:$0xf]
    %v5833 = vld [vmem:[%s5757 + $0x12c] sm:$0xf]
    %v5834 = vld [vmem:[%s5757 + $0x130] sm:$0xf]
    %v5835 = vld [vmem:[%s5757 + $0x134] sm:$0xf]
    %v5836 = vld [vmem:[%s5757 + $0x138] sm:$0xf]
    %v5837 = vld [vmem:[%s5757 + $0x13c] sm:$0xf]
    %v5838 = vld [vmem:[%s5757 + $0x140] sm:$0xf]
    %v5839 = vld [vmem:[%s5757 + $0x144] sm:$0xf]
    %v5840 = vld [vmem:[%s5757 + $0x148] sm:$0xf]
    %v5841 = vld [vmem:[%s5757 + $0x14c] sm:$0xf]
    %v5842 = vld [vmem:[%s5757 + $0x150] sm:$0xf]
    %v5843 = vld [vmem:[%s5757 + $0x154] sm:$0xf]
    %v5844 = vld [vmem:[%s5757 + $0x158] sm:$0xf]
    %v5845 = vld [vmem:[%s5757 + $0x15c] sm:$0xf]
    %v5846 = vld [vmem:[%s5757 + $0x160] sm:$0xf]
    %v5847 = vld [vmem:[%s5757 + $0x164] sm:$0xf]
    %v5848 = vld [vmem:[%s5757 + $0x168] sm:$0xf]
    %v5849 = vld [vmem:[%s5757 + $0x16c] sm:$0xf]
    %v5850 = vld [vmem:[%s5757 + $0x170] sm:$0xf]
    %v5851 = vld [vmem:[%s5757 + $0x174] sm:$0xf]
    %v5852 = vld [vmem:[%s5757 + $0x178] sm:$0xf]
    %v5853 = vld [vmem:[%s5757 + $0x17c] sm:$0xf]
    %v5854 = vld [vmem:[%s5757 + $0x180] sm:$0xf]
    %v5855 = vld [vmem:[%s5757 + $0x184] sm:$0xf]
    %v5856 = vld [vmem:[%s5757 + $0x188] sm:$0xf]
    %v5857 = vld [vmem:[%s5757 + $0x18c] sm:$0xf]
    %v5858 = vld [vmem:[%s5757 + $0x190] sm:$0xf]
    %v5859 = vld [vmem:[%s5757 + $0x194] sm:$0xf]
    %v5860 = vld [vmem:[%s5757 + $0x198] sm:$0xf]
    %v5861 = vld [vmem:[%s5757 + $0x19c] sm:$0xf]
    %v5862 = vld [vmem:[%s5757 + $0x1a0] sm:$0xf]
    %v5863 = vld [vmem:[%s5757 + $0x1a4] sm:$0xf]
    %v5864 = vld [vmem:[%s5757 + $0x1a8] sm:$0xf]
    %v5865 = vld [vmem:[%s5757 + $0x1ac] sm:$0xf]
    %v5866 = vld [vmem:[%s5757 + $0x1b0] sm:$0xf]
    %v5867 = vld [vmem:[%s5757 + $0x1b4] sm:$0xf]
    %v5868 = vld [vmem:[%s5757 + $0x1b8] sm:$0xf]
    %v5869 = vld [vmem:[%s5757 + $0x1bc] sm:$0xf]
    %v5870 = vld [vmem:[%s5757 + $0x1c0] sm:$0xf]
    %v5871 = vld [vmem:[%s5757 + $0x1c4] sm:$0xf]
    %v5872 = vld [vmem:[%s5757 + $0x1c8] sm:$0xf]
    %v5873 = vld [vmem:[%s5757 + $0x1cc] sm:$0xf]
    %v5874 = vld [vmem:[%s5757 + $0x1d0] sm:$0xf]
    %v5875 = vld [vmem:[%s5757 + $0x1d4] sm:$0xf]
    %v5876 = vld [vmem:[%s5757 + $0x1d8] sm:$0xf]
    %v5877 = vld [vmem:[%s5757 + $0x1dc] sm:$0xf]
    %v5878 = vld [vmem:[%s5757 + $0x1e0] sm:$0xf]
    %v5879 = vld [vmem:[%s5757 + $0x1e4] sm:$0xf]
    %v5880 = vld [vmem:[%s5757 + $0x1e8] sm:$0xf]
    %v5881 = vld [vmem:[%s5757 + $0x1ec] sm:$0xf]
    %v5882 = vld [vmem:[%s5757 + $0x1f0] sm:$0xf]
    %v5883 = vld [vmem:[%s5757 + $0x1f4] sm:$0xf]
    %v5884 = vld [vmem:[%s5757 + $0x1f8] sm:$0xf]
    %v5885 = vld [vmem:[%s5757 + $0x1fc] sm:$0xf]
    %v5886 = vld [vmem:[%s5757 + $0x200] sm:$0xf]
    %v5887 = vld [vmem:[%s5757 + $0x204] sm:$0xf]
    %v5888 = vld [vmem:[%s5757 + $0x208] sm:$0xf]
    %v5889 = vld [vmem:[%s5757 + $0x20c] sm:$0xf]
    %v5890 = vld [vmem:[%s5757 + $0x210] sm:$0xf]
    %v5891 = vld [vmem:[%s5757 + $0x214] sm:$0xf]
    %v5892 = vld [vmem:[%s5757 + $0x218] sm:$0xf]
    %v5893 = vld [vmem:[%s5757 + $0x21c] sm:$0xf]
    %v5894 = vld [vmem:[%s5757 + $0x220] sm:$0xf]
    %v5895 = vld [vmem:[%s5757 + $0x224] sm:$0xf]
    %v5896 = vld [vmem:[%s5757 + $0x228] sm:$0xf]
    %v5897 = vld [vmem:[%s5757 + $0x22c] sm:$0xf]
    %v5898 = vld [vmem:[%s5757 + $0x230] sm:$0xf]
    %v5899 = vld [vmem:[%s5757 + $0x234] sm:$0xf]
    %v5900 = vld [vmem:[%s5757 + $0x238] sm:$0xf]
    %v5901 = vld [vmem:[%s5757 + $0x23c] sm:$0xf]
    %v5902 = vld [vmem:[%s5757 + $0x240] sm:$0xf]
    %v5903 = vld [vmem:[%s5757 + $0x244] sm:$0xf]
    %v5904 = vld [vmem:[%s5757 + $0x248] sm:$0xf]
    %v5905 = vld [vmem:[%s5757 + $0x24c] sm:$0xf]
    %v5906 = vld [vmem:[%s5757 + $0x250] sm:$0xf]
    %v5907 = vld [vmem:[%s5757 + $0x254] sm:$0xf]
    %v5908 = vld [vmem:[%s5757 + $0x258] sm:$0xf]
    %v5909 = vld [vmem:[%s5757 + $0x25c] sm:$0xf]
    %v5910 = vld [vmem:[%s5757 + $0x260] sm:$0xf]
    %v5911 = vld [vmem:[%s5757 + $0x264] sm:$0xf]
    %v5912 = vld [vmem:[%s5757 + $0x268] sm:$0xf]
    %v5913 = vld [vmem:[%s5757 + $0x26c] sm:$0xf]
    %v5914 = vld [vmem:[%s5757 + $0x270] sm:$0xf]
    %v5915 = vld [vmem:[%s5757 + $0x274] sm:$0xf]
    %v5916 = vld [vmem:[%s5757 + $0x278] sm:$0xf]
    %v5917 = vld [vmem:[%s5757 + $0x27c] sm:$0xf]
    %v5918 = vld [vmem:[%s5757 + $0x280] sm:$0xf]
    %v5919 = vld [vmem:[%s5757 + $0x284] sm:$0xf]
    %v5920 = vld [vmem:[%s5757 + $0x288] sm:$0xf]
    %v5921 = vld [vmem:[%s5757 + $0x28c] sm:$0xf]
    %v5922 = vld [vmem:[%s5757 + $0x290] sm:$0xf]
    %v5923 = vld [vmem:[%s5757 + $0x294] sm:$0xf]
    %v5924 = vld [vmem:[%s5757 + $0x298] sm:$0xf]
    %v5925 = vld [vmem:[%s5757 + $0x29c] sm:$0xf]
    %v5926 = vld [vmem:[%s5757 + $0x2a0] sm:$0xf]
    %v5927 = vld [vmem:[%s5757 + $0x2a4] sm:$0xf]
    %v5928 = vld [vmem:[%s5757 + $0x2a8] sm:$0xf]
    %v5929 = vld [vmem:[%s5757 + $0x2ac] sm:$0xf]
    %v5930 = vld [vmem:[%s5757 + $0x2b0] sm:$0xf]
    %v5931 = vld [vmem:[%s5757 + $0x2b4] sm:$0xf]
    %v5932 = vld [vmem:[%s5757 + $0x2b8] sm:$0xf]
    %v5933 = vld [vmem:[%s5757 + $0x2bc] sm:$0xf]
    %v5934 = vld [vmem:[%s5757 + $0x2c0] sm:$0xf]
    %v5935 = vld [vmem:[%s5757 + $0x2c4] sm:$0xf]
    %v5936 = vld [vmem:[%s5757 + $0x2c8] sm:$0xf]
    %v5937 = vld [vmem:[%s5757 + $0x2cc] sm:$0xf]
    %v5938 = vld [vmem:[%s5757 + $0x2d0] sm:$0xf]
    %v5939 = vld [vmem:[%s5757 + $0x2d4] sm:$0xf]
    %v5940 = vld [vmem:[%s5757 + $0x2d8] sm:$0xf]
    %v5941 = vld [vmem:[%s5757 + $0x2dc] sm:$0xf]
    %v5942 = vld [vmem:[%s5757 + $0x2e0] sm:$0xf]
    %v5943 = vld [vmem:[%s5757 + $0x2e4] sm:$0xf]
    %v5944 = vld [vmem:[%s5757 + $0x2e8] sm:$0xf]
    %v5945 = vld [vmem:[%s5757 + $0x2ec] sm:$0xf]
    %v5946 = vld [vmem:[%s5757 + $0x2f0] sm:$0xf]
    %v5947 = vld [vmem:[%s5757 + $0x2f4] sm:$0xf]
    %v5948 = vld [vmem:[%s5757 + $0x2f8] sm:$0xf]
    %v5949 = vld [vmem:[%s5757 + $0x2fc] sm:$0xf]
    %v5950 = vld [vmem:[%s5757 + $0x300] sm:$0xf]
    %v5951 = vld [vmem:[%s5757 + $0x304] sm:$0xf]
    %v5952 = vld [vmem:[%s5757 + $0x308] sm:$0xf]
    %v5953 = vld [vmem:[%s5757 + $0x30c] sm:$0xf]
    %v5954 = vld [vmem:[%s5757 + $0x310] sm:$0xf]
    %v5955 = vld [vmem:[%s5757 + $0x314] sm:$0xf]
    %v5956 = vld [vmem:[%s5757 + $0x318] sm:$0xf]
    %v5957 = vld [vmem:[%s5757 + $0x31c] sm:$0xf]
    %v5958 = vld [vmem:[%s5757 + $0x320] sm:$0xf]
    %v5959 = vld [vmem:[%s5757 + $0x324] sm:$0xf]
    %v5960 = vld [vmem:[%s5757 + $0x328] sm:$0xf]
    %v5961 = vld [vmem:[%s5757 + $0x32c] sm:$0xf]
    %v5962 = vld [vmem:[%s5757 + $0x330] sm:$0xf]
    %v5963 = vld [vmem:[%s5757 + $0x334] sm:$0xf]
    %v5964 = vld [vmem:[%s5757 + $0x338] sm:$0xf]
    %v5965 = vld [vmem:[%s5757 + $0x33c] sm:$0xf]
    %v5966 = vld [vmem:[%s5757 + $0x340] sm:$0xf]
    %v5967 = vld [vmem:[%s5757 + $0x344] sm:$0xf]
    %v5968 = vld [vmem:[%s5757 + $0x348] sm:$0xf]
    %v5969 = vld [vmem:[%s5757 + $0x34c] sm:$0xf]
    %v5970 = vld [vmem:[%s5757 + $0x350] sm:$0xf]
    %v5971 = vld [vmem:[%s5757 + $0x354] sm:$0xf]
    %v5972 = vld [vmem:[%s5757 + $0x358] sm:$0xf]
    %v5973 = vld [vmem:[%s5757 + $0x35c] sm:$0xf]
    %v5974 = vld [vmem:[%s5757 + $0x360] sm:$0xf]
    %v5975 = vld [vmem:[%s5757 + $0x364] sm:$0xf]
    %v5976 = vld [vmem:[%s5757 + $0x368] sm:$0xf]
    %v5977 = vld [vmem:[%s5757 + $0x36c] sm:$0xf]
    %v5978 = vld [vmem:[%s5757 + $0x370] sm:$0xf]
    %v5979 = vld [vmem:[%s5757 + $0x374] sm:$0xf]
    %v5980 = vld [vmem:[%s5757 + $0x378] sm:$0xf]
    %v5981 = vld [vmem:[%s5757 + $0x37c] sm:$0xf]
    %v5982 = vld [vmem:[%s5757 + $0x380] sm:$0xf]
    %v5983 = vld [vmem:[%s5757 + $0x384] sm:$0xf]
    %v5984 = vld [vmem:[%s5757 + $0x388] sm:$0xf]
    %v5985 = vld [vmem:[%s5757 + $0x38c] sm:$0xf]
    %v5986 = vld [vmem:[%s5757 + $0x390] sm:$0xf]
    %v5987 = vld [vmem:[%s5757 + $0x394] sm:$0xf]
    %v5988 = vld [vmem:[%s5757 + $0x398] sm:$0xf]
    %v5989 = vld [vmem:[%s5757 + $0x39c] sm:$0xf]
    %v5990 = vld [vmem:[%s5757 + $0x3a0] sm:$0xf]
    %v5991 = vld [vmem:[%s5757 + $0x3a4] sm:$0xf]
    %v5992 = vld [vmem:[%s5757 + $0x3a8] sm:$0xf]
    %v5993 = vld [vmem:[%s5757 + $0x3ac] sm:$0xf]
    %v5994 = vld [vmem:[%s5757 + $0x3b0] sm:$0xf]
    %v5995 = vld [vmem:[%s5757 + $0x3b4] sm:$0xf]
    %v5996 = vld [vmem:[%s5757 + $0x3b8] sm:$0xf]
    %v5997 = vld [vmem:[%s5757 + $0x3bc] sm:$0xf]
    %v5998 = vld [vmem:[%s5757 + $0x3c0] sm:$0xf]
    %v5999 = vld [vmem:[%s5757 + $0x3c4] sm:$0xf]
    %v6000 = vld [vmem:[%s5757 + $0x3c8] sm:$0xf]
    %v6001 = vld [vmem:[%s5757 + $0x3cc] sm:$0xf]
    %v6002 = vld [vmem:[%s5757 + $0x3d0] sm:$0xf]
    %v6003 = vld [vmem:[%s5757 + $0x3d4] sm:$0xf]
    %v6004 = vld [vmem:[%s5757 + $0x3d8] sm:$0xf]
    %v6005 = vld [vmem:[%s5757 + $0x3dc] sm:$0xf]
    %v6006 = vld [vmem:[%s5757 + $0x3e0] sm:$0xf]
    %v6007 = vld [vmem:[%s5757 + $0x3e4] sm:$0xf]
    %v6008 = vld [vmem:[%s5757 + $0x3e8] sm:$0xf]
    %v6009 = vld [vmem:[%s5757 + $0x3ec] sm:$0xf]
    %v6010 = vld [vmem:[%s5757 + $0x3f0] sm:$0xf]
    %v6011 = vld [vmem:[%s5757 + $0x3f4] sm:$0xf]
    %v6012 = vld [vmem:[%s5757 + $0x3f8] sm:$0xf]
    %v6013 = vld [vmem:[%s5757 + $0x3fc] sm:$0xf]
    %s6014 = scalar_lea.vmem %s8, 2
    %v6015 = vld [vmem:[%s6014] sm:$0x1]
    %v6017 = vlaneseq
    %v6018 = vshrl.u32 %v6017, 7
    %v6019 = vsub.s32 0, %v6018
    %v6020 = vrot.slane %v6015, %v6019
    %v6278 = vunpack.c.l.b16 %v5758
    %v6279 = vunpack.c.l.b16 %v5759
    %v6280 = vunpack.c.l.b16 %v5760
    %v6281 = vunpack.c.l.b16 %v5761
    %v6282 = vunpack.c.l.b16 %v5762
    %v6283 = vunpack.c.l.b16 %v5763
    %v6284 = vunpack.c.l.b16 %v5764
    %v6285 = vunpack.c.l.b16 %v5765
    %v6286 = vunpack.c.l.b16 %v5766
    %v6287 = vunpack.c.l.b16 %v5767
    %v6288 = vunpack.c.l.b16 %v5768
    %v6289 = vunpack.c.l.b16 %v5769
    %v6290 = vunpack.c.l.b16 %v5770
    %v6291 = vunpack.c.l.b16 %v5771
    %v6292 = vunpack.c.l.b16 %v5772
    %v6293 = vunpack.c.l.b16 %v5773
    %v6294 = vunpack.c.l.b16 %v5774
    %v6295 = vunpack.c.l.b16 %v5775
    %v6296 = vunpack.c.l.b16 %v5776
    %v6297 = vunpack.c.l.b16 %v5777
    %v6298 = vunpack.c.l.b16 %v5778
    %v6299 = vunpack.c.l.b16 %v5779
    %v6300 = vunpack.c.l.b16 %v5780
    %v6301 = vunpack.c.l.b16 %v5781
    %v6302 = vunpack.c.l.b16 %v5782
    %v6303 = vunpack.c.l.b16 %v5783
    %v6304 = vunpack.c.l.b16 %v5784
    %v6305 = vunpack.c.l.b16 %v5785
    %v6306 = vunpack.c.l.b16 %v5786
    %v6307 = vunpack.c.l.b16 %v5787
    %v6308 = vunpack.c.l.b16 %v5788
    %v6309 = vunpack.c.l.b16 %v5789
    %v6310 = vunpack.c.l.b16 %v5790
    %v6311 = vunpack.c.l.b16 %v5791
    %v6312 = vunpack.c.l.b16 %v5792
    %v6313 = vunpack.c.l.b16 %v5793
    %v6314 = vunpack.c.l.b16 %v5794
    %v6315 = vunpack.c.l.b16 %v5795
    %v6316 = vunpack.c.l.b16 %v5796
    %v6317 = vunpack.c.l.b16 %v5797
    %v6318 = vunpack.c.l.b16 %v5798
    %v6319 = vunpack.c.l.b16 %v5799
    %v6320 = vunpack.c.l.b16 %v5800
    %v6321 = vunpack.c.l.b16 %v5801
    %v6322 = vunpack.c.l.b16 %v5802
    %v6323 = vunpack.c.l.b16 %v5803
    %v6324 = vunpack.c.l.b16 %v5804
    %v6325 = vunpack.c.l.b16 %v5805
    %v6326 = vunpack.c.l.b16 %v5806
    %v6327 = vunpack.c.l.b16 %v5807
    %v6328 = vunpack.c.l.b16 %v5808
    %v6329 = vunpack.c.l.b16 %v5809
    %v6330 = vunpack.c.l.b16 %v5810
    %v6331 = vunpack.c.l.b16 %v5811
    %v6332 = vunpack.c.l.b16 %v5812
    %v6333 = vunpack.c.l.b16 %v5813
    %v6334 = vunpack.c.l.b16 %v5814
    %v6335 = vunpack.c.l.b16 %v5815
    %v6336 = vunpack.c.l.b16 %v5816
    %v6337 = vunpack.c.l.b16 %v5817
    %v6338 = vunpack.c.l.b16 %v5818
    %v6339 = vunpack.c.l.b16 %v5819
    %v6340 = vunpack.c.l.b16 %v5820
    %v6341 = vunpack.c.l.b16 %v5821
    %v6342 = vunpack.c.l.b16 %v5822
    %v6343 = vunpack.c.l.b16 %v5823
    %v6344 = vunpack.c.l.b16 %v5824
    %v6345 = vunpack.c.l.b16 %v5825
    %v6346 = vunpack.c.l.b16 %v5826
    %v6347 = vunpack.c.l.b16 %v5827
    %v6348 = vunpack.c.l.b16 %v5828
    %v6349 = vunpack.c.l.b16 %v5829
    %v6350 = vunpack.c.l.b16 %v5830
    %v6351 = vunpack.c.l.b16 %v5831
    %v6352 = vunpack.c.l.b16 %v5832
    %v6353 = vunpack.c.l.b16 %v5833
    %v6354 = vunpack.c.l.b16 %v5834
    %v6355 = vunpack.c.l.b16 %v5835
    %v6356 = vunpack.c.l.b16 %v5836
    %v6357 = vunpack.c.l.b16 %v5837
    %v6358 = vunpack.c.l.b16 %v5838
    %v6359 = vunpack.c.l.b16 %v5839
    %v6360 = vunpack.c.l.b16 %v5840
    %v6361 = vunpack.c.l.b16 %v5841
    %v6362 = vunpack.c.l.b16 %v5842
    %v6363 = vunpack.c.l.b16 %v5843
    %v6364 = vunpack.c.l.b16 %v5844
    %v6365 = vunpack.c.l.b16 %v5845
    %v6366 = vunpack.c.l.b16 %v5846
    %v6367 = vunpack.c.l.b16 %v5847
    %v6368 = vunpack.c.l.b16 %v5848
    %v6369 = vunpack.c.l.b16 %v5849
    %v6370 = vunpack.c.l.b16 %v5850
    %v6371 = vunpack.c.l.b16 %v5851
    %v6372 = vunpack.c.l.b16 %v5852
    %v6373 = vunpack.c.l.b16 %v5853
    %v6374 = vunpack.c.l.b16 %v5854
    %v6375 = vunpack.c.l.b16 %v5855
    %v6376 = vunpack.c.l.b16 %v5856
    %v6377 = vunpack.c.l.b16 %v5857
    %v6378 = vunpack.c.l.b16 %v5858
    %v6379 = vunpack.c.l.b16 %v5859
    %v6380 = vunpack.c.l.b16 %v5860
    %v6381 = vunpack.c.l.b16 %v5861
    %v6382 = vunpack.c.l.b16 %v5862
    %v6383 = vunpack.c.l.b16 %v5863
    %v6384 = vunpack.c.l.b16 %v5864
    %v6385 = vunpack.c.l.b16 %v5865
    %v6386 = vunpack.c.l.b16 %v5866
    %v6387 = vunpack.c.l.b16 %v5867
    %v6388 = vunpack.c.l.b16 %v5868
    %v6389 = vunpack.c.l.b16 %v5869
    %v6390 = vunpack.c.l.b16 %v5870
    %v6391 = vunpack.c.l.b16 %v5871
    %v6392 = vunpack.c.l.b16 %v5872
    %v6393 = vunpack.c.l.b16 %v5873
    %v6394 = vunpack.c.l.b16 %v5874
    %v6395 = vunpack.c.l.b16 %v5875
    %v6396 = vunpack.c.l.b16 %v5876
    %v6397 = vunpack.c.l.b16 %v5877
    %v6398 = vunpack.c.l.b16 %v5878
    %v6399 = vunpack.c.l.b16 %v5879
    %v6400 = vunpack.c.l.b16 %v5880
    %v6401 = vunpack.c.l.b16 %v5881
    %v6402 = vunpack.c.l.b16 %v5882
    %v6403 = vunpack.c.l.b16 %v5883
    %v6404 = vunpack.c.l.b16 %v5884
    %v6405 = vunpack.c.l.b16 %v5885
    %v6406 = vunpack.c.l.b16 %v5886
    %v6407 = vunpack.c.l.b16 %v5887
    %v6408 = vunpack.c.l.b16 %v5888
    %v6409 = vunpack.c.l.b16 %v5889
    %v6410 = vunpack.c.l.b16 %v5890
    %v6411 = vunpack.c.l.b16 %v5891
    %v6412 = vunpack.c.l.b16 %v5892
    %v6413 = vunpack.c.l.b16 %v5893
    %v6414 = vunpack.c.l.b16 %v5894
    %v6415 = vunpack.c.l.b16 %v5895
    %v6416 = vunpack.c.l.b16 %v5896
    %v6417 = vunpack.c.l.b16 %v5897
    %v6418 = vunpack.c.l.b16 %v5898
    %v6419 = vunpack.c.l.b16 %v5899
    %v6420 = vunpack.c.l.b16 %v5900
    %v6421 = vunpack.c.l.b16 %v5901
    %v6422 = vunpack.c.l.b16 %v5902
    %v6423 = vunpack.c.l.b16 %v5903
    %v6424 = vunpack.c.l.b16 %v5904
    %v6425 = vunpack.c.l.b16 %v5905
    %v6426 = vunpack.c.l.b16 %v5906
    %v6427 = vunpack.c.l.b16 %v5907
    %v6428 = vunpack.c.l.b16 %v5908
    %v6429 = vunpack.c.l.b16 %v5909
    %v6430 = vunpack.c.l.b16 %v5910
    %v6431 = vunpack.c.l.b16 %v5911
    %v6432 = vunpack.c.l.b16 %v5912
    %v6433 = vunpack.c.l.b16 %v5913
    %v6434 = vunpack.c.l.b16 %v5914
    %v6435 = vunpack.c.l.b16 %v5915
    %v6436 = vunpack.c.l.b16 %v5916
    %v6437 = vunpack.c.l.b16 %v5917
    %v6438 = vunpack.c.l.b16 %v5918
    %v6439 = vunpack.c.l.b16 %v5919
    %v6440 = vunpack.c.l.b16 %v5920
    %v6441 = vunpack.c.l.b16 %v5921
    %v6442 = vunpack.c.l.b16 %v5922
    %v6443 = vunpack.c.l.b16 %v5923
    %v6444 = vunpack.c.l.b16 %v5924
    %v6445 = vunpack.c.l.b16 %v5925
    %v6446 = vunpack.c.l.b16 %v5926
    %v6447 = vunpack.c.l.b16 %v5927
    %v6448 = vunpack.c.l.b16 %v5928
    %v6449 = vunpack.c.l.b16 %v5929
    %v6450 = vunpack.c.l.b16 %v5930
    %v6451 = vunpack.c.l.b16 %v5931
    %v6452 = vunpack.c.l.b16 %v5932
    %v6453 = vunpack.c.l.b16 %v5933
    %v6454 = vunpack.c.l.b16 %v5934
    %v6455 = vunpack.c.l.b16 %v5935
    %v6456 = vunpack.c.l.b16 %v5936
    %v6457 = vunpack.c.l.b16 %v5937
    %v6458 = vunpack.c.l.b16 %v5938
    %v6459 = vunpack.c.l.b16 %v5939
    %v6460 = vunpack.c.l.b16 %v5940
    %v6461 = vunpack.c.l.b16 %v5941
    %v6462 = vunpack.c.l.b16 %v5942
    %v6463 = vunpack.c.l.b16 %v5943
    %v6464 = vunpack.c.l.b16 %v5944
    %v6465 = vunpack.c.l.b16 %v5945
    %v6466 = vunpack.c.l.b16 %v5946
    %v6467 = vunpack.c.l.b16 %v5947
    %v6468 = vunpack.c.l.b16 %v5948
    %v6469 = vunpack.c.l.b16 %v5949
    %v6470 = vunpack.c.l.b16 %v5950
    %v6471 = vunpack.c.l.b16 %v5951
    %v6472 = vunpack.c.l.b16 %v5952
    %v6473 = vunpack.c.l.b16 %v5953
    %v6474 = vunpack.c.l.b16 %v5954
    %v6475 = vunpack.c.l.b16 %v5955
    %v6476 = vunpack.c.l.b16 %v5956
    %v6477 = vunpack.c.l.b16 %v5957
    %v6478 = vunpack.c.l.b16 %v5958
    %v6479 = vunpack.c.l.b16 %v5959
    %v6480 = vunpack.c.l.b16 %v5960
    %v6481 = vunpack.c.l.b16 %v5961
    %v6482 = vunpack.c.l.b16 %v5962
    %v6483 = vunpack.c.l.b16 %v5963
    %v6484 = vunpack.c.l.b16 %v5964
    %v6485 = vunpack.c.l.b16 %v5965
    %v6486 = vunpack.c.l.b16 %v5966
    %v6487 = vunpack.c.l.b16 %v5967
    %v6488 = vunpack.c.l.b16 %v5968
    %v6489 = vunpack.c.l.b16 %v5969
    %v6490 = vunpack.c.l.b16 %v5970
    %v6491 = vunpack.c.l.b16 %v5971
    %v6492 = vunpack.c.l.b16 %v5972
    %v6493 = vunpack.c.l.b16 %v5973
    %v6494 = vunpack.c.l.b16 %v5974
    %v6495 = vunpack.c.l.b16 %v5975
    %v6496 = vunpack.c.l.b16 %v5976
    %v6497 = vunpack.c.l.b16 %v5977
    %v6498 = vunpack.c.l.b16 %v5978
    %v6499 = vunpack.c.l.b16 %v5979
    %v6500 = vunpack.c.l.b16 %v5980
    %v6501 = vunpack.c.l.b16 %v5981
    %v6502 = vunpack.c.l.b16 %v5982
    %v6503 = vunpack.c.l.b16 %v5983
    %v6504 = vunpack.c.l.b16 %v5984
    %v6505 = vunpack.c.l.b16 %v5985
    %v6506 = vunpack.c.l.b16 %v5986
    %v6507 = vunpack.c.l.b16 %v5987
    %v6508 = vunpack.c.l.b16 %v5988
    %v6509 = vunpack.c.l.b16 %v5989
    %v6510 = vunpack.c.l.b16 %v5990
    %v6511 = vunpack.c.l.b16 %v5991
    %v6512 = vunpack.c.l.b16 %v5992
    %v6513 = vunpack.c.l.b16 %v5993
    %v6514 = vunpack.c.l.b16 %v5994
    %v6515 = vunpack.c.l.b16 %v5995
    %v6516 = vunpack.c.l.b16 %v5996
    %v6517 = vunpack.c.l.b16 %v5997
    %v6518 = vunpack.c.l.b16 %v5998
    %v6519 = vunpack.c.l.b16 %v5999
    %v6520 = vunpack.c.l.b16 %v6000
    %v6521 = vunpack.c.l.b16 %v6001
    %v6522 = vunpack.c.l.b16 %v6002
    %v6523 = vunpack.c.l.b16 %v6003
    %v6524 = vunpack.c.l.b16 %v6004
    %v6525 = vunpack.c.l.b16 %v6005
    %v6526 = vunpack.c.l.b16 %v6006
    %v6527 = vunpack.c.l.b16 %v6007
    %v6528 = vunpack.c.l.b16 %v6008
    %v6529 = vunpack.c.l.b16 %v6009
    %v6530 = vunpack.c.l.b16 %v6010
    %v6531 = vunpack.c.l.b16 %v6011
    %v6532 = vunpack.c.l.b16 %v6012
    %v6533 = vunpack.c.l.b16 %v6013
    %v6534 = vpack.c.b16 %v6279, %v6278
    %v6535 = vpack.c.b16 %v6281, %v6280
    %v6536 = vpack.c.b16 %v6283, %v6282
    %v6537 = vpack.c.b16 %v6285, %v6284
    %v6538 = vpack.c.b16 %v6287, %v6286
    %v6539 = vpack.c.b16 %v6289, %v6288
    %v6540 = vpack.c.b16 %v6291, %v6290
    %v6541 = vpack.c.b16 %v6293, %v6292
    %v6542 = vpack.c.b16 %v6295, %v6294
    %v6543 = vpack.c.b16 %v6297, %v6296
    %v6544 = vpack.c.b16 %v6299, %v6298
    %v6545 = vpack.c.b16 %v6301, %v6300
    %v6546 = vpack.c.b16 %v6303, %v6302
    %v6547 = vpack.c.b16 %v6305, %v6304
    %v6548 = vpack.c.b16 %v6307, %v6306
    %v6549 = vpack.c.b16 %v6309, %v6308
    %v6550 = vpack.c.b16 %v6311, %v6310
    %v6551 = vpack.c.b16 %v6313, %v6312
    %v6552 = vpack.c.b16 %v6315, %v6314
    %v6553 = vpack.c.b16 %v6317, %v6316
    %v6554 = vpack.c.b16 %v6319, %v6318
    %v6555 = vpack.c.b16 %v6321, %v6320
    %v6556 = vpack.c.b16 %v6323, %v6322
    %v6557 = vpack.c.b16 %v6325, %v6324
    %v6558 = vpack.c.b16 %v6327, %v6326
    %v6559 = vpack.c.b16 %v6329, %v6328
    %v6560 = vpack.c.b16 %v6331, %v6330
    %v6561 = vpack.c.b16 %v6333, %v6332
    %v6562 = vpack.c.b16 %v6335, %v6334
    %v6563 = vpack.c.b16 %v6337, %v6336
    %v6564 = vpack.c.b16 %v6339, %v6338
    %v6565 = vpack.c.b16 %v6341, %v6340
    %v6566 = vpack.c.b16 %v6343, %v6342
    %v6567 = vpack.c.b16 %v6345, %v6344
    %v6568 = vpack.c.b16 %v6347, %v6346
    %v6569 = vpack.c.b16 %v6349, %v6348
    %v6570 = vpack.c.b16 %v6351, %v6350
    %v6571 = vpack.c.b16 %v6353, %v6352
    %v6572 = vpack.c.b16 %v6355, %v6354
    %v6573 = vpack.c.b16 %v6357, %v6356
    %v6574 = vpack.c.b16 %v6359, %v6358
    %v6575 = vpack.c.b16 %v6361, %v6360
    %v6576 = vpack.c.b16 %v6363, %v6362
    %v6577 = vpack.c.b16 %v6365, %v6364
    %v6578 = vpack.c.b16 %v6367, %v6366
    %v6579 = vpack.c.b16 %v6369, %v6368
    %v6580 = vpack.c.b16 %v6371, %v6370
    %v6581 = vpack.c.b16 %v6373, %v6372
    %v6582 = vpack.c.b16 %v6375, %v6374
    %v6583 = vpack.c.b16 %v6377, %v6376
    %v6584 = vpack.c.b16 %v6379, %v6378
    %v6585 = vpack.c.b16 %v6381, %v6380
    %v6586 = vpack.c.b16 %v6383, %v6382
    %v6587 = vpack.c.b16 %v6385, %v6384
    %v6588 = vpack.c.b16 %v6387, %v6386
    %v6589 = vpack.c.b16 %v6389, %v6388
    %v6590 = vpack.c.b16 %v6391, %v6390
    %v6591 = vpack.c.b16 %v6393, %v6392
    %v6592 = vpack.c.b16 %v6395, %v6394
    %v6593 = vpack.c.b16 %v6397, %v6396
    %v6594 = vpack.c.b16 %v6399, %v6398
    %v6595 = vpack.c.b16 %v6401, %v6400
    %v6596 = vpack.c.b16 %v6403, %v6402
    %v6597 = vpack.c.b16 %v6405, %v6404
    %v6598 = vpack.c.b16 %v6407, %v6406
    %v6599 = vpack.c.b16 %v6409, %v6408
    %v6600 = vpack.c.b16 %v6411, %v6410
    %v6601 = vpack.c.b16 %v6413, %v6412
    %v6602 = vpack.c.b16 %v6415, %v6414
    %v6603 = vpack.c.b16 %v6417, %v6416
    %v6604 = vpack.c.b16 %v6419, %v6418
    %v6605 = vpack.c.b16 %v6421, %v6420
    %v6606 = vpack.c.b16 %v6423, %v6422
    %v6607 = vpack.c.b16 %v6425, %v6424
    %v6608 = vpack.c.b16 %v6427, %v6426
    %v6609 = vpack.c.b16 %v6429, %v6428
    %v6610 = vpack.c.b16 %v6431, %v6430
    %v6611 = vpack.c.b16 %v6433, %v6432
    %v6612 = vpack.c.b16 %v6435, %v6434
    %v6613 = vpack.c.b16 %v6437, %v6436
    %v6614 = vpack.c.b16 %v6439, %v6438
    %v6615 = vpack.c.b16 %v6441, %v6440
    %v6616 = vpack.c.b16 %v6443, %v6442
    %v6617 = vpack.c.b16 %v6445, %v6444
    %v6618 = vpack.c.b16 %v6447, %v6446
    %v6619 = vpack.c.b16 %v6449, %v6448
    %v6620 = vpack.c.b16 %v6451, %v6450
    %v6621 = vpack.c.b16 %v6453, %v6452
    %v6622 = vpack.c.b16 %v6455, %v6454
    %v6623 = vpack.c.b16 %v6457, %v6456
    %v6624 = vpack.c.b16 %v6459, %v6458
    %v6625 = vpack.c.b16 %v6461, %v6460
    %v6626 = vpack.c.b16 %v6463, %v6462
    %v6627 = vpack.c.b16 %v6465, %v6464
    %v6628 = vpack.c.b16 %v6467, %v6466
    %v6629 = vpack.c.b16 %v6469, %v6468
    %v6630 = vpack.c.b16 %v6471, %v6470
    %v6631 = vpack.c.b16 %v6473, %v6472
    %v6632 = vpack.c.b16 %v6475, %v6474
    %v6633 = vpack.c.b16 %v6477, %v6476
    %v6634 = vpack.c.b16 %v6479, %v6478
    %v6635 = vpack.c.b16 %v6481, %v6480
    %v6636 = vpack.c.b16 %v6483, %v6482
    %v6637 = vpack.c.b16 %v6485, %v6484
    %v6638 = vpack.c.b16 %v6487, %v6486
    %v6639 = vpack.c.b16 %v6489, %v6488
    %v6640 = vpack.c.b16 %v6491, %v6490
    %v6641 = vpack.c.b16 %v6493, %v6492
    %v6642 = vpack.c.b16 %v6495, %v6494
    %v6643 = vpack.c.b16 %v6497, %v6496
    %v6644 = vpack.c.b16 %v6499, %v6498
    %v6645 = vpack.c.b16 %v6501, %v6500
    %v6646 = vpack.c.b16 %v6503, %v6502
    %v6647 = vpack.c.b16 %v6505, %v6504
    %v6648 = vpack.c.b16 %v6507, %v6506
    %v6649 = vpack.c.b16 %v6509, %v6508
    %v6650 = vpack.c.b16 %v6511, %v6510
    %v6651 = vpack.c.b16 %v6513, %v6512
    %v6652 = vpack.c.b16 %v6515, %v6514
    %v6653 = vpack.c.b16 %v6517, %v6516
    %v6654 = vpack.c.b16 %v6519, %v6518
    %v6655 = vpack.c.b16 %v6521, %v6520
    %v6656 = vpack.c.b16 %v6523, %v6522
    %v6657 = vpack.c.b16 %v6525, %v6524
    %v6658 = vpack.c.b16 %v6527, %v6526
    %v6659 = vpack.c.b16 %v6529, %v6528
    %v6660 = vpack.c.b16 %v6531, %v6530
    %v6661 = vpack.c.b16 %v6533, %v6532
    %6790 = vmatprep.subr.bf16.mxu0 0
    %6791 = vmatpush1.bf16.msra.mxu0 %v6534
    %6792 = vmatprep.subr.bf16.mxu0 0
    %6793 = vmatpush1.bf16.msra.mxu0 %v6535
    %6794 = vmatprep.subr.bf16.mxu0 0
    %6795 = vmatpush1.bf16.msra.mxu0 %v6536
    %6796 = vmatprep.subr.bf16.mxu0 0
    %6797 = vmatpush1.bf16.msra.mxu0 %v6537
    %6798 = vmatprep.subr.bf16.mxu0 0
    %6799 = vmatpush1.bf16.msra.mxu0 %v6538
    %6800 = vmatprep.subr.bf16.mxu0 0
    %6801 = vmatpush1.bf16.msra.mxu0 %v6539
    %6802 = vmatprep.subr.bf16.mxu0 0
    %6803 = vmatpush1.bf16.msra.mxu0 %v6540
    %6804 = vmatprep.subr.bf16.mxu0 0
    %6805 = vmatpush1.bf16.msra.mxu0 %v6541
    %6806 = vmatprep.subr.bf16.mxu0 0
    %6807 = vmatpush1.bf16.msra.mxu0 %v6542
    %6808 = vmatprep.subr.bf16.mxu0 0
    %6809 = vmatpush1.bf16.msra.mxu0 %v6543
    %6810 = vmatprep.subr.bf16.mxu0 0
    %6811 = vmatpush1.bf16.msra.mxu0 %v6544
    %6812 = vmatprep.subr.bf16.mxu0 0
    %6813 = vmatpush1.bf16.msra.mxu0 %v6545
    %6814 = vmatprep.subr.bf16.mxu0 0
    %6815 = vmatpush1.bf16.msra.mxu0 %v6546
    %6816 = vmatprep.subr.bf16.mxu0 0
    %6817 = vmatpush1.bf16.msra.mxu0 %v6547
    %6818 = vmatprep.subr.bf16.mxu0 0
    %6819 = vmatpush1.bf16.msra.mxu0 %v6548
    %6820 = vmatprep.subr.bf16.mxu0 0
    %6821 = vmatpush1.bf16.msra.mxu0 %v6549
    %6822 = vmatprep.mubr.bf16.mxu0 %v5742
    %6823 = vmatmul.mubr.bf16.gmra.mrb[0].mxu0 %v5741
    %v6824 = vpop.f32.mrb[0].mxu0
    %v6825 = vadd.f32 %v6020, %v6824
    %v6826 = vpop.f32.mrb[0].mxu0
    %v6827 = vpop.f32.mrb[0].mxu0
    %v6828 = vpop.f32.mrb[0].mxu0
    %6829 = vdwg.mxu0
    %6830 = vmatprep.subr.bf16.mxu0 0
    %6831 = vmatpush1.bf16.msra.mxu0 %v6550
    %6832 = vmatprep.subr.bf16.mxu0 0
    %6833 = vmatpush1.bf16.msra.mxu0 %v6551
    %6834 = vmatprep.subr.bf16.mxu0 0
    %6835 = vmatpush1.bf16.msra.mxu0 %v6552
    %6836 = vmatprep.subr.bf16.mxu0 0
    %6837 = vmatpush1.bf16.msra.mxu0 %v6553
    %6838 = vmatprep.subr.bf16.mxu0 0
    %6839 = vmatpush1.bf16.msra.mxu0 %v6554
    %6840 = vmatprep.subr.bf16.mxu0 0
    %6841 = vmatpush1.bf16.msra.mxu0 %v6555
    %6842 = vmatprep.subr.bf16.mxu0 0
    %6843 = vmatpush1.bf16.msra.mxu0 %v6556
    %6844 = vmatprep.subr.bf16.mxu0 0
    %6845 = vmatpush1.bf16.msra.mxu0 %v6557
    %6846 = vmatprep.subr.bf16.mxu0 0
    %6847 = vmatpush1.bf16.msra.mxu0 %v6558
    %6848 = vmatprep.subr.bf16.mxu0 0
    %6849 = vmatpush1.bf16.msra.mxu0 %v6559
    %6850 = vmatprep.subr.bf16.mxu0 0
    %6851 = vmatpush1.bf16.msra.mxu0 %v6560
    %6852 = vmatprep.subr.bf16.mxu0 0
    %6853 = vmatpush1.bf16.msra.mxu0 %v6561
    %6854 = vmatprep.subr.bf16.mxu0 0
    %6855 = vmatpush1.bf16.msra.mxu0 %v6562
    %6856 = vmatprep.subr.bf16.mxu0 0
    %6857 = vmatpush1.bf16.msra.mxu0 %v6563
    %6858 = vmatprep.subr.bf16.mxu0 0
    %6859 = vmatpush1.bf16.msra.mxu0 %v6564
    %6860 = vmatprep.subr.bf16.mxu0 0
    %6861 = vmatpush1.bf16.msra.mxu0 %v6565
    %6862 = vmatprep.mubr.bf16.mxu0 %v5744
    %6863 = vmatmul.mubr.bf16.gmra.mrb[0].mxu0 %v5743
    %v6864 = vpop.f32.mrb[0].mxu0
    %v6865 = vadd.f32 %v6825, %v6864
    %v6866 = vpop.f32.mrb[0].mxu0
    %v6867 = vpop.f32.mrb[0].mxu0
    %v6868 = vpop.f32.mrb[0].mxu0
    %6869 = vdwg.mxu0
    %6870 = vmatprep.subr.bf16.mxu0 0
    %6871 = vmatpush1.bf16.msra.mxu0 %v6566
    %6872 = vmatprep.subr.bf16.mxu0 0
    %6873 = vmatpush1.bf16.msra.mxu0 %v6567
    %6874 = vmatprep.subr.bf16.mxu0 0
    %6875 = vmatpush1.bf16.msra.mxu0 %v6568
    %6876 = vmatprep.subr.bf16.mxu0 0
    %6877 = vmatpush1.bf16.msra.mxu0 %v6569
    %6878 = vmatprep.subr.bf16.mxu0 0
    %6879 = vmatpush1.bf16.msra.mxu0 %v6570
    %6880 = vmatprep.subr.bf16.mxu0 0
    %6881 = vmatpush1.bf16.msra.mxu0 %v6571
    %6882 = vmatprep.subr.bf16.mxu0 0
    %6883 = vmatpush1.bf16.msra.mxu0 %v6572
    %6884 = vmatprep.subr.bf16.mxu0 0
    %6885 = vmatpush1.bf16.msra.mxu0 %v6573
    %6886 = vmatprep.subr.bf16.mxu0 0
    %6887 = vmatpush1.bf16.msra.mxu0 %v6574
    %6888 = vmatprep.subr.bf16.mxu0 0
    %6889 = vmatpush1.bf16.msra.mxu0 %v6575
    %6890 = vmatprep.subr.bf16.mxu0 0
    %6891 = vmatpush1.bf16.msra.mxu0 %v6576
    %6892 = vmatprep.subr.bf16.mxu0 0
    %6893 = vmatpush1.bf16.msra.mxu0 %v6577
    %6894 = vmatprep.subr.bf16.mxu0 0
    %6895 = vmatpush1.bf16.msra.mxu0 %v6578
    %6896 = vmatprep.subr.bf16.mxu0 0
    %6897 = vmatpush1.bf16.msra.mxu0 %v6579
    %6898 = vmatprep.subr.bf16.mxu0 0
    %6899 = vmatpush1.bf16.msra.mxu0 %v6580
    %6900 = vmatprep.subr.bf16.mxu0 0
    %6901 = vmatpush1.bf16.msra.mxu0 %v6581
    %6902 = vmatprep.mubr.bf16.mxu0 %v5746
    %6903 = vmatmul.mubr.bf16.gmra.mrb[0].mxu0 %v5745
    %v6904 = vpop.f32.mrb[0].mxu0
    %v6905 = vadd.f32 %v6865, %v6904
    %v6906 = vpop.f32.mrb[0].mxu0
    %v6907 = vpop.f32.mrb[0].mxu0
    %v6908 = vpop.f32.mrb[0].mxu0
    %6909 = vdwg.mxu0
    %6910 = vmatprep.subr.bf16.mxu0 0
    %6911 = vmatpush1.bf16.msra.mxu0 %v6582
    %6912 = vmatprep.subr.bf16.mxu0 0
    %6913 = vmatpush1.bf16.msra.mxu0 %v6583
    %6914 = vmatprep.subr.bf16.mxu0 0
    %6915 = vmatpush1.bf16.msra.mxu0 %v6584
    %6916 = vmatprep.subr.bf16.mxu0 0
    %6917 = vmatpush1.bf16.msra.mxu0 %v6585
    %6918 = vmatprep.subr.bf16.mxu0 0
    %6919 = vmatpush1.bf16.msra.mxu0 %v6586
    %6920 = vmatprep.subr.bf16.mxu0 0
    %6921 = vmatpush1.bf16.msra.mxu0 %v6587
    %6922 = vmatprep.subr.bf16.mxu0 0
    %6923 = vmatpush1.bf16.msra.mxu0 %v6588
    %6924 = vmatprep.subr.bf16.mxu0 0
    %6925 = vmatpush1.bf16.msra.mxu0 %v6589
    %6926 = vmatprep.subr.bf16.mxu0 0
    %6927 = vmatpush1.bf16.msra.mxu0 %v6590
    %6928 = vmatprep.subr.bf16.mxu0 0
    %6929 = vmatpush1.bf16.msra.mxu0 %v6591
    %6930 = vmatprep.subr.bf16.mxu0 0
    %6931 = vmatpush1.bf16.msra.mxu0 %v6592
    %6932 = vmatprep.subr.bf16.mxu0 0
    %6933 = vmatpush1.bf16.msra.mxu0 %v6593
    %6934 = vmatprep.subr.bf16.mxu0 0
    %6935 = vmatpush1.bf16.msra.mxu0 %v6594
    %6936 = vmatprep.subr.bf16.mxu0 0
    %6937 = vmatpush1.bf16.msra.mxu0 %v6595
    %6938 = vmatprep.subr.bf16.mxu0 0
    %6939 = vmatpush1.bf16.msra.mxu0 %v6596
    %6940 = vmatprep.subr.bf16.mxu0 0
    %6941 = vmatpush1.bf16.msra.mxu0 %v6597
    %6942 = vmatprep.mubr.bf16.mxu0 %v5748
    %6943 = vmatmul.mubr.bf16.gmra.mrb[0].mxu0 %v5747
    %v6944 = vpop.f32.mrb[0].mxu0
    %v6945 = vadd.f32 %v6905, %v6944
    %v6946 = vpop.f32.mrb[0].mxu0
    %v6947 = vpop.f32.mrb[0].mxu0
    %v6948 = vpop.f32.mrb[0].mxu0
    %6949 = vdwg.mxu0
    %6950 = vmatprep.subr.bf16.mxu0 0
    %6951 = vmatpush1.bf16.msra.mxu0 %v6598
    %6952 = vmatprep.subr.bf16.mxu0 0
    %6953 = vmatpush1.bf16.msra.mxu0 %v6599
    %6954 = vmatprep.subr.bf16.mxu0 0
    %6955 = vmatpush1.bf16.msra.mxu0 %v6600
    %6956 = vmatprep.subr.bf16.mxu0 0
    %6957 = vmatpush1.bf16.msra.mxu0 %v6601
    %6958 = vmatprep.subr.bf16.mxu0 0
    %6959 = vmatpush1.bf16.msra.mxu0 %v6602
    %6960 = vmatprep.subr.bf16.mxu0 0
    %6961 = vmatpush1.bf16.msra.mxu0 %v6603
    %6962 = vmatprep.subr.bf16.mxu0 0
    %6963 = vmatpush1.bf16.msra.mxu0 %v6604
    %6964 = vmatprep.subr.bf16.mxu0 0
    %6965 = vmatpush1.bf16.msra.mxu0 %v6605
    %6966 = vmatprep.subr.bf16.mxu0 0
    %6967 = vmatpush1.bf16.msra.mxu0 %v6606
    %6968 = vmatprep.subr.bf16.mxu0 0
    %6969 = vmatpush1.bf16.msra.mxu0 %v6607
    %6970 = vmatprep.subr.bf16.mxu0 0
    %6971 = vmatpush1.bf16.msra.mxu0 %v6608
    %6972 = vmatprep.subr.bf16.mxu0 0
    %6973 = vmatpush1.bf16.msra.mxu0 %v6609
    %6974 = vmatprep.subr.bf16.mxu0 0
    %6975 = vmatpush1.bf16.msra.mxu0 %v6610
    %6976 = vmatprep.subr.bf16.mxu0 0
    %6977 = vmatpush1.bf16.msra.mxu0 %v6611
    %6978 = vmatprep.subr.bf16.mxu0 0
    %6979 = vmatpush1.bf16.msra.mxu0 %v6612
    %6980 = vmatprep.subr.bf16.mxu0 0
    %6981 = vmatpush1.bf16.msra.mxu0 %v6613
    %6982 = vmatprep.mubr.bf16.mxu0 %v5750
    %6983 = vmatmul.mubr.bf16.gmra.mrb[0].mxu0 %v5749
    %v6984 = vpop.f32.mrb[0].mxu0
    %v6985 = vadd.f32 %v6945, %v6984
    %v6986 = vpop.f32.mrb[0].mxu0
    %v6987 = vpop.f32.mrb[0].mxu0
    %v6988 = vpop.f32.mrb[0].mxu0
    %6989 = vdwg.mxu0
    %6990 = vmatprep.subr.bf16.mxu0 0
    %6991 = vmatpush1.bf16.msra.mxu0 %v6614
    %6992 = vmatprep.subr.bf16.mxu0 0
    %6993 = vmatpush1.bf16.msra.mxu0 %v6615
    %6994 = vmatprep.subr.bf16.mxu0 0
    %6995 = vmatpush1.bf16.msra.mxu0 %v6616
    %6996 = vmatprep.subr.bf16.mxu0 0
    %6997 = vmatpush1.bf16.msra.mxu0 %v6617
    %6998 = vmatprep.subr.bf16.mxu0 0
    %6999 = vmatpush1.bf16.msra.mxu0 %v6618
    %7000 = vmatprep.subr.bf16.mxu0 0
    %7001 = vmatpush1.bf16.msra.mxu0 %v6619
    %7002 = vmatprep.subr.bf16.mxu0 0
    %7003 = vmatpush1.bf16.msra.mxu0 %v6620
    %7004 = vmatprep.subr.bf16.mxu0 0
    %7005 = vmatpush1.bf16.msra.mxu0 %v6621
    %7006 = vmatprep.subr.bf16.mxu0 0
    %7007 = vmatpush1.bf16.msra.mxu0 %v6622
    %7008 = vmatprep.subr.bf16.mxu0 0
    %7009 = vmatpush1.bf16.msra.mxu0 %v6623
    %7010 = vmatprep.subr.bf16.mxu0 0
    %7011 = vmatpush1.bf16.msra.mxu0 %v6624
    %7012 = vmatprep.subr.bf16.mxu0 0
    %7013 = vmatpush1.bf16.msra.mxu0 %v6625
    %7014 = vmatprep.subr.bf16.mxu0 0
    %7015 = vmatpush1.bf16.msra.mxu0 %v6626
    %7016 = vmatprep.subr.bf16.mxu0 0
    %7017 = vmatpush1.bf16.msra.mxu0 %v6627
    %7018 = vmatprep.subr.bf16.mxu0 0
    %7019 = vmatpush1.bf16.msra.mxu0 %v6628
    %7020 = vmatprep.subr.bf16.mxu0 0
    %7021 = vmatpush1.bf16.msra.mxu0 %v6629
    %7022 = vmatprep.mubr.bf16.mxu0 %v5752
    %7023 = vmatmul.mubr.bf16.gmra.mrb[0].mxu0 %v5751
    %v7024 = vpop.f32.mrb[0].mxu0
    %v7025 = vadd.f32 %v6985, %v7024
    %v7026 = vpop.f32.mrb[0].mxu0
    %v7027 = vpop.f32.mrb[0].mxu0
    %v7028 = vpop.f32.mrb[0].mxu0
    %7029 = vdwg.mxu0
    %7030 = vmatprep.subr.bf16.mxu0 0
    %7031 = vmatpush1.bf16.msra.mxu0 %v6630
    %7032 = vmatprep.subr.bf16.mxu0 0
    %7033 = vmatpush1.bf16.msra.mxu0 %v6631
    %7034 = vmatprep.subr.bf16.mxu0 0
    %7035 = vmatpush1.bf16.msra.mxu0 %v6632
    %7036 = vmatprep.subr.bf16.mxu0 0
    %7037 = vmatpush1.bf16.msra.mxu0 %v6633
    %7038 = vmatprep.subr.bf16.mxu0 0
    %7039 = vmatpush1.bf16.msra.mxu0 %v6634
    %7040 = vmatprep.subr.bf16.mxu0 0
    %7041 = vmatpush1.bf16.msra.mxu0 %v6635
    %7042 = vmatprep.subr.bf16.mxu0 0
    %7043 = vmatpush1.bf16.msra.mxu0 %v6636
    %7044 = vmatprep.subr.bf16.mxu0 0
    %7045 = vmatpush1.bf16.msra.mxu0 %v6637
    %7046 = vmatprep.subr.bf16.mxu0 0
    %7047 = vmatpush1.bf16.msra.mxu0 %v6638
    %7048 = vmatprep.subr.bf16.mxu0 0
    %7049 = vmatpush1.bf16.msra.mxu0 %v6639
    %7050 = vmatprep.subr.bf16.mxu0 0
    %7051 = vmatpush1.bf16.msra.mxu0 %v6640
    %7052 = vmatprep.subr.bf16.mxu0 0
    %7053 = vmatpush1.bf16.msra.mxu0 %v6641
    %7054 = vmatprep.subr.bf16.mxu0 0
    %7055 = vmatpush1.bf16.msra.mxu0 %v6642
    %7056 = vmatprep.subr.bf16.mxu0 0
    %7057 = vmatpush1.bf16.msra.mxu0 %v6643
    %7058 = vmatprep.subr.bf16.mxu0 0
    %7059 = vmatpush1.bf16.msra.mxu0 %v6644
    %7060 = vmatprep.subr.bf16.mxu0 0
    %7061 = vmatpush1.bf16.msra.mxu0 %v6645
    %7062 = vmatprep.mubr.bf16.mxu0 %v5754
    %7063 = vmatmul.mubr.bf16.gmra.mrb[0].mxu0 %v5753
    %v7064 = vpop.f32.mrb[0].mxu0
    %v7065 = vadd.f32 %v7025, %v7064
    %v7066 = vpop.f32.mrb[0].mxu0
    %v7067 = vpop.f32.mrb[0].mxu0
    %v7068 = vpop.f32.mrb[0].mxu0
    %7069 = vdwg.mxu0
    %7070 = vmatprep.subr.bf16.mxu0 0
    %7071 = vmatpush1.bf16.msra.mxu0 %v6646
    %7072 = vmatprep.subr.bf16.mxu0 0
    %7073 = vmatpush1.bf16.msra.mxu0 %v6647
    %7074 = vmatprep.subr.bf16.mxu0 0
    %7075 = vmatpush1.bf16.msra.mxu0 %v6648
    %7076 = vmatprep.subr.bf16.mxu0 0
    %7077 = vmatpush1.bf16.msra.mxu0 %v6649
    %7078 = vmatprep.subr.bf16.mxu0 0
    %7079 = vmatpush1.bf16.msra.mxu0 %v6650
    %7080 = vmatprep.subr.bf16.mxu0 0
    %7081 = vmatpush1.bf16.msra.mxu0 %v6651
    %7082 = vmatprep.subr.bf16.mxu0 0
    %7083 = vmatpush1.bf16.msra.mxu0 %v6652
    %7084 = vmatprep.subr.bf16.mxu0 0
    %7085 = vmatpush1.bf16.msra.mxu0 %v6653
    %7086 = vmatprep.subr.bf16.mxu0 0
    %7087 = vmatpush1.bf16.msra.mxu0 %v6654
    %7088 = vmatprep.subr.bf16.mxu0 0
    %7089 = vmatpush1.bf16.msra.mxu0 %v6655
    %7090 = vmatprep.subr.bf16.mxu0 0
    %7091 = vmatpush1.bf16.msra.mxu0 %v6656
    %7092 = vmatprep.subr.bf16.mxu0 0
    %7093 = vmatpush1.bf16.msra.mxu0 %v6657
    %7094 = vmatprep.subr.bf16.mxu0 0
    %7095 = vmatpush1.bf16.msra.mxu0 %v6658
    %7096 = vmatprep.subr.bf16.mxu0 0
    %7097 = vmatpush1.bf16.msra.mxu0 %v6659
    %7098 = vmatprep.subr.bf16.mxu0 0
    %7099 = vmatpush1.bf16.msra.mxu0 %v6660
    %7100 = vmatprep.subr.bf16.mxu0 0
    %7101 = vmatpush1.bf16.msra.mxu0 %v6661
    %7102 = vmatprep.mubr.bf16.mxu0 %v5756
    %7103 = vmatmul.mubr.bf16.gmra.mrb[0].mxu0 %v5755
    %v7104 = vpop.f32.mrb[0].mxu0
    %v7105 = vadd.f32 %v7065, %v7104
    %v7106 = vpop.f32.mrb[0].mxu0
    %v7107 = vpop.f32.mrb[0].mxu0
    %v7108 = vpop.f32.mrb[0].mxu0
    %7109 = vdwg.mxu0
    %v7110 = vadd.f32 %v4922, %v7105
    %s7111 = scalar_lea.vmem %s11, 2
    %v7112 = vld [vmem:[%s7111] sm:$0x1]
    %s7113 = scalar_lea.vmem %s12, 2
    %v7114 = vld [vmem:[%s7113] sm:$0x1]
    %v7115 = vsel %vm182, %v7110, 0.0
    %7116 = vadd.xlane.f32.xlu0 %v7115
    %v7117 = vpop.xlane.xlu0 %7116
    %v7118 = vmul.f32 %v7117, %v232
    %v7119 = vsub.f32 %v7110, %v7118
    %v7120 = vmul.f32 %v7119, %v7119
    %v7121 = vsel %vm182, %v7120, 0.0
    %7122 = vadd.xlane.f32.xlu0 %v7121
    %v7123 = vpop.xlane.xlu0 %7122
    %v7124 = vmul.f32 %v7123, %v232
    %v7125 = vadd.f32 %v7124, 1e-05
    %v7126 = vrsqrt.pop %v7125
    %v7127 = vmul.f32 %v7119, %v7126
    %v7129 = vlaneseq
    %v7130 = vshrl.u32 %v7129, 7
    %v7131 = vsub.s32 0, %v7130
    %v7132 = vrot.slane %v7112, %v7131
    %v7134 = vmul.f32 %v7127, %v7132
    %v7136 = vlaneseq
    %v7137 = vshrl.u32 %v7136, 7
    %v7138 = vsub.s32 0, %v7137
    %v7139 = vrot.slane %v7114, %v7138
    %v7141 = vadd.f32 %v7134, %v7139
    %v7142 = vld [vmem:[%s13] sm:$0xff]
    %v7143 = vld [vmem:[%s13 + $0x8] sm:$0xff]
    %v7144 = vld [vmem:[%s13 + $0x10] sm:$0xff]
    %v7145 = vld [vmem:[%s13 + $0x18] sm:$0xff]
    %v7146 = vld [vmem:[%s13 + $0x20] sm:$0xff]
    %v7147 = vld [vmem:[%s13 + $0x28] sm:$0xff]
    %v7148 = vld [vmem:[%s13 + $0x30] sm:$0xff]
    %v7149 = vld [vmem:[%s13 + $0x38] sm:$0xff]
    %v7150 = vld [vmem:[%s14] sm:$0x1]
    %v7152 = vlaneseq
    %v7153 = vshrl.u32 %v7152, 7
    %v7154 = vsub.s32 0, %v7153
    %v7155 = vrot.slane %v7150, %v7154
    %v7158 = vsel %vm182, %v7141, 0
    %7160 = vmatprep.subr.mxu0 0.0
    %7161 = vmatpush1.msra.mxu0 %v7142
    %7162 = vmatprep.subr.mxu0 0.0
    %7163 = vmatpush1.msra.mxu0 %v7143
    %7164 = vmatprep.subr.mxu0 0.0
    %7165 = vmatpush1.msra.mxu0 %v7144
    %7166 = vmatprep.subr.mxu0 0.0
    %7167 = vmatpush1.msra.mxu0 %v7145
    %7168 = vmatprep.subr.mxu0 0.0
    %7169 = vmatpush1.msra.mxu0 %v7146
    %7170 = vmatprep.subr.mxu0 0.0
    %7171 = vmatpush1.msra.mxu0 %v7147
    %7172 = vmatprep.subr.mxu0 0.0
    %7173 = vmatpush1.msra.mxu0 %v7148
    %7174 = vmatprep.subr.mxu0 0.0
    %7175 = vmatpush1.msra.mxu0 %v7149
    %7176 = vmatprep.subr.mxu0 0.0
    %7177 = vmatpush1.msra.mxu0 0.0
    %7178 = vmatprep.subr.mxu0 0.0
    %7179 = vmatpush1.msra.mxu0 0.0
    %7180 = vmatprep.subr.mxu0 0.0
    %7181 = vmatpush1.msra.mxu0 0.0
    %7182 = vmatprep.subr.mxu0 0.0
    %7183 = vmatpush1.msra.mxu0 0.0
    %7184 = vmatprep.subr.mxu0 0.0
    %7185 = vmatpush1.msra.mxu0 0.0
    %7186 = vmatprep.subr.mxu0 0.0
    %7187 = vmatpush1.msra.mxu0 0.0
    %7188 = vmatprep.subr.mxu0 0.0
    %7189 = vmatpush1.msra.mxu0 0.0
    %7190 = vmatprep.subr.mxu0 0.0
    %7191 = vmatpush1.msra.mxu0 0.0
    %7192 = vmatprep.subr.mxu0 0.0
    %7193 = vmatpush1.msra.mxu0 0.0
    %7194 = vmatprep.subr.mxu0 0.0
    %7195 = vmatpush1.msra.mxu0 0.0
    %7196 = vmatprep.subr.mxu0 0.0
    %7197 = vmatpush1.msra.mxu0 0.0
    %7198 = vmatprep.subr.mxu0 0.0
    %7199 = vmatpush1.msra.mxu0 0.0
    %7200 = vmatprep.subr.mxu0 0.0
    %7201 = vmatpush1.msra.mxu0 0.0
    %7202 = vmatprep.subr.mxu0 0.0
    %7203 = vmatpush1.msra.mxu0 0.0
    %7204 = vmatprep.subr.mxu0 0.0
    %7205 = vmatpush1.msra.mxu0 0.0
    %7206 = vmatprep.subr.mxu0 0.0
    %7207 = vmatpush1.msra.mxu0 0.0
    %7208 = vmatprep.subr.mxu0 0.0
    %7209 = vmatpush1.msra.mxu0 0.0
    %7210 = vmatprep.subr.mxu0 0.0
    %7211 = vmatpush1.msra.mxu0 0.0
    %7212 = vmatprep.subr.mxu0 0.0
    %7213 = vmatpush1.msra.mxu0 0.0
    %7214 = vmatprep.subr.mxu0 0.0
    %7215 = vmatpush1.msra.mxu0 0.0
    %7216 = vmatprep.subr.mxu0 0.0
    %7217 = vmatpush1.msra.mxu0 0.0
    %7218 = vmatprep.subr.mxu0 0.0
    %7219 = vmatpush1.msra.mxu0 0.0
    %7220 = vmatprep.subr.mxu0 0.0
    %7221 = vmatpush1.msra.mxu0 0.0
    %7222 = vmatprep.subr.mxu0 0.0
    %7223 = vmatpush1.msra.mxu0 0.0
    %7224 = vmatprep.mubr.f32.mxu0 0.0
    %7225 = vmatmul.mubr.f32.gmra.mrb[0].mxu0 %v7158
    %v7226 = vpop.f32.mrb[0].mxu0
    %v7227 = vadd.f32 %v7155, %v7226
    %v7228 = vpop.f32.mrb[0].mxu0
    %7229 = vdwg.mxu0
    %v7230 = vxor.u32 %v7227, 2147483648
    %v7231 = vmul.f32 %v7230, 1.442695
    %v7232 = vpow.pop %v7231
    %v7233 = vadd.f32 %v7232, 1.0
    %v7234 = vrcp.pop %v7233
    %v7235 = vmul.f32 1.0, %v7234
    %7236 = vst [vmem:[#allocation2] sm:$0xff] %v7235
    // Predicated region
    $region62: #{tpu_custom_call.1} parent=1 // pred_check
      _
    $region63: #{tpu_custom_call.1} parent=1 // pred_check_branch
      %7238 = sbr.rel (0) target = $region65
    $region64: #{tpu_custom_call.1} parent=1 // pred_region
      %s7240 = ssub.s32 128, 128
      %7241 = vsyncadd [#allocation3], %s7240
      %s7243 = sshll.u32 [#allocation2], 4
      %s7244 = int_to_ptr.vmem [resolvable:$true] %s7243
      %7246 = dma.vmem_to_hbm [thread:$0]  %s7244, 128, %s15, [#allocation3]
    $region65: #{tpu_custom_call.1} parent=1 // pred_fallthru
      _
    // Predicated region
    $region66: #{tpu_custom_call.1} parent=1 // pred_check
      _
    $region67: #{tpu_custom_call.1} parent=1 // pred_check_branch
      %7248 = sbr.rel (0) target = $region69
    $region68: #{tpu_custom_call.1} parent=1 // pred_region
      %7249 = dma.done [#allocation3], 128
    $region69: #{tpu_custom_call.1} parent=1 // pred_fallthru
      _
    %7250 = vsyncpa [#allocation3], 1

</llo_original>
